<compile_context>
chip_gen: v5e
topology: v5e:2x2
jax: 0.10.0
libtpu: 0.0.40
codegen_flags: <defaults>
</compile_context>

<pallas_src>
import functools
import math

import numpy as np

import jax
import jax.numpy as jnp
from jax.experimental import pallas as pl
from jax.experimental.pallas import tpu as pltpu


# ---------------------------------------------------------------------------
# Grid-partition helpers (channels-last; pure layout, XLA) + reference helpers
# ---------------------------------------------------------------------------

def _window_partition_cl(x, ps):
    B, H, W, C = x.shape
    ph, pw = ps
    x = x.reshape(B, H // ph, ph, W // pw, pw, C)
    x = jnp.transpose(x, (0, 1, 3, 2, 4, 5))
    return x.reshape(B * (H // ph) * (W // pw), ph * pw, C)


def _window_reverse_cl(win, ps, img_size, B):
    ph, pw = ps
    H, W = img_size
    C = win.shape[-1]
    x = win.reshape(B, H // ph, W // pw, ph, pw, C)
    x = jnp.transpose(x, (0, 1, 3, 2, 4, 5))
    return x.reshape(B, H, W, C)


def _grid_partition_cl(x, gs):
    B, H, W, C = x.shape
    gh, gw = gs
    x = x.reshape(B, gh, H // gh, gw, W // gw, C)
    x = jnp.transpose(x, (0, 2, 4, 1, 3, 5))
    return x.reshape(B * (H // gh) * (W // gw), gh * gw, C)


def _grid_reverse_cl(win, gs, img_size, B):
    gh, gw = gs
    H, W = img_size
    C = win.shape[-1]
    x = win.reshape(B, H // gh, W // gw, gh, gw, C)
    x = jnp.transpose(x, (0, 3, 1, 4, 2, 5))
    return x.reshape(B, H, W, C)


# ---------------------------------------------------------------------------
# Fused Pallas kernel: norm1 + windowed MHA + proj + residual + norm2 + MLP + residual
# ---------------------------------------------------------------------------

def _layernorm(x, gamma, beta, eps):
    mu = jnp.mean(x, axis=-1, keepdims=True)
    var = jnp.mean(jnp.square(x - mu), axis=-1, keepdims=True)
    return (x - mu) * jax.lax.rsqrt(var + eps) * gamma + beta


def _fused_kernel(x_ref, bias_ref, g1_ref, be1_ref, wqkv_ref, bqkv_ref,
                  wproj_ref, bproj_ref, g2_ref, be2_ref, w1_ref, b1_ref,
                  w2_ref, b2_ref, o_ref, *, num_heads, dim_head, scale, eps):
    sh, wc, C = x_ref.shape
    T = sh * wc
    DA = num_heads * dim_head
    bf16 = jnp.bfloat16

    x = x_ref[...].astype(jnp.float32).reshape(T, C)           # f32 residual carrier

    # ---- attention branch: norm1 -> qkv -> masked MHA -> proj -> +residual --
    xn = _layernorm(x, g1_ref[...], be1_ref[...], eps)
    qkv = (jnp.dot(xn.astype(bf16), wqkv_ref[...],
                   preferred_element_type=jnp.float32) + bqkv_ref[...])
    qkv = qkv.astype(bf16)                                      # single downcast
    q = qkv[:, 0 * DA:1 * DA]                                   # 128-lane aligned
    k = qkv[:, 1 * DA:2 * DA]
    v = qkv[:, 2 * DA:3 * DA]

    bias = bias_ref[...]                                        # (T,T): 0 in-window, -1e30 across
    lane = jax.lax.broadcasted_iota(jnp.int32, (1, DA), 1)
    o = jnp.zeros((T, DA), jnp.float32)
    for h in range(num_heads):                                  # static unroll
        band = jnp.logical_and(lane >= h * dim_head, lane < (h + 1) * dim_head)
        qh = jnp.where(band, q, jnp.zeros((), bf16))            # select head's 32 lanes
        vh = jnp.where(band, v, jnp.zeros((), bf16))
        # Full (T,DA)x(DA,T) MXU matmul; off-head lanes contribute zero.
        s = jnp.einsum("nc,mc->nm", qh, k,
                       preferred_element_type=jnp.float32) * scale + bias
        s = s - jnp.max(s, axis=-1, keepdims=True)              # f32 softmax stats
        p = jnp.exp(s)
        p = p * pl.reciprocal(jnp.sum(p, axis=-1, keepdims=True), approx=True)
        o = o + jnp.einsum("nm,mc->nc", p.astype(bf16), vh,
                           preferred_element_type=jnp.float32)
    y1 = x + (jnp.dot(o.astype(bf16), wproj_ref[...],
                      preferred_element_type=jnp.float32) + bproj_ref[...])

    # ---- MLP branch: norm2 -> fc1 -> GELU -> fc2 -> +residual ----------------
    yn = _layernorm(y1, g2_ref[...], be2_ref[...], eps)
    hid = (jnp.dot(yn.astype(bf16), w1_ref[...],
                   preferred_element_type=jnp.float32) + b1_ref[...])
    hid = jax.nn.gelu(hid, approximate=True)                    # tanh approx (EUP)
    y2 = y1 + (jnp.dot(hid.astype(bf16), w2_ref[...],
                       preferred_element_type=jnp.float32) + b2_ref[...])

    o_ref[...] = y2.reshape(sh, wc, C).astype(o_ref.dtype)


def _full_spec(shape):
    nd = len(shape)
    return pl.BlockSpec(shape, lambda i, _nd=nd: (0,) * _nd)


def _make_window_bias(sh, wc, ph, pw):
    """Additive attention bias over strip-ordered tokens: 0 inside a (ph,pw)
    window, -1e30 across windows.  (Hook: a per-head RelPosBias can be folded
    in here without kernel changes.)"""
    rr, cc = np.meshgrid(np.arange(sh), np.arange(wc), indexing="ij")
    wid = ((rr // ph) * (wc // pw) + (cc // pw)).reshape(-1)
    same = wid[:, None] == wid[None, :]
    return jnp.asarray(np.where(same, 0.0, -1e30), dtype=jnp.float32)


def _fused_rows(rows, params, *, ph, pw, num_heads, dim_head, eps):
    """rows: (R, Wc, C) channels-last row-strips; every ph consecutive rows form
    independent (ph, pw) attention windows.  Returns the full fused block."""
    R, Wc, C = rows.shape
    assert R % ph == 0 and Wc % pw == 0
    dim_attn = num_heads * dim_head
    hidden = params["w_fc1"].shape[1]
    total_rg = R // ph                         # independent ph-row groups
    tok_per_rg = ph * Wc

    # ---- tile sizing from the true VMEM working set (per-generation budget) --
    try:
        vmem_cap = int(pltpu.get_tpu_info().vmem_capacity_bytes)
    except Exception:
        vmem_cap = 64 << 20                    # v7x-sized conservative fallback
    budget = min(vmem_cap // 4, 20 << 20)
    base_per_tok = 36 * C + 22 * dim_attn + 6 * hidden   # linear live terms (bytes/token)

    nrow = 1
    for d in range(1, total_rg + 1):
        if total_rg % d:
            continue                           # tile must divide NW: no masked remainder
        t = d * tok_per_rg
        if t > 1024:
            continue                           # bound (T,T) scores / flop inflation
        if t * base_per_tok + 10 * t * t > budget:
            continue
        if total_rg // d < 2 and total_rg >= 2:
            continue                           # keep >=2 grid steps for v7x megacore
        nrow = d
    sh = nrow * ph
    tokens = sh * Wc
    grid = (total_rg // nrow,)

    bias = _make_window_bias(sh, Wc, ph, pw)   # (T, T) f32 constant, same every step

    f32, bf16 = jnp.float32, jnp.bfloat16
    args = (
        rows,
        bias,
        params["ln1_g"].reshape(1, C).astype(f32),
        params["ln1_b"].reshape(1, C).astype(f32),
        params["w_qkv"].astype(bf16),
        params["b_qkv"].reshape(1, 3 * dim_attn).astype(f32),
        params["w_proj"].astype(bf16),
        params["b_proj"].reshape(1, C).astype(f32),
        params["ln2_g"].reshape(1, C).astype(f32),
        params["ln2_b"].reshape(1, C).astype(f32),
        params["w_fc1"].astype(bf16),
        params["b_fc1"].reshape(1, hidden).astype(f32),
        params["w_fc2"].astype(bf16),
        params["b_fc2"].reshape(1, C).astype(f32),
    )
    row_spec = pl.BlockSpec((sh, Wc, C), lambda i: (i, 0, 0))
    in_specs = [row_spec] + [_full_spec(a.shape) for a in args[1:]]

    const_bytes = sum(a.size * a.dtype.itemsize for a in args[1:])
    est = tokens * base_per_tok + 10 * tokens * tokens + 2 * const_bytes
    vmem_limit = int(min(vmem_cap * 3 // 4, max(32 << 20, 2 * est)))

    # advisory cost estimate so XLA schedules the surrounding layout ops well
    t_total = R * Wc
    flops = (2 * t_total * C * (3 * dim_attn + dim_attn + 2 * hidden)
             + grid[0] * num_heads * 4 * tokens * tokens * dim_head)
    transcendentals = grid[0] * num_heads * tokens * tokens + t_total * hidden
    bytes_accessed = 2 * t_total * C * 4 + const_bytes

    kernel = functools.partial(
        _fused_kernel, num_heads=num_heads, dim_head=dim_head,
        scale=dim_head ** (-0.5), eps=eps)

    return pl.pallas_call(
        kernel,
        out_shape=jax.ShapeDtypeStruct((R, Wc, C), rows.dtype),
        grid=grid,
        in_specs=in_specs,
        out_specs=row_spec,
        compiler_params=pltpu.CompilerParams(
            dimension_semantics=("parallel",),
            vmem_limit_bytes=vmem_limit),
        cost_estimate=pl.CostEstimate(
            flops=int(flops),
            transcendentals=int(transcendentals),
            bytes_accessed=int(bytes_accessed)),
    )(*args)


# ---------------------------------------------------------------------------
# Full PartitionAttention2d forward (NCHW in / NCHW out)
# ---------------------------------------------------------------------------

def partition_attention_2d_forward(x_nchw, params, *, partition_size,
                                   partition_block=True, num_heads, dim_head,
                                   eps=1e-6):
    B, C, H, W = x_nchw.shape
    x = jnp.transpose(x_nchw, (0, 2, 3, 1))                  # NCHW -> NHWC (lane = C)
    if partition_block:
        ph, pw = partition_size
        assert H % ph == 0 and W % pw == 0
        # Window partition/reverse is fused into the kernel: row-strip BlockSpec
        # plus an in-kernel block-diagonal attention mask.
        rows = x.reshape(B * H, W, C)
        out = _fused_rows(rows, params, ph=ph, pw=pw,
                          num_heads=num_heads, dim_head=dim_head, eps=eps)
        y = out.reshape(B, H, W, C)
    else:
        # TODO(synk): grid windows are strided; partition/reverse stays in XLA.
        win = _grid_partition_cl(x, partition_size)           # (NW, N, C)
        NW, N, _ = win.shape
        rows = win.reshape(NW * N, 1, C)
        out = _fused_rows(rows, params, ph=N, pw=1,
                          num_heads=num_heads, dim_head=dim_head, eps=eps)
        y = _grid_reverse_cl(out.reshape(NW, N, C), partition_size, (H, W), B)
    return jnp.transpose(y, (0, 3, 1, 2))                     # back to NCHW


# ---------------------------------------------------------------------------
# Parameters (PyTorch Conv2d-1x1 / LayerNorm style init)
# NOTE: w_qkv/b_qkv columns are laid out [Q_allheads | K_allheads | V_allheads]
# (heads contiguous inside each block).  Loading timm's head-first interleaved
# checkpoint requires a one-time column permutation into this layout.
# ---------------------------------------------------------------------------

def init_params(key, dim, dim_head, num_heads, expand_ratio=4.0):
    dim_attn = num_heads * dim_head
    hidden = int(dim * expand_ratio)
    ks = jax.random.split(key, 8)

    def u(k, shape, fan_in):
        b = 1.0 / math.sqrt(fan_in)
        return jax.random.uniform(k, shape, jnp.float32, -b, b)

    return {
        "ln1_g": jnp.ones((dim,), jnp.float32),
        "ln1_b": jnp.zeros((dim,), jnp.float32),
        "w_qkv": u(ks[0], (dim, 3 * dim_attn), dim),
        "b_qkv": u(ks[1], (3 * dim_attn,), dim),
        "w_proj": u(ks[2], (dim_attn, dim), dim_attn),
        "b_proj": u(ks[3], (dim,), dim_attn),
        "ln2_g": jnp.ones((dim,), jnp.float32),
        "ln2_b": jnp.zeros((dim,), jnp.float32),
        "w_fc1": u(ks[4], (dim, hidden), dim),
        "b_fc1": u(ks[5], (hidden,), dim),
        "w_fc2": u(ks[6], (hidden, dim), hidden),
        "b_fc2": u(ks[7], (dim,), hidden),
    }


# ---------------------------------------------------------------------------
# Pure-JAX f32 reference of the same forward pass
# ---------------------------------------------------------------------------

def _reference_forward(x_nchw, params, *, partition_size, partition_block,
                       num_heads, dim_head, eps):
    B, C, H, W = x_nchw.shape
    DA = num_heads * dim_head
    x = jnp.transpose(x_nchw, (0, 2, 3, 1))

    def ln(t, g, b):
        mu = t.mean(-1, keepdims=True)
        var = jnp.square(t - mu).mean(-1, keepdims=True)
        return (t - mu) / jnp.sqrt(var + eps) * g + b

    part = _window_partition_cl if partition_block else _grid_partition_cl
    rev = _window_reverse_cl if partition_block else _grid_reverse_cl

    xn = ln(x, params["ln1_g"], params["ln1_b"])
    win = part(xn, partition_size)                            # (NW, N, C)
    NW, N, _ = win.shape
    qkv = win @ params["w_qkv"] + params["b_qkv"]             # [Q | K | V] layout
    q, k, v = jnp.split(qkv, 3, axis=-1)

    def heads(t):
        return t.reshape(NW, N, num_heads, dim_head).transpose(0, 2, 1, 3)

    q, k, v = heads(q), heads(k), heads(v)
    attn = jax.nn.softmax((q * dim_head ** -0.5) @ jnp.swapaxes(k, -1, -2), axis=-1)
    o = (attn @ v).transpose(0, 2, 1, 3).reshape(NW, N, DA)
    o = o @ params["w_proj"] + params["b_proj"]
    y1 = x + rev(o, partition_size, (H, W), B)

    yn = ln(y1, params["ln2_g"], params["ln2_b"])
    hid = jax.nn.gelu(yn @ params["w_fc1"] + params["b_fc1"], approximate=True)
    y2 = y1 + hid @ params["w_fc2"] + params["b_fc2"]
    return jnp.transpose(y2, (0, 3, 1, 2))


if __name__ == "__main__":
    # Module config: dim=128, dim_head=32 -> num_heads=4, window_size=(4,4),
    # partition_type='block'.  Input is NCHW: (B=2, C=128, H=16, W=16).
    dim = 128
    dim_head = 32
    num_heads = dim // dim_head
    B, H, W = 2, 16, 16
    partition_size = (4, 4)
    eps = 1e-6

    key = jax.random.PRNGKey(0)
    kx, kp = jax.random.split(key)
    x = jax.random.normal(kx, (B, dim, H, W), dtype=jnp.float32)
    params = init_params(kp, dim, dim_head, num_heads, expand_ratio=4.0)

    fwd = jax.jit(functools.partial(
        partition_attention_2d_forward,
        partition_size=partition_size, partition_block=True,
        num_heads=num_heads, dim_head=dim_head, eps=eps))

    out = jax.block_until_ready(fwd(x, params))
    assert out.shape == (B, dim, H, W), out.shape
    assert bool(jnp.all(jnp.isfinite(out)))

    # Correctness vs pure-f32 JAX reference (kernel uses bf16 MXU inputs with
    # f32 accumulation + approx EUP reciprocal): relative-L2 and element-wise
    # max-abs gates.
    ref = _reference_forward(x, params, partition_size=partition_size,
                             partition_block=True, num_heads=num_heads,
                             dim_head=dim_head, eps=eps)
    rel_err = float(jnp.linalg.norm(out - ref) / jnp.linalg.norm(ref))
    max_abs = float(jnp.max(jnp.abs(out - ref)))
    assert rel_err < 2e-2, f"relative L2 error too large: {rel_err}"
    assert max_abs < 7.5e-2, f"max abs error too large: {max_abs}"

    print("KERNEL_OK")
</pallas_src>

<mosaic_0001>
module attributes {stable_mosaic.version = 11 : i64} {
  func.func @_fused_kernel(%arg0: i32, %arg1: memref<16x16x128xf32, #tpu.memory_space<vmem>>, %arg2: memref<256x256xf32, #tpu.memory_space<vmem>>, %arg3: memref<1x128xf32, #tpu.memory_space<vmem>>, %arg4: memref<1x128xf32, #tpu.memory_space<vmem>>, %arg5: memref<128x384xbf16, #tpu.memory_space<vmem>>, %arg6: memref<1x384xf32, #tpu.memory_space<vmem>>, %arg7: memref<128x128xbf16, #tpu.memory_space<vmem>>, %arg8: memref<1x128xf32, #tpu.memory_space<vmem>>, %arg9: memref<1x128xf32, #tpu.memory_space<vmem>>, %arg10: memref<1x128xf32, #tpu.memory_space<vmem>>, %arg11: memref<128x512xbf16, #tpu.memory_space<vmem>>, %arg12: memref<1x512xf32, #tpu.memory_space<vmem>>, %arg13: memref<512x128xbf16, #tpu.memory_space<vmem>>, %arg14: memref<1x128xf32, #tpu.memory_space<vmem>>, %arg15: memref<16x16x128xf32, #tpu.memory_space<vmem>>) attributes {dimension_semantics = [#tpu.dimension_semantics<parallel>], iteration_bounds = array<i64: 2>, scalar_prefetch = 0 : i64, scratch_operands = 0 : i64, tpu.core_type = #tpu.core_type<tc>, window_params = [{transform_indices = @transform_0, window_bounds = array<i64: 16, 16, 128>}, {pipeline_mode = #tpu.pipeline_mode<synchronous>, transform_indices = @transform_1, window_bounds = array<i64: 256, 256>}, {pipeline_mode = #tpu.pipeline_mode<synchronous>, transform_indices = @transform_2, window_bounds = array<i64: 1, 128>}, {pipeline_mode = #tpu.pipeline_mode<synchronous>, transform_indices = @transform_3, window_bounds = array<i64: 1, 128>}, {pipeline_mode = #tpu.pipeline_mode<synchronous>, transform_indices = @transform_4, window_bounds = array<i64: 128, 384>}, {pipeline_mode = #tpu.pipeline_mode<synchronous>, transform_indices = @transform_5, window_bounds = array<i64: 1, 384>}, {pipeline_mode = #tpu.pipeline_mode<synchronous>, transform_indices = @transform_6, window_bounds = array<i64: 128, 128>}, {pipeline_mode = #tpu.pipeline_mode<synchronous>, transform_indices = @transform_7, window_bounds = array<i64: 1, 128>}, {pipeline_mode = #tpu.pipeline_mode<synchronous>, transform_indices = @transform_8, window_bounds = array<i64: 1, 128>}, {pipeline_mode = #tpu.pipeline_mode<synchronous>, transform_indices = @transform_9, window_bounds = array<i64: 1, 128>}, {pipeline_mode = #tpu.pipeline_mode<synchronous>, transform_indices = @transform_10, window_bounds = array<i64: 128, 512>}, {pipeline_mode = #tpu.pipeline_mode<synchronous>, transform_indices = @transform_11, window_bounds = array<i64: 1, 512>}, {pipeline_mode = #tpu.pipeline_mode<synchronous>, transform_indices = @transform_12, window_bounds = array<i64: 512, 128>}, {pipeline_mode = #tpu.pipeline_mode<synchronous>, transform_indices = @transform_13, window_bounds = array<i64: 1, 128>}, {transform_indices = @transform_14, window_bounds = array<i64: 16, 16, 128>}]} {
    %c0 = arith.constant 0 : index
    %c0_0 = arith.constant 0 : index
    %c0_1 = arith.constant 0 : index
    %0 = vector.load %arg1[%c0, %c0_0, %c0_1] : memref<16x16x128xf32, #tpu.memory_space<vmem>>, vector<16x16x128xf32>
    %1 = vector.shape_cast %0 : vector<16x16x128xf32> to vector<256x128xf32>
    %c0_2 = arith.constant 0 : index
    %c0_3 = arith.constant 0 : index
    %2 = vector.load %arg3[%c0_2, %c0_3] : memref<1x128xf32, #tpu.memory_space<vmem>>, vector<1x128xf32>
    %c0_4 = arith.constant 0 : index
    %c0_5 = arith.constant 0 : index
    %3 = vector.load %arg4[%c0_4, %c0_5] : memref<1x128xf32, #tpu.memory_space<vmem>>, vector<1x128xf32>
    %cst = arith.constant dense<0.000000e+00> : vector<256xf32>
    %4 = vector.multi_reduction <add>, %1, %cst [1] : vector<256x128xf32> to vector<256xf32>
    %5 = vector.shape_cast %4 : vector<256xf32> to vector<256x1xf32>
    %cst_6 = arith.constant 1.280000e+02 : f32
    %6 = vector.broadcast %cst_6 : f32 to vector<256x1xf32>
    %7 = arith.divf %5, %6 : vector<256x1xf32>
    %8 = vector.broadcast %7 : vector<256x1xf32> to vector<256x128xf32>
    %9 = arith.subf %1, %8 : vector<256x128xf32>
    %10 = arith.mulf %9, %9 : vector<256x128xf32>
    %cst_7 = arith.constant dense<0.000000e+00> : vector<256xf32>
    %11 = vector.multi_reduction <add>, %10, %cst_7 [1] : vector<256x128xf32> to vector<256xf32>
    %12 = vector.shape_cast %11 : vector<256xf32> to vector<256x1xf32>
    %cst_8 = arith.constant 1.280000e+02 : f32
    %13 = vector.broadcast %cst_8 : f32 to vector<256x1xf32>
    %14 = arith.divf %12, %13 : vector<256x1xf32>
    %15 = vector.broadcast %7 : vector<256x1xf32> to vector<256x128xf32>
    %16 = arith.subf %1, %15 : vector<256x128xf32>
    %cst_9 = arith.constant 9.99999997E-7 : f32
    %17 = vector.broadcast %cst_9 : f32 to vector<256x1xf32>
    %18 = arith.addf %14, %17 : vector<256x1xf32>
    %19 = math.rsqrt %18 : vector<256x1xf32>
    %20 = vector.broadcast %19 : vector<256x1xf32> to vector<256x128xf32>
    %21 = arith.mulf %16, %20 : vector<256x128xf32>
    %22 = vector.broadcast %2 : vector<1x128xf32> to vector<256x128xf32>
    %23 = arith.mulf %21, %22 : vector<256x128xf32>
    %24 = vector.broadcast %3 : vector<1x128xf32> to vector<256x128xf32>
    %25 = arith.addf %23, %24 : vector<256x128xf32>
    %26 = arith.truncf %25 : vector<256x128xf32> to vector<256x128xbf16>
    %c0_10 = arith.constant 0 : index
    %c0_11 = arith.constant 0 : index
    %27 = vector.load %arg5[%c0_10, %c0_11] : memref<128x384xbf16, #tpu.memory_space<vmem>>, vector<128x384xbf16>
    %cst_12 = arith.constant dense<0.000000e+00> : vector<256x384xf32>
    %28 = tpu.matmul %26, %27, %cst_12 {dimension_numbers = #tpu.dot_dimension_numbers<[1], [0], [0], [1], [0, 0, 1, 1], [], []>} : vector<256x128xbf16>, vector<128x384xbf16>, vector<256x384xf32> -> vector<256x384xf32>
    %c0_13 = arith.constant 0 : index
    %c0_14 = arith.constant 0 : index
    %29 = vector.load %arg6[%c0_13, %c0_14] : memref<1x384xf32, #tpu.memory_space<vmem>>, vector<1x384xf32>
    %30 = vector.broadcast %29 : vector<1x384xf32> to vector<256x384xf32>
    %31 = arith.addf %28, %30 : vector<256x384xf32>
    %32 = arith.truncf %31 : vector<256x384xf32> to vector<256x384xbf16>
    %33 = vector.extract_strided_slice %32 {offsets = [0, 0], sizes = [256, 128], strides = [1, 1]} : vector<256x384xbf16> to vector<256x128xbf16>
    %34 = vector.extract_strided_slice %32 {offsets = [0, 128], sizes = [256, 128], strides = [1, 1]} : vector<256x384xbf16> to vector<256x128xbf16>
    %35 = vector.extract_strided_slice %32 {offsets = [0, 256], sizes = [256, 128], strides = [1, 1]} : vector<256x384xbf16> to vector<256x128xbf16>
    %c0_15 = arith.constant 0 : index
    %c0_16 = arith.constant 0 : index
    %36 = vector.load %arg2[%c0_15, %c0_16] : memref<256x256xf32, #tpu.memory_space<vmem>>, vector<256x256xf32>
    %37 = tpu.iota {dimensions = array<i32: 1>} : vector<1x128xi32>
    %cst_17 = arith.constant 0.000000e+00 : f32
    %38 = vector.broadcast %cst_17 : f32 to vector<256x128xf32>
    %c0_i32 = arith.constant 0 : i32
    %39 = vector.broadcast %c0_i32 : i32 to vector<1x128xi32>
    %40 = arith.cmpi sge, %37, %39 : vector<1x128xi32>
    %c32_i32 = arith.constant 32 : i32
    %41 = vector.broadcast %c32_i32 : i32 to vector<1x128xi32>
    %42 = arith.cmpi slt, %37, %41 : vector<1x128xi32>
    %43 = arith.andi %40, %42 : vector<1x128xi1>
    %cst_18 = arith.constant 0.000000e+00 : bf16
    %44 = vector.shape_cast %43 : vector<1x128xi1> to vector<1x128xi1>
    %45 = vector.broadcast %44 : vector<1x128xi1> to vector<256x128xi1>
    %46 = vector.broadcast %cst_18 : bf16 to vector<256x128xbf16>
    %47 = arith.select %45, %33, %46 : vector<256x128xi1>, vector<256x128xbf16>
    %cst_19 = arith.constant 0.000000e+00 : bf16
    %48 = vector.shape_cast %43 : vector<1x128xi1> to vector<1x128xi1>
    %49 = vector.broadcast %48 : vector<1x128xi1> to vector<256x128xi1>
    %50 = vector.broadcast %cst_19 : bf16 to vector<256x128xbf16>
    %51 = arith.select %49, %35, %50 : vector<256x128xi1>, vector<256x128xbf16>
    "tpu.trace_start"() <{level = 10 : i32, message = "nc,mc->nm"}> : () -> ()
    %cst_20 = arith.constant dense<0.000000e+00> : vector<256x256xf32>
    %52 = tpu.matmul %47, %34, %cst_20 {dimension_numbers = #tpu.dot_dimension_numbers<[1], [1], [0], [0], [0, 0, 1, 0], [], []>} : vector<256x128xbf16>, vector<256x128xbf16>, vector<256x256xf32> -> vector<256x256xf32>
    "tpu.trace_stop"() : () -> ()
    %cst_21 = arith.constant 0.176776692 : f32
    %53 = vector.broadcast %cst_21 : f32 to vector<256x256xf32>
    %54 = arith.mulf %52, %53 : vector<256x256xf32>
    %55 = arith.addf %54, %36 : vector<256x256xf32>
    %cst_22 = arith.constant dense<0xFF800000> : vector<256xf32>
    %56 = vector.multi_reduction <maximumf>, %55, %cst_22 [1] : vector<256x256xf32> to vector<256xf32>
    %57 = vector.shape_cast %56 : vector<256xf32> to vector<256x1xf32>
    %58 = vector.broadcast %57 : vector<256x1xf32> to vector<256x256xf32>
    %59 = arith.subf %55, %58 : vector<256x256xf32>
    %60 = math.exp %59 : vector<256x256xf32>
    %cst_23 = arith.constant dense<0.000000e+00> : vector<256xf32>
    %61 = vector.multi_reduction <add>, %60, %cst_23 [1] : vector<256x256xf32> to vector<256xf32>
    %62 = vector.shape_cast %61 : vector<256xf32> to vector<256x1xf32>
    %63 = tpu.reciprocal %62 {approx = true} : vector<256x1xf32> -> vector<256x1xf32>
    %64 = vector.broadcast %63 : vector<256x1xf32> to vector<256x256xf32>
    %65 = arith.mulf %60, %64 : vector<256x256xf32>
    %66 = arith.truncf %65 : vector<256x256xf32> to vector<256x256xbf16>
    "tpu.trace_start"() <{level = 10 : i32, message = "nm,mc->nc"}> : () -> ()
    %cst_24 = arith.constant dense<0.000000e+00> : vector<256x128xf32>
    %67 = tpu.matmul %66, %51, %cst_24 {dimension_numbers = #tpu.dot_dimension_numbers<[1], [0], [0], [1], [0, 0, 1, 1], [], []>} : vector<256x256xbf16>, vector<256x128xbf16>, vector<256x128xf32> -> vector<256x128xf32>
    "tpu.trace_stop"() : () -> ()
    %68 = arith.addf %38, %67 : vector<256x128xf32>
    %c32_i32_25 = arith.constant 32 : i32
    %69 = vector.broadcast %c32_i32_25 : i32 to vector<1x128xi32>
    %70 = arith.cmpi sge, %37, %69 : vector<1x128xi32>
    %c64_i32 = arith.constant 64 : i32
    %71 = vector.broadcast %c64_i32 : i32 to vector<1x128xi32>
    %72 = arith.cmpi slt, %37, %71 : vector<1x128xi32>
    %73 = arith.andi %70, %72 : vector<1x128xi1>
    %cst_26 = arith.constant 0.000000e+00 : bf16
    %74 = vector.shape_cast %73 : vector<1x128xi1> to vector<1x128xi1>
    %75 = vector.broadcast %74 : vector<1x128xi1> to vector<256x128xi1>
    %76 = vector.broadcast %cst_26 : bf16 to vector<256x128xbf16>
    %77 = arith.select %75, %33, %76 : vector<256x128xi1>, vector<256x128xbf16>
    %cst_27 = arith.constant 0.000000e+00 : bf16
    %78 = vector.shape_cast %73 : vector<1x128xi1> to vector<1x128xi1>
    %79 = vector.broadcast %78 : vector<1x128xi1> to vector<256x128xi1>
    %80 = vector.broadcast %cst_27 : bf16 to vector<256x128xbf16>
    %81 = arith.select %79, %35, %80 : vector<256x128xi1>, vector<256x128xbf16>
    "tpu.trace_start"() <{level = 10 : i32, message = "nc,mc->nm"}> : () -> ()
    %cst_28 = arith.constant dense<0.000000e+00> : vector<256x256xf32>
    %82 = tpu.matmul %77, %34, %cst_28 {dimension_numbers = #tpu.dot_dimension_numbers<[1], [1], [0], [0], [0, 0, 1, 0], [], []>} : vector<256x128xbf16>, vector<256x128xbf16>, vector<256x256xf32> -> vector<256x256xf32>
    "tpu.trace_stop"() : () -> ()
    %cst_29 = arith.constant 0.176776692 : f32
    %83 = vector.broadcast %cst_29 : f32 to vector<256x256xf32>
    %84 = arith.mulf %82, %83 : vector<256x256xf32>
    %85 = arith.addf %84, %36 : vector<256x256xf32>
    %cst_30 = arith.constant dense<0xFF800000> : vector<256xf32>
    %86 = vector.multi_reduction <maximumf>, %85, %cst_30 [1] : vector<256x256xf32> to vector<256xf32>
    %87 = vector.shape_cast %86 : vector<256xf32> to vector<256x1xf32>
    %88 = vector.broadcast %87 : vector<256x1xf32> to vector<256x256xf32>
    %89 = arith.subf %85, %88 : vector<256x256xf32>
    %90 = math.exp %89 : vector<256x256xf32>
    %cst_31 = arith.constant dense<0.000000e+00> : vector<256xf32>
    %91 = vector.multi_reduction <add>, %90, %cst_31 [1] : vector<256x256xf32> to vector<256xf32>
    %92 = vector.shape_cast %91 : vector<256xf32> to vector<256x1xf32>
    %93 = tpu.reciprocal %92 {approx = true} : vector<256x1xf32> -> vector<256x1xf32>
    %94 = vector.broadcast %93 : vector<256x1xf32> to vector<256x256xf32>
    %95 = arith.mulf %90, %94 : vector<256x256xf32>
    %96 = arith.truncf %95 : vector<256x256xf32> to vector<256x256xbf16>
    "tpu.trace_start"() <{level = 10 : i32, message = "nm,mc->nc"}> : () -> ()
    %cst_32 = arith.constant dense<0.000000e+00> : vector<256x128xf32>
    %97 = tpu.matmul %96, %81, %cst_32 {dimension_numbers = #tpu.dot_dimension_numbers<[1], [0], [0], [1], [0, 0, 1, 1], [], []>} : vector<256x256xbf16>, vector<256x128xbf16>, vector<256x128xf32> -> vector<256x128xf32>
    "tpu.trace_stop"() : () -> ()
    %98 = arith.addf %68, %97 : vector<256x128xf32>
    %c64_i32_33 = arith.constant 64 : i32
    %99 = vector.broadcast %c64_i32_33 : i32 to vector<1x128xi32>
    %100 = arith.cmpi sge, %37, %99 : vector<1x128xi32>
    %c96_i32 = arith.constant 96 : i32
    %101 = vector.broadcast %c96_i32 : i32 to vector<1x128xi32>
    %102 = arith.cmpi slt, %37, %101 : vector<1x128xi32>
    %103 = arith.andi %100, %102 : vector<1x128xi1>
    %cst_34 = arith.constant 0.000000e+00 : bf16
    %104 = vector.shape_cast %103 : vector<1x128xi1> to vector<1x128xi1>
    %105 = vector.broadcast %104 : vector<1x128xi1> to vector<256x128xi1>
    %106 = vector.broadcast %cst_34 : bf16 to vector<256x128xbf16>
    %107 = arith.select %105, %33, %106 : vector<256x128xi1>, vector<256x128xbf16>
    %cst_35 = arith.constant 0.000000e+00 : bf16
    %108 = vector.shape_cast %103 : vector<1x128xi1> to vector<1x128xi1>
    %109 = vector.broadcast %108 : vector<1x128xi1> to vector<256x128xi1>
    %110 = vector.broadcast %cst_35 : bf16 to vector<256x128xbf16>
    %111 = arith.select %109, %35, %110 : vector<256x128xi1>, vector<256x128xbf16>
    "tpu.trace_start"() <{level = 10 : i32, message = "nc,mc->nm"}> : () -> ()
    %cst_36 = arith.constant dense<0.000000e+00> : vector<256x256xf32>
    %112 = tpu.matmul %107, %34, %cst_36 {dimension_numbers = #tpu.dot_dimension_numbers<[1], [1], [0], [0], [0, 0, 1, 0], [], []>} : vector<256x128xbf16>, vector<256x128xbf16>, vector<256x256xf32> -> vector<256x256xf32>
    "tpu.trace_stop"() : () -> ()
    %cst_37 = arith.constant 0.176776692 : f32
    %113 = vector.broadcast %cst_37 : f32 to vector<256x256xf32>
    %114 = arith.mulf %112, %113 : vector<256x256xf32>
    %115 = arith.addf %114, %36 : vector<256x256xf32>
    %cst_38 = arith.constant dense<0xFF800000> : vector<256xf32>
    %116 = vector.multi_reduction <maximumf>, %115, %cst_38 [1] : vector<256x256xf32> to vector<256xf32>
    %117 = vector.shape_cast %116 : vector<256xf32> to vector<256x1xf32>
    %118 = vector.broadcast %117 : vector<256x1xf32> to vector<256x256xf32>
    %119 = arith.subf %115, %118 : vector<256x256xf32>
    %120 = math.exp %119 : vector<256x256xf32>
    %cst_39 = arith.constant dense<0.000000e+00> : vector<256xf32>
    %121 = vector.multi_reduction <add>, %120, %cst_39 [1] : vector<256x256xf32> to vector<256xf32>
    %122 = vector.shape_cast %121 : vector<256xf32> to vector<256x1xf32>
    %123 = tpu.reciprocal %122 {approx = true} : vector<256x1xf32> -> vector<256x1xf32>
    %124 = vector.broadcast %123 : vector<256x1xf32> to vector<256x256xf32>
    %125 = arith.mulf %120, %124 : vector<256x256xf32>
    %126 = arith.truncf %125 : vector<256x256xf32> to vector<256x256xbf16>
    "tpu.trace_start"() <{level = 10 : i32, message = "nm,mc->nc"}> : () -> ()
    %cst_40 = arith.constant dense<0.000000e+00> : vector<256x128xf32>
    %127 = tpu.matmul %126, %111, %cst_40 {dimension_numbers = #tpu.dot_dimension_numbers<[1], [0], [0], [1], [0, 0, 1, 1], [], []>} : vector<256x256xbf16>, vector<256x128xbf16>, vector<256x128xf32> -> vector<256x128xf32>
    "tpu.trace_stop"() : () -> ()
    %128 = arith.addf %98, %127 : vector<256x128xf32>
    %c96_i32_41 = arith.constant 96 : i32
    %129 = vector.broadcast %c96_i32_41 : i32 to vector<1x128xi32>
    %130 = arith.cmpi sge, %37, %129 : vector<1x128xi32>
    %c128_i32 = arith.constant 128 : i32
    %131 = vector.broadcast %c128_i32 : i32 to vector<1x128xi32>
    %132 = arith.cmpi slt, %37, %131 : vector<1x128xi32>
    %133 = arith.andi %130, %132 : vector<1x128xi1>
    %cst_42 = arith.constant 0.000000e+00 : bf16
    %134 = vector.shape_cast %133 : vector<1x128xi1> to vector<1x128xi1>
    %135 = vector.broadcast %134 : vector<1x128xi1> to vector<256x128xi1>
    %136 = vector.broadcast %cst_42 : bf16 to vector<256x128xbf16>
    %137 = arith.select %135, %33, %136 : vector<256x128xi1>, vector<256x128xbf16>
    %cst_43 = arith.constant 0.000000e+00 : bf16
    %138 = vector.shape_cast %133 : vector<1x128xi1> to vector<1x128xi1>
    %139 = vector.broadcast %138 : vector<1x128xi1> to vector<256x128xi1>
    %140 = vector.broadcast %cst_43 : bf16 to vector<256x128xbf16>
    %141 = arith.select %139, %35, %140 : vector<256x128xi1>, vector<256x128xbf16>
    "tpu.trace_start"() <{level = 10 : i32, message = "nc,mc->nm"}> : () -> ()
    %cst_44 = arith.constant dense<0.000000e+00> : vector<256x256xf32>
    %142 = tpu.matmul %137, %34, %cst_44 {dimension_numbers = #tpu.dot_dimension_numbers<[1], [1], [0], [0], [0, 0, 1, 0], [], []>} : vector<256x128xbf16>, vector<256x128xbf16>, vector<256x256xf32> -> vector<256x256xf32>
    "tpu.trace_stop"() : () -> ()
    %cst_45 = arith.constant 0.176776692 : f32
    %143 = vector.broadcast %cst_45 : f32 to vector<256x256xf32>
    %144 = arith.mulf %142, %143 : vector<256x256xf32>
    %145 = arith.addf %144, %36 : vector<256x256xf32>
    %cst_46 = arith.constant dense<0xFF800000> : vector<256xf32>
    %146 = vector.multi_reduction <maximumf>, %145, %cst_46 [1] : vector<256x256xf32> to vector<256xf32>
    %147 = vector.shape_cast %146 : vector<256xf32> to vector<256x1xf32>
    %148 = vector.broadcast %147 : vector<256x1xf32> to vector<256x256xf32>
    %149 = arith.subf %145, %148 : vector<256x256xf32>
    %150 = math.exp %149 : vector<256x256xf32>
    %cst_47 = arith.constant dense<0.000000e+00> : vector<256xf32>
    %151 = vector.multi_reduction <add>, %150, %cst_47 [1] : vector<256x256xf32> to vector<256xf32>
    %152 = vector.shape_cast %151 : vector<256xf32> to vector<256x1xf32>
    %153 = tpu.reciprocal %152 {approx = true} : vector<256x1xf32> -> vector<256x1xf32>
    %154 = vector.broadcast %153 : vector<256x1xf32> to vector<256x256xf32>
    %155 = arith.mulf %150, %154 : vector<256x256xf32>
    %156 = arith.truncf %155 : vector<256x256xf32> to vector<256x256xbf16>
    "tpu.trace_start"() <{level = 10 : i32, message = "nm,mc->nc"}> : () -> ()
    %cst_48 = arith.constant dense<0.000000e+00> : vector<256x128xf32>
    %157 = tpu.matmul %156, %141, %cst_48 {dimension_numbers = #tpu.dot_dimension_numbers<[1], [0], [0], [1], [0, 0, 1, 1], [], []>} : vector<256x256xbf16>, vector<256x128xbf16>, vector<256x128xf32> -> vector<256x128xf32>
    "tpu.trace_stop"() : () -> ()
    %158 = arith.addf %128, %157 : vector<256x128xf32>
    %159 = arith.truncf %158 : vector<256x128xf32> to vector<256x128xbf16>
    %c0_49 = arith.constant 0 : index
    %c0_50 = arith.constant 0 : index
    %160 = vector.load %arg7[%c0_49, %c0_50] : memref<128x128xbf16, #tpu.memory_space<vmem>>, vector<128x128xbf16>
    %cst_51 = arith.constant dense<0.000000e+00> : vector<256x128xf32>
    %161 = tpu.matmul %159, %160, %cst_51 {dimension_numbers = #tpu.dot_dimension_numbers<[1], [0], [0], [1], [0, 0, 1, 1], [], []>} : vector<256x128xbf16>, vector<128x128xbf16>, vector<256x128xf32> -> vector<256x128xf32>
    %c0_52 = arith.constant 0 : index
    %c0_53 = arith.constant 0 : index
    %162 = vector.load %arg8[%c0_52, %c0_53] : memref<1x128xf32, #tpu.memory_space<vmem>>, vector<1x128xf32>
    %163 = vector.broadcast %162 : vector<1x128xf32> to vector<256x128xf32>
    %164 = arith.addf %161, %163 : vector<256x128xf32>
    %165 = arith.addf %1, %164 : vector<256x128xf32>
    %c0_54 = arith.constant 0 : index
    %c0_55 = arith.constant 0 : index
    %166 = vector.load %arg9[%c0_54, %c0_55] : memref<1x128xf32, #tpu.memory_space<vmem>>, vector<1x128xf32>
    %c0_56 = arith.constant 0 : index
    %c0_57 = arith.constant 0 : index
    %167 = vector.load %arg10[%c0_56, %c0_57] : memref<1x128xf32, #tpu.memory_space<vmem>>, vector<1x128xf32>
    %cst_58 = arith.constant dense<0.000000e+00> : vector<256xf32>
    %168 = vector.multi_reduction <add>, %165, %cst_58 [1] : vector<256x128xf32> to vector<256xf32>
    %169 = vector.shape_cast %168 : vector<256xf32> to vector<256x1xf32>
    %cst_59 = arith.constant 1.280000e+02 : f32
    %170 = vector.broadcast %cst_59 : f32 to vector<256x1xf32>
    %171 = arith.divf %169, %170 : vector<256x1xf32>
    %172 = vector.broadcast %171 : vector<256x1xf32> to vector<256x128xf32>
    %173 = arith.subf %165, %172 : vector<256x128xf32>
    %174 = arith.mulf %173, %173 : vector<256x128xf32>
    %cst_60 = arith.constant dense<0.000000e+00> : vector<256xf32>
    %175 = vector.multi_reduction <add>, %174, %cst_60 [1] : vector<256x128xf32> to vector<256xf32>
    %176 = vector.shape_cast %175 : vector<256xf32> to vector<256x1xf32>
    %cst_61 = arith.constant 1.280000e+02 : f32
    %177 = vector.broadcast %cst_61 : f32 to vector<256x1xf32>
    %178 = arith.divf %176, %177 : vector<256x1xf32>
    %179 = vector.broadcast %171 : vector<256x1xf32> to vector<256x128xf32>
    %180 = arith.subf %165, %179 : vector<256x128xf32>
    %cst_62 = arith.constant 9.99999997E-7 : f32
    %181 = vector.broadcast %cst_62 : f32 to vector<256x1xf32>
    %182 = arith.addf %178, %181 : vector<256x1xf32>
    %183 = math.rsqrt %182 : vector<256x1xf32>
    %184 = vector.broadcast %183 : vector<256x1xf32> to vector<256x128xf32>
    %185 = arith.mulf %180, %184 : vector<256x128xf32>
    %186 = vector.broadcast %166 : vector<1x128xf32> to vector<256x128xf32>
    %187 = arith.mulf %185, %186 : vector<256x128xf32>
    %188 = vector.broadcast %167 : vector<1x128xf32> to vector<256x128xf32>
    %189 = arith.addf %187, %188 : vector<256x128xf32>
    %190 = arith.truncf %189 : vector<256x128xf32> to vector<256x128xbf16>
    %c0_63 = arith.constant 0 : index
    %c0_64 = arith.constant 0 : index
    %191 = vector.load %arg11[%c0_63, %c0_64] : memref<128x512xbf16, #tpu.memory_space<vmem>>, vector<128x512xbf16>
    %cst_65 = arith.constant dense<0.000000e+00> : vector<256x512xf32>
    %192 = tpu.matmul %190, %191, %cst_65 {dimension_numbers = #tpu.dot_dimension_numbers<[1], [0], [0], [1], [0, 0, 1, 1], [], []>} : vector<256x128xbf16>, vector<128x512xbf16>, vector<256x512xf32> -> vector<256x512xf32>
    %c0_66 = arith.constant 0 : index
    %c0_67 = arith.constant 0 : index
    %193 = vector.load %arg12[%c0_66, %c0_67] : memref<1x512xf32, #tpu.memory_space<vmem>>, vector<1x512xf32>
    %194 = vector.broadcast %193 : vector<1x512xf32> to vector<256x512xf32>
    %195 = arith.addf %192, %194 : vector<256x512xf32>
    %196 = arith.mulf %195, %195 : vector<256x512xf32>
    %197 = arith.mulf %195, %196 : vector<256x512xf32>
    %cst_68 = arith.constant 4.471500e-02 : f32
    %198 = vector.broadcast %cst_68 : f32 to vector<256x512xf32>
    %199 = arith.mulf %198, %197 : vector<256x512xf32>
    %200 = arith.addf %195, %199 : vector<256x512xf32>
    %cst_69 = arith.constant 0.797884583 : f32
    %201 = vector.broadcast %cst_69 : f32 to vector<256x512xf32>
    %202 = arith.mulf %201, %200 : vector<256x512xf32>
    %203 = math.tanh %202 : vector<256x512xf32>
    %cst_70 = arith.constant 1.000000e+00 : f32
    %204 = vector.broadcast %cst_70 : f32 to vector<256x512xf32>
    %205 = arith.addf %204, %203 : vector<256x512xf32>
    %cst_71 = arith.constant 5.000000e-01 : f32
    %206 = vector.broadcast %cst_71 : f32 to vector<256x512xf32>
    %207 = arith.mulf %206, %205 : vector<256x512xf32>
    %208 = arith.mulf %195, %207 : vector<256x512xf32>
    %209 = arith.truncf %208 : vector<256x512xf32> to vector<256x512xbf16>
    %c0_72 = arith.constant 0 : index
    %c0_73 = arith.constant 0 : index
    %210 = vector.load %arg13[%c0_72, %c0_73] : memref<512x128xbf16, #tpu.memory_space<vmem>>, vector<512x128xbf16>
    %cst_74 = arith.constant dense<0.000000e+00> : vector<256x128xf32>
    %211 = tpu.matmul %209, %210, %cst_74 {dimension_numbers = #tpu.dot_dimension_numbers<[1], [0], [0], [1], [0, 0, 1, 1], [], []>} : vector<256x512xbf16>, vector<512x128xbf16>, vector<256x128xf32> -> vector<256x128xf32>
    %c0_75 = arith.constant 0 : index
    %c0_76 = arith.constant 0 : index
    %212 = vector.load %arg14[%c0_75, %c0_76] : memref<1x128xf32, #tpu.memory_space<vmem>>, vector<1x128xf32>
    %213 = vector.broadcast %212 : vector<1x128xf32> to vector<256x128xf32>
    %214 = arith.addf %211, %213 : vector<256x128xf32>
    %215 = arith.addf %165, %214 : vector<256x128xf32>
    %216 = vector.shape_cast %215 : vector<256x128xf32> to vector<16x16x128xf32>
    %c0_77 = arith.constant 0 : index
    %c0_78 = arith.constant 0 : index
    %c0_79 = arith.constant 0 : index
    %217 = vector.load %arg15[%c0_77, %c0_78, %c0_79] : memref<16x16x128xf32, #tpu.memory_space<vmem>>, vector<16x16x128xf32>
    tpu.vector_store %arg15[%c0_77, %c0_78, %c0_79], %216 {strides = array<i32>} : memref<16x16x128xf32, #tpu.memory_space<vmem>>, vector<16x16x128xf32>,
    return
  }
  func.func @transform_0(%arg0: i32) -> (i32, i32, i32) {
    %c0_i32 = arith.constant 0 : i32
    %c0_i32_0 = arith.constant 0 : i32
    %c0_i32_1 = arith.constant 0 : i32
    return %arg0, %c0_i32, %c0_i32_0 : i32, i32, i32
  }
  func.func @transform_1(%arg0: i32) -> (i32, i32) {
    %c0_i32 = arith.constant 0 : i32
    %c0_i32_0 = arith.constant 0 : i32
    %c0_i32_1 = arith.constant 0 : i32
    return %c0_i32, %c0_i32_0 : i32, i32
  }
  func.func @transform_2(%arg0: i32) -> (i32, i32) {
    %c0_i32 = arith.constant 0 : i32
    %c0_i32_0 = arith.constant 0 : i32
    %c0_i32_1 = arith.constant 0 : i32
    return %c0_i32, %c0_i32_0 : i32, i32
  }
  func.func @transform_3(%arg0: i32) -> (i32, i32) {
    %c0_i32 = arith.constant 0 : i32
    %c0_i32_0 = arith.constant 0 : i32
    %c0_i32_1 = arith.constant 0 : i32
    return %c0_i32, %c0_i32_0 : i32, i32
  }
  func.func @transform_4(%arg0: i32) -> (i32, i32) {
    %c0_i32 = arith.constant 0 : i32
    %c0_i32_0 = arith.constant 0 : i32
    %c0_i32_1 = arith.constant 0 : i32
    return %c0_i32, %c0_i32_0 : i32, i32
  }
  func.func @transform_5(%arg0: i32) -> (i32, i32) {
    %c0_i32 = arith.constant 0 : i32
    %c0_i32_0 = arith.constant 0 : i32
    %c0_i32_1 = arith.constant 0 : i32
    return %c0_i32, %c0_i32_0 : i32, i32
  }
  func.func @transform_6(%arg0: i32) -> (i32, i32) {
    %c0_i32 = arith.constant 0 : i32
    %c0_i32_0 = arith.constant 0 : i32
    %c0_i32_1 = arith.constant 0 : i32
    return %c0_i32, %c0_i32_0 : i32, i32
  }
  func.func @transform_7(%arg0: i32) -> (i32, i32) {
    %c0_i32 = arith.constant 0 : i32
    %c0_i32_0 = arith.constant 0 : i32
    %c0_i32_1 = arith.constant 0 : i32
    return %c0_i32, %c0_i32_0 : i32, i32
  }
  func.func @transform_8(%arg0: i32) -> (i32, i32) {
    %c0_i32 = arith.constant 0 : i32
    %c0_i32_0 = arith.constant 0 : i32
    %c0_i32_1 = arith.constant 0 : i32
    return %c0_i32, %c0_i32_0 : i32, i32
  }
  func.func @transform_9(%arg0: i32) -> (i32, i32) {
    %c0_i32 = arith.constant 0 : i32
    %c0_i32_0 = arith.constant 0 : i32
    %c0_i32_1 = arith.constant 0 : i32
    return %c0_i32, %c0_i32_0 : i32, i32
  }
  func.func @transform_10(%arg0: i32) -> (i32, i32) {
    %c0_i32 = arith.constant 0 : i32
    %c0_i32_0 = arith.constant 0 : i32
    %c0_i32_1 = arith.constant 0 : i32
    return %c0_i32, %c0_i32_0 : i32, i32
  }
  func.func @transform_11(%arg0: i32) -> (i32, i32) {
    %c0_i32 = arith.constant 0 : i32
    %c0_i32_0 = arith.constant 0 : i32
    %c0_i32_1 = arith.constant 0 : i32
    return %c0_i32, %c0_i32_0 : i32, i32
  }
  func.func @transform_12(%arg0: i32) -> (i32, i32) {
    %c0_i32 = arith.constant 0 : i32
    %c0_i32_0 = arith.constant 0 : i32
    %c0_i32_1 = arith.constant 0 : i32
    return %c0_i32, %c0_i32_0 : i32, i32
  }
  func.func @transform_13(%arg0: i32) -> (i32, i32) {
    %c0_i32 = arith.constant 0 : i32
    %c0_i32_0 = arith.constant 0 : i32
    %c0_i32_1 = arith.constant 0 : i32
    return %c0_i32, %c0_i32_0 : i32, i32
  }
  func.func @transform_14(%arg0: i32) -> (i32, i32, i32) {
    %c0_i32 = arith.constant 0 : i32
    %c0_i32_0 = arith.constant 0 : i32
    %c0_i32_1 = arith.constant 0 : i32
    return %arg0, %c0_i32, %c0_i32_0 : i32, i32, i32
  }
}

</mosaic_0001>

<llo_original>
// kernel: partition_attention_2d_forward.1
$region0: #{partition_attention_2d_forward.1}
  #allocation0 [shape = 'u32[]', space=smem, size = 0x4, offset = 0x4, fixed_abs, tag = 'smem constant byte address 0x4 - core index']
  #allocation1 [shape = 'u32[72,128]{1,0:T(1,128)}', space=vmem, size = 0x9000, scoped, tag = 'internal scratch']
  %s0 = inlined_call_operand.vmem [shape: f32[32,16,128], index: 0, kind: input, shape index: {}]
  %s1 = inlined_call_operand.vmem [shape: f32[256,256], index: 1, kind: input, shape index: {}]
  %s2 = inlined_call_operand.vmem [shape: f32[1,128], index: 2, kind: input, shape index: {}]
  %s3 = inlined_call_operand.vmem [shape: f32[1,128], index: 3, kind: input, shape index: {}]
  %s4 = inlined_call_operand.vmem [shape: bf16[128,384], index: 4, kind: input, shape index: {}]
  %s5 = inlined_call_operand.vmem [shape: f32[1,384], index: 5, kind: input, shape index: {}]
  %s6 = inlined_call_operand.vmem [shape: bf16[128,128], index: 6, kind: input, shape index: {}]
  %s7 = inlined_call_operand.vmem [shape: f32[1,128], index: 7, kind: input, shape index: {}]
  %s8 = inlined_call_operand.vmem [shape: f32[1,128], index: 8, kind: input, shape index: {}]
  %s9 = inlined_call_operand.vmem [shape: f32[1,128], index: 9, kind: input, shape index: {}]
  %s10 = inlined_call_operand.vmem [shape: bf16[128,512], index: 10, kind: input, shape index: {}]
  %s11 = inlined_call_operand.vmem [shape: f32[1,512], index: 11, kind: input, shape index: {}]
  %s12 = inlined_call_operand.vmem [shape: bf16[512,128], index: 12, kind: input, shape index: {}]
  %s13 = inlined_call_operand.vmem [shape: f32[1,128], index: 13, kind: input, shape index: {}]
  %s14 = inlined_call_operand.hbm [shape: f32[32,16,128], index: 14, kind: output, shape index: {}]
  %s15 = sld [smem:[#allocation0]]
  $region89: #{partition_attention_2d_forward.1} parent=0
    _
  %s17 = ssub.s32 1, %s15
  %s18 = scalar_select 0, %s17, %s15
  $region1: #{partition_attention_2d_forward.1} parent=0
    #allocation2 [shape = 'u8[262144]{0}', space=vmem, size = 0x40000, scoped, tag = 'output window, operand 0']
    #allocation3 [shape = 's32[2]{0}', space=sflag, size = 0x8, scoped, tag = 'scoped memory for partition_attention_2d_forward.1']
    %19 = vsyncpa [#allocation3], 0
    %s20 = scalar_lea.sflag [#allocation3], 1
    %21 = vsyncpa %s20, 0
    loop: start=0, step=1, limit=4
    $region2: #{partition_attention_2d_forward.1} parent=1 // loop_pre_header
      _
    $region3: #{partition_attention_2d_forward.1} parent=1 // loop_header
      %s23 = sphi 0, %s27
      %p24 = scmp.ge.s32.totalorder %s23, 4
      %s33 = sphi 0, %s35
      %s36 = sphi 0, %s33
      %s37 = sphi 0, %s36
      %s53 = sphi 0, %s37
      %s57 = sphi 0, %s57
      %s59 = sphi 0, %s57
      %s60 = sphi 0, %s59
      %s74 = sphi 0, %s60
      %s78 = sphi 0, %s78
      %s80 = sphi 0, %s78
      %s81 = sphi 0, %s80
      %s95 = sphi 0, %s81
      %s99 = sphi 0, %s99
      %s101 = sphi 0, %s99
      %s102 = sphi 0, %s101
      %s116 = sphi 0, %s102
      %s120 = sphi 0, %s120
      %s122 = sphi 0, %s120
      %s123 = sphi 0, %s122
      %s137 = sphi 0, %s123
      %s141 = sphi 0, %s141
      %s143 = sphi 0, %s141
      %s144 = sphi 0, %s143
      %s158 = sphi 0, %s144
      %s162 = sphi 0, %s162
      %s164 = sphi 0, %s162
      %s165 = sphi 0, %s164
      %s179 = sphi 0, %s165
      %s183 = sphi 0, %s183
      %s185 = sphi 0, %s183
      %s186 = sphi 0, %s185
      %s200 = sphi 0, %s186
      %s204 = sphi 0, %s204
      %s206 = sphi 0, %s204
      %s207 = sphi 0, %s206
      %s221 = sphi 0, %s207
      %s225 = sphi 0, %s225
      %s227 = sphi 0, %s225
      %s228 = sphi 0, %s227
      %s242 = sphi 0, %s228
      %s246 = sphi 0, %s246
      %s248 = sphi 0, %s246
      %s249 = sphi 0, %s248
      %s263 = sphi 0, %s249
      %s267 = sphi 0, %s267
      %s269 = sphi 0, %s267
      %s270 = sphi 0, %s269
      %s284 = sphi 0, %s270
      %s288 = sphi 0, %s288
      %s290 = sphi 0, %s288
      %s291 = sphi 0, %s290
      %s305 = sphi 0, %s291
      %s309 = sphi 0, %s309
      %s311 = sphi 0, %s309
      %s312 = sphi 0, %s311
      %s326 = sphi 0, %s312
      %s332 = sphi 0, %s334
      %s335 = sphi 0, %s332
      %s336 = sphi 0, %s335
      %s352 = sphi 0, %s336
    $region4: #{partition_attention_2d_forward.1} parent=1 // loop_header_branch
      %26 = sbr.rel (%p24) target = $region8
    $region5: #{partition_attention_2d_forward.1} parent=1 // loop_body
      %s28 = ssub.s32 %s23, 1
      %s29 = ssub.s32 %s23, 2
      %s30 = sadd.s32 %s23, 1
      %s31 = ssub.s32 %s23, %s30
      %p32 = scmp.eq.s32.totalorder %s31, 0
      %s34 = sadd.s32 %s33, 1
      %s35 = scalar_select %p32, %s33, %s34
      %p38 = pneg %p32
      %p39 = scmp.eq.s32.totalorder %s23, 1
      %p40 = por %p38, %p39
      %p41 = scmp.ne.s32.totalorder %s33, %s36
      %p42 = scmp.eq.s32.totalorder %s23, 0
      %p43 = por %p41, %p42
      %p44 = scmp.ne.s32.totalorder %s33, %s36
      %p45 = scmp.eq.s32.totalorder %s28, 1
      %p46 = por %p44, %p45
      %p47 = scmp.ne.s32.totalorder %s36, %s37
      %p48 = scmp.eq.s32.totalorder %s28, 0
      %p49 = por %p47, %p48
      %p50 = scmp.ne.s32.totalorder %s36, %s37
      %p51 = scmp.eq.s32.totalorder %s29, 1
      %p52 = por %p50, %p51
      %p54 = scmp.ne.s32.totalorder %s37, %s53
      %p55 = scmp.eq.s32.totalorder %s29, 0
      %p56 = por %p54, %p55
      %s58 = sadd.s32 %s57, 1
      %p61 = scmp.eq.s32.totalorder %s23, 1
      %p62 = scmp.ne.s32.totalorder %s57, %s59
      %p63 = scmp.eq.s32.totalorder %s23, 0
      %p64 = por %p62, %p63
      %p65 = scmp.ne.s32.totalorder %s57, %s59
      %p66 = scmp.eq.s32.totalorder %s28, 1
      %p67 = por %p65, %p66
      %p68 = scmp.ne.s32.totalorder %s59, %s60
      %p69 = scmp.eq.s32.totalorder %s28, 0
      %p70 = por %p68, %p69
      %p71 = scmp.ne.s32.totalorder %s59, %s60
      %p72 = scmp.eq.s32.totalorder %s29, 1
      %p73 = por %p71, %p72
      %p75 = scmp.ne.s32.totalorder %s60, %s74
      %p76 = scmp.eq.s32.totalorder %s29, 0
      %p77 = por %p75, %p76
      %s79 = sadd.s32 %s78, 1
      %p82 = scmp.eq.s32.totalorder %s23, 1
      %p83 = scmp.ne.s32.totalorder %s78, %s80
      %p84 = scmp.eq.s32.totalorder %s23, 0
      %p85 = por %p83, %p84
      %p86 = scmp.ne.s32.totalorder %s78, %s80
      %p87 = scmp.eq.s32.totalorder %s28, 1
      %p88 = por %p86, %p87
      %p89 = scmp.ne.s32.totalorder %s80, %s81
      %p90 = scmp.eq.s32.totalorder %s28, 0
      %p91 = por %p89, %p90
      %p92 = scmp.ne.s32.totalorder %s80, %s81
      %p93 = scmp.eq.s32.totalorder %s29, 1
      %p94 = por %p92, %p93
      %p96 = scmp.ne.s32.totalorder %s81, %s95
      %p97 = scmp.eq.s32.totalorder %s29, 0
      %p98 = por %p96, %p97
      %s100 = sadd.s32 %s99, 1
      %p103 = scmp.eq.s32.totalorder %s23, 1
      %p104 = scmp.ne.s32.totalorder %s99, %s101
      %p105 = scmp.eq.s32.totalorder %s23, 0
      %p106 = por %p104, %p105
      %p107 = scmp.ne.s32.totalorder %s99, %s101
      %p108 = scmp.eq.s32.totalorder %s28, 1
      %p109 = por %p107, %p108
      %p110 = scmp.ne.s32.totalorder %s101, %s102
      %p111 = scmp.eq.s32.totalorder %s28, 0
      %p112 = por %p110, %p111
      %p113 = scmp.ne.s32.totalorder %s101, %s102
      %p114 = scmp.eq.s32.totalorder %s29, 1
      %p115 = por %p113, %p114
      %p117 = scmp.ne.s32.totalorder %s102, %s116
      %p118 = scmp.eq.s32.totalorder %s29, 0
      %p119 = por %p117, %p118
      %s121 = sadd.s32 %s120, 1
      %p124 = scmp.eq.s32.totalorder %s23, 1
      %p125 = scmp.ne.s32.totalorder %s120, %s122
      %p126 = scmp.eq.s32.totalorder %s23, 0
      %p127 = por %p125, %p126
      %p128 = scmp.ne.s32.totalorder %s120, %s122
      %p129 = scmp.eq.s32.totalorder %s28, 1
      %p130 = por %p128, %p129
      %p131 = scmp.ne.s32.totalorder %s122, %s123
      %p132 = scmp.eq.s32.totalorder %s28, 0
      %p133 = por %p131, %p132
      %p134 = scmp.ne.s32.totalorder %s122, %s123
      %p135 = scmp.eq.s32.totalorder %s29, 1
      %p136 = por %p134, %p135
      %p138 = scmp.ne.s32.totalorder %s123, %s137
      %p139 = scmp.eq.s32.totalorder %s29, 0
      %p140 = por %p138, %p139
      %s142 = sadd.s32 %s141, 1
      %p145 = scmp.eq.s32.totalorder %s23, 1
      %p146 = scmp.ne.s32.totalorder %s141, %s143
      %p147 = scmp.eq.s32.totalorder %s23, 0
      %p148 = por %p146, %p147
      %p149 = scmp.ne.s32.totalorder %s141, %s143
      %p150 = scmp.eq.s32.totalorder %s28, 1
      %p151 = por %p149, %p150
      %p152 = scmp.ne.s32.totalorder %s143, %s144
      %p153 = scmp.eq.s32.totalorder %s28, 0
      %p154 = por %p152, %p153
      %p155 = scmp.ne.s32.totalorder %s143, %s144
      %p156 = scmp.eq.s32.totalorder %s29, 1
      %p157 = por %p155, %p156
      %p159 = scmp.ne.s32.totalorder %s144, %s158
      %p160 = scmp.eq.s32.totalorder %s29, 0
      %p161 = por %p159, %p160
      %s163 = sadd.s32 %s162, 1
      %p166 = scmp.eq.s32.totalorder %s23, 1
      %p167 = scmp.ne.s32.totalorder %s162, %s164
      %p168 = scmp.eq.s32.totalorder %s23, 0
      %p169 = por %p167, %p168
      %p170 = scmp.ne.s32.totalorder %s162, %s164
      %p171 = scmp.eq.s32.totalorder %s28, 1
      %p172 = por %p170, %p171
      %p173 = scmp.ne.s32.totalorder %s164, %s165
      %p174 = scmp.eq.s32.totalorder %s28, 0
      %p175 = por %p173, %p174
      %p176 = scmp.ne.s32.totalorder %s164, %s165
      %p177 = scmp.eq.s32.totalorder %s29, 1
      %p178 = por %p176, %p177
      %p180 = scmp.ne.s32.totalorder %s165, %s179
      %p181 = scmp.eq.s32.totalorder %s29, 0
      %p182 = por %p180, %p181
      %s184 = sadd.s32 %s183, 1
      %p187 = scmp.eq.s32.totalorder %s23, 1
      %p188 = scmp.ne.s32.totalorder %s183, %s185
      %p189 = scmp.eq.s32.totalorder %s23, 0
      %p190 = por %p188, %p189
      %p191 = scmp.ne.s32.totalorder %s183, %s185
      %p192 = scmp.eq.s32.totalorder %s28, 1
      %p193 = por %p191, %p192
      %p194 = scmp.ne.s32.totalorder %s185, %s186
      %p195 = scmp.eq.s32.totalorder %s28, 0
      %p196 = por %p194, %p195
      %p197 = scmp.ne.s32.totalorder %s185, %s186
      %p198 = scmp.eq.s32.totalorder %s29, 1
      %p199 = por %p197, %p198
      %p201 = scmp.ne.s32.totalorder %s186, %s200
      %p202 = scmp.eq.s32.totalorder %s29, 0
      %p203 = por %p201, %p202
      %s205 = sadd.s32 %s204, 1
      %p208 = scmp.eq.s32.totalorder %s23, 1
      %p209 = scmp.ne.s32.totalorder %s204, %s206
      %p210 = scmp.eq.s32.totalorder %s23, 0
      %p211 = por %p209, %p210
      %p212 = scmp.ne.s32.totalorder %s204, %s206
      %p213 = scmp.eq.s32.totalorder %s28, 1
      %p214 = por %p212, %p213
      %p215 = scmp.ne.s32.totalorder %s206, %s207
      %p216 = scmp.eq.s32.totalorder %s28, 0
      %p217 = por %p215, %p216
      %p218 = scmp.ne.s32.totalorder %s206, %s207
      %p219 = scmp.eq.s32.totalorder %s29, 1
      %p220 = por %p218, %p219
      %p222 = scmp.ne.s32.totalorder %s207, %s221
      %p223 = scmp.eq.s32.totalorder %s29, 0
      %p224 = por %p222, %p223
      %s226 = sadd.s32 %s225, 1
      %p229 = scmp.eq.s32.totalorder %s23, 1
      %p230 = scmp.ne.s32.totalorder %s225, %s227
      %p231 = scmp.eq.s32.totalorder %s23, 0
      %p232 = por %p230, %p231
      %p233 = scmp.ne.s32.totalorder %s225, %s227
      %p234 = scmp.eq.s32.totalorder %s28, 1
      %p235 = por %p233, %p234
      %p236 = scmp.ne.s32.totalorder %s227, %s228
      %p237 = scmp.eq.s32.totalorder %s28, 0
      %p238 = por %p236, %p237
      %p239 = scmp.ne.s32.totalorder %s227, %s228
      %p240 = scmp.eq.s32.totalorder %s29, 1
      %p241 = por %p239, %p240
      %p243 = scmp.ne.s32.totalorder %s228, %s242
      %p244 = scmp.eq.s32.totalorder %s29, 0
      %p245 = por %p243, %p244
      %s247 = sadd.s32 %s246, 1
      %p250 = scmp.eq.s32.totalorder %s23, 1
      %p251 = scmp.ne.s32.totalorder %s246, %s248
      %p252 = scmp.eq.s32.totalorder %s23, 0
      %p253 = por %p251, %p252
      %p254 = scmp.ne.s32.totalorder %s246, %s248
      %p255 = scmp.eq.s32.totalorder %s28, 1
      %p256 = por %p254, %p255
      %p257 = scmp.ne.s32.totalorder %s248, %s249
      %p258 = scmp.eq.s32.totalorder %s28, 0
      %p259 = por %p257, %p258
      %p260 = scmp.ne.s32.totalorder %s248, %s249
      %p261 = scmp.eq.s32.totalorder %s29, 1
      %p262 = por %p260, %p261
      %p264 = scmp.ne.s32.totalorder %s249, %s263
      %p265 = scmp.eq.s32.totalorder %s29, 0
      %p266 = por %p264, %p265
      %s268 = sadd.s32 %s267, 1
      %p271 = scmp.eq.s32.totalorder %s23, 1
      %p272 = scmp.ne.s32.totalorder %s267, %s269
      %p273 = scmp.eq.s32.totalorder %s23, 0
      %p274 = por %p272, %p273
      %p275 = scmp.ne.s32.totalorder %s267, %s269
      %p276 = scmp.eq.s32.totalorder %s28, 1
      %p277 = por %p275, %p276
      %p278 = scmp.ne.s32.totalorder %s269, %s270
      %p279 = scmp.eq.s32.totalorder %s28, 0
      %p280 = por %p278, %p279
      %p281 = scmp.ne.s32.totalorder %s269, %s270
      %p282 = scmp.eq.s32.totalorder %s29, 1
      %p283 = por %p281, %p282
      %p285 = scmp.ne.s32.totalorder %s270, %s284
      %p286 = scmp.eq.s32.totalorder %s29, 0
      %p287 = por %p285, %p286
      %s289 = sadd.s32 %s288, 1
      %p292 = scmp.eq.s32.totalorder %s23, 1
      %p293 = scmp.ne.s32.totalorder %s288, %s290
      %p294 = scmp.eq.s32.totalorder %s23, 0
      %p295 = por %p293, %p294
      %p296 = scmp.ne.s32.totalorder %s288, %s290
      %p297 = scmp.eq.s32.totalorder %s28, 1
      %p298 = por %p296, %p297
      %p299 = scmp.ne.s32.totalorder %s290, %s291
      %p300 = scmp.eq.s32.totalorder %s28, 0
      %p301 = por %p299, %p300
      %p302 = scmp.ne.s32.totalorder %s290, %s291
      %p303 = scmp.eq.s32.totalorder %s29, 1
      %p304 = por %p302, %p303
      %p306 = scmp.ne.s32.totalorder %s291, %s305
      %p307 = scmp.eq.s32.totalorder %s29, 0
      %p308 = por %p306, %p307
      %s310 = sadd.s32 %s309, 1
      %p313 = scmp.eq.s32.totalorder %s23, 1
      %p314 = scmp.ne.s32.totalorder %s309, %s311
      %p315 = scmp.eq.s32.totalorder %s23, 0
      %p316 = por %p314, %p315
      %p317 = scmp.ne.s32.totalorder %s309, %s311
      %p318 = scmp.eq.s32.totalorder %s28, 1
      %p319 = por %p317, %p318
      %p320 = scmp.ne.s32.totalorder %s311, %s312
      %p321 = scmp.eq.s32.totalorder %s28, 0
      %p322 = por %p320, %p321
      %p323 = scmp.ne.s32.totalorder %s311, %s312
      %p324 = scmp.eq.s32.totalorder %s29, 1
      %p325 = por %p323, %p324
      %p327 = scmp.ne.s32.totalorder %s312, %s326
      %p328 = scmp.eq.s32.totalorder %s29, 0
      %p329 = por %p327, %p328
      %s330 = ssub.s32 %s23, %s30
      %p331 = scmp.eq.s32.totalorder %s330, 0
      %s333 = sadd.s32 %s332, 1
      %s334 = scalar_select %p331, %s332, %s333
      %p337 = pneg %p331
      %p338 = scmp.eq.s32.totalorder %s23, 1
      %p339 = por %p337, %p338
      %p340 = scmp.ne.s32.totalorder %s332, %s335
      %p341 = scmp.eq.s32.totalorder %s23, 0
      %p342 = por %p340, %p341
      %p343 = scmp.ne.s32.totalorder %s332, %s335
      %p344 = scmp.eq.s32.totalorder %s28, 1
      %p345 = por %p343, %p344
      %p346 = scmp.ne.s32.totalorder %s335, %s336
      %p347 = scmp.eq.s32.totalorder %s28, 0
      %p348 = por %p346, %p347
      %p349 = scmp.ne.s32.totalorder %s335, %s336
      %p350 = scmp.eq.s32.totalorder %s29, 1
      %p351 = por %p349, %p350
      %p353 = scmp.ne.s32.totalorder %s336, %s352
      %p354 = scmp.eq.s32.totalorder %s29, 0
      %p355 = por %p353, %p354
      %p356 = scmp.le.s32.totalorder 1, %s23
      %p357 = scmp.lt.s32.totalorder %s23, 3
      %p358 = pnand %p356, %p357
      %p359 = pneg %p358
      // Predicated region
      $region9: #{partition_attention_2d_forward.1} parent=5 // pred_check
        _
      $region10: #{partition_attention_2d_forward.1} parent=5 // pred_check_branch
        %361 = sbr.rel (%p358) target = $region12
      $region11: #{partition_attention_2d_forward.1} parent=5 // pred_region
        %s362 = ssub.s32 %s23, 1
        // Predicated region
        $region13: #{partition_attention_2d_forward.1} parent=11 // pred_check
          %p363 = pneg %p70
        $region14: #{partition_attention_2d_forward.1} parent=11 // pred_check_branch
          %365 = sbr.rel (%p363) target = $region16
        $region15: #{partition_attention_2d_forward.1} parent=11 // pred_region
          _
        $region16: #{partition_attention_2d_forward.1} parent=11 // pred_fallthru
          _
        // Predicated region
        $region17: #{partition_attention_2d_forward.1} parent=11 // pred_check
          %p366 = pneg %p91
        $region18: #{partition_attention_2d_forward.1} parent=11 // pred_check_branch
          %368 = sbr.rel (%p366) target = $region20
        $region19: #{partition_attention_2d_forward.1} parent=11 // pred_region
          _
        $region20: #{partition_attention_2d_forward.1} parent=11 // pred_fallthru
          _
        // Predicated region
        $region21: #{partition_attention_2d_forward.1} parent=11 // pred_check
          %p369 = pneg %p112
        $region22: #{partition_attention_2d_forward.1} parent=11 // pred_check_branch
          %371 = sbr.rel (%p369) target = $region24
        $region23: #{partition_attention_2d_forward.1} parent=11 // pred_region
          _
        $region24: #{partition_attention_2d_forward.1} parent=11 // pred_fallthru
          _
        // Predicated region
        $region25: #{partition_attention_2d_forward.1} parent=11 // pred_check
          %p372 = pneg %p133
        $region26: #{partition_attention_2d_forward.1} parent=11 // pred_check_branch
          %374 = sbr.rel (%p372) target = $region28
        $region27: #{partition_attention_2d_forward.1} parent=11 // pred_region
          _
        $region28: #{partition_attention_2d_forward.1} parent=11 // pred_fallthru
          _
        // Predicated region
        $region29: #{partition_attention_2d_forward.1} parent=11 // pred_check
          %p375 = pneg %p154
        $region30: #{partition_attention_2d_forward.1} parent=11 // pred_check_branch
          %377 = sbr.rel (%p375) target = $region32
        $region31: #{partition_attention_2d_forward.1} parent=11 // pred_region
          _
        $region32: #{partition_attention_2d_forward.1} parent=11 // pred_fallthru
          _
        // Predicated region
        $region33: #{partition_attention_2d_forward.1} parent=11 // pred_check
          %p378 = pneg %p175
        $region34: #{partition_attention_2d_forward.1} parent=11 // pred_check_branch
          %380 = sbr.rel (%p378) target = $region36
        $region35: #{partition_attention_2d_forward.1} parent=11 // pred_region
          _
        $region36: #{partition_attention_2d_forward.1} parent=11 // pred_fallthru
          _
        // Predicated region
        $region37: #{partition_attention_2d_forward.1} parent=11 // pred_check
          %p381 = pneg %p196
        $region38: #{partition_attention_2d_forward.1} parent=11 // pred_check_branch
          %383 = sbr.rel (%p381) target = $region40
        $region39: #{partition_attention_2d_forward.1} parent=11 // pred_region
          _
        $region40: #{partition_attention_2d_forward.1} parent=11 // pred_fallthru
          _
        // Predicated region
        $region41: #{partition_attention_2d_forward.1} parent=11 // pred_check
          %p384 = pneg %p217
        $region42: #{partition_attention_2d_forward.1} parent=11 // pred_check_branch
          %386 = sbr.rel (%p384) target = $region44
        $region43: #{partition_attention_2d_forward.1} parent=11 // pred_region
          _
        $region44: #{partition_attention_2d_forward.1} parent=11 // pred_fallthru
          _
        // Predicated region
        $region45: #{partition_attention_2d_forward.1} parent=11 // pred_check
          %p387 = pneg %p238
        $region46: #{partition_attention_2d_forward.1} parent=11 // pred_check_branch
          %389 = sbr.rel (%p387) target = $region48
        $region47: #{partition_attention_2d_forward.1} parent=11 // pred_region
          _
        $region48: #{partition_attention_2d_forward.1} parent=11 // pred_fallthru
          _
        // Predicated region
        $region49: #{partition_attention_2d_forward.1} parent=11 // pred_check
          %p390 = pneg %p259
        $region50: #{partition_attention_2d_forward.1} parent=11 // pred_check_branch
          %392 = sbr.rel (%p390) target = $region52
        $region51: #{partition_attention_2d_forward.1} parent=11 // pred_region
          _
        $region52: #{partition_attention_2d_forward.1} parent=11 // pred_fallthru
          _
        // Predicated region
        $region53: #{partition_attention_2d_forward.1} parent=11 // pred_check
          %p393 = pneg %p280
        $region54: #{partition_attention_2d_forward.1} parent=11 // pred_check_branch
          %395 = sbr.rel (%p393) target = $region56
        $region55: #{partition_attention_2d_forward.1} parent=11 // pred_region
          _
        $region56: #{partition_attention_2d_forward.1} parent=11 // pred_fallthru
          _
        // Predicated region
        $region57: #{partition_attention_2d_forward.1} parent=11 // pred_check
          %p396 = pneg %p301
        $region58: #{partition_attention_2d_forward.1} parent=11 // pred_check_branch
          %398 = sbr.rel (%p396) target = $region60
        $region59: #{partition_attention_2d_forward.1} parent=11 // pred_region
          _
        $region60: #{partition_attention_2d_forward.1} parent=11 // pred_fallthru
          _
        // Predicated region
        $region61: #{partition_attention_2d_forward.1} parent=11 // pred_check
          %p399 = pneg %p322
        $region62: #{partition_attention_2d_forward.1} parent=11 // pred_check_branch
          %401 = sbr.rel (%p399) target = $region64
        $region63: #{partition_attention_2d_forward.1} parent=11 // pred_region
          _
        $region64: #{partition_attention_2d_forward.1} parent=11 // pred_fallthru
          _
      $region12: #{partition_attention_2d_forward.1} parent=5 // pred_fallthru
        _
      %p402 = scmp.lt.s32.totalorder %s23, 2
      // Predicated region
      $region65: #{partition_attention_2d_forward.1} parent=5 // pred_check
        %p403 = pneg %p402
      $region66: #{partition_attention_2d_forward.1} parent=5 // pred_check_branch
        %405 = sbr.rel (%p403) target = $region68
      $region67: #{partition_attention_2d_forward.1} parent=5 // pred_region
        // Predicated region
        $region69: #{partition_attention_2d_forward.1} parent=67 // pred_check
          %p406 = pneg %p43
        $region70: #{partition_attention_2d_forward.1} parent=67 // pred_check_branch
          %408 = sbr.rel (%p406) target = $region72
        $region71: #{partition_attention_2d_forward.1} parent=67 // pred_region
          %s409 = smul.u32 16, %s23
          %p410 = scmp.lt.s32.totalorder %s409, 31
          %s411 = scalar_select %p410, %s409, 31
          %s412 = smul.addr %s411, 2
          %s413 = smul.addr %s412, 8
          %s414 = scalar_lea.vmem %s0, %s413
          %s415 = smul.u32 16, %s23
        $region72: #{partition_attention_2d_forward.1} parent=67 // pred_fallthru
          _
      $region68: #{partition_attention_2d_forward.1} parent=5 // pred_fallthru
        _
      %p416 = scmp.le.s32.totalorder 1, %s23
      %p417 = scmp.lt.s32.totalorder %s23, 3
      %p418 = pnand %p416, %p417
      %p419 = pneg %p418
      // Predicated region
      $region73: #{partition_attention_2d_forward.1} parent=5 // pred_check
        _
      $region74: #{partition_attention_2d_forward.1} parent=5 // pred_check_branch
        %421 = sbr.rel (%p418) target = $region76
      $region75: #{partition_attention_2d_forward.1} parent=5 // pred_region
        %s422 = ssub.s32 %s23, 1
        %s423 = smul.u32 16, %s28
        %p424 = scmp.lt.s32.totalorder %s423, 31
        %s425 = scalar_select %p424, %s423, 31
        %s426 = smul.addr %s425, 2
        %s427 = smul.addr %s426, 8
        %s428 = scalar_lea.vmem %s0, %s427
        %p429 = pneg %p49
        %p430 = pneg %p46
        %p431 = pneg %p70
        %p432 = pneg %p67
        %p433 = pneg %p91
        %p434 = pneg %p88
        %p435 = pneg %p112
        %p436 = pneg %p109
        %p437 = pneg %p133
        %p438 = pneg %p130
        %p439 = pneg %p154
        %p440 = pneg %p151
        %p441 = pneg %p175
        %p442 = pneg %p172
        %p443 = pneg %p196
        %p444 = pneg %p193
        %p445 = pneg %p217
        %p446 = pneg %p214
        %p447 = pneg %p238
        %p448 = pneg %p235
        %p449 = pneg %p259
        %p450 = pneg %p256
        %p451 = pneg %p280
        %p452 = pneg %p277
        %p453 = pneg %p301
        %p454 = pneg %p298
        %p455 = pneg %p322
        %p456 = pneg %p319
        %p457 = pneg %p348
        %p458 = pneg %p345
        %s459 = sand.u32 %s335, 1
        %s460 = scalar_lea.sflag [#allocation3], %s459
        %s461 = sand.u32 %s335, 1
        %s462 = smul.addr %s461, 256
        %s463 = scalar_lea.vmem [#allocation2], %s462
        %s464 = smul.u32 16, %s28
        %p465 = scmp.lt.s32.totalorder %s464, 31
        %s466 = scalar_select %p465, %s464, 31
        %s467 = smul.addr %s466, 2
        %s468 = smul.addr %s467, 8
        %s469 = scalar_lea.vmem %s0, %s468
        %s470 = smul.u32 16, %s28
        %s471 = smul.u32 16, %s28
        %v473 = vld [vmem:[%s469] sm:$0xff]
        %v474 = vld [vmem:[%s469 + $0x8] sm:$0xff]
        %v475 = vld [vmem:[%s469 + $0x10] sm:$0xff]
        %v476 = vld [vmem:[%s469 + $0x18] sm:$0xff]
        %v477 = vld [vmem:[%s469 + $0x20] sm:$0xff]
        %v478 = vld [vmem:[%s469 + $0x28] sm:$0xff]
        %v479 = vld [vmem:[%s469 + $0x30] sm:$0xff]
        %v480 = vld [vmem:[%s469 + $0x38] sm:$0xff]
        %v481 = vld [vmem:[%s469 + $0x40] sm:$0xff]
        %v482 = vld [vmem:[%s469 + $0x48] sm:$0xff]
        %v483 = vld [vmem:[%s469 + $0x50] sm:$0xff]
        %v484 = vld [vmem:[%s469 + $0x58] sm:$0xff]
        %v485 = vld [vmem:[%s469 + $0x60] sm:$0xff]
        %v486 = vld [vmem:[%s469 + $0x68] sm:$0xff]
        %v487 = vld [vmem:[%s469 + $0x70] sm:$0xff]
        %v488 = vld [vmem:[%s469 + $0x78] sm:$0xff]
        %v489 = vld [vmem:[%s469 + $0x80] sm:$0xff]
        %v490 = vld [vmem:[%s469 + $0x88] sm:$0xff]
        %v491 = vld [vmem:[%s469 + $0x90] sm:$0xff]
        %v492 = vld [vmem:[%s469 + $0x98] sm:$0xff]
        %v493 = vld [vmem:[%s469 + $0xa0] sm:$0xff]
        %v494 = vld [vmem:[%s469 + $0xa8] sm:$0xff]
        %v495 = vld [vmem:[%s469 + $0xb0] sm:$0xff]
        %v496 = vld [vmem:[%s469 + $0xb8] sm:$0xff]
        %v497 = vld [vmem:[%s469 + $0xc0] sm:$0xff]
        %v498 = vld [vmem:[%s469 + $0xc8] sm:$0xff]
        %v499 = vld [vmem:[%s469 + $0xd0] sm:$0xff]
        %v500 = vld [vmem:[%s469 + $0xd8] sm:$0xff]
        %v501 = vld [vmem:[%s469 + $0xe0] sm:$0xff]
        %v502 = vld [vmem:[%s469 + $0xe8] sm:$0xff]
        %v503 = vld [vmem:[%s469 + $0xf0] sm:$0xff]
        %v504 = vld [vmem:[%s469 + $0xf8] sm:$0xff]
        %v505 = vld [vmem:[%s2] sm:$0x1]
        %v506 = vld [vmem:[%s3] sm:$0x1]
        %507 = vadd.xlane.f32.xlu0 %v473
        %v508 = vpop.xlane.xlu0 %507
        %509 = vadd.xlane.f32.xlu0 %v474
        %v510 = vpop.xlane.xlu0 %509
        %511 = vadd.xlane.f32.xlu0 %v475
        %v512 = vpop.xlane.xlu0 %511
        %513 = vadd.xlane.f32.xlu0 %v476
        %v514 = vpop.xlane.xlu0 %513
        %515 = vadd.xlane.f32.xlu0 %v477
        %v516 = vpop.xlane.xlu0 %515
        %517 = vadd.xlane.f32.xlu0 %v478
        %v518 = vpop.xlane.xlu0 %517
        %519 = vadd.xlane.f32.xlu0 %v479
        %v520 = vpop.xlane.xlu0 %519
        %521 = vadd.xlane.f32.xlu0 %v480
        %v522 = vpop.xlane.xlu0 %521
        %523 = vadd.xlane.f32.xlu0 %v481
        %v524 = vpop.xlane.xlu0 %523
        %525 = vadd.xlane.f32.xlu0 %v482
        %v526 = vpop.xlane.xlu0 %525
        %527 = vadd.xlane.f32.xlu0 %v483
        %v528 = vpop.xlane.xlu0 %527
        %529 = vadd.xlane.f32.xlu0 %v484
        %v530 = vpop.xlane.xlu0 %529
        %531 = vadd.xlane.f32.xlu0 %v485
        %v532 = vpop.xlane.xlu0 %531
        %533 = vadd.xlane.f32.xlu0 %v486
        %v534 = vpop.xlane.xlu0 %533
        %535 = vadd.xlane.f32.xlu0 %v487
        %v536 = vpop.xlane.xlu0 %535
        %537 = vadd.xlane.f32.xlu0 %v488
        %v538 = vpop.xlane.xlu0 %537
        %539 = vadd.xlane.f32.xlu0 %v489
        %v540 = vpop.xlane.xlu0 %539
        %541 = vadd.xlane.f32.xlu0 %v490
        %v542 = vpop.xlane.xlu0 %541
        %543 = vadd.xlane.f32.xlu0 %v491
        %v544 = vpop.xlane.xlu0 %543
        %545 = vadd.xlane.f32.xlu0 %v492
        %v546 = vpop.xlane.xlu0 %545
        %547 = vadd.xlane.f32.xlu0 %v493
        %v548 = vpop.xlane.xlu0 %547
        %549 = vadd.xlane.f32.xlu0 %v494
        %v550 = vpop.xlane.xlu0 %549
        %551 = vadd.xlane.f32.xlu0 %v495
        %v552 = vpop.xlane.xlu0 %551
        %553 = vadd.xlane.f32.xlu0 %v496
        %v554 = vpop.xlane.xlu0 %553
        %555 = vadd.xlane.f32.xlu0 %v497
        %v556 = vpop.xlane.xlu0 %555
        %557 = vadd.xlane.f32.xlu0 %v498
        %v558 = vpop.xlane.xlu0 %557
        %559 = vadd.xlane.f32.xlu0 %v499
        %v560 = vpop.xlane.xlu0 %559
        %561 = vadd.xlane.f32.xlu0 %v500
        %v562 = vpop.xlane.xlu0 %561
        %563 = vadd.xlane.f32.xlu0 %v501
        %v564 = vpop.xlane.xlu0 %563
        %565 = vadd.xlane.f32.xlu0 %v502
        %v566 = vpop.xlane.xlu0 %565
        %567 = vadd.xlane.f32.xlu0 %v503
        %v568 = vpop.xlane.xlu0 %567
        %569 = vadd.xlane.f32.xlu0 %v504
        %v570 = vpop.xlane.xlu0 %569
        %v571 = vrcp.pop 128.0
        %v572 = vmul.f32 128.0, %v571
        %v573 = vsub.f32 1.0, %v572
        %v574 = vmul.f32 %v571, %v573
        %v575 = vadd.f32 %v571, %v574
        %vm576 = vweird.f32 %v571
        %v577 = vsel %vm576, %v571, %v575
        %v578 = vmul.f32 %v508, %v577
        %v579 = vmul.f32 %v510, %v577
        %v580 = vmul.f32 %v512, %v577
        %v581 = vmul.f32 %v514, %v577
        %v582 = vmul.f32 %v516, %v577
        %v583 = vmul.f32 %v518, %v577
        %v584 = vmul.f32 %v520, %v577
        %v585 = vmul.f32 %v522, %v577
        %v586 = vmul.f32 %v524, %v577
        %v587 = vmul.f32 %v526, %v577
        %v588 = vmul.f32 %v528, %v577
        %v589 = vmul.f32 %v530, %v577
        %v590 = vmul.f32 %v532, %v577
        %v591 = vmul.f32 %v534, %v577
        %v592 = vmul.f32 %v536, %v577
        %v593 = vmul.f32 %v538, %v577
        %v594 = vmul.f32 %v540, %v577
        %v595 = vmul.f32 %v542, %v577
        %v596 = vmul.f32 %v544, %v577
        %v597 = vmul.f32 %v546, %v577
        %v598 = vmul.f32 %v548, %v577
        %v599 = vmul.f32 %v550, %v577
        %v600 = vmul.f32 %v552, %v577
        %v601 = vmul.f32 %v554, %v577
        %v602 = vmul.f32 %v556, %v577
        %v603 = vmul.f32 %v558, %v577
        %v604 = vmul.f32 %v560, %v577
        %v605 = vmul.f32 %v562, %v577
        %v606 = vmul.f32 %v564, %v577
        %v607 = vmul.f32 %v566, %v577
        %v608 = vmul.f32 %v568, %v577
        %v609 = vmul.f32 %v570, %v577
        %v610 = vsub.f32 %v473, %v578
        %v611 = vsub.f32 %v474, %v579
        %v612 = vsub.f32 %v475, %v580
        %v613 = vsub.f32 %v476, %v581
        %v614 = vsub.f32 %v477, %v582
        %v615 = vsub.f32 %v478, %v583
        %v616 = vsub.f32 %v479, %v584
        %v617 = vsub.f32 %v480, %v585
        %v618 = vsub.f32 %v481, %v586
        %v619 = vsub.f32 %v482, %v587
        %v620 = vsub.f32 %v483, %v588
        %v621 = vsub.f32 %v484, %v589
        %v622 = vsub.f32 %v485, %v590
        %v623 = vsub.f32 %v486, %v591
        %v624 = vsub.f32 %v487, %v592
        %v625 = vsub.f32 %v488, %v593
        %v626 = vsub.f32 %v489, %v594
        %v627 = vsub.f32 %v490, %v595
        %v628 = vsub.f32 %v491, %v596
        %v629 = vsub.f32 %v492, %v597
        %v630 = vsub.f32 %v493, %v598
        %v631 = vsub.f32 %v494, %v599
        %v632 = vsub.f32 %v495, %v600
        %v633 = vsub.f32 %v496, %v601
        %v634 = vsub.f32 %v497, %v602
        %v635 = vsub.f32 %v498, %v603
        %v636 = vsub.f32 %v499, %v604
        %v637 = vsub.f32 %v500, %v605
        %v638 = vsub.f32 %v501, %v606
        %v639 = vsub.f32 %v502, %v607
        %v640 = vsub.f32 %v503, %v608
        %v641 = vsub.f32 %v504, %v609
        %v642 = vmul.f32 %v610, %v610
        %v643 = vmul.f32 %v611, %v611
        %v644 = vmul.f32 %v612, %v612
        %v645 = vmul.f32 %v613, %v613
        %v646 = vmul.f32 %v614, %v614
        %v647 = vmul.f32 %v615, %v615
        %v648 = vmul.f32 %v616, %v616
        %v649 = vmul.f32 %v617, %v617
        %v650 = vmul.f32 %v618, %v618
        %v651 = vmul.f32 %v619, %v619
        %v652 = vmul.f32 %v620, %v620
        %v653 = vmul.f32 %v621, %v621
        %v654 = vmul.f32 %v622, %v622
        %v655 = vmul.f32 %v623, %v623
        %v656 = vmul.f32 %v624, %v624
        %v657 = vmul.f32 %v625, %v625
        %v658 = vmul.f32 %v626, %v626
        %v659 = vmul.f32 %v627, %v627
        %v660 = vmul.f32 %v628, %v628
        %v661 = vmul.f32 %v629, %v629
        %v662 = vmul.f32 %v630, %v630
        %v663 = vmul.f32 %v631, %v631
        %v664 = vmul.f32 %v632, %v632
        %v665 = vmul.f32 %v633, %v633
        %v666 = vmul.f32 %v634, %v634
        %v667 = vmul.f32 %v635, %v635
        %v668 = vmul.f32 %v636, %v636
        %v669 = vmul.f32 %v637, %v637
        %v670 = vmul.f32 %v638, %v638
        %v671 = vmul.f32 %v639, %v639
        %v672 = vmul.f32 %v640, %v640
        %v673 = vmul.f32 %v641, %v641
        %674 = vadd.xlane.f32.xlu0 %v642
        %v675 = vpop.xlane.xlu0 %674
        %676 = vadd.xlane.f32.xlu0 %v643
        %v677 = vpop.xlane.xlu0 %676
        %678 = vadd.xlane.f32.xlu0 %v644
        %v679 = vpop.xlane.xlu0 %678
        %680 = vadd.xlane.f32.xlu0 %v645
        %v681 = vpop.xlane.xlu0 %680
        %682 = vadd.xlane.f32.xlu0 %v646
        %v683 = vpop.xlane.xlu0 %682
        %684 = vadd.xlane.f32.xlu0 %v647
        %v685 = vpop.xlane.xlu0 %684
        %686 = vadd.xlane.f32.xlu0 %v648
        %v687 = vpop.xlane.xlu0 %686
        %688 = vadd.xlane.f32.xlu0 %v649
        %v689 = vpop.xlane.xlu0 %688
        %690 = vadd.xlane.f32.xlu0 %v650
        %v691 = vpop.xlane.xlu0 %690
        %692 = vadd.xlane.f32.xlu0 %v651
        %v693 = vpop.xlane.xlu0 %692
        %694 = vadd.xlane.f32.xlu0 %v652
        %v695 = vpop.xlane.xlu0 %694
        %696 = vadd.xlane.f32.xlu0 %v653
        %v697 = vpop.xlane.xlu0 %696
        %698 = vadd.xlane.f32.xlu0 %v654
        %v699 = vpop.xlane.xlu0 %698
        %700 = vadd.xlane.f32.xlu0 %v655
        %v701 = vpop.xlane.xlu0 %700
        %702 = vadd.xlane.f32.xlu0 %v656
        %v703 = vpop.xlane.xlu0 %702
        %704 = vadd.xlane.f32.xlu0 %v657
        %v705 = vpop.xlane.xlu0 %704
        %706 = vadd.xlane.f32.xlu0 %v658
        %v707 = vpop.xlane.xlu0 %706
        %708 = vadd.xlane.f32.xlu0 %v659
        %v709 = vpop.xlane.xlu0 %708
        %710 = vadd.xlane.f32.xlu0 %v660
        %v711 = vpop.xlane.xlu0 %710
        %712 = vadd.xlane.f32.xlu0 %v661
        %v713 = vpop.xlane.xlu0 %712
        %714 = vadd.xlane.f32.xlu0 %v662
        %v715 = vpop.xlane.xlu0 %714
        %716 = vadd.xlane.f32.xlu0 %v663
        %v717 = vpop.xlane.xlu0 %716
        %718 = vadd.xlane.f32.xlu0 %v664
        %v719 = vpop.xlane.xlu0 %718
        %720 = vadd.xlane.f32.xlu0 %v665
        %v721 = vpop.xlane.xlu0 %720
        %722 = vadd.xlane.f32.xlu0 %v666
        %v723 = vpop.xlane.xlu0 %722
        %724 = vadd.xlane.f32.xlu0 %v667
        %v725 = vpop.xlane.xlu0 %724
        %726 = vadd.xlane.f32.xlu0 %v668
        %v727 = vpop.xlane.xlu0 %726
        %728 = vadd.xlane.f32.xlu0 %v669
        %v729 = vpop.xlane.xlu0 %728
        %730 = vadd.xlane.f32.xlu0 %v670
        %v731 = vpop.xlane.xlu0 %730
        %732 = vadd.xlane.f32.xlu0 %v671
        %v733 = vpop.xlane.xlu0 %732
        %734 = vadd.xlane.f32.xlu0 %v672
        %v735 = vpop.xlane.xlu0 %734
        %736 = vadd.xlane.f32.xlu0 %v673
        %v737 = vpop.xlane.xlu0 %736
        %v738 = vmul.f32 %v675, %v577
        %v739 = vmul.f32 %v677, %v577
        %v740 = vmul.f32 %v679, %v577
        %v741 = vmul.f32 %v681, %v577
        %v742 = vmul.f32 %v683, %v577
        %v743 = vmul.f32 %v685, %v577
        %v744 = vmul.f32 %v687, %v577
        %v745 = vmul.f32 %v689, %v577
        %v746 = vmul.f32 %v691, %v577
        %v747 = vmul.f32 %v693, %v577
        %v748 = vmul.f32 %v695, %v577
        %v749 = vmul.f32 %v697, %v577
        %v750 = vmul.f32 %v699, %v577
        %v751 = vmul.f32 %v701, %v577
        %v752 = vmul.f32 %v703, %v577
        %v753 = vmul.f32 %v705, %v577
        %v754 = vmul.f32 %v707, %v577
        %v755 = vmul.f32 %v709, %v577
        %v756 = vmul.f32 %v711, %v577
        %v757 = vmul.f32 %v713, %v577
        %v758 = vmul.f32 %v715, %v577
        %v759 = vmul.f32 %v717, %v577
        %v760 = vmul.f32 %v719, %v577
        %v761 = vmul.f32 %v721, %v577
        %v762 = vmul.f32 %v723, %v577
        %v763 = vmul.f32 %v725, %v577
        %v764 = vmul.f32 %v727, %v577
        %v765 = vmul.f32 %v729, %v577
        %v766 = vmul.f32 %v731, %v577
        %v767 = vmul.f32 %v733, %v577
        %v768 = vmul.f32 %v735, %v577
        %v769 = vmul.f32 %v737, %v577
        %v770 = vadd.f32 %v738, 1e-06
        %v771 = vadd.f32 %v739, 1e-06
        %v772 = vadd.f32 %v740, 1e-06
        %v773 = vadd.f32 %v741, 1e-06
        %v774 = vadd.f32 %v742, 1e-06
        %v775 = vadd.f32 %v743, 1e-06
        %v776 = vadd.f32 %v744, 1e-06
        %v777 = vadd.f32 %v745, 1e-06
        %v778 = vadd.f32 %v746, 1e-06
        %v779 = vadd.f32 %v747, 1e-06
        %v780 = vadd.f32 %v748, 1e-06
        %v781 = vadd.f32 %v749, 1e-06
        %v782 = vadd.f32 %v750, 1e-06
        %v783 = vadd.f32 %v751, 1e-06
        %v784 = vadd.f32 %v752, 1e-06
        %v785 = vadd.f32 %v753, 1e-06
        %v786 = vadd.f32 %v754, 1e-06
        %v787 = vadd.f32 %v755, 1e-06
        %v788 = vadd.f32 %v756, 1e-06
        %v789 = vadd.f32 %v757, 1e-06
        %v790 = vadd.f32 %v758, 1e-06
        %v791 = vadd.f32 %v759, 1e-06
        %v792 = vadd.f32 %v760, 1e-06
        %v793 = vadd.f32 %v761, 1e-06
        %v794 = vadd.f32 %v762, 1e-06
        %v795 = vadd.f32 %v763, 1e-06
        %v796 = vadd.f32 %v764, 1e-06
        %v797 = vadd.f32 %v765, 1e-06
        %v798 = vadd.f32 %v766, 1e-06
        %v799 = vadd.f32 %v767, 1e-06
        %v800 = vadd.f32 %v768, 1e-06
        %v801 = vadd.f32 %v769, 1e-06
        %v802 = vrsqrt.pop %v770
        %v803 = vmul.f32 %v802, %v770
        %v804 = vmul.f32 %v803, %v802
        %v805 = vmul.f32 0.5, %v804
        %v806 = vsub.f32 1.5, %v805
        %v807 = vmul.f32 %v802, %v806
        %vm808 = vweird.f32 %v770
        %vm809 = vweird.f32 %v802
        %vm810 = vmor %vm808, %vm809
        %v811 = vsel %vm810, %v802, %v807
        %v812 = vrsqrt.pop %v771
        %v813 = vmul.f32 %v812, %v771
        %v814 = vmul.f32 %v813, %v812
        %v815 = vmul.f32 0.5, %v814
        %v816 = vsub.f32 1.5, %v815
        %v817 = vmul.f32 %v812, %v816
        %vm818 = vweird.f32 %v771
        %vm819 = vweird.f32 %v812
        %vm820 = vmor %vm818, %vm819
        %v821 = vsel %vm820, %v812, %v817
        %v822 = vrsqrt.pop %v772
        %v823 = vmul.f32 %v822, %v772
        %v824 = vmul.f32 %v823, %v822
        %v825 = vmul.f32 0.5, %v824
        %v826 = vsub.f32 1.5, %v825
        %v827 = vmul.f32 %v822, %v826
        %vm828 = vweird.f32 %v772
        %vm829 = vweird.f32 %v822
        %vm830 = vmor %vm828, %vm829
        %v831 = vsel %vm830, %v822, %v827
        %v832 = vrsqrt.pop %v773
        %v833 = vmul.f32 %v832, %v773
        %v834 = vmul.f32 %v833, %v832
        %v835 = vmul.f32 0.5, %v834
        %v836 = vsub.f32 1.5, %v835
        %v837 = vmul.f32 %v832, %v836
        %vm838 = vweird.f32 %v773
        %vm839 = vweird.f32 %v832
        %vm840 = vmor %vm838, %vm839
        %v841 = vsel %vm840, %v832, %v837
        %v842 = vrsqrt.pop %v774
        %v843 = vmul.f32 %v842, %v774
        %v844 = vmul.f32 %v843, %v842
        %v845 = vmul.f32 0.5, %v844
        %v846 = vsub.f32 1.5, %v845
        %v847 = vmul.f32 %v842, %v846
        %vm848 = vweird.f32 %v774
        %vm849 = vweird.f32 %v842
        %vm850 = vmor %vm848, %vm849
        %v851 = vsel %vm850, %v842, %v847
        %v852 = vrsqrt.pop %v775
        %v853 = vmul.f32 %v852, %v775
        %v854 = vmul.f32 %v853, %v852
        %v855 = vmul.f32 0.5, %v854
        %v856 = vsub.f32 1.5, %v855
        %v857 = vmul.f32 %v852, %v856
        %vm858 = vweird.f32 %v775
        %vm859 = vweird.f32 %v852
        %vm860 = vmor %vm858, %vm859
        %v861 = vsel %vm860, %v852, %v857
        %v862 = vrsqrt.pop %v776
        %v863 = vmul.f32 %v862, %v776
        %v864 = vmul.f32 %v863, %v862
        %v865 = vmul.f32 0.5, %v864
        %v866 = vsub.f32 1.5, %v865
        %v867 = vmul.f32 %v862, %v866
        %vm868 = vweird.f32 %v776
        %vm869 = vweird.f32 %v862
        %vm870 = vmor %vm868, %vm869
        %v871 = vsel %vm870, %v862, %v867
        %v872 = vrsqrt.pop %v777
        %v873 = vmul.f32 %v872, %v777
        %v874 = vmul.f32 %v873, %v872
        %v875 = vmul.f32 0.5, %v874
        %v876 = vsub.f32 1.5, %v875
        %v877 = vmul.f32 %v872, %v876
        %vm878 = vweird.f32 %v777
        %vm879 = vweird.f32 %v872
        %vm880 = vmor %vm878, %vm879
        %v881 = vsel %vm880, %v872, %v877
        %v882 = vrsqrt.pop %v778
        %v883 = vmul.f32 %v882, %v778
        %v884 = vmul.f32 %v883, %v882
        %v885 = vmul.f32 0.5, %v884
        %v886 = vsub.f32 1.5, %v885
        %v887 = vmul.f32 %v882, %v886
        %vm888 = vweird.f32 %v778
        %vm889 = vweird.f32 %v882
        %vm890 = vmor %vm888, %vm889
        %v891 = vsel %vm890, %v882, %v887
        %v892 = vrsqrt.pop %v779
        %v893 = vmul.f32 %v892, %v779
        %v894 = vmul.f32 %v893, %v892
        %v895 = vmul.f32 0.5, %v894
        %v896 = vsub.f32 1.5, %v895
        %v897 = vmul.f32 %v892, %v896
        %vm898 = vweird.f32 %v779
        %vm899 = vweird.f32 %v892
        %vm900 = vmor %vm898, %vm899
        %v901 = vsel %vm900, %v892, %v897
        %v902 = vrsqrt.pop %v780
        %v903 = vmul.f32 %v902, %v780
        %v904 = vmul.f32 %v903, %v902
        %v905 = vmul.f32 0.5, %v904
        %v906 = vsub.f32 1.5, %v905
        %v907 = vmul.f32 %v902, %v906
        %vm908 = vweird.f32 %v780
        %vm909 = vweird.f32 %v902
        %vm910 = vmor %vm908, %vm909
        %v911 = vsel %vm910, %v902, %v907
        %v912 = vrsqrt.pop %v781
        %v913 = vmul.f32 %v912, %v781
        %v914 = vmul.f32 %v913, %v912
        %v915 = vmul.f32 0.5, %v914
        %v916 = vsub.f32 1.5, %v915
        %v917 = vmul.f32 %v912, %v916
        %vm918 = vweird.f32 %v781
        %vm919 = vweird.f32 %v912
        %vm920 = vmor %vm918, %vm919
        %v921 = vsel %vm920, %v912, %v917
        %v922 = vrsqrt.pop %v782
        %v923 = vmul.f32 %v922, %v782
        %v924 = vmul.f32 %v923, %v922
        %v925 = vmul.f32 0.5, %v924
        %v926 = vsub.f32 1.5, %v925
        %v927 = vmul.f32 %v922, %v926
        %vm928 = vweird.f32 %v782
        %vm929 = vweird.f32 %v922
        %vm930 = vmor %vm928, %vm929
        %v931 = vsel %vm930, %v922, %v927
        %v932 = vrsqrt.pop %v783
        %v933 = vmul.f32 %v932, %v783
        %v934 = vmul.f32 %v933, %v932
        %v935 = vmul.f32 0.5, %v934
        %v936 = vsub.f32 1.5, %v935
        %v937 = vmul.f32 %v932, %v936
        %vm938 = vweird.f32 %v783
        %vm939 = vweird.f32 %v932
        %vm940 = vmor %vm938, %vm939
        %v941 = vsel %vm940, %v932, %v937
        %v942 = vrsqrt.pop %v784
        %v943 = vmul.f32 %v942, %v784
        %v944 = vmul.f32 %v943, %v942
        %v945 = vmul.f32 0.5, %v944
        %v946 = vsub.f32 1.5, %v945
        %v947 = vmul.f32 %v942, %v946
        %vm948 = vweird.f32 %v784
        %vm949 = vweird.f32 %v942
        %vm950 = vmor %vm948, %vm949
        %v951 = vsel %vm950, %v942, %v947
        %v952 = vrsqrt.pop %v785
        %v953 = vmul.f32 %v952, %v785
        %v954 = vmul.f32 %v953, %v952
        %v955 = vmul.f32 0.5, %v954
        %v956 = vsub.f32 1.5, %v955
        %v957 = vmul.f32 %v952, %v956
        %vm958 = vweird.f32 %v785
        %vm959 = vweird.f32 %v952
        %vm960 = vmor %vm958, %vm959
        %v961 = vsel %vm960, %v952, %v957
        %v962 = vrsqrt.pop %v786
        %v963 = vmul.f32 %v962, %v786
        %v964 = vmul.f32 %v963, %v962
        %v965 = vmul.f32 0.5, %v964
        %v966 = vsub.f32 1.5, %v965
        %v967 = vmul.f32 %v962, %v966
        %vm968 = vweird.f32 %v786
        %vm969 = vweird.f32 %v962
        %vm970 = vmor %vm968, %vm969
        %v971 = vsel %vm970, %v962, %v967
        %v972 = vrsqrt.pop %v787
        %v973 = vmul.f32 %v972, %v787
        %v974 = vmul.f32 %v973, %v972
        %v975 = vmul.f32 0.5, %v974
        %v976 = vsub.f32 1.5, %v975
        %v977 = vmul.f32 %v972, %v976
        %vm978 = vweird.f32 %v787
        %vm979 = vweird.f32 %v972
        %vm980 = vmor %vm978, %vm979
        %v981 = vsel %vm980, %v972, %v977
        %v982 = vrsqrt.pop %v788
        %v983 = vmul.f32 %v982, %v788
        %v984 = vmul.f32 %v983, %v982
        %v985 = vmul.f32 0.5, %v984
        %v986 = vsub.f32 1.5, %v985
        %v987 = vmul.f32 %v982, %v986
        %vm988 = vweird.f32 %v788
        %vm989 = vweird.f32 %v982
        %vm990 = vmor %vm988, %vm989
        %v991 = vsel %vm990, %v982, %v987
        %v992 = vrsqrt.pop %v789
        %v993 = vmul.f32 %v992, %v789
        %v994 = vmul.f32 %v993, %v992
        %v995 = vmul.f32 0.5, %v994
        %v996 = vsub.f32 1.5, %v995
        %v997 = vmul.f32 %v992, %v996
        %vm998 = vweird.f32 %v789
        %vm999 = vweird.f32 %v992
        %vm1000 = vmor %vm998, %vm999
        %v1001 = vsel %vm1000, %v992, %v997
        %v1002 = vrsqrt.pop %v790
        %v1003 = vmul.f32 %v1002, %v790
        %v1004 = vmul.f32 %v1003, %v1002
        %v1005 = vmul.f32 0.5, %v1004
        %v1006 = vsub.f32 1.5, %v1005
        %v1007 = vmul.f32 %v1002, %v1006
        %vm1008 = vweird.f32 %v790
        %vm1009 = vweird.f32 %v1002
        %vm1010 = vmor %vm1008, %vm1009
        %v1011 = vsel %vm1010, %v1002, %v1007
        %v1012 = vrsqrt.pop %v791
        %v1013 = vmul.f32 %v1012, %v791
        %v1014 = vmul.f32 %v1013, %v1012
        %v1015 = vmul.f32 0.5, %v1014
        %v1016 = vsub.f32 1.5, %v1015
        %v1017 = vmul.f32 %v1012, %v1016
        %vm1018 = vweird.f32 %v791
        %vm1019 = vweird.f32 %v1012
        %vm1020 = vmor %vm1018, %vm1019
        %v1021 = vsel %vm1020, %v1012, %v1017
        %v1022 = vrsqrt.pop %v792
        %v1023 = vmul.f32 %v1022, %v792
        %v1024 = vmul.f32 %v1023, %v1022
        %v1025 = vmul.f32 0.5, %v1024
        %v1026 = vsub.f32 1.5, %v1025
        %v1027 = vmul.f32 %v1022, %v1026
        %vm1028 = vweird.f32 %v792
        %vm1029 = vweird.f32 %v1022
        %vm1030 = vmor %vm1028, %vm1029
        %v1031 = vsel %vm1030, %v1022, %v1027
        %v1032 = vrsqrt.pop %v793
        %v1033 = vmul.f32 %v1032, %v793
        %v1034 = vmul.f32 %v1033, %v1032
        %v1035 = vmul.f32 0.5, %v1034
        %v1036 = vsub.f32 1.5, %v1035
        %v1037 = vmul.f32 %v1032, %v1036
        %vm1038 = vweird.f32 %v793
        %vm1039 = vweird.f32 %v1032
        %vm1040 = vmor %vm1038, %vm1039
        %v1041 = vsel %vm1040, %v1032, %v1037
        %v1042 = vrsqrt.pop %v794
        %v1043 = vmul.f32 %v1042, %v794
        %v1044 = vmul.f32 %v1043, %v1042
        %v1045 = vmul.f32 0.5, %v1044
        %v1046 = vsub.f32 1.5, %v1045
        %v1047 = vmul.f32 %v1042, %v1046
        %vm1048 = vweird.f32 %v794
        %vm1049 = vweird.f32 %v1042
        %vm1050 = vmor %vm1048, %vm1049
        %v1051 = vsel %vm1050, %v1042, %v1047
        %v1052 = vrsqrt.pop %v795
        %v1053 = vmul.f32 %v1052, %v795
        %v1054 = vmul.f32 %v1053, %v1052
        %v1055 = vmul.f32 0.5, %v1054
        %v1056 = vsub.f32 1.5, %v1055
        %v1057 = vmul.f32 %v1052, %v1056
        %vm1058 = vweird.f32 %v795
        %vm1059 = vweird.f32 %v1052
        %vm1060 = vmor %vm1058, %vm1059
        %v1061 = vsel %vm1060, %v1052, %v1057
        %v1062 = vrsqrt.pop %v796
        %v1063 = vmul.f32 %v1062, %v796
        %v1064 = vmul.f32 %v1063, %v1062
        %v1065 = vmul.f32 0.5, %v1064
        %v1066 = vsub.f32 1.5, %v1065
        %v1067 = vmul.f32 %v1062, %v1066
        %vm1068 = vweird.f32 %v796
        %vm1069 = vweird.f32 %v1062
        %vm1070 = vmor %vm1068, %vm1069
        %v1071 = vsel %vm1070, %v1062, %v1067
        %v1072 = vrsqrt.pop %v797
        %v1073 = vmul.f32 %v1072, %v797
        %v1074 = vmul.f32 %v1073, %v1072
        %v1075 = vmul.f32 0.5, %v1074
        %v1076 = vsub.f32 1.5, %v1075
        %v1077 = vmul.f32 %v1072, %v1076
        %vm1078 = vweird.f32 %v797
        %vm1079 = vweird.f32 %v1072
        %vm1080 = vmor %vm1078, %vm1079
        %v1081 = vsel %vm1080, %v1072, %v1077
        %v1082 = vrsqrt.pop %v798
        %v1083 = vmul.f32 %v1082, %v798
        %v1084 = vmul.f32 %v1083, %v1082
        %v1085 = vmul.f32 0.5, %v1084
        %v1086 = vsub.f32 1.5, %v1085
        %v1087 = vmul.f32 %v1082, %v1086
        %vm1088 = vweird.f32 %v798
        %vm1089 = vweird.f32 %v1082
        %vm1090 = vmor %vm1088, %vm1089
        %v1091 = vsel %vm1090, %v1082, %v1087
        %v1092 = vrsqrt.pop %v799
        %v1093 = vmul.f32 %v1092, %v799
        %v1094 = vmul.f32 %v1093, %v1092
        %v1095 = vmul.f32 0.5, %v1094
        %v1096 = vsub.f32 1.5, %v1095
        %v1097 = vmul.f32 %v1092, %v1096
        %vm1098 = vweird.f32 %v799
        %vm1099 = vweird.f32 %v1092
        %vm1100 = vmor %vm1098, %vm1099
        %v1101 = vsel %vm1100, %v1092, %v1097
        %v1102 = vrsqrt.pop %v800
        %v1103 = vmul.f32 %v1102, %v800
        %v1104 = vmul.f32 %v1103, %v1102
        %v1105 = vmul.f32 0.5, %v1104
        %v1106 = vsub.f32 1.5, %v1105
        %v1107 = vmul.f32 %v1102, %v1106
        %vm1108 = vweird.f32 %v800
        %vm1109 = vweird.f32 %v1102
        %vm1110 = vmor %vm1108, %vm1109
        %v1111 = vsel %vm1110, %v1102, %v1107
        %v1112 = vrsqrt.pop %v801
        %v1113 = vmul.f32 %v1112, %v801
        %v1114 = vmul.f32 %v1113, %v1112
        %v1115 = vmul.f32 0.5, %v1114
        %v1116 = vsub.f32 1.5, %v1115
        %v1117 = vmul.f32 %v1112, %v1116
        %vm1118 = vweird.f32 %v801
        %vm1119 = vweird.f32 %v1112
        %vm1120 = vmor %vm1118, %vm1119
        %v1121 = vsel %vm1120, %v1112, %v1117
        %v1122 = vmul.f32 %v610, %v811
        %v1123 = vmul.f32 %v611, %v821
        %v1124 = vmul.f32 %v612, %v831
        %v1125 = vmul.f32 %v613, %v841
        %v1126 = vmul.f32 %v614, %v851
        %v1127 = vmul.f32 %v615, %v861
        %v1128 = vmul.f32 %v616, %v871
        %v1129 = vmul.f32 %v617, %v881
        %v1130 = vmul.f32 %v618, %v891
        %v1131 = vmul.f32 %v619, %v901
        %v1132 = vmul.f32 %v620, %v911
        %v1133 = vmul.f32 %v621, %v921
        %v1134 = vmul.f32 %v622, %v931
        %v1135 = vmul.f32 %v623, %v941
        %v1136 = vmul.f32 %v624, %v951
        %v1137 = vmul.f32 %v625, %v961
        %v1138 = vmul.f32 %v626, %v971
        %v1139 = vmul.f32 %v627, %v981
        %v1140 = vmul.f32 %v628, %v991
        %v1141 = vmul.f32 %v629, %v1001
        %v1142 = vmul.f32 %v630, %v1011
        %v1143 = vmul.f32 %v631, %v1021
        %v1144 = vmul.f32 %v632, %v1031
        %v1145 = vmul.f32 %v633, %v1041
        %v1146 = vmul.f32 %v634, %v1051
        %v1147 = vmul.f32 %v635, %v1061
        %v1148 = vmul.f32 %v636, %v1071
        %v1149 = vmul.f32 %v637, %v1081
        %v1150 = vmul.f32 %v638, %v1091
        %v1151 = vmul.f32 %v639, %v1101
        %v1152 = vmul.f32 %v640, %v1111
        %v1153 = vmul.f32 %v641, %v1121
        %v1155 = vperm.slane %v505, 0
        %v1157 = vmul.f32 %v1122, %v1155
        %v1158 = vmul.f32 %v1123, %v1155
        %v1159 = vmul.f32 %v1124, %v1155
        %v1160 = vmul.f32 %v1125, %v1155
        %v1161 = vmul.f32 %v1126, %v1155
        %v1162 = vmul.f32 %v1127, %v1155
        %v1163 = vmul.f32 %v1128, %v1155
        %v1164 = vmul.f32 %v1129, %v1155
        %v1165 = vmul.f32 %v1130, %v1155
        %v1166 = vmul.f32 %v1131, %v1155
        %v1167 = vmul.f32 %v1132, %v1155
        %v1168 = vmul.f32 %v1133, %v1155
        %v1169 = vmul.f32 %v1134, %v1155
        %v1170 = vmul.f32 %v1135, %v1155
        %v1171 = vmul.f32 %v1136, %v1155
        %v1172 = vmul.f32 %v1137, %v1155
        %v1173 = vmul.f32 %v1138, %v1155
        %v1174 = vmul.f32 %v1139, %v1155
        %v1175 = vmul.f32 %v1140, %v1155
        %v1176 = vmul.f32 %v1141, %v1155
        %v1177 = vmul.f32 %v1142, %v1155
        %v1178 = vmul.f32 %v1143, %v1155
        %v1179 = vmul.f32 %v1144, %v1155
        %v1180 = vmul.f32 %v1145, %v1155
        %v1181 = vmul.f32 %v1146, %v1155
        %v1182 = vmul.f32 %v1147, %v1155
        %v1183 = vmul.f32 %v1148, %v1155
        %v1184 = vmul.f32 %v1149, %v1155
        %v1185 = vmul.f32 %v1150, %v1155
        %v1186 = vmul.f32 %v1151, %v1155
        %v1187 = vmul.f32 %v1152, %v1155
        %v1188 = vmul.f32 %v1153, %v1155
        %v1190 = vperm.slane %v506, 0
        %v1192 = vadd.f32 %v1157, %v1190
        %v1193 = vadd.f32 %v1158, %v1190
        %v1194 = vadd.f32 %v1159, %v1190
        %v1195 = vadd.f32 %v1160, %v1190
        %v1196 = vadd.f32 %v1161, %v1190
        %v1197 = vadd.f32 %v1162, %v1190
        %v1198 = vadd.f32 %v1163, %v1190
        %v1199 = vadd.f32 %v1164, %v1190
        %v1200 = vadd.f32 %v1165, %v1190
        %v1201 = vadd.f32 %v1166, %v1190
        %v1202 = vadd.f32 %v1167, %v1190
        %v1203 = vadd.f32 %v1168, %v1190
        %v1204 = vadd.f32 %v1169, %v1190
        %v1205 = vadd.f32 %v1170, %v1190
        %v1206 = vadd.f32 %v1171, %v1190
        %v1207 = vadd.f32 %v1172, %v1190
        %v1208 = vadd.f32 %v1173, %v1190
        %v1209 = vadd.f32 %v1174, %v1190
        %v1210 = vadd.f32 %v1175, %v1190
        %v1211 = vadd.f32 %v1176, %v1190
        %v1212 = vadd.f32 %v1177, %v1190
        %v1213 = vadd.f32 %v1178, %v1190
        %v1214 = vadd.f32 %v1179, %v1190
        %v1215 = vadd.f32 %v1180, %v1190
        %v1216 = vadd.f32 %v1181, %v1190
        %v1217 = vadd.f32 %v1182, %v1190
        %v1218 = vadd.f32 %v1183, %v1190
        %v1219 = vadd.f32 %v1184, %v1190
        %v1220 = vadd.f32 %v1185, %v1190
        %v1221 = vadd.f32 %v1186, %v1190
        %v1222 = vadd.f32 %v1187, %v1190
        %v1223 = vadd.f32 %v1188, %v1190
        %v1224 = vpack.c.bf16 %v1193, %v1192
        %v1225 = vpack.c.bf16 %v1195, %v1194
        %v1226 = vpack.c.bf16 %v1197, %v1196
        %v1227 = vpack.c.bf16 %v1199, %v1198
        %v1228 = vpack.c.bf16 %v1201, %v1200
        %v1229 = vpack.c.bf16 %v1203, %v1202
        %v1230 = vpack.c.bf16 %v1205, %v1204
        %v1231 = vpack.c.bf16 %v1207, %v1206
        %v1232 = vpack.c.bf16 %v1209, %v1208
        %v1233 = vpack.c.bf16 %v1211, %v1210
        %v1234 = vpack.c.bf16 %v1213, %v1212
        %v1235 = vpack.c.bf16 %v1215, %v1214
        %v1236 = vpack.c.bf16 %v1217, %v1216
        %v1237 = vpack.c.bf16 %v1219, %v1218
        %v1238 = vpack.c.bf16 %v1221, %v1220
        %v1239 = vpack.c.bf16 %v1223, %v1222
        %v1240 = vld [vmem:[%s4] sm:$0xff]
        %v1241 = vld [vmem:[%s4 + $0x8] sm:$0xf]
        %v1242 = vld [vmem:[%s4 + $0xc] sm:$0xff]
        %v1243 = vld [vmem:[%s4 + $0x14] sm:$0xf]
        %v1244 = vld [vmem:[%s4 + $0x18] sm:$0xff]
        %v1245 = vld [vmem:[%s4 + $0x20] sm:$0xf]
        %v1246 = vld [vmem:[%s4 + $0x24] sm:$0xff]
        %v1247 = vld [vmem:[%s4 + $0x2c] sm:$0xf]
        %v1248 = vld [vmem:[%s4 + $0x30] sm:$0xff]
        %v1249 = vld [vmem:[%s4 + $0x38] sm:$0xf]
        %v1250 = vld [vmem:[%s4 + $0x3c] sm:$0xff]
        %v1251 = vld [vmem:[%s4 + $0x44] sm:$0xf]
        %v1252 = vld [vmem:[%s4 + $0x48] sm:$0xff]
        %v1253 = vld [vmem:[%s4 + $0x50] sm:$0xf]
        %v1254 = vld [vmem:[%s4 + $0x54] sm:$0xff]
        %v1255 = vld [vmem:[%s4 + $0x5c] sm:$0xf]
        %v1256 = vld [vmem:[%s4 + $0x60] sm:$0xff]
        %v1257 = vld [vmem:[%s4 + $0x68] sm:$0xf]
        %v1258 = vld [vmem:[%s4 + $0x6c] sm:$0xff]
        %v1259 = vld [vmem:[%s4 + $0x74] sm:$0xf]
        %v1260 = vld [vmem:[%s4 + $0x78] sm:$0xff]
        %v1261 = vld [vmem:[%s4 + $0x80] sm:$0xf]
        %v1262 = vld [vmem:[%s4 + $0x84] sm:$0xff]
        %v1263 = vld [vmem:[%s4 + $0x8c] sm:$0xf]
        %v1264 = vld [vmem:[%s4 + $0x90] sm:$0xff]
        %v1265 = vld [vmem:[%s4 + $0x98] sm:$0xf]
        %v1266 = vld [vmem:[%s4 + $0x9c] sm:$0xff]
        %v1267 = vld [vmem:[%s4 + $0xa4] sm:$0xf]
        %v1268 = vld [vmem:[%s4 + $0xa8] sm:$0xff]
        %v1269 = vld [vmem:[%s4 + $0xb0] sm:$0xf]
        %v1270 = vld [vmem:[%s4 + $0xb4] sm:$0xff]
        %v1271 = vld [vmem:[%s4 + $0xbc] sm:$0xf]
        %v1272 = vld [vmem:[%s5] sm:$0x7]
        %v1274 = vperm.slane %v1272, 0
        %v1275 = vperm.slane %v1272, 1
        %v1276 = vperm.slane %v1272, 2
        %v1312 = vunpack.c.l.b16 %v1240
        %v1313 = vunpack.c.h.b16 %v1240
        %v1314 = vunpack.c.l.b16 %v1241
        %v1315 = vunpack.c.l.b16 %v1242
        %v1316 = vunpack.c.h.b16 %v1242
        %v1317 = vunpack.c.l.b16 %v1243
        %v1318 = vunpack.c.l.b16 %v1244
        %v1319 = vunpack.c.h.b16 %v1244
        %v1320 = vunpack.c.l.b16 %v1245
        %v1321 = vunpack.c.l.b16 %v1246
        %v1322 = vunpack.c.h.b16 %v1246
        %v1323 = vunpack.c.l.b16 %v1247
        %v1324 = vunpack.c.l.b16 %v1248
        %v1325 = vunpack.c.h.b16 %v1248
        %v1326 = vunpack.c.l.b16 %v1249
        %v1327 = vunpack.c.l.b16 %v1250
        %v1328 = vunpack.c.h.b16 %v1250
        %v1329 = vunpack.c.l.b16 %v1251
        %v1330 = vunpack.c.l.b16 %v1252
        %v1331 = vunpack.c.h.b16 %v1252
        %v1332 = vunpack.c.l.b16 %v1253
        %v1333 = vunpack.c.l.b16 %v1254
        %v1334 = vunpack.c.h.b16 %v1254
        %v1335 = vunpack.c.l.b16 %v1255
        %v1336 = vunpack.c.l.b16 %v1256
        %v1337 = vunpack.c.h.b16 %v1256
        %v1338 = vunpack.c.l.b16 %v1257
        %v1339 = vunpack.c.l.b16 %v1258
        %v1340 = vunpack.c.h.b16 %v1258
        %v1341 = vunpack.c.l.b16 %v1259
        %v1342 = vunpack.c.l.b16 %v1260
        %v1343 = vunpack.c.h.b16 %v1260
        %v1344 = vunpack.c.l.b16 %v1261
        %v1345 = vunpack.c.l.b16 %v1262
        %v1346 = vunpack.c.h.b16 %v1262
        %v1347 = vunpack.c.l.b16 %v1263
        %v1348 = vunpack.c.l.b16 %v1264
        %v1349 = vunpack.c.h.b16 %v1264
        %v1350 = vunpack.c.l.b16 %v1265
        %v1351 = vunpack.c.l.b16 %v1266
        %v1352 = vunpack.c.h.b16 %v1266
        %v1353 = vunpack.c.l.b16 %v1267
        %v1354 = vunpack.c.l.b16 %v1268
        %v1355 = vunpack.c.h.b16 %v1268
        %v1356 = vunpack.c.l.b16 %v1269
        %v1357 = vunpack.c.l.b16 %v1270
        %v1358 = vunpack.c.h.b16 %v1270
        %v1359 = vunpack.c.l.b16 %v1271
        %v1360 = vpack.c.b16 %v1315, %v1312
        %v1361 = vpack.c.b16 %v1316, %v1313
        %v1362 = vpack.c.b16 %v1317, %v1314
        %v1363 = vpack.c.b16 %v1321, %v1318
        %v1364 = vpack.c.b16 %v1322, %v1319
        %v1365 = vpack.c.b16 %v1323, %v1320
        %v1366 = vpack.c.b16 %v1327, %v1324
        %v1367 = vpack.c.b16 %v1328, %v1325
        %v1368 = vpack.c.b16 %v1329, %v1326
        %v1369 = vpack.c.b16 %v1333, %v1330
        %v1370 = vpack.c.b16 %v1334, %v1331
        %v1371 = vpack.c.b16 %v1335, %v1332
        %v1372 = vpack.c.b16 %v1339, %v1336
        %v1373 = vpack.c.b16 %v1340, %v1337
        %v1374 = vpack.c.b16 %v1341, %v1338
        %v1375 = vpack.c.b16 %v1345, %v1342
        %v1376 = vpack.c.b16 %v1346, %v1343
        %v1377 = vpack.c.b16 %v1347, %v1344
        %v1378 = vpack.c.b16 %v1351, %v1348
        %v1379 = vpack.c.b16 %v1352, %v1349
        %v1380 = vpack.c.b16 %v1353, %v1350
        %v1381 = vpack.c.b16 %v1357, %v1354
        %v1382 = vpack.c.b16 %v1358, %v1355
        %v1383 = vpack.c.b16 %v1359, %v1356
        %1408 = vmatpush.bf16.msra.mxu0 %v1381
        %1409 = vmatpush.bf16.msra.mxu0 %v1378
        %1410 = vmatpush.bf16.msra.mxu0 %v1375
        %1411 = vmatpush.bf16.msra.mxu0 %v1372
        %1412 = vmatpush.bf16.msra.mxu0 %v1369
        %1413 = vmatpush.bf16.msra.mxu0 %v1366
        %1414 = vmatpush.bf16.msra.mxu0 %v1363
        %1415 = vmatpush.bf16.msra.mxu0 %v1360
        %1416 = vmatmul.bf16.gmra.mxu0 %v1224
        %v1417 = vpop.f32.mrf.mxu0
        %v1418 = vadd.f32 %v1274, %v1417
        %v1419 = vpop.f32.mrf.mxu0
        %v1420 = vadd.f32 %v1274, %v1419
        %1421 = vmatmul.bf16.gmra.mxu0 %v1225
        %v1422 = vpop.f32.mrf.mxu0
        %v1423 = vadd.f32 %v1274, %v1422
        %v1424 = vpop.f32.mrf.mxu0
        %v1425 = vadd.f32 %v1274, %v1424
        %1426 = vmatmul.bf16.gmra.mxu0 %v1226
        %v1427 = vpop.f32.mrf.mxu0
        %v1428 = vadd.f32 %v1274, %v1427
        %v1429 = vpop.f32.mrf.mxu0
        %v1430 = vadd.f32 %v1274, %v1429
        %1431 = vmatmul.bf16.gmra.mxu0 %v1227
        %v1432 = vpop.f32.mrf.mxu0
        %v1433 = vadd.f32 %v1274, %v1432
        %v1434 = vpop.f32.mrf.mxu0
        %v1435 = vadd.f32 %v1274, %v1434
        %1436 = vmatmul.bf16.gmra.mxu0 %v1228
        %v1437 = vpop.f32.mrf.mxu0
        %v1438 = vadd.f32 %v1274, %v1437
        %v1439 = vpop.f32.mrf.mxu0
        %v1440 = vadd.f32 %v1274, %v1439
        %1441 = vmatmul.bf16.gmra.mxu0 %v1229
        %v1442 = vpop.f32.mrf.mxu0
        %v1443 = vadd.f32 %v1274, %v1442
        %v1444 = vpop.f32.mrf.mxu0
        %v1445 = vadd.f32 %v1274, %v1444
        %1446 = vmatmul.bf16.gmra.mxu0 %v1230
        %v1447 = vpop.f32.mrf.mxu0
        %v1448 = vadd.f32 %v1274, %v1447
        %v1449 = vpop.f32.mrf.mxu0
        %v1450 = vadd.f32 %v1274, %v1449
        %1451 = vmatmul.bf16.gmra.mxu0 %v1231
        %v1452 = vpop.f32.mrf.mxu0
        %v1453 = vadd.f32 %v1274, %v1452
        %v1454 = vpop.f32.mrf.mxu0
        %v1455 = vadd.f32 %v1274, %v1454
        %1456 = vmatmul.bf16.gmra.mxu0 %v1232
        %v1457 = vpop.f32.mrf.mxu0
        %v1458 = vadd.f32 %v1274, %v1457
        %v1459 = vpop.f32.mrf.mxu0
        %v1460 = vadd.f32 %v1274, %v1459
        %1461 = vmatmul.bf16.gmra.mxu0 %v1233
        %v1462 = vpop.f32.mrf.mxu0
        %v1463 = vadd.f32 %v1274, %v1462
        %v1464 = vpop.f32.mrf.mxu0
        %v1465 = vadd.f32 %v1274, %v1464
        %1466 = vmatmul.bf16.gmra.mxu0 %v1234
        %v1467 = vpop.f32.mrf.mxu0
        %v1468 = vadd.f32 %v1274, %v1467
        %v1469 = vpop.f32.mrf.mxu0
        %v1470 = vadd.f32 %v1274, %v1469
        %1471 = vmatmul.bf16.gmra.mxu0 %v1235
        %v1472 = vpop.f32.mrf.mxu0
        %v1473 = vadd.f32 %v1274, %v1472
        %v1474 = vpop.f32.mrf.mxu0
        %v1475 = vadd.f32 %v1274, %v1474
        %1476 = vmatmul.bf16.gmra.mxu0 %v1236
        %v1477 = vpop.f32.mrf.mxu0
        %v1478 = vadd.f32 %v1274, %v1477
        %v1479 = vpop.f32.mrf.mxu0
        %v1480 = vadd.f32 %v1274, %v1479
        %1481 = vmatmul.bf16.gmra.mxu0 %v1237
        %v1482 = vpop.f32.mrf.mxu0
        %v1483 = vadd.f32 %v1274, %v1482
        %v1484 = vpop.f32.mrf.mxu0
        %v1485 = vadd.f32 %v1274, %v1484
        %1486 = vmatmul.bf16.gmra.mxu0 %v1238
        %v1487 = vpop.f32.mrf.mxu0
        %v1488 = vadd.f32 %v1274, %v1487
        %v1489 = vpop.f32.mrf.mxu0
        %v1490 = vadd.f32 %v1274, %v1489
        %1491 = vmatmul.bf16.gmra.mxu0 %v1239
        %v1492 = vpop.f32.mrf.mxu0
        %v1493 = vadd.f32 %v1274, %v1492
        %v1494 = vpop.f32.mrf.mxu0
        %v1495 = vadd.f32 %v1274, %v1494
        %1496 = vdwg.mxu0
        %1497 = vmatpush.bf16.msra.mxu0 %v1382
        %1498 = vmatpush.bf16.msra.mxu0 %v1379
        %1499 = vmatpush.bf16.msra.mxu0 %v1376
        %1500 = vmatpush.bf16.msra.mxu0 %v1373
        %1501 = vmatpush.bf16.msra.mxu0 %v1370
        %1502 = vmatpush.bf16.msra.mxu0 %v1367
        %1503 = vmatpush.bf16.msra.mxu0 %v1364
        %1504 = vmatpush.bf16.msra.mxu0 %v1361
        %1505 = vmatmul.bf16.gmra.mxu0 %v1224
        %v1506 = vpop.f32.mrf.mxu0
        %v1507 = vadd.f32 %v1275, %v1506
        %v1508 = vpop.f32.mrf.mxu0
        %v1509 = vadd.f32 %v1275, %v1508
        %1510 = vmatmul.bf16.gmra.mxu0 %v1225
        %v1511 = vpop.f32.mrf.mxu0
        %v1512 = vadd.f32 %v1275, %v1511
        %v1513 = vpop.f32.mrf.mxu0
        %v1514 = vadd.f32 %v1275, %v1513
        %1515 = vmatmul.bf16.gmra.mxu0 %v1226
        %v1516 = vpop.f32.mrf.mxu0
        %v1517 = vadd.f32 %v1275, %v1516
        %v1518 = vpop.f32.mrf.mxu0
        %v1519 = vadd.f32 %v1275, %v1518
        %1520 = vmatmul.bf16.gmra.mxu0 %v1227
        %v1521 = vpop.f32.mrf.mxu0
        %v1522 = vadd.f32 %v1275, %v1521
        %v1523 = vpop.f32.mrf.mxu0
        %v1524 = vadd.f32 %v1275, %v1523
        %1525 = vmatmul.bf16.gmra.mxu0 %v1228
        %v1526 = vpop.f32.mrf.mxu0
        %v1527 = vadd.f32 %v1275, %v1526
        %v1528 = vpop.f32.mrf.mxu0
        %v1529 = vadd.f32 %v1275, %v1528
        %1530 = vmatmul.bf16.gmra.mxu0 %v1229
        %v1531 = vpop.f32.mrf.mxu0
        %v1532 = vadd.f32 %v1275, %v1531
        %v1533 = vpop.f32.mrf.mxu0
        %v1534 = vadd.f32 %v1275, %v1533
        %1535 = vmatmul.bf16.gmra.mxu0 %v1230
        %v1536 = vpop.f32.mrf.mxu0
        %v1537 = vadd.f32 %v1275, %v1536
        %v1538 = vpop.f32.mrf.mxu0
        %v1539 = vadd.f32 %v1275, %v1538
        %1540 = vmatmul.bf16.gmra.mxu0 %v1231
        %v1541 = vpop.f32.mrf.mxu0
        %v1542 = vadd.f32 %v1275, %v1541
        %v1543 = vpop.f32.mrf.mxu0
        %v1544 = vadd.f32 %v1275, %v1543
        %1545 = vmatmul.bf16.gmra.mxu0 %v1232
        %v1546 = vpop.f32.mrf.mxu0
        %v1547 = vadd.f32 %v1275, %v1546
        %v1548 = vpop.f32.mrf.mxu0
        %v1549 = vadd.f32 %v1275, %v1548
        %1550 = vmatmul.bf16.gmra.mxu0 %v1233
        %v1551 = vpop.f32.mrf.mxu0
        %v1552 = vadd.f32 %v1275, %v1551
        %v1553 = vpop.f32.mrf.mxu0
        %v1554 = vadd.f32 %v1275, %v1553
        %1555 = vmatmul.bf16.gmra.mxu0 %v1234
        %v1556 = vpop.f32.mrf.mxu0
        %v1557 = vadd.f32 %v1275, %v1556
        %v1558 = vpop.f32.mrf.mxu0
        %v1559 = vadd.f32 %v1275, %v1558
        %1560 = vmatmul.bf16.gmra.mxu0 %v1235
        %v1561 = vpop.f32.mrf.mxu0
        %v1562 = vadd.f32 %v1275, %v1561
        %v1563 = vpop.f32.mrf.mxu0
        %v1564 = vadd.f32 %v1275, %v1563
        %1565 = vmatmul.bf16.gmra.mxu0 %v1236
        %v1566 = vpop.f32.mrf.mxu0
        %v1567 = vadd.f32 %v1275, %v1566
        %v1568 = vpop.f32.mrf.mxu0
        %v1569 = vadd.f32 %v1275, %v1568
        %1570 = vmatmul.bf16.gmra.mxu0 %v1237
        %v1571 = vpop.f32.mrf.mxu0
        %v1572 = vadd.f32 %v1275, %v1571
        %v1573 = vpop.f32.mrf.mxu0
        %v1574 = vadd.f32 %v1275, %v1573
        %1575 = vmatmul.bf16.gmra.mxu0 %v1238
        %v1576 = vpop.f32.mrf.mxu0
        %v1577 = vadd.f32 %v1275, %v1576
        %v1578 = vpop.f32.mrf.mxu0
        %v1579 = vadd.f32 %v1275, %v1578
        %1580 = vmatmul.bf16.gmra.mxu0 %v1239
        %v1581 = vpop.f32.mrf.mxu0
        %v1582 = vadd.f32 %v1275, %v1581
        %v1583 = vpop.f32.mrf.mxu0
        %v1584 = vadd.f32 %v1275, %v1583
        %1585 = vdwg.mxu0
        %1586 = vmatpush.bf16.msra.mxu0 %v1383
        %1587 = vmatpush.bf16.msra.mxu0 %v1380
        %1588 = vmatpush.bf16.msra.mxu0 %v1377
        %1589 = vmatpush.bf16.msra.mxu0 %v1374
        %1590 = vmatpush.bf16.msra.mxu0 %v1371
        %1591 = vmatpush.bf16.msra.mxu0 %v1368
        %1592 = vmatpush.bf16.msra.mxu0 %v1365
        %1593 = vmatpush.bf16.msra.mxu0 %v1362
        %1594 = vmatmul.bf16.gmra.mxu0 %v1224
        %v1595 = vpop.f32.mrf.mxu0
        %v1596 = vadd.f32 %v1276, %v1595
        %v1597 = vpop.f32.mrf.mxu0
        %v1598 = vadd.f32 %v1276, %v1597
        %1599 = vmatmul.bf16.gmra.mxu0 %v1225
        %v1600 = vpop.f32.mrf.mxu0
        %v1601 = vadd.f32 %v1276, %v1600
        %v1602 = vpop.f32.mrf.mxu0
        %v1603 = vadd.f32 %v1276, %v1602
        %1604 = vmatmul.bf16.gmra.mxu0 %v1226
        %v1605 = vpop.f32.mrf.mxu0
        %v1606 = vadd.f32 %v1276, %v1605
        %v1607 = vpop.f32.mrf.mxu0
        %v1608 = vadd.f32 %v1276, %v1607
        %1609 = vmatmul.bf16.gmra.mxu0 %v1227
        %v1610 = vpop.f32.mrf.mxu0
        %v1611 = vadd.f32 %v1276, %v1610
        %v1612 = vpop.f32.mrf.mxu0
        %v1613 = vadd.f32 %v1276, %v1612
        %1614 = vmatmul.bf16.gmra.mxu0 %v1228
        %v1615 = vpop.f32.mrf.mxu0
        %v1616 = vadd.f32 %v1276, %v1615
        %v1617 = vpop.f32.mrf.mxu0
        %v1618 = vadd.f32 %v1276, %v1617
        %1619 = vmatmul.bf16.gmra.mxu0 %v1229
        %v1620 = vpop.f32.mrf.mxu0
        %v1621 = vadd.f32 %v1276, %v1620
        %v1622 = vpop.f32.mrf.mxu0
        %v1623 = vadd.f32 %v1276, %v1622
        %1624 = vmatmul.bf16.gmra.mxu0 %v1230
        %v1625 = vpop.f32.mrf.mxu0
        %v1626 = vadd.f32 %v1276, %v1625
        %v1627 = vpop.f32.mrf.mxu0
        %v1628 = vadd.f32 %v1276, %v1627
        %1629 = vmatmul.bf16.gmra.mxu0 %v1231
        %v1630 = vpop.f32.mrf.mxu0
        %v1631 = vadd.f32 %v1276, %v1630
        %v1632 = vpop.f32.mrf.mxu0
        %v1633 = vadd.f32 %v1276, %v1632
        %1634 = vmatmul.bf16.gmra.mxu0 %v1232
        %v1635 = vpop.f32.mrf.mxu0
        %v1636 = vadd.f32 %v1276, %v1635
        %v1637 = vpop.f32.mrf.mxu0
        %v1638 = vadd.f32 %v1276, %v1637
        %1639 = vmatmul.bf16.gmra.mxu0 %v1233
        %v1640 = vpop.f32.mrf.mxu0
        %v1641 = vadd.f32 %v1276, %v1640
        %v1642 = vpop.f32.mrf.mxu0
        %v1643 = vadd.f32 %v1276, %v1642
        %1644 = vmatmul.bf16.gmra.mxu0 %v1234
        %v1645 = vpop.f32.mrf.mxu0
        %v1646 = vadd.f32 %v1276, %v1645
        %v1647 = vpop.f32.mrf.mxu0
        %v1648 = vadd.f32 %v1276, %v1647
        %1649 = vmatmul.bf16.gmra.mxu0 %v1235
        %v1650 = vpop.f32.mrf.mxu0
        %v1651 = vadd.f32 %v1276, %v1650
        %v1652 = vpop.f32.mrf.mxu0
        %v1653 = vadd.f32 %v1276, %v1652
        %1654 = vmatmul.bf16.gmra.mxu0 %v1236
        %v1655 = vpop.f32.mrf.mxu0
        %v1656 = vadd.f32 %v1276, %v1655
        %v1657 = vpop.f32.mrf.mxu0
        %v1658 = vadd.f32 %v1276, %v1657
        %1659 = vmatmul.bf16.gmra.mxu0 %v1237
        %v1660 = vpop.f32.mrf.mxu0
        %v1661 = vadd.f32 %v1276, %v1660
        %v1662 = vpop.f32.mrf.mxu0
        %v1663 = vadd.f32 %v1276, %v1662
        %1664 = vmatmul.bf16.gmra.mxu0 %v1238
        %v1665 = vpop.f32.mrf.mxu0
        %v1666 = vadd.f32 %v1276, %v1665
        %v1667 = vpop.f32.mrf.mxu0
        %v1668 = vadd.f32 %v1276, %v1667
        %1669 = vmatmul.bf16.gmra.mxu0 %v1239
        %v1670 = vpop.f32.mrf.mxu0
        %v1671 = vadd.f32 %v1276, %v1670
        %v1672 = vpop.f32.mrf.mxu0
        %v1673 = vadd.f32 %v1276, %v1672
        %1674 = vdwg.mxu0
        %v1675 = vpack.c.bf16 %v1507, %v1418
        %v1676 = vpack.c.bf16 %v1596, %v1596
        %v1677 = vpack.c.bf16 %v1509, %v1420
        %v1678 = vpack.c.bf16 %v1598, %v1598
        %v1679 = vpack.c.bf16 %v1512, %v1423
        %v1680 = vpack.c.bf16 %v1601, %v1601
        %v1681 = vpack.c.bf16 %v1514, %v1425
        %v1682 = vpack.c.bf16 %v1603, %v1603
        %v1683 = vpack.c.bf16 %v1517, %v1428
        %v1684 = vpack.c.bf16 %v1606, %v1606
        %v1685 = vpack.c.bf16 %v1519, %v1430
        %v1686 = vpack.c.bf16 %v1608, %v1608
        %v1687 = vpack.c.bf16 %v1522, %v1433
        %v1688 = vpack.c.bf16 %v1611, %v1611
        %v1689 = vpack.c.bf16 %v1524, %v1435
        %v1690 = vpack.c.bf16 %v1613, %v1613
        %v1691 = vpack.c.bf16 %v1527, %v1438
        %v1692 = vpack.c.bf16 %v1616, %v1616
        %v1693 = vpack.c.bf16 %v1529, %v1440
        %v1694 = vpack.c.bf16 %v1618, %v1618
        %v1695 = vpack.c.bf16 %v1532, %v1443
        %v1696 = vpack.c.bf16 %v1621, %v1621
        %v1697 = vpack.c.bf16 %v1534, %v1445
        %v1698 = vpack.c.bf16 %v1623, %v1623
        %v1699 = vpack.c.bf16 %v1537, %v1448
        %v1700 = vpack.c.bf16 %v1626, %v1626
        %v1701 = vpack.c.bf16 %v1539, %v1450
        %v1702 = vpack.c.bf16 %v1628, %v1628
        %v1703 = vpack.c.bf16 %v1542, %v1453
        %v1704 = vpack.c.bf16 %v1631, %v1631
        %v1705 = vpack.c.bf16 %v1544, %v1455
        %v1706 = vpack.c.bf16 %v1633, %v1633
        %v1707 = vpack.c.bf16 %v1547, %v1458
        %v1708 = vpack.c.bf16 %v1636, %v1636
        %v1709 = vpack.c.bf16 %v1549, %v1460
        %v1710 = vpack.c.bf16 %v1638, %v1638
        %v1711 = vpack.c.bf16 %v1552, %v1463
        %v1712 = vpack.c.bf16 %v1641, %v1641
        %v1713 = vpack.c.bf16 %v1554, %v1465
        %v1714 = vpack.c.bf16 %v1643, %v1643
        %v1715 = vpack.c.bf16 %v1557, %v1468
        %v1716 = vpack.c.bf16 %v1646, %v1646
        %v1717 = vpack.c.bf16 %v1559, %v1470
        %v1718 = vpack.c.bf16 %v1648, %v1648
        %v1719 = vpack.c.bf16 %v1562, %v1473
        %v1720 = vpack.c.bf16 %v1651, %v1651
        %v1721 = vpack.c.bf16 %v1564, %v1475
        %v1722 = vpack.c.bf16 %v1653, %v1653
        %v1723 = vpack.c.bf16 %v1567, %v1478
        %v1724 = vpack.c.bf16 %v1656, %v1656
        %v1725 = vpack.c.bf16 %v1569, %v1480
        %v1726 = vpack.c.bf16 %v1658, %v1658
        %v1727 = vpack.c.bf16 %v1572, %v1483
        %v1728 = vpack.c.bf16 %v1661, %v1661
        %v1729 = vpack.c.bf16 %v1574, %v1485
        %v1730 = vpack.c.bf16 %v1663, %v1663
        %v1731 = vpack.c.bf16 %v1577, %v1488
        %v1732 = vpack.c.bf16 %v1666, %v1666
        %v1733 = vpack.c.bf16 %v1579, %v1490
        %v1734 = vpack.c.bf16 %v1668, %v1668
        %v1735 = vpack.c.bf16 %v1582, %v1493
        %v1736 = vpack.c.bf16 %v1671, %v1671
        %v1737 = vpack.c.bf16 %v1584, %v1495
        %v1738 = vpack.c.bf16 %v1673, %v1673
        %v1739 = vld [vmem:[%s1] sm:$0xff]
        %v1740 = vld [vmem:[%s1 + $0x8] sm:$0xff]
        %v1741 = vld [vmem:[%s1 + $0x10] sm:$0xff]
        %v1742 = vld [vmem:[%s1 + $0x18] sm:$0xff]
        %v1743 = vld [vmem:[%s1 + $0x20] sm:$0xff]
        %v1744 = vld [vmem:[%s1 + $0x28] sm:$0xff]
        %v1745 = vld [vmem:[%s1 + $0x30] sm:$0xff]
        %v1746 = vld [vmem:[%s1 + $0x38] sm:$0xff]
        %v1747 = vld [vmem:[%s1 + $0x40] sm:$0xff]
        %v1748 = vld [vmem:[%s1 + $0x48] sm:$0xff]
        %v1749 = vld [vmem:[%s1 + $0x50] sm:$0xff]
        %v1750 = vld [vmem:[%s1 + $0x58] sm:$0xff]
        %v1751 = vld [vmem:[%s1 + $0x60] sm:$0xff]
        %v1752 = vld [vmem:[%s1 + $0x68] sm:$0xff]
        %v1753 = vld [vmem:[%s1 + $0x70] sm:$0xff]
        %v1754 = vld [vmem:[%s1 + $0x78] sm:$0xff]
        %v1755 = vld [vmem:[%s1 + $0x80] sm:$0xff]
        %v1756 = vld [vmem:[%s1 + $0x88] sm:$0xff]
        %v1757 = vld [vmem:[%s1 + $0x90] sm:$0xff]
        %v1758 = vld [vmem:[%s1 + $0x98] sm:$0xff]
        %v1759 = vld [vmem:[%s1 + $0xa0] sm:$0xff]
        %v1760 = vld [vmem:[%s1 + $0xa8] sm:$0xff]
        %v1761 = vld [vmem:[%s1 + $0xb0] sm:$0xff]
        %v1762 = vld [vmem:[%s1 + $0xb8] sm:$0xff]
        %v1763 = vld [vmem:[%s1 + $0xc0] sm:$0xff]
        %v1764 = vld [vmem:[%s1 + $0xc8] sm:$0xff]
        %v1765 = vld [vmem:[%s1 + $0xd0] sm:$0xff]
        %v1766 = vld [vmem:[%s1 + $0xd8] sm:$0xff]
        %v1767 = vld [vmem:[%s1 + $0xe0] sm:$0xff]
        %v1768 = vld [vmem:[%s1 + $0xe8] sm:$0xff]
        %v1769 = vld [vmem:[%s1 + $0xf0] sm:$0xff]
        %v1770 = vld [vmem:[%s1 + $0xf8] sm:$0xff]
        %v1771 = vld [vmem:[%s1 + $0x100] sm:$0xff]
        %v1772 = vld [vmem:[%s1 + $0x108] sm:$0xff]
        %v1773 = vld [vmem:[%s1 + $0x110] sm:$0xff]
        %v1774 = vld [vmem:[%s1 + $0x118] sm:$0xff]
        %v1775 = vld [vmem:[%s1 + $0x120] sm:$0xff]
        %v1776 = vld [vmem:[%s1 + $0x128] sm:$0xff]
        %v1777 = vld [vmem:[%s1 + $0x130] sm:$0xff]
        %v1778 = vld [vmem:[%s1 + $0x138] sm:$0xff]
        %v1779 = vld [vmem:[%s1 + $0x140] sm:$0xff]
        %v1780 = vld [vmem:[%s1 + $0x148] sm:$0xff]
        %v1781 = vld [vmem:[%s1 + $0x150] sm:$0xff]
        %v1782 = vld [vmem:[%s1 + $0x158] sm:$0xff]
        %v1783 = vld [vmem:[%s1 + $0x160] sm:$0xff]
        %v1784 = vld [vmem:[%s1 + $0x168] sm:$0xff]
        %v1785 = vld [vmem:[%s1 + $0x170] sm:$0xff]
        %v1786 = vld [vmem:[%s1 + $0x178] sm:$0xff]
        %v1787 = vld [vmem:[%s1 + $0x180] sm:$0xff]
        %v1788 = vld [vmem:[%s1 + $0x188] sm:$0xff]
        %v1789 = vld [vmem:[%s1 + $0x190] sm:$0xff]
        %v1790 = vld [vmem:[%s1 + $0x198] sm:$0xff]
        %v1791 = vld [vmem:[%s1 + $0x1a0] sm:$0xff]
        %v1792 = vld [vmem:[%s1 + $0x1a8] sm:$0xff]
        %v1793 = vld [vmem:[%s1 + $0x1b0] sm:$0xff]
        %v1794 = vld [vmem:[%s1 + $0x1b8] sm:$0xff]
        %v1795 = vld [vmem:[%s1 + $0x1c0] sm:$0xff]
        %v1796 = vld [vmem:[%s1 + $0x1c8] sm:$0xff]
        %v1797 = vld [vmem:[%s1 + $0x1d0] sm:$0xff]
        %v1798 = vld [vmem:[%s1 + $0x1d8] sm:$0xff]
        %v1799 = vld [vmem:[%s1 + $0x1e0] sm:$0xff]
        %v1800 = vld [vmem:[%s1 + $0x1e8] sm:$0xff]
        %v1801 = vld [vmem:[%s1 + $0x1f0] sm:$0xff]
        %v1802 = vld [vmem:[%s1 + $0x1f8] sm:$0xff]
        %v1803 = vlaneseq
        %v1804 = vand.u32 %v1803, 127
        %vm1805 = vcmp.ge.s32.totalorder %v1804, 0
        %vm1806 = vcmp.lt.s32.totalorder %v1804, 32
        %vm1807 = vmand %vm1805, %vm1806
        %v1808 = vsel %vm1807, 1, 0
        %vm1809 = vcmp.eq.s32.totalorder %v1808, 1
        %vm1810 = vmpackc.low %vm1809, %vm1809
        %v1811 = vsel %vm1810, %v1675, 0
        %v1812 = vsel %vm1810, %v1677, 0
        %v1813 = vsel %vm1810, %v1679, 0
        %v1814 = vsel %vm1810, %v1681, 0
        %v1815 = vsel %vm1810, %v1683, 0
        %v1816 = vsel %vm1810, %v1685, 0
        %v1817 = vsel %vm1810, %v1687, 0
        %v1818 = vsel %vm1810, %v1689, 0
        %v1819 = vsel %vm1810, %v1691, 0
        %v1820 = vsel %vm1810, %v1693, 0
        %v1821 = vsel %vm1810, %v1695, 0
        %v1822 = vsel %vm1810, %v1697, 0
        %v1823 = vsel %vm1810, %v1699, 0
        %v1824 = vsel %vm1810, %v1701, 0
        %v1825 = vsel %vm1810, %v1703, 0
        %v1826 = vsel %vm1810, %v1705, 0
        %v1827 = vsel %vm1810, %v1707, 0
        %v1828 = vsel %vm1810, %v1709, 0
        %v1829 = vsel %vm1810, %v1711, 0
        %v1830 = vsel %vm1810, %v1713, 0
        %v1831 = vsel %vm1810, %v1715, 0
        %v1832 = vsel %vm1810, %v1717, 0
        %v1833 = vsel %vm1810, %v1719, 0
        %v1834 = vsel %vm1810, %v1721, 0
        %v1835 = vsel %vm1810, %v1723, 0
        %v1836 = vsel %vm1810, %v1725, 0
        %v1837 = vsel %vm1810, %v1727, 0
        %v1838 = vsel %vm1810, %v1729, 0
        %v1839 = vsel %vm1810, %v1731, 0
        %v1840 = vsel %vm1810, %v1733, 0
        %v1841 = vsel %vm1810, %v1735, 0
        %v1842 = vsel %vm1810, %v1737, 0
        %v1843 = vsel %vm1810, %v1676, 0
        %v1844 = vsel %vm1810, %v1678, 0
        %v1845 = vsel %vm1810, %v1680, 0
        %v1846 = vsel %vm1810, %v1682, 0
        %v1847 = vsel %vm1810, %v1684, 0
        %v1848 = vsel %vm1810, %v1686, 0
        %v1849 = vsel %vm1810, %v1688, 0
        %v1850 = vsel %vm1810, %v1690, 0
        %v1851 = vsel %vm1810, %v1692, 0
        %v1852 = vsel %vm1810, %v1694, 0
        %v1853 = vsel %vm1810, %v1696, 0
        %v1854 = vsel %vm1810, %v1698, 0
        %v1855 = vsel %vm1810, %v1700, 0
        %v1856 = vsel %vm1810, %v1702, 0
        %v1857 = vsel %vm1810, %v1704, 0
        %v1858 = vsel %vm1810, %v1706, 0
        %v1859 = vsel %vm1810, %v1708, 0
        %v1860 = vsel %vm1810, %v1710, 0
        %v1861 = vsel %vm1810, %v1712, 0
        %v1862 = vsel %vm1810, %v1714, 0
        %v1863 = vsel %vm1810, %v1716, 0
        %v1864 = vsel %vm1810, %v1718, 0
        %v1865 = vsel %vm1810, %v1720, 0
        %v1866 = vsel %vm1810, %v1722, 0
        %v1867 = vsel %vm1810, %v1724, 0
        %v1868 = vsel %vm1810, %v1726, 0
        %v1869 = vsel %vm1810, %v1728, 0
        %v1870 = vsel %vm1810, %v1730, 0
        %v1871 = vsel %vm1810, %v1732, 0
        %v1872 = vsel %vm1810, %v1734, 0
        %v1873 = vsel %vm1810, %v1736, 0
        %v1874 = vsel %vm1810, %v1738, 0
        %v1907 = vunpack.c.l.b16 %v1811
        %v1908 = vunpack.c.l.b16 %v1812
        %v1909 = vunpack.c.l.b16 %v1813
        %v1910 = vunpack.c.l.b16 %v1814
        %v1911 = vunpack.c.l.b16 %v1815
        %v1912 = vunpack.c.l.b16 %v1816
        %v1913 = vunpack.c.l.b16 %v1817
        %v1914 = vunpack.c.l.b16 %v1818
        %v1915 = vunpack.c.l.b16 %v1819
        %v1916 = vunpack.c.l.b16 %v1820
        %v1917 = vunpack.c.l.b16 %v1821
        %v1918 = vunpack.c.l.b16 %v1822
        %v1919 = vunpack.c.l.b16 %v1823
        %v1920 = vunpack.c.l.b16 %v1824
        %v1921 = vunpack.c.l.b16 %v1825
        %v1922 = vunpack.c.l.b16 %v1826
        %v1923 = vunpack.c.l.b16 %v1827
        %v1924 = vunpack.c.l.b16 %v1828
        %v1925 = vunpack.c.l.b16 %v1829
        %v1926 = vunpack.c.l.b16 %v1830
        %v1927 = vunpack.c.l.b16 %v1831
        %v1928 = vunpack.c.l.b16 %v1832
        %v1929 = vunpack.c.l.b16 %v1833
        %v1930 = vunpack.c.l.b16 %v1834
        %v1931 = vunpack.c.l.b16 %v1835
        %v1932 = vunpack.c.l.b16 %v1836
        %v1933 = vunpack.c.l.b16 %v1837
        %v1934 = vunpack.c.l.b16 %v1838
        %v1935 = vunpack.c.l.b16 %v1839
        %v1936 = vunpack.c.l.b16 %v1840
        %v1937 = vunpack.c.l.b16 %v1841
        %v1938 = vunpack.c.l.b16 %v1842
        %v1939 = vpack.c.b16 %v1908, %v1907
        %v1940 = vpack.c.b16 %v1910, %v1909
        %v1941 = vpack.c.b16 %v1912, %v1911
        %v1942 = vpack.c.b16 %v1914, %v1913
        %v1943 = vpack.c.b16 %v1916, %v1915
        %v1944 = vpack.c.b16 %v1918, %v1917
        %v1945 = vpack.c.b16 %v1920, %v1919
        %v1946 = vpack.c.b16 %v1922, %v1921
        %v1947 = vpack.c.b16 %v1924, %v1923
        %v1948 = vpack.c.b16 %v1926, %v1925
        %v1949 = vpack.c.b16 %v1928, %v1927
        %v1950 = vpack.c.b16 %v1930, %v1929
        %v1951 = vpack.c.b16 %v1932, %v1931
        %v1952 = vpack.c.b16 %v1934, %v1933
        %v1953 = vpack.c.b16 %v1936, %v1935
        %v1954 = vpack.c.b16 %v1938, %v1937
        %v2003 = vunpack.c.h.b16 %v1675
        %v2004 = vunpack.c.h.b16 %v1677
        %v2005 = vunpack.c.h.b16 %v1679
        %v2006 = vunpack.c.h.b16 %v1681
        %v2007 = vunpack.c.h.b16 %v1683
        %v2008 = vunpack.c.h.b16 %v1685
        %v2009 = vunpack.c.h.b16 %v1687
        %v2010 = vunpack.c.h.b16 %v1689
        %v2011 = vunpack.c.h.b16 %v1691
        %v2012 = vunpack.c.h.b16 %v1693
        %v2013 = vunpack.c.h.b16 %v1695
        %v2014 = vunpack.c.h.b16 %v1697
        %v2015 = vunpack.c.h.b16 %v1699
        %v2016 = vunpack.c.h.b16 %v1701
        %v2017 = vunpack.c.h.b16 %v1703
        %v2018 = vunpack.c.h.b16 %v1705
        %v2019 = vunpack.c.h.b16 %v1707
        %v2020 = vunpack.c.h.b16 %v1709
        %v2021 = vunpack.c.h.b16 %v1711
        %v2022 = vunpack.c.h.b16 %v1713
        %v2023 = vunpack.c.h.b16 %v1715
        %v2024 = vunpack.c.h.b16 %v1717
        %v2025 = vunpack.c.h.b16 %v1719
        %v2026 = vunpack.c.h.b16 %v1721
        %v2027 = vunpack.c.h.b16 %v1723
        %v2028 = vunpack.c.h.b16 %v1725
        %v2029 = vunpack.c.h.b16 %v1727
        %v2030 = vunpack.c.h.b16 %v1729
        %v2031 = vunpack.c.h.b16 %v1731
        %v2032 = vunpack.c.h.b16 %v1733
        %v2033 = vunpack.c.h.b16 %v1735
        %v2034 = vunpack.c.h.b16 %v1737
        %v2035 = vpack.c.b16 %v2004, %v2003
        %v2036 = vpack.c.b16 %v2006, %v2005
        %v2037 = vpack.c.b16 %v2008, %v2007
        %v2038 = vpack.c.b16 %v2010, %v2009
        %v2039 = vpack.c.b16 %v2012, %v2011
        %v2040 = vpack.c.b16 %v2014, %v2013
        %v2041 = vpack.c.b16 %v2016, %v2015
        %v2042 = vpack.c.b16 %v2018, %v2017
        %v2043 = vpack.c.b16 %v2020, %v2019
        %v2044 = vpack.c.b16 %v2022, %v2021
        %v2045 = vpack.c.b16 %v2024, %v2023
        %v2046 = vpack.c.b16 %v2026, %v2025
        %v2047 = vpack.c.b16 %v2028, %v2027
        %v2048 = vpack.c.b16 %v2030, %v2029
        %v2049 = vpack.c.b16 %v2032, %v2031
        %v2050 = vpack.c.b16 %v2034, %v2033
        %2067 = vmatpush.bf16.xpose.msra.mxu0 %v2042
        %2068 = vmatpush.bf16.xpose.msra.mxu0 %v2041
        %2069 = vmatpush.bf16.xpose.msra.mxu0 %v2040
        %2070 = vmatpush.bf16.xpose.msra.mxu0 %v2039
        %2071 = vmatpush.bf16.xpose.msra.mxu0 %v2038
        %2072 = vmatpush.bf16.xpose.msra.mxu0 %v2037
        %2073 = vmatpush.bf16.xpose.msra.mxu0 %v2036
        %2074 = vmatpush.bf16.xpose.msra.mxu0 %v2035
        %2075 = vmatmul.bf16.gmra.mxu0 %v1939
        %v2076 = vpop.f32.mrf.mxu0
        %v2077 = vadd.f32 0.0, %v2076
        %v2078 = vpop.f32.mrf.mxu0
        %v2079 = vadd.f32 0.0, %v2078
        %2080 = vmatmul.bf16.gmra.mxu0 %v1940
        %v2081 = vpop.f32.mrf.mxu0
        %v2082 = vadd.f32 0.0, %v2081
        %v2083 = vpop.f32.mrf.mxu0
        %v2084 = vadd.f32 0.0, %v2083
        %2085 = vmatmul.bf16.gmra.mxu0 %v1941
        %v2086 = vpop.f32.mrf.mxu0
        %v2087 = vadd.f32 0.0, %v2086
        %v2088 = vpop.f32.mrf.mxu0
        %v2089 = vadd.f32 0.0, %v2088
        %2090 = vmatmul.bf16.gmra.mxu0 %v1942
        %v2091 = vpop.f32.mrf.mxu0
        %v2092 = vadd.f32 0.0, %v2091
        %v2093 = vpop.f32.mrf.mxu0
        %v2094 = vadd.f32 0.0, %v2093
        %2095 = vmatmul.bf16.gmra.mxu0 %v1943
        %v2096 = vpop.f32.mrf.mxu0
        %v2097 = vadd.f32 0.0, %v2096
        %v2098 = vpop.f32.mrf.mxu0
        %v2099 = vadd.f32 0.0, %v2098
        %2100 = vmatmul.bf16.gmra.mxu0 %v1944
        %v2101 = vpop.f32.mrf.mxu0
        %v2102 = vadd.f32 0.0, %v2101
        %v2103 = vpop.f32.mrf.mxu0
        %v2104 = vadd.f32 0.0, %v2103
        %2105 = vmatmul.bf16.gmra.mxu0 %v1945
        %v2106 = vpop.f32.mrf.mxu0
        %v2107 = vadd.f32 0.0, %v2106
        %v2108 = vpop.f32.mrf.mxu0
        %v2109 = vadd.f32 0.0, %v2108
        %2110 = vmatmul.bf16.gmra.mxu0 %v1946
        %v2111 = vpop.f32.mrf.mxu0
        %v2112 = vadd.f32 0.0, %v2111
        %v2113 = vpop.f32.mrf.mxu0
        %v2114 = vadd.f32 0.0, %v2113
        %2115 = vmatmul.bf16.gmra.mxu0 %v1947
        %v2116 = vpop.f32.mrf.mxu0
        %v2117 = vadd.f32 0.0, %v2116
        %v2118 = vpop.f32.mrf.mxu0
        %v2119 = vadd.f32 0.0, %v2118
        %2120 = vmatmul.bf16.gmra.mxu0 %v1948
        %v2121 = vpop.f32.mrf.mxu0
        %v2122 = vadd.f32 0.0, %v2121
        %v2123 = vpop.f32.mrf.mxu0
        %v2124 = vadd.f32 0.0, %v2123
        %2125 = vmatmul.bf16.gmra.mxu0 %v1949
        %v2126 = vpop.f32.mrf.mxu0
        %v2127 = vadd.f32 0.0, %v2126
        %v2128 = vpop.f32.mrf.mxu0
        %v2129 = vadd.f32 0.0, %v2128
        %2130 = vmatmul.bf16.gmra.mxu0 %v1950
        %v2131 = vpop.f32.mrf.mxu0
        %v2132 = vadd.f32 0.0, %v2131
        %v2133 = vpop.f32.mrf.mxu0
        %v2134 = vadd.f32 0.0, %v2133
        %2135 = vmatmul.bf16.gmra.mxu0 %v1951
        %v2136 = vpop.f32.mrf.mxu0
        %v2137 = vadd.f32 0.0, %v2136
        %v2138 = vpop.f32.mrf.mxu0
        %v2139 = vadd.f32 0.0, %v2138
        %2140 = vmatmul.bf16.gmra.mxu0 %v1952
        %v2141 = vpop.f32.mrf.mxu0
        %v2142 = vadd.f32 0.0, %v2141
        %v2143 = vpop.f32.mrf.mxu0
        %v2144 = vadd.f32 0.0, %v2143
        %2145 = vmatmul.bf16.gmra.mxu0 %v1953
        %v2146 = vpop.f32.mrf.mxu0
        %v2147 = vadd.f32 0.0, %v2146
        %v2148 = vpop.f32.mrf.mxu0
        %v2149 = vadd.f32 0.0, %v2148
        %2150 = vmatmul.bf16.gmra.mxu0 %v1954
        %v2151 = vpop.f32.mrf.mxu0
        %v2152 = vadd.f32 0.0, %v2151
        %v2153 = vpop.f32.mrf.mxu0
        %v2154 = vadd.f32 0.0, %v2153
        %2155 = vdwg.mxu0
        %2156 = vmatpush.bf16.xpose.msra.mxu0 %v2050
        %2157 = vmatpush.bf16.xpose.msra.mxu0 %v2049
        %2158 = vmatpush.bf16.xpose.msra.mxu0 %v2048
        %2159 = vmatpush.bf16.xpose.msra.mxu0 %v2047
        %2160 = vmatpush.bf16.xpose.msra.mxu0 %v2046
        %2161 = vmatpush.bf16.xpose.msra.mxu0 %v2045
        %2162 = vmatpush.bf16.xpose.msra.mxu0 %v2044
        %2163 = vmatpush.bf16.xpose.msra.mxu0 %v2043
        %2164 = vmatmul.bf16.gmra.mxu0 %v1939
        %v2165 = vpop.f32.mrf.mxu0
        %v2166 = vadd.f32 0.0, %v2165
        %v2167 = vpop.f32.mrf.mxu0
        %v2168 = vadd.f32 0.0, %v2167
        %2169 = vmatmul.bf16.gmra.mxu0 %v1940
        %v2170 = vpop.f32.mrf.mxu0
        %v2171 = vadd.f32 0.0, %v2170
        %v2172 = vpop.f32.mrf.mxu0
        %v2173 = vadd.f32 0.0, %v2172
        %2174 = vmatmul.bf16.gmra.mxu0 %v1941
        %v2175 = vpop.f32.mrf.mxu0
        %v2176 = vadd.f32 0.0, %v2175
        %v2177 = vpop.f32.mrf.mxu0
        %v2178 = vadd.f32 0.0, %v2177
        %2179 = vmatmul.bf16.gmra.mxu0 %v1942
        %v2180 = vpop.f32.mrf.mxu0
        %v2181 = vadd.f32 0.0, %v2180
        %v2182 = vpop.f32.mrf.mxu0
        %v2183 = vadd.f32 0.0, %v2182
        %2184 = vmatmul.bf16.gmra.mxu0 %v1943
        %v2185 = vpop.f32.mrf.mxu0
        %v2186 = vadd.f32 0.0, %v2185
        %v2187 = vpop.f32.mrf.mxu0
        %v2188 = vadd.f32 0.0, %v2187
        %2189 = vmatmul.bf16.gmra.mxu0 %v1944
        %v2190 = vpop.f32.mrf.mxu0
        %v2191 = vadd.f32 0.0, %v2190
        %v2192 = vpop.f32.mrf.mxu0
        %v2193 = vadd.f32 0.0, %v2192
        %2194 = vmatmul.bf16.gmra.mxu0 %v1945
        %v2195 = vpop.f32.mrf.mxu0
        %v2196 = vadd.f32 0.0, %v2195
        %v2197 = vpop.f32.mrf.mxu0
        %v2198 = vadd.f32 0.0, %v2197
        %2199 = vmatmul.bf16.gmra.mxu0 %v1946
        %v2200 = vpop.f32.mrf.mxu0
        %v2201 = vadd.f32 0.0, %v2200
        %v2202 = vpop.f32.mrf.mxu0
        %v2203 = vadd.f32 0.0, %v2202
        %2204 = vmatmul.bf16.gmra.mxu0 %v1947
        %v2205 = vpop.f32.mrf.mxu0
        %v2206 = vadd.f32 0.0, %v2205
        %v2207 = vpop.f32.mrf.mxu0
        %v2208 = vadd.f32 0.0, %v2207
        %2209 = vmatmul.bf16.gmra.mxu0 %v1948
        %v2210 = vpop.f32.mrf.mxu0
        %v2211 = vadd.f32 0.0, %v2210
        %v2212 = vpop.f32.mrf.mxu0
        %v2213 = vadd.f32 0.0, %v2212
        %2214 = vmatmul.bf16.gmra.mxu0 %v1949
        %v2215 = vpop.f32.mrf.mxu0
        %v2216 = vadd.f32 0.0, %v2215
        %v2217 = vpop.f32.mrf.mxu0
        %v2218 = vadd.f32 0.0, %v2217
        %2219 = vmatmul.bf16.gmra.mxu0 %v1950
        %v2220 = vpop.f32.mrf.mxu0
        %v2221 = vadd.f32 0.0, %v2220
        %v2222 = vpop.f32.mrf.mxu0
        %v2223 = vadd.f32 0.0, %v2222
        %2224 = vmatmul.bf16.gmra.mxu0 %v1951
        %v2225 = vpop.f32.mrf.mxu0
        %v2226 = vadd.f32 0.0, %v2225
        %v2227 = vpop.f32.mrf.mxu0
        %v2228 = vadd.f32 0.0, %v2227
        %2229 = vmatmul.bf16.gmra.mxu0 %v1952
        %v2230 = vpop.f32.mrf.mxu0
        %v2231 = vadd.f32 0.0, %v2230
        %v2232 = vpop.f32.mrf.mxu0
        %v2233 = vadd.f32 0.0, %v2232
        %2234 = vmatmul.bf16.gmra.mxu0 %v1953
        %v2235 = vpop.f32.mrf.mxu0
        %v2236 = vadd.f32 0.0, %v2235
        %v2237 = vpop.f32.mrf.mxu0
        %v2238 = vadd.f32 0.0, %v2237
        %2239 = vmatmul.bf16.gmra.mxu0 %v1954
        %v2240 = vpop.f32.mrf.mxu0
        %v2241 = vadd.f32 0.0, %v2240
        %v2242 = vpop.f32.mrf.mxu0
        %v2243 = vadd.f32 0.0, %v2242
        %2244 = vdwg.mxu0
        %v2245 = vmul.f32 %v2077, 0.17677669
        %v2246 = vmul.f32 %v2166, 0.17677669
        %v2247 = vmul.f32 %v2079, 0.17677669
        %v2248 = vmul.f32 %v2168, 0.17677669
        %v2249 = vmul.f32 %v2082, 0.17677669
        %v2250 = vmul.f32 %v2171, 0.17677669
        %v2251 = vmul.f32 %v2084, 0.17677669
        %v2252 = vmul.f32 %v2173, 0.17677669
        %v2253 = vmul.f32 %v2087, 0.17677669
        %v2254 = vmul.f32 %v2176, 0.17677669
        %v2255 = vmul.f32 %v2089, 0.17677669
        %v2256 = vmul.f32 %v2178, 0.17677669
        %v2257 = vmul.f32 %v2092, 0.17677669
        %v2258 = vmul.f32 %v2181, 0.17677669
        %v2259 = vmul.f32 %v2094, 0.17677669
        %v2260 = vmul.f32 %v2183, 0.17677669
        %v2261 = vmul.f32 %v2097, 0.17677669
        %v2262 = vmul.f32 %v2186, 0.17677669
        %v2263 = vmul.f32 %v2099, 0.17677669
        %v2264 = vmul.f32 %v2188, 0.17677669
        %v2265 = vmul.f32 %v2102, 0.17677669
        %v2266 = vmul.f32 %v2191, 0.17677669
        %v2267 = vmul.f32 %v2104, 0.17677669
        %v2268 = vmul.f32 %v2193, 0.17677669
        %v2269 = vmul.f32 %v2107, 0.17677669
        %v2270 = vmul.f32 %v2196, 0.17677669
        %v2271 = vmul.f32 %v2109, 0.17677669
        %v2272 = vmul.f32 %v2198, 0.17677669
        %v2273 = vmul.f32 %v2112, 0.17677669
        %v2274 = vmul.f32 %v2201, 0.17677669
        %v2275 = vmul.f32 %v2114, 0.17677669
        %v2276 = vmul.f32 %v2203, 0.17677669
        %v2277 = vmul.f32 %v2117, 0.17677669
        %v2278 = vmul.f32 %v2206, 0.17677669
        %v2279 = vmul.f32 %v2119, 0.17677669
        %v2280 = vmul.f32 %v2208, 0.17677669
        %v2281 = vmul.f32 %v2122, 0.17677669
        %v2282 = vmul.f32 %v2211, 0.17677669
        %v2283 = vmul.f32 %v2124, 0.17677669
        %v2284 = vmul.f32 %v2213, 0.17677669
        %v2285 = vmul.f32 %v2127, 0.17677669
        %v2286 = vmul.f32 %v2216, 0.17677669
        %v2287 = vmul.f32 %v2129, 0.17677669
        %v2288 = vmul.f32 %v2218, 0.17677669
        %v2289 = vmul.f32 %v2132, 0.17677669
        %v2290 = vmul.f32 %v2221, 0.17677669
        %v2291 = vmul.f32 %v2134, 0.17677669
        %v2292 = vmul.f32 %v2223, 0.17677669
        %v2293 = vmul.f32 %v2137, 0.17677669
        %v2294 = vmul.f32 %v2226, 0.17677669
        %v2295 = vmul.f32 %v2139, 0.17677669
        %v2296 = vmul.f32 %v2228, 0.17677669
        %v2297 = vmul.f32 %v2142, 0.17677669
        %v2298 = vmul.f32 %v2231, 0.17677669
        %v2299 = vmul.f32 %v2144, 0.17677669
        %v2300 = vmul.f32 %v2233, 0.17677669
        %v2301 = vmul.f32 %v2147, 0.17677669
        %v2302 = vmul.f32 %v2236, 0.17677669
        %v2303 = vmul.f32 %v2149, 0.17677669
        %v2304 = vmul.f32 %v2238, 0.17677669
        %v2305 = vmul.f32 %v2152, 0.17677669
        %v2306 = vmul.f32 %v2241, 0.17677669
        %v2307 = vmul.f32 %v2154, 0.17677669
        %v2308 = vmul.f32 %v2243, 0.17677669
        %v2309 = vadd.f32 %v2245, %v1739
        %v2310 = vadd.f32 %v2246, %v1740
        %v2311 = vadd.f32 %v2247, %v1741
        %v2312 = vadd.f32 %v2248, %v1742
        %v2313 = vadd.f32 %v2249, %v1743
        %v2314 = vadd.f32 %v2250, %v1744
        %v2315 = vadd.f32 %v2251, %v1745
        %v2316 = vadd.f32 %v2252, %v1746
        %v2317 = vadd.f32 %v2253, %v1747
        %v2318 = vadd.f32 %v2254, %v1748
        %v2319 = vadd.f32 %v2255, %v1749
        %v2320 = vadd.f32 %v2256, %v1750
        %v2321 = vadd.f32 %v2257, %v1751
        %v2322 = vadd.f32 %v2258, %v1752
        %v2323 = vadd.f32 %v2259, %v1753
        %v2324 = vadd.f32 %v2260, %v1754
        %v2325 = vadd.f32 %v2261, %v1755
        %v2326 = vadd.f32 %v2262, %v1756
        %v2327 = vadd.f32 %v2263, %v1757
        %v2328 = vadd.f32 %v2264, %v1758
        %v2329 = vadd.f32 %v2265, %v1759
        %v2330 = vadd.f32 %v2266, %v1760
        %v2331 = vadd.f32 %v2267, %v1761
        %v2332 = vadd.f32 %v2268, %v1762
        %v2333 = vadd.f32 %v2269, %v1763
        %v2334 = vadd.f32 %v2270, %v1764
        %v2335 = vadd.f32 %v2271, %v1765
        %v2336 = vadd.f32 %v2272, %v1766
        %v2337 = vadd.f32 %v2273, %v1767
        %v2338 = vadd.f32 %v2274, %v1768
        %v2339 = vadd.f32 %v2275, %v1769
        %v2340 = vadd.f32 %v2276, %v1770
        %v2341 = vadd.f32 %v2277, %v1771
        %v2342 = vadd.f32 %v2278, %v1772
        %v2343 = vadd.f32 %v2279, %v1773
        %v2344 = vadd.f32 %v2280, %v1774
        %v2345 = vadd.f32 %v2281, %v1775
        %v2346 = vadd.f32 %v2282, %v1776
        %v2347 = vadd.f32 %v2283, %v1777
        %v2348 = vadd.f32 %v2284, %v1778
        %v2349 = vadd.f32 %v2285, %v1779
        %v2350 = vadd.f32 %v2286, %v1780
        %v2351 = vadd.f32 %v2287, %v1781
        %v2352 = vadd.f32 %v2288, %v1782
        %v2353 = vadd.f32 %v2289, %v1783
        %v2354 = vadd.f32 %v2290, %v1784
        %v2355 = vadd.f32 %v2291, %v1785
        %v2356 = vadd.f32 %v2292, %v1786
        %v2357 = vadd.f32 %v2293, %v1787
        %v2358 = vadd.f32 %v2294, %v1788
        %v2359 = vadd.f32 %v2295, %v1789
        %v2360 = vadd.f32 %v2296, %v1790
        %v2361 = vadd.f32 %v2297, %v1791
        %v2362 = vadd.f32 %v2298, %v1792
        %v2363 = vadd.f32 %v2299, %v1793
        %v2364 = vadd.f32 %v2300, %v1794
        %v2365 = vadd.f32 %v2301, %v1795
        %v2366 = vadd.f32 %v2302, %v1796
        %v2367 = vadd.f32 %v2303, %v1797
        %v2368 = vadd.f32 %v2304, %v1798
        %v2369 = vadd.f32 %v2305, %v1799
        %v2370 = vadd.f32 %v2306, %v1800
        %v2371 = vadd.f32 %v2307, %v1801
        %v2372 = vadd.f32 %v2308, %v1802
        %v2373 = vmax.f32 %v2309, %v2310
        %2374 = vmax.xlane.f32.xlu0 %v2373
        %v2375 = vpop.xlane.xlu0 %2374
        %v2376 = vmax.f32 %v2311, %v2312
        %2377 = vmax.xlane.f32.xlu0 %v2376
        %v2378 = vpop.xlane.xlu0 %2377
        %v2379 = vmax.f32 %v2313, %v2314
        %2380 = vmax.xlane.f32.xlu0 %v2379
        %v2381 = vpop.xlane.xlu0 %2380
        %v2382 = vmax.f32 %v2315, %v2316
        %2383 = vmax.xlane.f32.xlu0 %v2382
        %v2384 = vpop.xlane.xlu0 %2383
        %v2385 = vmax.f32 %v2317, %v2318
        %2386 = vmax.xlane.f32.xlu0 %v2385
        %v2387 = vpop.xlane.xlu0 %2386
        %v2388 = vmax.f32 %v2319, %v2320
        %2389 = vmax.xlane.f32.xlu0 %v2388
        %v2390 = vpop.xlane.xlu0 %2389
        %v2391 = vmax.f32 %v2321, %v2322
        %2392 = vmax.xlane.f32.xlu0 %v2391
        %v2393 = vpop.xlane.xlu0 %2392
        %v2394 = vmax.f32 %v2323, %v2324
        %2395 = vmax.xlane.f32.xlu0 %v2394
        %v2396 = vpop.xlane.xlu0 %2395
        %v2397 = vmax.f32 %v2325, %v2326
        %2398 = vmax.xlane.f32.xlu0 %v2397
        %v2399 = vpop.xlane.xlu0 %2398
        %v2400 = vmax.f32 %v2327, %v2328
        %2401 = vmax.xlane.f32.xlu0 %v2400
        %v2402 = vpop.xlane.xlu0 %2401
        %v2403 = vmax.f32 %v2329, %v2330
        %2404 = vmax.xlane.f32.xlu0 %v2403
        %v2405 = vpop.xlane.xlu0 %2404
        %v2406 = vmax.f32 %v2331, %v2332
        %2407 = vmax.xlane.f32.xlu0 %v2406
        %v2408 = vpop.xlane.xlu0 %2407
        %v2409 = vmax.f32 %v2333, %v2334
        %2410 = vmax.xlane.f32.xlu0 %v2409
        %v2411 = vpop.xlane.xlu0 %2410
        %v2412 = vmax.f32 %v2335, %v2336
        %2413 = vmax.xlane.f32.xlu0 %v2412
        %v2414 = vpop.xlane.xlu0 %2413
        %v2415 = vmax.f32 %v2337, %v2338
        %2416 = vmax.xlane.f32.xlu0 %v2415
        %v2417 = vpop.xlane.xlu0 %2416
        %v2418 = vmax.f32 %v2339, %v2340
        %2419 = vmax.xlane.f32.xlu0 %v2418
        %v2420 = vpop.xlane.xlu0 %2419
        %v2421 = vmax.f32 %v2341, %v2342
        %2422 = vmax.xlane.f32.xlu0 %v2421
        %v2423 = vpop.xlane.xlu0 %2422
        %v2424 = vmax.f32 %v2343, %v2344
        %2425 = vmax.xlane.f32.xlu0 %v2424
        %v2426 = vpop.xlane.xlu0 %2425
        %v2427 = vmax.f32 %v2345, %v2346
        %2428 = vmax.xlane.f32.xlu0 %v2427
        %v2429 = vpop.xlane.xlu0 %2428
        %v2430 = vmax.f32 %v2347, %v2348
        %2431 = vmax.xlane.f32.xlu0 %v2430
        %v2432 = vpop.xlane.xlu0 %2431
        %v2433 = vmax.f32 %v2349, %v2350
        %2434 = vmax.xlane.f32.xlu0 %v2433
        %v2435 = vpop.xlane.xlu0 %2434
        %v2436 = vmax.f32 %v2351, %v2352
        %2437 = vmax.xlane.f32.xlu0 %v2436
        %v2438 = vpop.xlane.xlu0 %2437
        %v2439 = vmax.f32 %v2353, %v2354
        %2440 = vmax.xlane.f32.xlu0 %v2439
        %v2441 = vpop.xlane.xlu0 %2440
        %v2442 = vmax.f32 %v2355, %v2356
        %2443 = vmax.xlane.f32.xlu0 %v2442
        %v2444 = vpop.xlane.xlu0 %2443
        %v2445 = vmax.f32 %v2357, %v2358
        %2446 = vmax.xlane.f32.xlu0 %v2445
        %v2447 = vpop.xlane.xlu0 %2446
        %v2448 = vmax.f32 %v2359, %v2360
        %2449 = vmax.xlane.f32.xlu0 %v2448
        %v2450 = vpop.xlane.xlu0 %2449
        %v2451 = vmax.f32 %v2361, %v2362
        %2452 = vmax.xlane.f32.xlu0 %v2451
        %v2453 = vpop.xlane.xlu0 %2452
        %v2454 = vmax.f32 %v2363, %v2364
        %2455 = vmax.xlane.f32.xlu0 %v2454
        %v2456 = vpop.xlane.xlu0 %2455
        %v2457 = vmax.f32 %v2365, %v2366
        %2458 = vmax.xlane.f32.xlu0 %v2457
        %v2459 = vpop.xlane.xlu0 %2458
        %v2460 = vmax.f32 %v2367, %v2368
        %2461 = vmax.xlane.f32.xlu0 %v2460
        %v2462 = vpop.xlane.xlu0 %2461
        %v2463 = vmax.f32 %v2369, %v2370
        %2464 = vmax.xlane.f32.xlu0 %v2463
        %v2465 = vpop.xlane.xlu0 %2464
        %v2466 = vmax.f32 %v2371, %v2372
        %2467 = vmax.xlane.f32.xlu0 %v2466
        %v2468 = vpop.xlane.xlu0 %2467
        %v2469 = vsub.f32 %v2309, %v2375
        %v2470 = vsub.f32 %v2310, %v2375
        %v2471 = vsub.f32 %v2311, %v2378
        %v2472 = vsub.f32 %v2312, %v2378
        %v2473 = vsub.f32 %v2313, %v2381
        %v2474 = vsub.f32 %v2314, %v2381
        %v2475 = vsub.f32 %v2315, %v2384
        %v2476 = vsub.f32 %v2316, %v2384
        %v2477 = vsub.f32 %v2317, %v2387
        %v2478 = vsub.f32 %v2318, %v2387
        %v2479 = vsub.f32 %v2319, %v2390
        %v2480 = vsub.f32 %v2320, %v2390
        %v2481 = vsub.f32 %v2321, %v2393
        %v2482 = vsub.f32 %v2322, %v2393
        %v2483 = vsub.f32 %v2323, %v2396
        %v2484 = vsub.f32 %v2324, %v2396
        %v2485 = vsub.f32 %v2325, %v2399
        %v2486 = vsub.f32 %v2326, %v2399
        %v2487 = vsub.f32 %v2327, %v2402
        %v2488 = vsub.f32 %v2328, %v2402
        %v2489 = vsub.f32 %v2329, %v2405
        %v2490 = vsub.f32 %v2330, %v2405
        %v2491 = vsub.f32 %v2331, %v2408
        %v2492 = vsub.f32 %v2332, %v2408
        %v2493 = vsub.f32 %v2333, %v2411
        %v2494 = vsub.f32 %v2334, %v2411
        %v2495 = vsub.f32 %v2335, %v2414
        %v2496 = vsub.f32 %v2336, %v2414
        %v2497 = vsub.f32 %v2337, %v2417
        %v2498 = vsub.f32 %v2338, %v2417
        %v2499 = vsub.f32 %v2339, %v2420
        %v2500 = vsub.f32 %v2340, %v2420
        %v2501 = vsub.f32 %v2341, %v2423
        %v2502 = vsub.f32 %v2342, %v2423
        %v2503 = vsub.f32 %v2343, %v2426
        %v2504 = vsub.f32 %v2344, %v2426
        %v2505 = vsub.f32 %v2345, %v2429
        %v2506 = vsub.f32 %v2346, %v2429
        %v2507 = vsub.f32 %v2347, %v2432
        %v2508 = vsub.f32 %v2348, %v2432
        %v2509 = vsub.f32 %v2349, %v2435
        %v2510 = vsub.f32 %v2350, %v2435
        %v2511 = vsub.f32 %v2351, %v2438
        %v2512 = vsub.f32 %v2352, %v2438
        %v2513 = vsub.f32 %v2353, %v2441
        %v2514 = vsub.f32 %v2354, %v2441
        %v2515 = vsub.f32 %v2355, %v2444
        %v2516 = vsub.f32 %v2356, %v2444
        %v2517 = vsub.f32 %v2357, %v2447
        %v2518 = vsub.f32 %v2358, %v2447
        %v2519 = vsub.f32 %v2359, %v2450
        %v2520 = vsub.f32 %v2360, %v2450
        %v2521 = vsub.f32 %v2361, %v2453
        %v2522 = vsub.f32 %v2362, %v2453
        %v2523 = vsub.f32 %v2363, %v2456
        %v2524 = vsub.f32 %v2364, %v2456
        %v2525 = vsub.f32 %v2365, %v2459
        %v2526 = vsub.f32 %v2366, %v2459
        %v2527 = vsub.f32 %v2367, %v2462
        %v2528 = vsub.f32 %v2368, %v2462
        %v2529 = vsub.f32 %v2369, %v2465
        %v2530 = vsub.f32 %v2370, %v2465
        %v2531 = vsub.f32 %v2371, %v2468
        %v2532 = vsub.f32 %v2372, %v2468
        %v2533 = vmul.f32 %v2469, 1.442695
        %v2534 = vpow.pop %v2533
        %v2535 = vmul.f32 %v2470, 1.442695
        %v2536 = vpow.pop %v2535
        %v2537 = vmul.f32 %v2471, 1.442695
        %v2538 = vpow.pop %v2537
        %v2539 = vmul.f32 %v2472, 1.442695
        %v2540 = vpow.pop %v2539
        %v2541 = vmul.f32 %v2473, 1.442695
        %v2542 = vpow.pop %v2541
        %v2543 = vmul.f32 %v2474, 1.442695
        %v2544 = vpow.pop %v2543
        %v2545 = vmul.f32 %v2475, 1.442695
        %v2546 = vpow.pop %v2545
        %v2547 = vmul.f32 %v2476, 1.442695
        %v2548 = vpow.pop %v2547
        %v2549 = vmul.f32 %v2477, 1.442695
        %v2550 = vpow.pop %v2549
        %v2551 = vmul.f32 %v2478, 1.442695
        %v2552 = vpow.pop %v2551
        %v2553 = vmul.f32 %v2479, 1.442695
        %v2554 = vpow.pop %v2553
        %v2555 = vmul.f32 %v2480, 1.442695
        %v2556 = vpow.pop %v2555
        %v2557 = vmul.f32 %v2481, 1.442695
        %v2558 = vpow.pop %v2557
        %v2559 = vmul.f32 %v2482, 1.442695
        %v2560 = vpow.pop %v2559
        %v2561 = vmul.f32 %v2483, 1.442695
        %v2562 = vpow.pop %v2561
        %v2563 = vmul.f32 %v2484, 1.442695
        %v2564 = vpow.pop %v2563
        %v2565 = vmul.f32 %v2485, 1.442695
        %v2566 = vpow.pop %v2565
        %v2567 = vmul.f32 %v2486, 1.442695
        %v2568 = vpow.pop %v2567
        %v2569 = vmul.f32 %v2487, 1.442695
        %v2570 = vpow.pop %v2569
        %v2571 = vmul.f32 %v2488, 1.442695
        %v2572 = vpow.pop %v2571
        %v2573 = vmul.f32 %v2489, 1.442695
        %v2574 = vpow.pop %v2573
        %v2575 = vmul.f32 %v2490, 1.442695
        %v2576 = vpow.pop %v2575
        %v2577 = vmul.f32 %v2491, 1.442695
        %v2578 = vpow.pop %v2577
        %v2579 = vmul.f32 %v2492, 1.442695
        %v2580 = vpow.pop %v2579
        %v2581 = vmul.f32 %v2493, 1.442695
        %v2582 = vpow.pop %v2581
        %v2583 = vmul.f32 %v2494, 1.442695
        %v2584 = vpow.pop %v2583
        %v2585 = vmul.f32 %v2495, 1.442695
        %v2586 = vpow.pop %v2585
        %v2587 = vmul.f32 %v2496, 1.442695
        %v2588 = vpow.pop %v2587
        %v2589 = vmul.f32 %v2497, 1.442695
        %v2590 = vpow.pop %v2589
        %v2591 = vmul.f32 %v2498, 1.442695
        %v2592 = vpow.pop %v2591
        %v2593 = vmul.f32 %v2499, 1.442695
        %v2594 = vpow.pop %v2593
        %v2595 = vmul.f32 %v2500, 1.442695
        %v2596 = vpow.pop %v2595
        %v2597 = vmul.f32 %v2501, 1.442695
        %v2598 = vpow.pop %v2597
        %v2599 = vmul.f32 %v2502, 1.442695
        %v2600 = vpow.pop %v2599
        %v2601 = vmul.f32 %v2503, 1.442695
        %v2602 = vpow.pop %v2601
        %v2603 = vmul.f32 %v2504, 1.442695
        %v2604 = vpow.pop %v2603
        %v2605 = vmul.f32 %v2505, 1.442695
        %v2606 = vpow.pop %v2605
        %v2607 = vmul.f32 %v2506, 1.442695
        %v2608 = vpow.pop %v2607
        %v2609 = vmul.f32 %v2507, 1.442695
        %v2610 = vpow.pop %v2609
        %v2611 = vmul.f32 %v2508, 1.442695
        %v2612 = vpow.pop %v2611
        %v2613 = vmul.f32 %v2509, 1.442695
        %v2614 = vpow.pop %v2613
        %v2615 = vmul.f32 %v2510, 1.442695
        %v2616 = vpow.pop %v2615
        %v2617 = vmul.f32 %v2511, 1.442695
        %v2618 = vpow.pop %v2617
        %v2619 = vmul.f32 %v2512, 1.442695
        %v2620 = vpow.pop %v2619
        %v2621 = vmul.f32 %v2513, 1.442695
        %v2622 = vpow.pop %v2621
        %v2623 = vmul.f32 %v2514, 1.442695
        %v2624 = vpow.pop %v2623
        %v2625 = vmul.f32 %v2515, 1.442695
        %v2626 = vpow.pop %v2625
        %v2627 = vmul.f32 %v2516, 1.442695
        %v2628 = vpow.pop %v2627
        %v2629 = vmul.f32 %v2517, 1.442695
        %v2630 = vpow.pop %v2629
        %v2631 = vmul.f32 %v2518, 1.442695
        %v2632 = vpow.pop %v2631
        %v2633 = vmul.f32 %v2519, 1.442695
        %v2634 = vpow.pop %v2633
        %v2635 = vmul.f32 %v2520, 1.442695
        %v2636 = vpow.pop %v2635
        %v2637 = vmul.f32 %v2521, 1.442695
        %v2638 = vpow.pop %v2637
        %v2639 = vmul.f32 %v2522, 1.442695
        %v2640 = vpow.pop %v2639
        %v2641 = vmul.f32 %v2523, 1.442695
        %v2642 = vpow.pop %v2641
        %v2643 = vmul.f32 %v2524, 1.442695
        %v2644 = vpow.pop %v2643
        %v2645 = vmul.f32 %v2525, 1.442695
        %v2646 = vpow.pop %v2645
        %v2647 = vmul.f32 %v2526, 1.442695
        %v2648 = vpow.pop %v2647
        %v2649 = vmul.f32 %v2527, 1.442695
        %v2650 = vpow.pop %v2649
        %v2651 = vmul.f32 %v2528, 1.442695
        %v2652 = vpow.pop %v2651
        %v2653 = vmul.f32 %v2529, 1.442695
        %v2654 = vpow.pop %v2653
        %v2655 = vmul.f32 %v2530, 1.442695
        %v2656 = vpow.pop %v2655
        %v2657 = vmul.f32 %v2531, 1.442695
        %v2658 = vpow.pop %v2657
        %v2659 = vmul.f32 %v2532, 1.442695
        %v2660 = vpow.pop %v2659
        %v2661 = vadd.f32 %v2534, %v2536
        %2662 = vadd.xlane.f32.xlu0 %v2661
        %v2663 = vpop.xlane.xlu0 %2662
        %v2664 = vadd.f32 %v2538, %v2540
        %2665 = vadd.xlane.f32.xlu0 %v2664
        %v2666 = vpop.xlane.xlu0 %2665
        %v2667 = vadd.f32 %v2542, %v2544
        %2668 = vadd.xlane.f32.xlu0 %v2667
        %v2669 = vpop.xlane.xlu0 %2668
        %v2670 = vadd.f32 %v2546, %v2548
        %2671 = vadd.xlane.f32.xlu0 %v2670
        %v2672 = vpop.xlane.xlu0 %2671
        %v2673 = vadd.f32 %v2550, %v2552
        %2674 = vadd.xlane.f32.xlu0 %v2673
        %v2675 = vpop.xlane.xlu0 %2674
        %v2676 = vadd.f32 %v2554, %v2556
        %2677 = vadd.xlane.f32.xlu0 %v2676
        %v2678 = vpop.xlane.xlu0 %2677
        %v2679 = vadd.f32 %v2558, %v2560
        %2680 = vadd.xlane.f32.xlu0 %v2679
        %v2681 = vpop.xlane.xlu0 %2680
        %v2682 = vadd.f32 %v2562, %v2564
        %2683 = vadd.xlane.f32.xlu0 %v2682
        %v2684 = vpop.xlane.xlu0 %2683
        %v2685 = vadd.f32 %v2566, %v2568
        %2686 = vadd.xlane.f32.xlu0 %v2685
        %v2687 = vpop.xlane.xlu0 %2686
        %v2688 = vadd.f32 %v2570, %v2572
        %2689 = vadd.xlane.f32.xlu0 %v2688
        %v2690 = vpop.xlane.xlu0 %2689
        %v2691 = vadd.f32 %v2574, %v2576
        %2692 = vadd.xlane.f32.xlu0 %v2691
        %v2693 = vpop.xlane.xlu0 %2692
        %v2694 = vadd.f32 %v2578, %v2580
        %2695 = vadd.xlane.f32.xlu0 %v2694
        %v2696 = vpop.xlane.xlu0 %2695
        %v2697 = vadd.f32 %v2582, %v2584
        %2698 = vadd.xlane.f32.xlu0 %v2697
        %v2699 = vpop.xlane.xlu0 %2698
        %v2700 = vadd.f32 %v2586, %v2588
        %2701 = vadd.xlane.f32.xlu0 %v2700
        %v2702 = vpop.xlane.xlu0 %2701
        %v2703 = vadd.f32 %v2590, %v2592
        %2704 = vadd.xlane.f32.xlu0 %v2703
        %v2705 = vpop.xlane.xlu0 %2704
        %v2706 = vadd.f32 %v2594, %v2596
        %2707 = vadd.xlane.f32.xlu0 %v2706
        %v2708 = vpop.xlane.xlu0 %2707
        %v2709 = vadd.f32 %v2598, %v2600
        %2710 = vadd.xlane.f32.xlu0 %v2709
        %v2711 = vpop.xlane.xlu0 %2710
        %v2712 = vadd.f32 %v2602, %v2604
        %2713 = vadd.xlane.f32.xlu0 %v2712
        %v2714 = vpop.xlane.xlu0 %2713
        %v2715 = vadd.f32 %v2606, %v2608
        %2716 = vadd.xlane.f32.xlu0 %v2715
        %v2717 = vpop.xlane.xlu0 %2716
        %v2718 = vadd.f32 %v2610, %v2612
        %2719 = vadd.xlane.f32.xlu0 %v2718
        %v2720 = vpop.xlane.xlu0 %2719
        %v2721 = vadd.f32 %v2614, %v2616
        %2722 = vadd.xlane.f32.xlu0 %v2721
        %v2723 = vpop.xlane.xlu0 %2722
        %v2724 = vadd.f32 %v2618, %v2620
        %2725 = vadd.xlane.f32.xlu0 %v2724
        %v2726 = vpop.xlane.xlu0 %2725
        %v2727 = vadd.f32 %v2622, %v2624
        %2728 = vadd.xlane.f32.xlu0 %v2727
        %v2729 = vpop.xlane.xlu0 %2728
        %v2730 = vadd.f32 %v2626, %v2628
        %2731 = vadd.xlane.f32.xlu0 %v2730
        %v2732 = vpop.xlane.xlu0 %2731
        %v2733 = vadd.f32 %v2630, %v2632
        %2734 = vadd.xlane.f32.xlu0 %v2733
        %v2735 = vpop.xlane.xlu0 %2734
        %v2736 = vadd.f32 %v2634, %v2636
        %2737 = vadd.xlane.f32.xlu0 %v2736
        %v2738 = vpop.xlane.xlu0 %2737
        %v2739 = vadd.f32 %v2638, %v2640
        %2740 = vadd.xlane.f32.xlu0 %v2739
        %v2741 = vpop.xlane.xlu0 %2740
        %v2742 = vadd.f32 %v2642, %v2644
        %2743 = vadd.xlane.f32.xlu0 %v2742
        %v2744 = vpop.xlane.xlu0 %2743
        %v2745 = vadd.f32 %v2646, %v2648
        %2746 = vadd.xlane.f32.xlu0 %v2745
        %v2747 = vpop.xlane.xlu0 %2746
        %v2748 = vadd.f32 %v2650, %v2652
        %2749 = vadd.xlane.f32.xlu0 %v2748
        %v2750 = vpop.xlane.xlu0 %2749
        %v2751 = vadd.f32 %v2654, %v2656
        %2752 = vadd.xlane.f32.xlu0 %v2751
        %v2753 = vpop.xlane.xlu0 %2752
        %v2754 = vadd.f32 %v2658, %v2660
        %2755 = vadd.xlane.f32.xlu0 %v2754
        %v2756 = vpop.xlane.xlu0 %2755
        %v2757 = vrcp.pop %v2663
        %v2758 = vrcp.pop %v2666
        %v2759 = vrcp.pop %v2669
        %v2760 = vrcp.pop %v2672
        %v2761 = vrcp.pop %v2675
        %v2762 = vrcp.pop %v2678
        %v2763 = vrcp.pop %v2681
        %v2764 = vrcp.pop %v2684
        %v2765 = vrcp.pop %v2687
        %v2766 = vrcp.pop %v2690
        %v2767 = vrcp.pop %v2693
        %v2768 = vrcp.pop %v2696
        %v2769 = vrcp.pop %v2699
        %v2770 = vrcp.pop %v2702
        %v2771 = vrcp.pop %v2705
        %v2772 = vrcp.pop %v2708
        %v2773 = vrcp.pop %v2711
        %v2774 = vrcp.pop %v2714
        %v2775 = vrcp.pop %v2717
        %v2776 = vrcp.pop %v2720
        %v2777 = vrcp.pop %v2723
        %v2778 = vrcp.pop %v2726
        %v2779 = vrcp.pop %v2729
        %v2780 = vrcp.pop %v2732
        %v2781 = vrcp.pop %v2735
        %v2782 = vrcp.pop %v2738
        %v2783 = vrcp.pop %v2741
        %v2784 = vrcp.pop %v2744
        %v2785 = vrcp.pop %v2747
        %v2786 = vrcp.pop %v2750
        %v2787 = vrcp.pop %v2753
        %v2788 = vrcp.pop %v2756
        %v2789 = vmul.f32 %v2534, %v2757
        %v2790 = vmul.f32 %v2536, %v2757
        %v2791 = vmul.f32 %v2538, %v2758
        %v2792 = vmul.f32 %v2540, %v2758
        %v2793 = vmul.f32 %v2542, %v2759
        %v2794 = vmul.f32 %v2544, %v2759
        %v2795 = vmul.f32 %v2546, %v2760
        %v2796 = vmul.f32 %v2548, %v2760
        %v2797 = vmul.f32 %v2550, %v2761
        %v2798 = vmul.f32 %v2552, %v2761
        %v2799 = vmul.f32 %v2554, %v2762
        %v2800 = vmul.f32 %v2556, %v2762
        %v2801 = vmul.f32 %v2558, %v2763
        %v2802 = vmul.f32 %v2560, %v2763
        %v2803 = vmul.f32 %v2562, %v2764
        %v2804 = vmul.f32 %v2564, %v2764
        %v2805 = vmul.f32 %v2566, %v2765
        %v2806 = vmul.f32 %v2568, %v2765
        %v2807 = vmul.f32 %v2570, %v2766
        %v2808 = vmul.f32 %v2572, %v2766
        %v2809 = vmul.f32 %v2574, %v2767
        %v2810 = vmul.f32 %v2576, %v2767
        %v2811 = vmul.f32 %v2578, %v2768
        %v2812 = vmul.f32 %v2580, %v2768
        %v2813 = vmul.f32 %v2582, %v2769
        %v2814 = vmul.f32 %v2584, %v2769
        %v2815 = vmul.f32 %v2586, %v2770
        %v2816 = vmul.f32 %v2588, %v2770
        %v2817 = vmul.f32 %v2590, %v2771
        %v2818 = vmul.f32 %v2592, %v2771
        %v2819 = vmul.f32 %v2594, %v2772
        %v2820 = vmul.f32 %v2596, %v2772
        %v2821 = vmul.f32 %v2598, %v2773
        %v2822 = vmul.f32 %v2600, %v2773
        %v2823 = vmul.f32 %v2602, %v2774
        %v2824 = vmul.f32 %v2604, %v2774
        %v2825 = vmul.f32 %v2606, %v2775
        %v2826 = vmul.f32 %v2608, %v2775
        %v2827 = vmul.f32 %v2610, %v2776
        %v2828 = vmul.f32 %v2612, %v2776
        %v2829 = vmul.f32 %v2614, %v2777
        %v2830 = vmul.f32 %v2616, %v2777
        %v2831 = vmul.f32 %v2618, %v2778
        %v2832 = vmul.f32 %v2620, %v2778
        %v2833 = vmul.f32 %v2622, %v2779
        %v2834 = vmul.f32 %v2624, %v2779
        %v2835 = vmul.f32 %v2626, %v2780
        %v2836 = vmul.f32 %v2628, %v2780
        %v2837 = vmul.f32 %v2630, %v2781
        %v2838 = vmul.f32 %v2632, %v2781
        %v2839 = vmul.f32 %v2634, %v2782
        %v2840 = vmul.f32 %v2636, %v2782
        %v2841 = vmul.f32 %v2638, %v2783
        %v2842 = vmul.f32 %v2640, %v2783
        %v2843 = vmul.f32 %v2642, %v2784
        %v2844 = vmul.f32 %v2644, %v2784
        %v2845 = vmul.f32 %v2646, %v2785
        %v2846 = vmul.f32 %v2648, %v2785
        %v2847 = vmul.f32 %v2650, %v2786
        %v2848 = vmul.f32 %v2652, %v2786
        %v2849 = vmul.f32 %v2654, %v2787
        %v2850 = vmul.f32 %v2656, %v2787
        %v2851 = vmul.f32 %v2658, %v2788
        %v2852 = vmul.f32 %v2660, %v2788
        %v2853 = vpack.c.bf16 %v2791, %v2789
        %v2854 = vpack.c.bf16 %v2792, %v2790
        %v2855 = vpack.c.bf16 %v2795, %v2793
        %v2856 = vpack.c.bf16 %v2796, %v2794
        %v2857 = vpack.c.bf16 %v2799, %v2797
        %v2858 = vpack.c.bf16 %v2800, %v2798
        %v2859 = vpack.c.bf16 %v2803, %v2801
        %v2860 = vpack.c.bf16 %v2804, %v2802
        %v2861 = vpack.c.bf16 %v2807, %v2805
        %v2862 = vpack.c.bf16 %v2808, %v2806
        %v2863 = vpack.c.bf16 %v2811, %v2809
        %v2864 = vpack.c.bf16 %v2812, %v2810
        %v2865 = vpack.c.bf16 %v2815, %v2813
        %v2866 = vpack.c.bf16 %v2816, %v2814
        %v2867 = vpack.c.bf16 %v2819, %v2817
        %v2868 = vpack.c.bf16 %v2820, %v2818
        %v2869 = vpack.c.bf16 %v2823, %v2821
        %v2870 = vpack.c.bf16 %v2824, %v2822
        %v2871 = vpack.c.bf16 %v2827, %v2825
        %v2872 = vpack.c.bf16 %v2828, %v2826
        %v2873 = vpack.c.bf16 %v2831, %v2829
        %v2874 = vpack.c.bf16 %v2832, %v2830
        %v2875 = vpack.c.bf16 %v2835, %v2833
        %v2876 = vpack.c.bf16 %v2836, %v2834
        %v2877 = vpack.c.bf16 %v2839, %v2837
        %v2878 = vpack.c.bf16 %v2840, %v2838
        %v2879 = vpack.c.bf16 %v2843, %v2841
        %v2880 = vpack.c.bf16 %v2844, %v2842
        %v2881 = vpack.c.bf16 %v2847, %v2845
        %v2882 = vpack.c.bf16 %v2848, %v2846
        %v2883 = vpack.c.bf16 %v2851, %v2849
        %v2884 = vpack.c.bf16 %v2852, %v2850
        %vm2885 = vcmp.ge.s32.totalorder %v1804, 32
        %vm2886 = vcmp.lt.s32.totalorder %v1804, 64
        %vm2887 = vmand %vm2885, %vm2886
        %v2888 = vsel %vm2887, 1, 0
        %vm2889 = vcmp.eq.s32.totalorder %v2888, 1
        %vm2890 = vmpackc.low %vm2889, %vm2889
        %v2891 = vsel %vm2890, %v1675, 0
        %v2892 = vsel %vm2890, %v1677, 0
        %v2893 = vsel %vm2890, %v1679, 0
        %v2894 = vsel %vm2890, %v1681, 0
        %v2895 = vsel %vm2890, %v1683, 0
        %v2896 = vsel %vm2890, %v1685, 0
        %v2897 = vsel %vm2890, %v1687, 0
        %v2898 = vsel %vm2890, %v1689, 0
        %v2899 = vsel %vm2890, %v1691, 0
        %v2900 = vsel %vm2890, %v1693, 0
        %v2901 = vsel %vm2890, %v1695, 0
        %v2902 = vsel %vm2890, %v1697, 0
        %v2903 = vsel %vm2890, %v1699, 0
        %v2904 = vsel %vm2890, %v1701, 0
        %v2905 = vsel %vm2890, %v1703, 0
        %v2906 = vsel %vm2890, %v1705, 0
        %v2907 = vsel %vm2890, %v1707, 0
        %v2908 = vsel %vm2890, %v1709, 0
        %v2909 = vsel %vm2890, %v1711, 0
        %v2910 = vsel %vm2890, %v1713, 0
        %v2911 = vsel %vm2890, %v1715, 0
        %v2912 = vsel %vm2890, %v1717, 0
        %v2913 = vsel %vm2890, %v1719, 0
        %v2914 = vsel %vm2890, %v1721, 0
        %v2915 = vsel %vm2890, %v1723, 0
        %v2916 = vsel %vm2890, %v1725, 0
        %v2917 = vsel %vm2890, %v1727, 0
        %v2918 = vsel %vm2890, %v1729, 0
        %v2919 = vsel %vm2890, %v1731, 0
        %v2920 = vsel %vm2890, %v1733, 0
        %v2921 = vsel %vm2890, %v1735, 0
        %v2922 = vsel %vm2890, %v1737, 0
        %v2923 = vsel %vm2890, %v1676, 0
        %v2924 = vsel %vm2890, %v1678, 0
        %v2925 = vsel %vm2890, %v1680, 0
        %v2926 = vsel %vm2890, %v1682, 0
        %v2927 = vsel %vm2890, %v1684, 0
        %v2928 = vsel %vm2890, %v1686, 0
        %v2929 = vsel %vm2890, %v1688, 0
        %v2930 = vsel %vm2890, %v1690, 0
        %v2931 = vsel %vm2890, %v1692, 0
        %v2932 = vsel %vm2890, %v1694, 0
        %v2933 = vsel %vm2890, %v1696, 0
        %v2934 = vsel %vm2890, %v1698, 0
        %v2935 = vsel %vm2890, %v1700, 0
        %v2936 = vsel %vm2890, %v1702, 0
        %v2937 = vsel %vm2890, %v1704, 0
        %v2938 = vsel %vm2890, %v1706, 0
        %v2939 = vsel %vm2890, %v1708, 0
        %v2940 = vsel %vm2890, %v1710, 0
        %v2941 = vsel %vm2890, %v1712, 0
        %v2942 = vsel %vm2890, %v1714, 0
        %v2943 = vsel %vm2890, %v1716, 0
        %v2944 = vsel %vm2890, %v1718, 0
        %v2945 = vsel %vm2890, %v1720, 0
        %v2946 = vsel %vm2890, %v1722, 0
        %v2947 = vsel %vm2890, %v1724, 0
        %v2948 = vsel %vm2890, %v1726, 0
        %v2949 = vsel %vm2890, %v1728, 0
        %v2950 = vsel %vm2890, %v1730, 0
        %v2951 = vsel %vm2890, %v1732, 0
        %v2952 = vsel %vm2890, %v1734, 0
        %v2953 = vsel %vm2890, %v1736, 0
        %v2954 = vsel %vm2890, %v1738, 0
        %v2987 = vunpack.c.l.b16 %v2891
        %v2988 = vunpack.c.l.b16 %v2892
        %v2989 = vunpack.c.l.b16 %v2893
        %v2990 = vunpack.c.l.b16 %v2894
        %v2991 = vunpack.c.l.b16 %v2895
        %v2992 = vunpack.c.l.b16 %v2896
        %v2993 = vunpack.c.l.b16 %v2897
        %v2994 = vunpack.c.l.b16 %v2898
        %v2995 = vunpack.c.l.b16 %v2899
        %v2996 = vunpack.c.l.b16 %v2900
        %v2997 = vunpack.c.l.b16 %v2901
        %v2998 = vunpack.c.l.b16 %v2902
        %v2999 = vunpack.c.l.b16 %v2903
        %v3000 = vunpack.c.l.b16 %v2904
        %v3001 = vunpack.c.l.b16 %v2905
        %v3002 = vunpack.c.l.b16 %v2906
        %v3003 = vunpack.c.l.b16 %v2907
        %v3004 = vunpack.c.l.b16 %v2908
        %v3005 = vunpack.c.l.b16 %v2909
        %v3006 = vunpack.c.l.b16 %v2910
        %v3007 = vunpack.c.l.b16 %v2911
        %v3008 = vunpack.c.l.b16 %v2912
        %v3009 = vunpack.c.l.b16 %v2913
        %v3010 = vunpack.c.l.b16 %v2914
        %v3011 = vunpack.c.l.b16 %v2915
        %v3012 = vunpack.c.l.b16 %v2916
        %v3013 = vunpack.c.l.b16 %v2917
        %v3014 = vunpack.c.l.b16 %v2918
        %v3015 = vunpack.c.l.b16 %v2919
        %v3016 = vunpack.c.l.b16 %v2920
        %v3017 = vunpack.c.l.b16 %v2921
        %v3018 = vunpack.c.l.b16 %v2922
        %v3019 = vpack.c.b16 %v2988, %v2987
        %v3020 = vpack.c.b16 %v2990, %v2989
        %v3021 = vpack.c.b16 %v2992, %v2991
        %v3022 = vpack.c.b16 %v2994, %v2993
        %v3023 = vpack.c.b16 %v2996, %v2995
        %v3024 = vpack.c.b16 %v2998, %v2997
        %v3025 = vpack.c.b16 %v3000, %v2999
        %v3026 = vpack.c.b16 %v3002, %v3001
        %v3027 = vpack.c.b16 %v3004, %v3003
        %v3028 = vpack.c.b16 %v3006, %v3005
        %v3029 = vpack.c.b16 %v3008, %v3007
        %v3030 = vpack.c.b16 %v3010, %v3009
        %v3031 = vpack.c.b16 %v3012, %v3011
        %v3032 = vpack.c.b16 %v3014, %v3013
        %v3033 = vpack.c.b16 %v3016, %v3015
        %v3034 = vpack.c.b16 %v3018, %v3017
        %3051 = vmatpush.bf16.xpose.msra.mxu0 %v2042
        %3052 = vmatpush.bf16.xpose.msra.mxu0 %v2041
        %3053 = vmatpush.bf16.xpose.msra.mxu0 %v2040
        %3054 = vmatpush.bf16.xpose.msra.mxu0 %v2039
        %3055 = vmatpush.bf16.xpose.msra.mxu0 %v2038
        %3056 = vmatpush.bf16.xpose.msra.mxu0 %v2037
        %3057 = vmatpush.bf16.xpose.msra.mxu0 %v2036
        %3058 = vmatpush.bf16.xpose.msra.mxu0 %v2035
        %3059 = vmatmul.bf16.gmra.mxu0 %v3019
        %v3060 = vpop.f32.mrf.mxu0
        %v3061 = vadd.f32 0.0, %v3060
        %v3062 = vpop.f32.mrf.mxu0
        %v3063 = vadd.f32 0.0, %v3062
        %3064 = vmatmul.bf16.gmra.mxu0 %v3020
        %v3065 = vpop.f32.mrf.mxu0
        %v3066 = vadd.f32 0.0, %v3065
        %v3067 = vpop.f32.mrf.mxu0
        %v3068 = vadd.f32 0.0, %v3067
        %3069 = vmatmul.bf16.gmra.mxu0 %v3021
        %v3070 = vpop.f32.mrf.mxu0
        %v3071 = vadd.f32 0.0, %v3070
        %v3072 = vpop.f32.mrf.mxu0
        %v3073 = vadd.f32 0.0, %v3072
        %3074 = vmatmul.bf16.gmra.mxu0 %v3022
        %v3075 = vpop.f32.mrf.mxu0
        %v3076 = vadd.f32 0.0, %v3075
        %v3077 = vpop.f32.mrf.mxu0
        %v3078 = vadd.f32 0.0, %v3077
        %3079 = vmatmul.bf16.gmra.mxu0 %v3023
        %v3080 = vpop.f32.mrf.mxu0
        %v3081 = vadd.f32 0.0, %v3080
        %v3082 = vpop.f32.mrf.mxu0
        %v3083 = vadd.f32 0.0, %v3082
        %3084 = vmatmul.bf16.gmra.mxu0 %v3024
        %v3085 = vpop.f32.mrf.mxu0
        %v3086 = vadd.f32 0.0, %v3085
        %v3087 = vpop.f32.mrf.mxu0
        %v3088 = vadd.f32 0.0, %v3087
        %3089 = vmatmul.bf16.gmra.mxu0 %v3025
        %v3090 = vpop.f32.mrf.mxu0
        %v3091 = vadd.f32 0.0, %v3090
        %v3092 = vpop.f32.mrf.mxu0
        %v3093 = vadd.f32 0.0, %v3092
        %3094 = vmatmul.bf16.gmra.mxu0 %v3026
        %v3095 = vpop.f32.mrf.mxu0
        %v3096 = vadd.f32 0.0, %v3095
        %v3097 = vpop.f32.mrf.mxu0
        %v3098 = vadd.f32 0.0, %v3097
        %3099 = vmatmul.bf16.gmra.mxu0 %v3027
        %v3100 = vpop.f32.mrf.mxu0
        %v3101 = vadd.f32 0.0, %v3100
        %v3102 = vpop.f32.mrf.mxu0
        %v3103 = vadd.f32 0.0, %v3102
        %3104 = vmatmul.bf16.gmra.mxu0 %v3028
        %v3105 = vpop.f32.mrf.mxu0
        %v3106 = vadd.f32 0.0, %v3105
        %v3107 = vpop.f32.mrf.mxu0
        %v3108 = vadd.f32 0.0, %v3107
        %3109 = vmatmul.bf16.gmra.mxu0 %v3029
        %v3110 = vpop.f32.mrf.mxu0
        %v3111 = vadd.f32 0.0, %v3110
        %v3112 = vpop.f32.mrf.mxu0
        %v3113 = vadd.f32 0.0, %v3112
        %3114 = vmatmul.bf16.gmra.mxu0 %v3030
        %v3115 = vpop.f32.mrf.mxu0
        %v3116 = vadd.f32 0.0, %v3115
        %v3117 = vpop.f32.mrf.mxu0
        %v3118 = vadd.f32 0.0, %v3117
        %3119 = vmatmul.bf16.gmra.mxu0 %v3031
        %v3120 = vpop.f32.mrf.mxu0
        %v3121 = vadd.f32 0.0, %v3120
        %v3122 = vpop.f32.mrf.mxu0
        %v3123 = vadd.f32 0.0, %v3122
        %3124 = vmatmul.bf16.gmra.mxu0 %v3032
        %v3125 = vpop.f32.mrf.mxu0
        %v3126 = vadd.f32 0.0, %v3125
        %v3127 = vpop.f32.mrf.mxu0
        %v3128 = vadd.f32 0.0, %v3127
        %3129 = vmatmul.bf16.gmra.mxu0 %v3033
        %v3130 = vpop.f32.mrf.mxu0
        %v3131 = vadd.f32 0.0, %v3130
        %v3132 = vpop.f32.mrf.mxu0
        %v3133 = vadd.f32 0.0, %v3132
        %3134 = vmatmul.bf16.gmra.mxu0 %v3034
        %v3135 = vpop.f32.mrf.mxu0
        %v3136 = vadd.f32 0.0, %v3135
        %v3137 = vpop.f32.mrf.mxu0
        %v3138 = vadd.f32 0.0, %v3137
        %3139 = vdwg.mxu0
        %3140 = vmatpush.bf16.xpose.msra.mxu0 %v2050
        %3141 = vmatpush.bf16.xpose.msra.mxu0 %v2049
        %3142 = vmatpush.bf16.xpose.msra.mxu0 %v2048
        %3143 = vmatpush.bf16.xpose.msra.mxu0 %v2047
        %3144 = vmatpush.bf16.xpose.msra.mxu0 %v2046
        %3145 = vmatpush.bf16.xpose.msra.mxu0 %v2045
        %3146 = vmatpush.bf16.xpose.msra.mxu0 %v2044
        %3147 = vmatpush.bf16.xpose.msra.mxu0 %v2043
        %3148 = vmatmul.bf16.gmra.mxu0 %v3019
        %v3149 = vpop.f32.mrf.mxu0
        %v3150 = vadd.f32 0.0, %v3149
        %v3151 = vpop.f32.mrf.mxu0
        %v3152 = vadd.f32 0.0, %v3151
        %3153 = vmatmul.bf16.gmra.mxu0 %v3020
        %v3154 = vpop.f32.mrf.mxu0
        %v3155 = vadd.f32 0.0, %v3154
        %v3156 = vpop.f32.mrf.mxu0
        %v3157 = vadd.f32 0.0, %v3156
        %3158 = vmatmul.bf16.gmra.mxu0 %v3021
        %v3159 = vpop.f32.mrf.mxu0
        %v3160 = vadd.f32 0.0, %v3159
        %v3161 = vpop.f32.mrf.mxu0
        %v3162 = vadd.f32 0.0, %v3161
        %3163 = vmatmul.bf16.gmra.mxu0 %v3022
        %v3164 = vpop.f32.mrf.mxu0
        %v3165 = vadd.f32 0.0, %v3164
        %v3166 = vpop.f32.mrf.mxu0
        %v3167 = vadd.f32 0.0, %v3166
        %3168 = vmatmul.bf16.gmra.mxu0 %v3023
        %v3169 = vpop.f32.mrf.mxu0
        %v3170 = vadd.f32 0.0, %v3169
        %v3171 = vpop.f32.mrf.mxu0
        %v3172 = vadd.f32 0.0, %v3171
        %3173 = vmatmul.bf16.gmra.mxu0 %v3024
        %v3174 = vpop.f32.mrf.mxu0
        %v3175 = vadd.f32 0.0, %v3174
        %v3176 = vpop.f32.mrf.mxu0
        %v3177 = vadd.f32 0.0, %v3176
        %3178 = vmatmul.bf16.gmra.mxu0 %v3025
        %v3179 = vpop.f32.mrf.mxu0
        %v3180 = vadd.f32 0.0, %v3179
        %v3181 = vpop.f32.mrf.mxu0
        %v3182 = vadd.f32 0.0, %v3181
        %3183 = vmatmul.bf16.gmra.mxu0 %v3026
        %v3184 = vpop.f32.mrf.mxu0
        %v3185 = vadd.f32 0.0, %v3184
        %v3186 = vpop.f32.mrf.mxu0
        %v3187 = vadd.f32 0.0, %v3186
        %3188 = vmatmul.bf16.gmra.mxu0 %v3027
        %v3189 = vpop.f32.mrf.mxu0
        %v3190 = vadd.f32 0.0, %v3189
        %v3191 = vpop.f32.mrf.mxu0
        %v3192 = vadd.f32 0.0, %v3191
        %3193 = vmatmul.bf16.gmra.mxu0 %v3028
        %v3194 = vpop.f32.mrf.mxu0
        %v3195 = vadd.f32 0.0, %v3194
        %v3196 = vpop.f32.mrf.mxu0
        %v3197 = vadd.f32 0.0, %v3196
        %3198 = vmatmul.bf16.gmra.mxu0 %v3029
        %v3199 = vpop.f32.mrf.mxu0
        %v3200 = vadd.f32 0.0, %v3199
        %v3201 = vpop.f32.mrf.mxu0
        %v3202 = vadd.f32 0.0, %v3201
        %3203 = vmatmul.bf16.gmra.mxu0 %v3030
        %v3204 = vpop.f32.mrf.mxu0
        %v3205 = vadd.f32 0.0, %v3204
        %v3206 = vpop.f32.mrf.mxu0
        %v3207 = vadd.f32 0.0, %v3206
        %3208 = vmatmul.bf16.gmra.mxu0 %v3031
        %v3209 = vpop.f32.mrf.mxu0
        %v3210 = vadd.f32 0.0, %v3209
        %v3211 = vpop.f32.mrf.mxu0
        %v3212 = vadd.f32 0.0, %v3211
        %3213 = vmatmul.bf16.gmra.mxu0 %v3032
        %v3214 = vpop.f32.mrf.mxu0
        %v3215 = vadd.f32 0.0, %v3214
        %v3216 = vpop.f32.mrf.mxu0
        %v3217 = vadd.f32 0.0, %v3216
        %3218 = vmatmul.bf16.gmra.mxu0 %v3033
        %v3219 = vpop.f32.mrf.mxu0
        %v3220 = vadd.f32 0.0, %v3219
        %v3221 = vpop.f32.mrf.mxu0
        %v3222 = vadd.f32 0.0, %v3221
        %3223 = vmatmul.bf16.gmra.mxu0 %v3034
        %v3224 = vpop.f32.mrf.mxu0
        %v3225 = vadd.f32 0.0, %v3224
        %v3226 = vpop.f32.mrf.mxu0
        %v3227 = vadd.f32 0.0, %v3226
        %3228 = vdwg.mxu0
        %v3229 = vmul.f32 %v3061, 0.17677669
        %v3230 = vmul.f32 %v3150, 0.17677669
        %v3231 = vmul.f32 %v3063, 0.17677669
        %v3232 = vmul.f32 %v3152, 0.17677669
        %v3233 = vmul.f32 %v3066, 0.17677669
        %v3234 = vmul.f32 %v3155, 0.17677669
        %v3235 = vmul.f32 %v3068, 0.17677669
        %v3236 = vmul.f32 %v3157, 0.17677669
        %v3237 = vmul.f32 %v3071, 0.17677669
        %v3238 = vmul.f32 %v3160, 0.17677669
        %v3239 = vmul.f32 %v3073, 0.17677669
        %v3240 = vmul.f32 %v3162, 0.17677669
        %v3241 = vmul.f32 %v3076, 0.17677669
        %v3242 = vmul.f32 %v3165, 0.17677669
        %v3243 = vmul.f32 %v3078, 0.17677669
        %v3244 = vmul.f32 %v3167, 0.17677669
        %v3245 = vmul.f32 %v3081, 0.17677669
        %v3246 = vmul.f32 %v3170, 0.17677669
        %v3247 = vmul.f32 %v3083, 0.17677669
        %v3248 = vmul.f32 %v3172, 0.17677669
        %v3249 = vmul.f32 %v3086, 0.17677669
        %v3250 = vmul.f32 %v3175, 0.17677669
        %v3251 = vmul.f32 %v3088, 0.17677669
        %v3252 = vmul.f32 %v3177, 0.17677669
        %v3253 = vmul.f32 %v3091, 0.17677669
        %v3254 = vmul.f32 %v3180, 0.17677669
        %v3255 = vmul.f32 %v3093, 0.17677669
        %v3256 = vmul.f32 %v3182, 0.17677669
        %v3257 = vmul.f32 %v3096, 0.17677669
        %v3258 = vmul.f32 %v3185, 0.17677669
        %v3259 = vmul.f32 %v3098, 0.17677669
        %v3260 = vmul.f32 %v3187, 0.17677669
        %v3261 = vmul.f32 %v3101, 0.17677669
        %v3262 = vmul.f32 %v3190, 0.17677669
        %v3263 = vmul.f32 %v3103, 0.17677669
        %v3264 = vmul.f32 %v3192, 0.17677669
        %v3265 = vmul.f32 %v3106, 0.17677669
        %v3266 = vmul.f32 %v3195, 0.17677669
        %v3267 = vmul.f32 %v3108, 0.17677669
        %v3268 = vmul.f32 %v3197, 0.17677669
        %v3269 = vmul.f32 %v3111, 0.17677669
        %v3270 = vmul.f32 %v3200, 0.17677669
        %v3271 = vmul.f32 %v3113, 0.17677669
        %v3272 = vmul.f32 %v3202, 0.17677669
        %v3273 = vmul.f32 %v3116, 0.17677669
        %v3274 = vmul.f32 %v3205, 0.17677669
        %v3275 = vmul.f32 %v3118, 0.17677669
        %v3276 = vmul.f32 %v3207, 0.17677669
        %v3277 = vmul.f32 %v3121, 0.17677669
        %v3278 = vmul.f32 %v3210, 0.17677669
        %v3279 = vmul.f32 %v3123, 0.17677669
        %v3280 = vmul.f32 %v3212, 0.17677669
        %v3281 = vmul.f32 %v3126, 0.17677669
        %v3282 = vmul.f32 %v3215, 0.17677669
        %v3283 = vmul.f32 %v3128, 0.17677669
        %v3284 = vmul.f32 %v3217, 0.17677669
        %v3285 = vmul.f32 %v3131, 0.17677669
        %v3286 = vmul.f32 %v3220, 0.17677669
        %v3287 = vmul.f32 %v3133, 0.17677669
        %v3288 = vmul.f32 %v3222, 0.17677669
        %v3289 = vmul.f32 %v3136, 0.17677669
        %v3290 = vmul.f32 %v3225, 0.17677669
        %v3291 = vmul.f32 %v3138, 0.17677669
        %v3292 = vmul.f32 %v3227, 0.17677669
        %v3293 = vadd.f32 %v3229, %v1739
        %v3294 = vadd.f32 %v3230, %v1740
        %v3295 = vadd.f32 %v3231, %v1741
        %v3296 = vadd.f32 %v3232, %v1742
        %v3297 = vadd.f32 %v3233, %v1743
        %v3298 = vadd.f32 %v3234, %v1744
        %v3299 = vadd.f32 %v3235, %v1745
        %v3300 = vadd.f32 %v3236, %v1746
        %v3301 = vadd.f32 %v3237, %v1747
        %v3302 = vadd.f32 %v3238, %v1748
        %v3303 = vadd.f32 %v3239, %v1749
        %v3304 = vadd.f32 %v3240, %v1750
        %v3305 = vadd.f32 %v3241, %v1751
        %v3306 = vadd.f32 %v3242, %v1752
        %v3307 = vadd.f32 %v3243, %v1753
        %v3308 = vadd.f32 %v3244, %v1754
        %v3309 = vadd.f32 %v3245, %v1755
        %v3310 = vadd.f32 %v3246, %v1756
        %v3311 = vadd.f32 %v3247, %v1757
        %v3312 = vadd.f32 %v3248, %v1758
        %v3313 = vadd.f32 %v3249, %v1759
        %v3314 = vadd.f32 %v3250, %v1760
        %v3315 = vadd.f32 %v3251, %v1761
        %v3316 = vadd.f32 %v3252, %v1762
        %v3317 = vadd.f32 %v3253, %v1763
        %v3318 = vadd.f32 %v3254, %v1764
        %v3319 = vadd.f32 %v3255, %v1765
        %v3320 = vadd.f32 %v3256, %v1766
        %v3321 = vadd.f32 %v3257, %v1767
        %v3322 = vadd.f32 %v3258, %v1768
        %v3323 = vadd.f32 %v3259, %v1769
        %v3324 = vadd.f32 %v3260, %v1770
        %v3325 = vadd.f32 %v3261, %v1771
        %v3326 = vadd.f32 %v3262, %v1772
        %v3327 = vadd.f32 %v3263, %v1773
        %v3328 = vadd.f32 %v3264, %v1774
        %v3329 = vadd.f32 %v3265, %v1775
        %v3330 = vadd.f32 %v3266, %v1776
        %v3331 = vadd.f32 %v3267, %v1777
        %v3332 = vadd.f32 %v3268, %v1778
        %v3333 = vadd.f32 %v3269, %v1779
        %v3334 = vadd.f32 %v3270, %v1780
        %v3335 = vadd.f32 %v3271, %v1781
        %v3336 = vadd.f32 %v3272, %v1782
        %v3337 = vadd.f32 %v3273, %v1783
        %v3338 = vadd.f32 %v3274, %v1784
        %v3339 = vadd.f32 %v3275, %v1785
        %v3340 = vadd.f32 %v3276, %v1786
        %v3341 = vadd.f32 %v3277, %v1787
        %v3342 = vadd.f32 %v3278, %v1788
        %v3343 = vadd.f32 %v3279, %v1789
        %v3344 = vadd.f32 %v3280, %v1790
        %v3345 = vadd.f32 %v3281, %v1791
        %v3346 = vadd.f32 %v3282, %v1792
        %v3347 = vadd.f32 %v3283, %v1793
        %v3348 = vadd.f32 %v3284, %v1794
        %v3349 = vadd.f32 %v3285, %v1795
        %v3350 = vadd.f32 %v3286, %v1796
        %v3351 = vadd.f32 %v3287, %v1797
        %v3352 = vadd.f32 %v3288, %v1798
        %v3353 = vadd.f32 %v3289, %v1799
        %v3354 = vadd.f32 %v3290, %v1800
        %v3355 = vadd.f32 %v3291, %v1801
        %v3356 = vadd.f32 %v3292, %v1802
        %v3357 = vmax.f32 %v3293, %v3294
        %3358 = vmax.xlane.f32.xlu0 %v3357
        %v3359 = vpop.xlane.xlu0 %3358
        %v3360 = vmax.f32 %v3295, %v3296
        %3361 = vmax.xlane.f32.xlu0 %v3360
        %v3362 = vpop.xlane.xlu0 %3361
        %v3363 = vmax.f32 %v3297, %v3298
        %3364 = vmax.xlane.f32.xlu0 %v3363
        %v3365 = vpop.xlane.xlu0 %3364
        %v3366 = vmax.f32 %v3299, %v3300
        %3367 = vmax.xlane.f32.xlu0 %v3366
        %v3368 = vpop.xlane.xlu0 %3367
        %v3369 = vmax.f32 %v3301, %v3302
        %3370 = vmax.xlane.f32.xlu0 %v3369
        %v3371 = vpop.xlane.xlu0 %3370
        %v3372 = vmax.f32 %v3303, %v3304
        %3373 = vmax.xlane.f32.xlu0 %v3372
        %v3374 = vpop.xlane.xlu0 %3373
        %v3375 = vmax.f32 %v3305, %v3306
        %3376 = vmax.xlane.f32.xlu0 %v3375
        %v3377 = vpop.xlane.xlu0 %3376
        %v3378 = vmax.f32 %v3307, %v3308
        %3379 = vmax.xlane.f32.xlu0 %v3378
        %v3380 = vpop.xlane.xlu0 %3379
        %v3381 = vmax.f32 %v3309, %v3310
        %3382 = vmax.xlane.f32.xlu0 %v3381
        %v3383 = vpop.xlane.xlu0 %3382
        %v3384 = vmax.f32 %v3311, %v3312
        %3385 = vmax.xlane.f32.xlu0 %v3384
        %v3386 = vpop.xlane.xlu0 %3385
        %v3387 = vmax.f32 %v3313, %v3314
        %3388 = vmax.xlane.f32.xlu0 %v3387
        %v3389 = vpop.xlane.xlu0 %3388
        %v3390 = vmax.f32 %v3315, %v3316
        %3391 = vmax.xlane.f32.xlu0 %v3390
        %v3392 = vpop.xlane.xlu0 %3391
        %v3393 = vmax.f32 %v3317, %v3318
        %3394 = vmax.xlane.f32.xlu0 %v3393
        %v3395 = vpop.xlane.xlu0 %3394
        %v3396 = vmax.f32 %v3319, %v3320
        %3397 = vmax.xlane.f32.xlu0 %v3396
        %v3398 = vpop.xlane.xlu0 %3397
        %v3399 = vmax.f32 %v3321, %v3322
        %3400 = vmax.xlane.f32.xlu0 %v3399
        %v3401 = vpop.xlane.xlu0 %3400
        %v3402 = vmax.f32 %v3323, %v3324
        %3403 = vmax.xlane.f32.xlu0 %v3402
        %v3404 = vpop.xlane.xlu0 %3403
        %v3405 = vmax.f32 %v3325, %v3326
        %3406 = vmax.xlane.f32.xlu0 %v3405
        %v3407 = vpop.xlane.xlu0 %3406
        %v3408 = vmax.f32 %v3327, %v3328
        %3409 = vmax.xlane.f32.xlu0 %v3408
        %v3410 = vpop.xlane.xlu0 %3409
        %v3411 = vmax.f32 %v3329, %v3330
        %3412 = vmax.xlane.f32.xlu0 %v3411
        %v3413 = vpop.xlane.xlu0 %3412
        %v3414 = vmax.f32 %v3331, %v3332
        %3415 = vmax.xlane.f32.xlu0 %v3414
        %v3416 = vpop.xlane.xlu0 %3415
        %v3417 = vmax.f32 %v3333, %v3334
        %3418 = vmax.xlane.f32.xlu0 %v3417
        %v3419 = vpop.xlane.xlu0 %3418
        %v3420 = vmax.f32 %v3335, %v3336
        %3421 = vmax.xlane.f32.xlu0 %v3420
        %v3422 = vpop.xlane.xlu0 %3421
        %v3423 = vmax.f32 %v3337, %v3338
        %3424 = vmax.xlane.f32.xlu0 %v3423
        %v3425 = vpop.xlane.xlu0 %3424
        %v3426 = vmax.f32 %v3339, %v3340
        %3427 = vmax.xlane.f32.xlu0 %v3426
        %v3428 = vpop.xlane.xlu0 %3427
        %v3429 = vmax.f32 %v3341, %v3342
        %3430 = vmax.xlane.f32.xlu0 %v3429
        %v3431 = vpop.xlane.xlu0 %3430
        %v3432 = vmax.f32 %v3343, %v3344
        %3433 = vmax.xlane.f32.xlu0 %v3432
        %v3434 = vpop.xlane.xlu0 %3433
        %v3435 = vmax.f32 %v3345, %v3346
        %3436 = vmax.xlane.f32.xlu0 %v3435
        %v3437 = vpop.xlane.xlu0 %3436
        %v3438 = vmax.f32 %v3347, %v3348
        %3439 = vmax.xlane.f32.xlu0 %v3438
        %v3440 = vpop.xlane.xlu0 %3439
        %v3441 = vmax.f32 %v3349, %v3350
        %3442 = vmax.xlane.f32.xlu0 %v3441
        %v3443 = vpop.xlane.xlu0 %3442
        %v3444 = vmax.f32 %v3351, %v3352
        %3445 = vmax.xlane.f32.xlu0 %v3444
        %v3446 = vpop.xlane.xlu0 %3445
        %v3447 = vmax.f32 %v3353, %v3354
        %3448 = vmax.xlane.f32.xlu0 %v3447
        %v3449 = vpop.xlane.xlu0 %3448
        %v3450 = vmax.f32 %v3355, %v3356
        %3451 = vmax.xlane.f32.xlu0 %v3450
        %v3452 = vpop.xlane.xlu0 %3451
        %v3453 = vsub.f32 %v3293, %v3359
        %v3454 = vsub.f32 %v3294, %v3359
        %v3455 = vsub.f32 %v3295, %v3362
        %v3456 = vsub.f32 %v3296, %v3362
        %v3457 = vsub.f32 %v3297, %v3365
        %v3458 = vsub.f32 %v3298, %v3365
        %v3459 = vsub.f32 %v3299, %v3368
        %v3460 = vsub.f32 %v3300, %v3368
        %v3461 = vsub.f32 %v3301, %v3371
        %v3462 = vsub.f32 %v3302, %v3371
        %v3463 = vsub.f32 %v3303, %v3374
        %v3464 = vsub.f32 %v3304, %v3374
        %v3465 = vsub.f32 %v3305, %v3377
        %v3466 = vsub.f32 %v3306, %v3377
        %v3467 = vsub.f32 %v3307, %v3380
        %v3468 = vsub.f32 %v3308, %v3380
        %v3469 = vsub.f32 %v3309, %v3383
        %v3470 = vsub.f32 %v3310, %v3383
        %v3471 = vsub.f32 %v3311, %v3386
        %v3472 = vsub.f32 %v3312, %v3386
        %v3473 = vsub.f32 %v3313, %v3389
        %v3474 = vsub.f32 %v3314, %v3389
        %v3475 = vsub.f32 %v3315, %v3392
        %v3476 = vsub.f32 %v3316, %v3392
        %v3477 = vsub.f32 %v3317, %v3395
        %v3478 = vsub.f32 %v3318, %v3395
        %v3479 = vsub.f32 %v3319, %v3398
        %v3480 = vsub.f32 %v3320, %v3398
        %v3481 = vsub.f32 %v3321, %v3401
        %v3482 = vsub.f32 %v3322, %v3401
        %v3483 = vsub.f32 %v3323, %v3404
        %v3484 = vsub.f32 %v3324, %v3404
        %v3485 = vsub.f32 %v3325, %v3407
        %v3486 = vsub.f32 %v3326, %v3407
        %v3487 = vsub.f32 %v3327, %v3410
        %v3488 = vsub.f32 %v3328, %v3410
        %v3489 = vsub.f32 %v3329, %v3413
        %v3490 = vsub.f32 %v3330, %v3413
        %v3491 = vsub.f32 %v3331, %v3416
        %v3492 = vsub.f32 %v3332, %v3416
        %v3493 = vsub.f32 %v3333, %v3419
        %v3494 = vsub.f32 %v3334, %v3419
        %v3495 = vsub.f32 %v3335, %v3422
        %v3496 = vsub.f32 %v3336, %v3422
        %v3497 = vsub.f32 %v3337, %v3425
        %v3498 = vsub.f32 %v3338, %v3425
        %v3499 = vsub.f32 %v3339, %v3428
        %v3500 = vsub.f32 %v3340, %v3428
        %v3501 = vsub.f32 %v3341, %v3431
        %v3502 = vsub.f32 %v3342, %v3431
        %v3503 = vsub.f32 %v3343, %v3434
        %v3504 = vsub.f32 %v3344, %v3434
        %v3505 = vsub.f32 %v3345, %v3437
        %v3506 = vsub.f32 %v3346, %v3437
        %v3507 = vsub.f32 %v3347, %v3440
        %v3508 = vsub.f32 %v3348, %v3440
        %v3509 = vsub.f32 %v3349, %v3443
        %v3510 = vsub.f32 %v3350, %v3443
        %v3511 = vsub.f32 %v3351, %v3446
        %v3512 = vsub.f32 %v3352, %v3446
        %v3513 = vsub.f32 %v3353, %v3449
        %v3514 = vsub.f32 %v3354, %v3449
        %v3515 = vsub.f32 %v3355, %v3452
        %v3516 = vsub.f32 %v3356, %v3452
        %v3517 = vmul.f32 %v3453, 1.442695
        %v3518 = vpow.pop %v3517
        %v3519 = vmul.f32 %v3454, 1.442695
        %v3520 = vpow.pop %v3519
        %v3521 = vmul.f32 %v3455, 1.442695
        %v3522 = vpow.pop %v3521
        %v3523 = vmul.f32 %v3456, 1.442695
        %v3524 = vpow.pop %v3523
        %v3525 = vmul.f32 %v3457, 1.442695
        %v3526 = vpow.pop %v3525
        %v3527 = vmul.f32 %v3458, 1.442695
        %v3528 = vpow.pop %v3527
        %v3529 = vmul.f32 %v3459, 1.442695
        %v3530 = vpow.pop %v3529
        %v3531 = vmul.f32 %v3460, 1.442695
        %v3532 = vpow.pop %v3531
        %v3533 = vmul.f32 %v3461, 1.442695
        %v3534 = vpow.pop %v3533
        %v3535 = vmul.f32 %v3462, 1.442695
        %v3536 = vpow.pop %v3535
        %v3537 = vmul.f32 %v3463, 1.442695
        %v3538 = vpow.pop %v3537
        %v3539 = vmul.f32 %v3464, 1.442695
        %v3540 = vpow.pop %v3539
        %v3541 = vmul.f32 %v3465, 1.442695
        %v3542 = vpow.pop %v3541
        %v3543 = vmul.f32 %v3466, 1.442695
        %v3544 = vpow.pop %v3543
        %v3545 = vmul.f32 %v3467, 1.442695
        %v3546 = vpow.pop %v3545
        %v3547 = vmul.f32 %v3468, 1.442695
        %v3548 = vpow.pop %v3547
        %v3549 = vmul.f32 %v3469, 1.442695
        %v3550 = vpow.pop %v3549
        %v3551 = vmul.f32 %v3470, 1.442695
        %v3552 = vpow.pop %v3551
        %v3553 = vmul.f32 %v3471, 1.442695
        %v3554 = vpow.pop %v3553
        %v3555 = vmul.f32 %v3472, 1.442695
        %v3556 = vpow.pop %v3555
        %v3557 = vmul.f32 %v3473, 1.442695
        %v3558 = vpow.pop %v3557
        %v3559 = vmul.f32 %v3474, 1.442695
        %v3560 = vpow.pop %v3559
        %v3561 = vmul.f32 %v3475, 1.442695
        %v3562 = vpow.pop %v3561
        %v3563 = vmul.f32 %v3476, 1.442695
        %v3564 = vpow.pop %v3563
        %v3565 = vmul.f32 %v3477, 1.442695
        %v3566 = vpow.pop %v3565
        %v3567 = vmul.f32 %v3478, 1.442695
        %v3568 = vpow.pop %v3567
        %v3569 = vmul.f32 %v3479, 1.442695
        %v3570 = vpow.pop %v3569
        %v3571 = vmul.f32 %v3480, 1.442695
        %v3572 = vpow.pop %v3571
        %v3573 = vmul.f32 %v3481, 1.442695
        %v3574 = vpow.pop %v3573
        %v3575 = vmul.f32 %v3482, 1.442695
        %v3576 = vpow.pop %v3575
        %v3577 = vmul.f32 %v3483, 1.442695
        %v3578 = vpow.pop %v3577
        %v3579 = vmul.f32 %v3484, 1.442695
        %v3580 = vpow.pop %v3579
        %v3581 = vmul.f32 %v3485, 1.442695
        %v3582 = vpow.pop %v3581
        %v3583 = vmul.f32 %v3486, 1.442695
        %v3584 = vpow.pop %v3583
        %v3585 = vmul.f32 %v3487, 1.442695
        %v3586 = vpow.pop %v3585
        %v3587 = vmul.f32 %v3488, 1.442695
        %v3588 = vpow.pop %v3587
        %v3589 = vmul.f32 %v3489, 1.442695
        %v3590 = vpow.pop %v3589
        %v3591 = vmul.f32 %v3490, 1.442695
        %v3592 = vpow.pop %v3591
        %v3593 = vmul.f32 %v3491, 1.442695
        %v3594 = vpow.pop %v3593
        %v3595 = vmul.f32 %v3492, 1.442695
        %v3596 = vpow.pop %v3595
        %v3597 = vmul.f32 %v3493, 1.442695
        %v3598 = vpow.pop %v3597
        %v3599 = vmul.f32 %v3494, 1.442695
        %v3600 = vpow.pop %v3599
        %v3601 = vmul.f32 %v3495, 1.442695
        %v3602 = vpow.pop %v3601
        %v3603 = vmul.f32 %v3496, 1.442695
        %v3604 = vpow.pop %v3603
        %v3605 = vmul.f32 %v3497, 1.442695
        %v3606 = vpow.pop %v3605
        %v3607 = vmul.f32 %v3498, 1.442695
        %v3608 = vpow.pop %v3607
        %v3609 = vmul.f32 %v3499, 1.442695
        %v3610 = vpow.pop %v3609
        %v3611 = vmul.f32 %v3500, 1.442695
        %v3612 = vpow.pop %v3611
        %v3613 = vmul.f32 %v3501, 1.442695
        %v3614 = vpow.pop %v3613
        %v3615 = vmul.f32 %v3502, 1.442695
        %v3616 = vpow.pop %v3615
        %v3617 = vmul.f32 %v3503, 1.442695
        %v3618 = vpow.pop %v3617
        %v3619 = vmul.f32 %v3504, 1.442695
        %v3620 = vpow.pop %v3619
        %v3621 = vmul.f32 %v3505, 1.442695
        %v3622 = vpow.pop %v3621
        %v3623 = vmul.f32 %v3506, 1.442695
        %v3624 = vpow.pop %v3623
        %v3625 = vmul.f32 %v3507, 1.442695
        %v3626 = vpow.pop %v3625
        %v3627 = vmul.f32 %v3508, 1.442695
        %v3628 = vpow.pop %v3627
        %v3629 = vmul.f32 %v3509, 1.442695
        %v3630 = vpow.pop %v3629
        %v3631 = vmul.f32 %v3510, 1.442695
        %v3632 = vpow.pop %v3631
        %v3633 = vmul.f32 %v3511, 1.442695
        %v3634 = vpow.pop %v3633
        %v3635 = vmul.f32 %v3512, 1.442695
        %v3636 = vpow.pop %v3635
        %v3637 = vmul.f32 %v3513, 1.442695
        %v3638 = vpow.pop %v3637
        %v3639 = vmul.f32 %v3514, 1.442695
        %v3640 = vpow.pop %v3639
        %v3641 = vmul.f32 %v3515, 1.442695
        %v3642 = vpow.pop %v3641
        %v3643 = vmul.f32 %v3516, 1.442695
        %v3644 = vpow.pop %v3643
        %v3645 = vadd.f32 %v3518, %v3520
        %3646 = vadd.xlane.f32.xlu0 %v3645
        %v3647 = vpop.xlane.xlu0 %3646
        %v3648 = vadd.f32 %v3522, %v3524
        %3649 = vadd.xlane.f32.xlu0 %v3648
        %v3650 = vpop.xlane.xlu0 %3649
        %v3651 = vadd.f32 %v3526, %v3528
        %3652 = vadd.xlane.f32.xlu0 %v3651
        %v3653 = vpop.xlane.xlu0 %3652
        %v3654 = vadd.f32 %v3530, %v3532
        %3655 = vadd.xlane.f32.xlu0 %v3654
        %v3656 = vpop.xlane.xlu0 %3655
        %v3657 = vadd.f32 %v3534, %v3536
        %3658 = vadd.xlane.f32.xlu0 %v3657
        %v3659 = vpop.xlane.xlu0 %3658
        %v3660 = vadd.f32 %v3538, %v3540
        %3661 = vadd.xlane.f32.xlu0 %v3660
        %v3662 = vpop.xlane.xlu0 %3661
        %v3663 = vadd.f32 %v3542, %v3544
        %3664 = vadd.xlane.f32.xlu0 %v3663
        %v3665 = vpop.xlane.xlu0 %3664
        %v3666 = vadd.f32 %v3546, %v3548
        %3667 = vadd.xlane.f32.xlu0 %v3666
        %v3668 = vpop.xlane.xlu0 %3667
        %v3669 = vadd.f32 %v3550, %v3552
        %3670 = vadd.xlane.f32.xlu0 %v3669
        %v3671 = vpop.xlane.xlu0 %3670
        %v3672 = vadd.f32 %v3554, %v3556
        %3673 = vadd.xlane.f32.xlu0 %v3672
        %v3674 = vpop.xlane.xlu0 %3673
        %v3675 = vadd.f32 %v3558, %v3560
        %3676 = vadd.xlane.f32.xlu0 %v3675
        %v3677 = vpop.xlane.xlu0 %3676
        %v3678 = vadd.f32 %v3562, %v3564
        %3679 = vadd.xlane.f32.xlu0 %v3678
        %v3680 = vpop.xlane.xlu0 %3679
        %v3681 = vadd.f32 %v3566, %v3568
        %3682 = vadd.xlane.f32.xlu0 %v3681
        %v3683 = vpop.xlane.xlu0 %3682
        %v3684 = vadd.f32 %v3570, %v3572
        %3685 = vadd.xlane.f32.xlu0 %v3684
        %v3686 = vpop.xlane.xlu0 %3685
        %v3687 = vadd.f32 %v3574, %v3576
        %3688 = vadd.xlane.f32.xlu0 %v3687
        %v3689 = vpop.xlane.xlu0 %3688
        %v3690 = vadd.f32 %v3578, %v3580
        %3691 = vadd.xlane.f32.xlu0 %v3690
        %v3692 = vpop.xlane.xlu0 %3691
        %v3693 = vadd.f32 %v3582, %v3584
        %3694 = vadd.xlane.f32.xlu0 %v3693
        %v3695 = vpop.xlane.xlu0 %3694
        %v3696 = vadd.f32 %v3586, %v3588
        %3697 = vadd.xlane.f32.xlu0 %v3696
        %v3698 = vpop.xlane.xlu0 %3697
        %v3699 = vadd.f32 %v3590, %v3592
        %3700 = vadd.xlane.f32.xlu0 %v3699
        %v3701 = vpop.xlane.xlu0 %3700
        %v3702 = vadd.f32 %v3594, %v3596
        %3703 = vadd.xlane.f32.xlu0 %v3702
        %v3704 = vpop.xlane.xlu0 %3703
        %v3705 = vadd.f32 %v3598, %v3600
        %3706 = vadd.xlane.f32.xlu0 %v3705
        %v3707 = vpop.xlane.xlu0 %3706
        %v3708 = vadd.f32 %v3602, %v3604
        %3709 = vadd.xlane.f32.xlu0 %v3708
        %v3710 = vpop.xlane.xlu0 %3709
        %v3711 = vadd.f32 %v3606, %v3608
        %3712 = vadd.xlane.f32.xlu0 %v3711
        %v3713 = vpop.xlane.xlu0 %3712
        %v3714 = vadd.f32 %v3610, %v3612
        %3715 = vadd.xlane.f32.xlu0 %v3714
        %v3716 = vpop.xlane.xlu0 %3715
        %v3717 = vadd.f32 %v3614, %v3616
        %3718 = vadd.xlane.f32.xlu0 %v3717
        %v3719 = vpop.xlane.xlu0 %3718
        %v3720 = vadd.f32 %v3618, %v3620
        %3721 = vadd.xlane.f32.xlu0 %v3720
        %v3722 = vpop.xlane.xlu0 %3721
        %v3723 = vadd.f32 %v3622, %v3624
        %3724 = vadd.xlane.f32.xlu0 %v3723
        %v3725 = vpop.xlane.xlu0 %3724
        %v3726 = vadd.f32 %v3626, %v3628
        %3727 = vadd.xlane.f32.xlu0 %v3726
        %v3728 = vpop.xlane.xlu0 %3727
        %v3729 = vadd.f32 %v3630, %v3632
        %3730 = vadd.xlane.f32.xlu0 %v3729
        %v3731 = vpop.xlane.xlu0 %3730
        %v3732 = vadd.f32 %v3634, %v3636
        %3733 = vadd.xlane.f32.xlu0 %v3732
        %v3734 = vpop.xlane.xlu0 %3733
        %v3735 = vadd.f32 %v3638, %v3640
        %3736 = vadd.xlane.f32.xlu0 %v3735
        %v3737 = vpop.xlane.xlu0 %3736
        %v3738 = vadd.f32 %v3642, %v3644
        %3739 = vadd.xlane.f32.xlu0 %v3738
        %v3740 = vpop.xlane.xlu0 %3739
        %v3741 = vrcp.pop %v3647
        %v3742 = vrcp.pop %v3650
        %v3743 = vrcp.pop %v3653
        %v3744 = vrcp.pop %v3656
        %v3745 = vrcp.pop %v3659
        %v3746 = vrcp.pop %v3662
        %v3747 = vrcp.pop %v3665
        %v3748 = vrcp.pop %v3668
        %v3749 = vrcp.pop %v3671
        %v3750 = vrcp.pop %v3674
        %v3751 = vrcp.pop %v3677
        %v3752 = vrcp.pop %v3680
        %v3753 = vrcp.pop %v3683
        %v3754 = vrcp.pop %v3686
        %v3755 = vrcp.pop %v3689
        %v3756 = vrcp.pop %v3692
        %v3757 = vrcp.pop %v3695
        %v3758 = vrcp.pop %v3698
        %v3759 = vrcp.pop %v3701
        %v3760 = vrcp.pop %v3704
        %v3761 = vrcp.pop %v3707
        %v3762 = vrcp.pop %v3710
        %v3763 = vrcp.pop %v3713
        %v3764 = vrcp.pop %v3716
        %v3765 = vrcp.pop %v3719
        %v3766 = vrcp.pop %v3722
        %v3767 = vrcp.pop %v3725
        %v3768 = vrcp.pop %v3728
        %v3769 = vrcp.pop %v3731
        %v3770 = vrcp.pop %v3734
        %v3771 = vrcp.pop %v3737
        %v3772 = vrcp.pop %v3740
        %v3773 = vmul.f32 %v3518, %v3741
        %v3774 = vmul.f32 %v3520, %v3741
        %v3775 = vmul.f32 %v3522, %v3742
        %v3776 = vmul.f32 %v3524, %v3742
        %v3777 = vmul.f32 %v3526, %v3743
        %v3778 = vmul.f32 %v3528, %v3743
        %v3779 = vmul.f32 %v3530, %v3744
        %v3780 = vmul.f32 %v3532, %v3744
        %v3781 = vmul.f32 %v3534, %v3745
        %v3782 = vmul.f32 %v3536, %v3745
        %v3783 = vmul.f32 %v3538, %v3746
        %v3784 = vmul.f32 %v3540, %v3746
        %v3785 = vmul.f32 %v3542, %v3747
        %v3786 = vmul.f32 %v3544, %v3747
        %v3787 = vmul.f32 %v3546, %v3748
        %v3788 = vmul.f32 %v3548, %v3748
        %v3789 = vmul.f32 %v3550, %v3749
        %v3790 = vmul.f32 %v3552, %v3749
        %v3791 = vmul.f32 %v3554, %v3750
        %v3792 = vmul.f32 %v3556, %v3750
        %v3793 = vmul.f32 %v3558, %v3751
        %v3794 = vmul.f32 %v3560, %v3751
        %v3795 = vmul.f32 %v3562, %v3752
        %v3796 = vmul.f32 %v3564, %v3752
        %v3797 = vmul.f32 %v3566, %v3753
        %v3798 = vmul.f32 %v3568, %v3753
        %v3799 = vmul.f32 %v3570, %v3754
        %v3800 = vmul.f32 %v3572, %v3754
        %v3801 = vmul.f32 %v3574, %v3755
        %v3802 = vmul.f32 %v3576, %v3755
        %v3803 = vmul.f32 %v3578, %v3756
        %v3804 = vmul.f32 %v3580, %v3756
        %v3805 = vmul.f32 %v3582, %v3757
        %v3806 = vmul.f32 %v3584, %v3757
        %v3807 = vmul.f32 %v3586, %v3758
        %v3808 = vmul.f32 %v3588, %v3758
        %v3809 = vmul.f32 %v3590, %v3759
        %v3810 = vmul.f32 %v3592, %v3759
        %v3811 = vmul.f32 %v3594, %v3760
        %v3812 = vmul.f32 %v3596, %v3760
        %v3813 = vmul.f32 %v3598, %v3761
        %v3814 = vmul.f32 %v3600, %v3761
        %v3815 = vmul.f32 %v3602, %v3762
        %v3816 = vmul.f32 %v3604, %v3762
        %v3817 = vmul.f32 %v3606, %v3763
        %v3818 = vmul.f32 %v3608, %v3763
        %v3819 = vmul.f32 %v3610, %v3764
        %v3820 = vmul.f32 %v3612, %v3764
        %v3821 = vmul.f32 %v3614, %v3765
        %v3822 = vmul.f32 %v3616, %v3765
        %v3823 = vmul.f32 %v3618, %v3766
        %v3824 = vmul.f32 %v3620, %v3766
        %v3825 = vmul.f32 %v3622, %v3767
        %v3826 = vmul.f32 %v3624, %v3767
        %v3827 = vmul.f32 %v3626, %v3768
        %v3828 = vmul.f32 %v3628, %v3768
        %v3829 = vmul.f32 %v3630, %v3769
        %v3830 = vmul.f32 %v3632, %v3769
        %v3831 = vmul.f32 %v3634, %v3770
        %v3832 = vmul.f32 %v3636, %v3770
        %v3833 = vmul.f32 %v3638, %v3771
        %v3834 = vmul.f32 %v3640, %v3771
        %v3835 = vmul.f32 %v3642, %v3772
        %v3836 = vmul.f32 %v3644, %v3772
        %v3837 = vpack.c.bf16 %v3775, %v3773
        %v3838 = vpack.c.bf16 %v3776, %v3774
        %v3839 = vpack.c.bf16 %v3779, %v3777
        %v3840 = vpack.c.bf16 %v3780, %v3778
        %v3841 = vpack.c.bf16 %v3783, %v3781
        %v3842 = vpack.c.bf16 %v3784, %v3782
        %v3843 = vpack.c.bf16 %v3787, %v3785
        %v3844 = vpack.c.bf16 %v3788, %v3786
        %v3845 = vpack.c.bf16 %v3791, %v3789
        %v3846 = vpack.c.bf16 %v3792, %v3790
        %v3847 = vpack.c.bf16 %v3795, %v3793
        %v3848 = vpack.c.bf16 %v3796, %v3794
        %v3849 = vpack.c.bf16 %v3799, %v3797
        %v3850 = vpack.c.bf16 %v3800, %v3798
        %v3851 = vpack.c.bf16 %v3803, %v3801
        %v3852 = vpack.c.bf16 %v3804, %v3802
        %v3853 = vpack.c.bf16 %v3807, %v3805
        %v3854 = vpack.c.bf16 %v3808, %v3806
        %v3855 = vpack.c.bf16 %v3811, %v3809
        %v3856 = vpack.c.bf16 %v3812, %v3810
        %v3857 = vpack.c.bf16 %v3815, %v3813
        %v3858 = vpack.c.bf16 %v3816, %v3814
        %v3859 = vpack.c.bf16 %v3819, %v3817
        %v3860 = vpack.c.bf16 %v3820, %v3818
        %v3861 = vpack.c.bf16 %v3823, %v3821
        %v3862 = vpack.c.bf16 %v3824, %v3822
        %v3863 = vpack.c.bf16 %v3827, %v3825
        %v3864 = vpack.c.bf16 %v3828, %v3826
        %v3865 = vpack.c.bf16 %v3831, %v3829
        %v3866 = vpack.c.bf16 %v3832, %v3830
        %v3867 = vpack.c.bf16 %v3835, %v3833
        %v3868 = vpack.c.bf16 %v3836, %v3834
        %v3901 = vunpack.c.l.b16 %v2923
        %v3902 = vunpack.c.l.b16 %v2924
        %v3903 = vunpack.c.l.b16 %v2925
        %v3904 = vunpack.c.l.b16 %v2926
        %v3905 = vunpack.c.l.b16 %v2927
        %v3906 = vunpack.c.l.b16 %v2928
        %v3907 = vunpack.c.l.b16 %v2929
        %v3908 = vunpack.c.l.b16 %v2930
        %v3909 = vunpack.c.l.b16 %v2931
        %v3910 = vunpack.c.l.b16 %v2932
        %v3911 = vunpack.c.l.b16 %v2933
        %v3912 = vunpack.c.l.b16 %v2934
        %v3913 = vunpack.c.l.b16 %v2935
        %v3914 = vunpack.c.l.b16 %v2936
        %v3915 = vunpack.c.l.b16 %v2937
        %v3916 = vunpack.c.l.b16 %v2938
        %v3917 = vunpack.c.l.b16 %v2939
        %v3918 = vunpack.c.l.b16 %v2940
        %v3919 = vunpack.c.l.b16 %v2941
        %v3920 = vunpack.c.l.b16 %v2942
        %v3921 = vunpack.c.l.b16 %v2943
        %v3922 = vunpack.c.l.b16 %v2944
        %v3923 = vunpack.c.l.b16 %v2945
        %v3924 = vunpack.c.l.b16 %v2946
        %v3925 = vunpack.c.l.b16 %v2947
        %v3926 = vunpack.c.l.b16 %v2948
        %v3927 = vunpack.c.l.b16 %v2949
        %v3928 = vunpack.c.l.b16 %v2950
        %v3929 = vunpack.c.l.b16 %v2951
        %v3930 = vunpack.c.l.b16 %v2952
        %v3931 = vunpack.c.l.b16 %v2953
        %v3932 = vunpack.c.l.b16 %v2954
        %v3933 = vpack.c.b16 %v3902, %v3901
        %v3934 = vpack.c.b16 %v3904, %v3903
        %v3935 = vpack.c.b16 %v3906, %v3905
        %v3936 = vpack.c.b16 %v3908, %v3907
        %v3937 = vpack.c.b16 %v3910, %v3909
        %v3938 = vpack.c.b16 %v3912, %v3911
        %v3939 = vpack.c.b16 %v3914, %v3913
        %v3940 = vpack.c.b16 %v3916, %v3915
        %v3941 = vpack.c.b16 %v3918, %v3917
        %v3942 = vpack.c.b16 %v3920, %v3919
        %v3943 = vpack.c.b16 %v3922, %v3921
        %v3944 = vpack.c.b16 %v3924, %v3923
        %v3945 = vpack.c.b16 %v3926, %v3925
        %v3946 = vpack.c.b16 %v3928, %v3927
        %v3947 = vpack.c.b16 %v3930, %v3929
        %v3948 = vpack.c.b16 %v3932, %v3931
        %3965 = vmatpush.bf16.msra.mxu0 %v3940
        %3966 = vmatpush.bf16.msra.mxu0 %v3939
        %3967 = vmatpush.bf16.msra.mxu0 %v3938
        %3968 = vmatpush.bf16.msra.mxu0 %v3937
        %3969 = vmatpush.bf16.msra.mxu0 %v3936
        %3970 = vmatpush.bf16.msra.mxu0 %v3935
        %3971 = vmatpush.bf16.msra.mxu0 %v3934
        %3972 = vmatpush.bf16.msra.mxu0 %v3933
        %3973 = vmatmul.bf16.gmra.mxu0 %v3837
        %v3974 = vpop.f32.mrf.mxu0
        %v3975 = vadd.f32 0.0, %v3974
        %v3976 = vpop.f32.mrf.mxu0
        %v3977 = vadd.f32 0.0, %v3976
        %3978 = vmatmul.bf16.gmra.mxu0 %v3839
        %v3979 = vpop.f32.mrf.mxu0
        %v3980 = vadd.f32 0.0, %v3979
        %v3981 = vpop.f32.mrf.mxu0
        %v3982 = vadd.f32 0.0, %v3981
        %3983 = vmatmul.bf16.gmra.mxu0 %v3841
        %v3984 = vpop.f32.mrf.mxu0
        %v3985 = vadd.f32 0.0, %v3984
        %v3986 = vpop.f32.mrf.mxu0
        %v3987 = vadd.f32 0.0, %v3986
        %3988 = vmatmul.bf16.gmra.mxu0 %v3843
        %v3989 = vpop.f32.mrf.mxu0
        %v3990 = vadd.f32 0.0, %v3989
        %v3991 = vpop.f32.mrf.mxu0
        %v3992 = vadd.f32 0.0, %v3991
        %3993 = vmatmul.bf16.gmra.mxu0 %v3845
        %v3994 = vpop.f32.mrf.mxu0
        %v3995 = vadd.f32 0.0, %v3994
        %v3996 = vpop.f32.mrf.mxu0
        %v3997 = vadd.f32 0.0, %v3996
        %3998 = vmatmul.bf16.gmra.mxu0 %v3847
        %v3999 = vpop.f32.mrf.mxu0
        %v4000 = vadd.f32 0.0, %v3999
        %v4001 = vpop.f32.mrf.mxu0
        %v4002 = vadd.f32 0.0, %v4001
        %4003 = vmatmul.bf16.gmra.mxu0 %v3849
        %v4004 = vpop.f32.mrf.mxu0
        %v4005 = vadd.f32 0.0, %v4004
        %v4006 = vpop.f32.mrf.mxu0
        %v4007 = vadd.f32 0.0, %v4006
        %4008 = vmatmul.bf16.gmra.mxu0 %v3851
        %v4009 = vpop.f32.mrf.mxu0
        %v4010 = vadd.f32 0.0, %v4009
        %v4011 = vpop.f32.mrf.mxu0
        %v4012 = vadd.f32 0.0, %v4011
        %4013 = vmatmul.bf16.gmra.mxu0 %v3853
        %v4014 = vpop.f32.mrf.mxu0
        %v4015 = vadd.f32 0.0, %v4014
        %v4016 = vpop.f32.mrf.mxu0
        %v4017 = vadd.f32 0.0, %v4016
        %4018 = vmatmul.bf16.gmra.mxu0 %v3855
        %v4019 = vpop.f32.mrf.mxu0
        %v4020 = vadd.f32 0.0, %v4019
        %v4021 = vpop.f32.mrf.mxu0
        %v4022 = vadd.f32 0.0, %v4021
        %4023 = vmatmul.bf16.gmra.mxu0 %v3857
        %v4024 = vpop.f32.mrf.mxu0
        %v4025 = vadd.f32 0.0, %v4024
        %v4026 = vpop.f32.mrf.mxu0
        %v4027 = vadd.f32 0.0, %v4026
        %4028 = vmatmul.bf16.gmra.mxu0 %v3859
        %v4029 = vpop.f32.mrf.mxu0
        %v4030 = vadd.f32 0.0, %v4029
        %v4031 = vpop.f32.mrf.mxu0
        %v4032 = vadd.f32 0.0, %v4031
        %4033 = vmatmul.bf16.gmra.mxu0 %v3861
        %v4034 = vpop.f32.mrf.mxu0
        %v4035 = vadd.f32 0.0, %v4034
        %v4036 = vpop.f32.mrf.mxu0
        %v4037 = vadd.f32 0.0, %v4036
        %4038 = vmatmul.bf16.gmra.mxu0 %v3863
        %v4039 = vpop.f32.mrf.mxu0
        %v4040 = vadd.f32 0.0, %v4039
        %v4041 = vpop.f32.mrf.mxu0
        %v4042 = vadd.f32 0.0, %v4041
        %4043 = vmatmul.bf16.gmra.mxu0 %v3865
        %v4044 = vpop.f32.mrf.mxu0
        %v4045 = vadd.f32 0.0, %v4044
        %v4046 = vpop.f32.mrf.mxu0
        %v4047 = vadd.f32 0.0, %v4046
        %4048 = vmatmul.bf16.gmra.mxu0 %v3867
        %v4049 = vpop.f32.mrf.mxu0
        %v4050 = vadd.f32 0.0, %v4049
        %v4051 = vpop.f32.mrf.mxu0
        %v4052 = vadd.f32 0.0, %v4051
        %4053 = vdwg.mxu0
        %4054 = vmatpush.bf16.msra.mxu0 %v3948
        %4055 = vmatpush.bf16.msra.mxu0 %v3947
        %4056 = vmatpush.bf16.msra.mxu0 %v3946
        %4057 = vmatpush.bf16.msra.mxu0 %v3945
        %4058 = vmatpush.bf16.msra.mxu0 %v3944
        %4059 = vmatpush.bf16.msra.mxu0 %v3943
        %4060 = vmatpush.bf16.msra.mxu0 %v3942
        %4061 = vmatpush.bf16.msra.mxu0 %v3941
        %4062 = vmatmul.bf16.gmra.mxu0 %v3838
        %v4063 = vpop.f32.mrf.mxu0
        %v4064 = vadd.f32 %v3975, %v4063
        %v4065 = vpop.f32.mrf.mxu0
        %v4066 = vadd.f32 %v3977, %v4065
        %4067 = vmatmul.bf16.gmra.mxu0 %v3840
        %v4068 = vpop.f32.mrf.mxu0
        %v4069 = vadd.f32 %v3980, %v4068
        %v4070 = vpop.f32.mrf.mxu0
        %v4071 = vadd.f32 %v3982, %v4070
        %4072 = vmatmul.bf16.gmra.mxu0 %v3842
        %v4073 = vpop.f32.mrf.mxu0
        %v4074 = vadd.f32 %v3985, %v4073
        %v4075 = vpop.f32.mrf.mxu0
        %v4076 = vadd.f32 %v3987, %v4075
        %4077 = vmatmul.bf16.gmra.mxu0 %v3844
        %v4078 = vpop.f32.mrf.mxu0
        %v4079 = vadd.f32 %v3990, %v4078
        %v4080 = vpop.f32.mrf.mxu0
        %v4081 = vadd.f32 %v3992, %v4080
        %4082 = vmatmul.bf16.gmra.mxu0 %v3846
        %v4083 = vpop.f32.mrf.mxu0
        %v4084 = vadd.f32 %v3995, %v4083
        %v4085 = vpop.f32.mrf.mxu0
        %v4086 = vadd.f32 %v3997, %v4085
        %4087 = vmatmul.bf16.gmra.mxu0 %v3848
        %v4088 = vpop.f32.mrf.mxu0
        %v4089 = vadd.f32 %v4000, %v4088
        %v4090 = vpop.f32.mrf.mxu0
        %v4091 = vadd.f32 %v4002, %v4090
        %4092 = vmatmul.bf16.gmra.mxu0 %v3850
        %v4093 = vpop.f32.mrf.mxu0
        %v4094 = vadd.f32 %v4005, %v4093
        %v4095 = vpop.f32.mrf.mxu0
        %v4096 = vadd.f32 %v4007, %v4095
        %4097 = vmatmul.bf16.gmra.mxu0 %v3852
        %v4098 = vpop.f32.mrf.mxu0
        %v4099 = vadd.f32 %v4010, %v4098
        %v4100 = vpop.f32.mrf.mxu0
        %v4101 = vadd.f32 %v4012, %v4100
        %4102 = vmatmul.bf16.gmra.mxu0 %v3854
        %v4103 = vpop.f32.mrf.mxu0
        %v4104 = vadd.f32 %v4015, %v4103
        %v4105 = vpop.f32.mrf.mxu0
        %v4106 = vadd.f32 %v4017, %v4105
        %4107 = vmatmul.bf16.gmra.mxu0 %v3856
        %v4108 = vpop.f32.mrf.mxu0
        %v4109 = vadd.f32 %v4020, %v4108
        %v4110 = vpop.f32.mrf.mxu0
        %v4111 = vadd.f32 %v4022, %v4110
        %4112 = vmatmul.bf16.gmra.mxu0 %v3858
        %v4113 = vpop.f32.mrf.mxu0
        %v4114 = vadd.f32 %v4025, %v4113
        %v4115 = vpop.f32.mrf.mxu0
        %v4116 = vadd.f32 %v4027, %v4115
        %4117 = vmatmul.bf16.gmra.mxu0 %v3860
        %v4118 = vpop.f32.mrf.mxu0
        %v4119 = vadd.f32 %v4030, %v4118
        %v4120 = vpop.f32.mrf.mxu0
        %v4121 = vadd.f32 %v4032, %v4120
        %4122 = vmatmul.bf16.gmra.mxu0 %v3862
        %v4123 = vpop.f32.mrf.mxu0
        %v4124 = vadd.f32 %v4035, %v4123
        %v4125 = vpop.f32.mrf.mxu0
        %v4126 = vadd.f32 %v4037, %v4125
        %4127 = vmatmul.bf16.gmra.mxu0 %v3864
        %v4128 = vpop.f32.mrf.mxu0
        %v4129 = vadd.f32 %v4040, %v4128
        %v4130 = vpop.f32.mrf.mxu0
        %v4131 = vadd.f32 %v4042, %v4130
        %4132 = vmatmul.bf16.gmra.mxu0 %v3866
        %v4133 = vpop.f32.mrf.mxu0
        %v4134 = vadd.f32 %v4045, %v4133
        %v4135 = vpop.f32.mrf.mxu0
        %v4136 = vadd.f32 %v4047, %v4135
        %4137 = vmatmul.bf16.gmra.mxu0 %v3868
        %v4138 = vpop.f32.mrf.mxu0
        %v4139 = vadd.f32 %v4050, %v4138
        %v4140 = vpop.f32.mrf.mxu0
        %v4141 = vadd.f32 %v4052, %v4140
        %4142 = vdwg.mxu0
        %v4175 = vunpack.c.l.b16 %v1843
        %v4176 = vunpack.c.l.b16 %v1844
        %v4177 = vunpack.c.l.b16 %v1845
        %v4178 = vunpack.c.l.b16 %v1846
        %v4179 = vunpack.c.l.b16 %v1847
        %v4180 = vunpack.c.l.b16 %v1848
        %v4181 = vunpack.c.l.b16 %v1849
        %v4182 = vunpack.c.l.b16 %v1850
        %v4183 = vunpack.c.l.b16 %v1851
        %v4184 = vunpack.c.l.b16 %v1852
        %v4185 = vunpack.c.l.b16 %v1853
        %v4186 = vunpack.c.l.b16 %v1854
        %v4187 = vunpack.c.l.b16 %v1855
        %v4188 = vunpack.c.l.b16 %v1856
        %v4189 = vunpack.c.l.b16 %v1857
        %v4190 = vunpack.c.l.b16 %v1858
        %v4191 = vunpack.c.l.b16 %v1859
        %v4192 = vunpack.c.l.b16 %v1860
        %v4193 = vunpack.c.l.b16 %v1861
        %v4194 = vunpack.c.l.b16 %v1862
        %v4195 = vunpack.c.l.b16 %v1863
        %v4196 = vunpack.c.l.b16 %v1864
        %v4197 = vunpack.c.l.b16 %v1865
        %v4198 = vunpack.c.l.b16 %v1866
        %v4199 = vunpack.c.l.b16 %v1867
        %v4200 = vunpack.c.l.b16 %v1868
        %v4201 = vunpack.c.l.b16 %v1869
        %v4202 = vunpack.c.l.b16 %v1870
        %v4203 = vunpack.c.l.b16 %v1871
        %v4204 = vunpack.c.l.b16 %v1872
        %v4205 = vunpack.c.l.b16 %v1873
        %v4206 = vunpack.c.l.b16 %v1874
        %v4207 = vpack.c.b16 %v4176, %v4175
        %v4208 = vpack.c.b16 %v4178, %v4177
        %v4209 = vpack.c.b16 %v4180, %v4179
        %v4210 = vpack.c.b16 %v4182, %v4181
        %v4211 = vpack.c.b16 %v4184, %v4183
        %v4212 = vpack.c.b16 %v4186, %v4185
        %v4213 = vpack.c.b16 %v4188, %v4187
        %v4214 = vpack.c.b16 %v4190, %v4189
        %v4215 = vpack.c.b16 %v4192, %v4191
        %v4216 = vpack.c.b16 %v4194, %v4193
        %v4217 = vpack.c.b16 %v4196, %v4195
        %v4218 = vpack.c.b16 %v4198, %v4197
        %v4219 = vpack.c.b16 %v4200, %v4199
        %v4220 = vpack.c.b16 %v4202, %v4201
        %v4221 = vpack.c.b16 %v4204, %v4203
        %v4222 = vpack.c.b16 %v4206, %v4205
        %4239 = vmatpush.bf16.msra.mxu0 %v4214
        %4240 = vmatpush.bf16.msra.mxu0 %v4213
        %4241 = vmatpush.bf16.msra.mxu0 %v4212
        %4242 = vmatpush.bf16.msra.mxu0 %v4211
        %4243 = vmatpush.bf16.msra.mxu0 %v4210
        %4244 = vmatpush.bf16.msra.mxu0 %v4209
        %4245 = vmatpush.bf16.msra.mxu0 %v4208
        %4246 = vmatpush.bf16.msra.mxu0 %v4207
        %4247 = vmatmul.bf16.gmra.mxu0 %v2853
        %v4248 = vpop.f32.mrf.mxu0
        %v4249 = vadd.f32 %v4064, %v4248
        %v4250 = vpop.f32.mrf.mxu0
        %v4251 = vadd.f32 %v4066, %v4250
        %4252 = vmatmul.bf16.gmra.mxu0 %v2855
        %v4253 = vpop.f32.mrf.mxu0
        %v4254 = vadd.f32 %v4069, %v4253
        %v4255 = vpop.f32.mrf.mxu0
        %v4256 = vadd.f32 %v4071, %v4255
        %4257 = vmatmul.bf16.gmra.mxu0 %v2857
        %v4258 = vpop.f32.mrf.mxu0
        %v4259 = vadd.f32 %v4074, %v4258
        %v4260 = vpop.f32.mrf.mxu0
        %v4261 = vadd.f32 %v4076, %v4260
        %4262 = vmatmul.bf16.gmra.mxu0 %v2859
        %v4263 = vpop.f32.mrf.mxu0
        %v4264 = vadd.f32 %v4079, %v4263
        %v4265 = vpop.f32.mrf.mxu0
        %v4266 = vadd.f32 %v4081, %v4265
        %4267 = vmatmul.bf16.gmra.mxu0 %v2861
        %v4268 = vpop.f32.mrf.mxu0
        %v4269 = vadd.f32 %v4084, %v4268
        %v4270 = vpop.f32.mrf.mxu0
        %v4271 = vadd.f32 %v4086, %v4270
        %4272 = vmatmul.bf16.gmra.mxu0 %v2863
        %v4273 = vpop.f32.mrf.mxu0
        %v4274 = vadd.f32 %v4089, %v4273
        %v4275 = vpop.f32.mrf.mxu0
        %v4276 = vadd.f32 %v4091, %v4275
        %4277 = vmatmul.bf16.gmra.mxu0 %v2865
        %v4278 = vpop.f32.mrf.mxu0
        %v4279 = vadd.f32 %v4094, %v4278
        %v4280 = vpop.f32.mrf.mxu0
        %v4281 = vadd.f32 %v4096, %v4280
        %4282 = vmatmul.bf16.gmra.mxu0 %v2867
        %v4283 = vpop.f32.mrf.mxu0
        %v4284 = vadd.f32 %v4099, %v4283
        %v4285 = vpop.f32.mrf.mxu0
        %v4286 = vadd.f32 %v4101, %v4285
        %4287 = vmatmul.bf16.gmra.mxu0 %v2869
        %v4288 = vpop.f32.mrf.mxu0
        %v4289 = vadd.f32 %v4104, %v4288
        %v4290 = vpop.f32.mrf.mxu0
        %v4291 = vadd.f32 %v4106, %v4290
        %4292 = vmatmul.bf16.gmra.mxu0 %v2871
        %v4293 = vpop.f32.mrf.mxu0
        %v4294 = vadd.f32 %v4109, %v4293
        %v4295 = vpop.f32.mrf.mxu0
        %v4296 = vadd.f32 %v4111, %v4295
        %4297 = vmatmul.bf16.gmra.mxu0 %v2873
        %v4298 = vpop.f32.mrf.mxu0
        %v4299 = vadd.f32 %v4114, %v4298
        %v4300 = vpop.f32.mrf.mxu0
        %v4301 = vadd.f32 %v4116, %v4300
        %4302 = vmatmul.bf16.gmra.mxu0 %v2875
        %v4303 = vpop.f32.mrf.mxu0
        %v4304 = vadd.f32 %v4119, %v4303
        %v4305 = vpop.f32.mrf.mxu0
        %v4306 = vadd.f32 %v4121, %v4305
        %4307 = vmatmul.bf16.gmra.mxu0 %v2877
        %v4308 = vpop.f32.mrf.mxu0
        %v4309 = vadd.f32 %v4124, %v4308
        %v4310 = vpop.f32.mrf.mxu0
        %v4311 = vadd.f32 %v4126, %v4310
        %4312 = vmatmul.bf16.gmra.mxu0 %v2879
        %v4313 = vpop.f32.mrf.mxu0
        %v4314 = vadd.f32 %v4129, %v4313
        %v4315 = vpop.f32.mrf.mxu0
        %v4316 = vadd.f32 %v4131, %v4315
        %4317 = vmatmul.bf16.gmra.mxu0 %v2881
        %v4318 = vpop.f32.mrf.mxu0
        %v4319 = vadd.f32 %v4134, %v4318
        %v4320 = vpop.f32.mrf.mxu0
        %v4321 = vadd.f32 %v4136, %v4320
        %4322 = vmatmul.bf16.gmra.mxu0 %v2883
        %v4323 = vpop.f32.mrf.mxu0
        %v4324 = vadd.f32 %v4139, %v4323
        %v4325 = vpop.f32.mrf.mxu0
        %v4326 = vadd.f32 %v4141, %v4325
        %4327 = vdwg.mxu0
        %4328 = vmatpush.bf16.msra.mxu0 %v4222
        %4329 = vmatpush.bf16.msra.mxu0 %v4221
        %4330 = vmatpush.bf16.msra.mxu0 %v4220
        %4331 = vmatpush.bf16.msra.mxu0 %v4219
        %4332 = vmatpush.bf16.msra.mxu0 %v4218
        %4333 = vmatpush.bf16.msra.mxu0 %v4217
        %4334 = vmatpush.bf16.msra.mxu0 %v4216
        %4335 = vmatpush.bf16.msra.mxu0 %v4215
        %4336 = vmatmul.bf16.gmra.mxu0 %v2854
        %v4337 = vpop.f32.mrf.mxu0
        %v4338 = vadd.f32 %v4249, %v4337
        %v4339 = vpop.f32.mrf.mxu0
        %v4340 = vadd.f32 %v4251, %v4339
        %4341 = vmatmul.bf16.gmra.mxu0 %v2856
        %v4342 = vpop.f32.mrf.mxu0
        %v4343 = vadd.f32 %v4254, %v4342
        %v4344 = vpop.f32.mrf.mxu0
        %v4345 = vadd.f32 %v4256, %v4344
        %4346 = vmatmul.bf16.gmra.mxu0 %v2858
        %v4347 = vpop.f32.mrf.mxu0
        %v4348 = vadd.f32 %v4259, %v4347
        %v4349 = vpop.f32.mrf.mxu0
        %v4350 = vadd.f32 %v4261, %v4349
        %4351 = vmatmul.bf16.gmra.mxu0 %v2860
        %v4352 = vpop.f32.mrf.mxu0
        %v4353 = vadd.f32 %v4264, %v4352
        %v4354 = vpop.f32.mrf.mxu0
        %v4355 = vadd.f32 %v4266, %v4354
        %4356 = vmatmul.bf16.gmra.mxu0 %v2862
        %v4357 = vpop.f32.mrf.mxu0
        %v4358 = vadd.f32 %v4269, %v4357
        %v4359 = vpop.f32.mrf.mxu0
        %v4360 = vadd.f32 %v4271, %v4359
        %4361 = vmatmul.bf16.gmra.mxu0 %v2864
        %v4362 = vpop.f32.mrf.mxu0
        %v4363 = vadd.f32 %v4274, %v4362
        %v4364 = vpop.f32.mrf.mxu0
        %v4365 = vadd.f32 %v4276, %v4364
        %4366 = vmatmul.bf16.gmra.mxu0 %v2866
        %v4367 = vpop.f32.mrf.mxu0
        %v4368 = vadd.f32 %v4279, %v4367
        %v4369 = vpop.f32.mrf.mxu0
        %v4370 = vadd.f32 %v4281, %v4369
        %4371 = vmatmul.bf16.gmra.mxu0 %v2868
        %v4372 = vpop.f32.mrf.mxu0
        %v4373 = vadd.f32 %v4284, %v4372
        %v4374 = vpop.f32.mrf.mxu0
        %v4375 = vadd.f32 %v4286, %v4374
        %4376 = vmatmul.bf16.gmra.mxu0 %v2870
        %v4377 = vpop.f32.mrf.mxu0
        %v4378 = vadd.f32 %v4289, %v4377
        %v4379 = vpop.f32.mrf.mxu0
        %v4380 = vadd.f32 %v4291, %v4379
        %4381 = vmatmul.bf16.gmra.mxu0 %v2872
        %v4382 = vpop.f32.mrf.mxu0
        %v4383 = vadd.f32 %v4294, %v4382
        %v4384 = vpop.f32.mrf.mxu0
        %v4385 = vadd.f32 %v4296, %v4384
        %4386 = vmatmul.bf16.gmra.mxu0 %v2874
        %v4387 = vpop.f32.mrf.mxu0
        %v4388 = vadd.f32 %v4299, %v4387
        %v4389 = vpop.f32.mrf.mxu0
        %v4390 = vadd.f32 %v4301, %v4389
        %4391 = vmatmul.bf16.gmra.mxu0 %v2876
        %v4392 = vpop.f32.mrf.mxu0
        %v4393 = vadd.f32 %v4304, %v4392
        %v4394 = vpop.f32.mrf.mxu0
        %v4395 = vadd.f32 %v4306, %v4394
        %4396 = vmatmul.bf16.gmra.mxu0 %v2878
        %v4397 = vpop.f32.mrf.mxu0
        %v4398 = vadd.f32 %v4309, %v4397
        %v4399 = vpop.f32.mrf.mxu0
        %v4400 = vadd.f32 %v4311, %v4399
        %4401 = vmatmul.bf16.gmra.mxu0 %v2880
        %v4402 = vpop.f32.mrf.mxu0
        %v4403 = vadd.f32 %v4314, %v4402
        %v4404 = vpop.f32.mrf.mxu0
        %v4405 = vadd.f32 %v4316, %v4404
        %4406 = vmatmul.bf16.gmra.mxu0 %v2882
        %v4407 = vpop.f32.mrf.mxu0
        %v4408 = vadd.f32 %v4319, %v4407
        %v4409 = vpop.f32.mrf.mxu0
        %v4410 = vadd.f32 %v4321, %v4409
        %4411 = vmatmul.bf16.gmra.mxu0 %v2884
        %v4412 = vpop.f32.mrf.mxu0
        %v4413 = vadd.f32 %v4324, %v4412
        %v4414 = vpop.f32.mrf.mxu0
        %v4415 = vadd.f32 %v4326, %v4414
        %4416 = vdwg.mxu0
        %vm4417 = vcmp.ge.s32.totalorder %v1804, 64
        %vm4418 = vcmp.lt.s32.totalorder %v1804, 96
        %vm4419 = vmand %vm4417, %vm4418
        %v4420 = vsel %vm4419, 1, 0
        %vm4421 = vcmp.eq.s32.totalorder %v4420, 1
        %vm4422 = vmpackc.low %vm4421, %vm4421
        %v4423 = vsel %vm4422, %v1675, 0
        %v4424 = vsel %vm4422, %v1677, 0
        %v4425 = vsel %vm4422, %v1679, 0
        %v4426 = vsel %vm4422, %v1681, 0
        %v4427 = vsel %vm4422, %v1683, 0
        %v4428 = vsel %vm4422, %v1685, 0
        %v4429 = vsel %vm4422, %v1687, 0
        %v4430 = vsel %vm4422, %v1689, 0
        %v4431 = vsel %vm4422, %v1691, 0
        %v4432 = vsel %vm4422, %v1693, 0
        %v4433 = vsel %vm4422, %v1695, 0
        %v4434 = vsel %vm4422, %v1697, 0
        %v4435 = vsel %vm4422, %v1699, 0
        %v4436 = vsel %vm4422, %v1701, 0
        %v4437 = vsel %vm4422, %v1703, 0
        %v4438 = vsel %vm4422, %v1705, 0
        %v4439 = vsel %vm4422, %v1707, 0
        %v4440 = vsel %vm4422, %v1709, 0
        %v4441 = vsel %vm4422, %v1711, 0
        %v4442 = vsel %vm4422, %v1713, 0
        %v4443 = vsel %vm4422, %v1715, 0
        %v4444 = vsel %vm4422, %v1717, 0
        %v4445 = vsel %vm4422, %v1719, 0
        %v4446 = vsel %vm4422, %v1721, 0
        %v4447 = vsel %vm4422, %v1723, 0
        %v4448 = vsel %vm4422, %v1725, 0
        %v4449 = vsel %vm4422, %v1727, 0
        %v4450 = vsel %vm4422, %v1729, 0
        %v4451 = vsel %vm4422, %v1731, 0
        %v4452 = vsel %vm4422, %v1733, 0
        %v4453 = vsel %vm4422, %v1735, 0
        %v4454 = vsel %vm4422, %v1737, 0
        %v4455 = vsel %vm4422, %v1676, 0
        %v4456 = vsel %vm4422, %v1678, 0
        %v4457 = vsel %vm4422, %v1680, 0
        %v4458 = vsel %vm4422, %v1682, 0
        %v4459 = vsel %vm4422, %v1684, 0
        %v4460 = vsel %vm4422, %v1686, 0
        %v4461 = vsel %vm4422, %v1688, 0
        %v4462 = vsel %vm4422, %v1690, 0
        %v4463 = vsel %vm4422, %v1692, 0
        %v4464 = vsel %vm4422, %v1694, 0
        %v4465 = vsel %vm4422, %v1696, 0
        %v4466 = vsel %vm4422, %v1698, 0
        %v4467 = vsel %vm4422, %v1700, 0
        %v4468 = vsel %vm4422, %v1702, 0
        %v4469 = vsel %vm4422, %v1704, 0
        %v4470 = vsel %vm4422, %v1706, 0
        %v4471 = vsel %vm4422, %v1708, 0
        %v4472 = vsel %vm4422, %v1710, 0
        %v4473 = vsel %vm4422, %v1712, 0
        %v4474 = vsel %vm4422, %v1714, 0
        %v4475 = vsel %vm4422, %v1716, 0
        %v4476 = vsel %vm4422, %v1718, 0
        %v4477 = vsel %vm4422, %v1720, 0
        %v4478 = vsel %vm4422, %v1722, 0
        %v4479 = vsel %vm4422, %v1724, 0
        %v4480 = vsel %vm4422, %v1726, 0
        %v4481 = vsel %vm4422, %v1728, 0
        %v4482 = vsel %vm4422, %v1730, 0
        %v4483 = vsel %vm4422, %v1732, 0
        %v4484 = vsel %vm4422, %v1734, 0
        %v4485 = vsel %vm4422, %v1736, 0
        %v4486 = vsel %vm4422, %v1738, 0
        %v4519 = vunpack.c.l.b16 %v4423
        %v4520 = vunpack.c.l.b16 %v4424
        %v4521 = vunpack.c.l.b16 %v4425
        %v4522 = vunpack.c.l.b16 %v4426
        %v4523 = vunpack.c.l.b16 %v4427
        %v4524 = vunpack.c.l.b16 %v4428
        %v4525 = vunpack.c.l.b16 %v4429
        %v4526 = vunpack.c.l.b16 %v4430
        %v4527 = vunpack.c.l.b16 %v4431
        %v4528 = vunpack.c.l.b16 %v4432
        %v4529 = vunpack.c.l.b16 %v4433
        %v4530 = vunpack.c.l.b16 %v4434
        %v4531 = vunpack.c.l.b16 %v4435
        %v4532 = vunpack.c.l.b16 %v4436
        %v4533 = vunpack.c.l.b16 %v4437
        %v4534 = vunpack.c.l.b16 %v4438
        %v4535 = vunpack.c.l.b16 %v4439
        %v4536 = vunpack.c.l.b16 %v4440
        %v4537 = vunpack.c.l.b16 %v4441
        %v4538 = vunpack.c.l.b16 %v4442
        %v4539 = vunpack.c.l.b16 %v4443
        %v4540 = vunpack.c.l.b16 %v4444
        %v4541 = vunpack.c.l.b16 %v4445
        %v4542 = vunpack.c.l.b16 %v4446
        %v4543 = vunpack.c.l.b16 %v4447
        %v4544 = vunpack.c.l.b16 %v4448
        %v4545 = vunpack.c.l.b16 %v4449
        %v4546 = vunpack.c.l.b16 %v4450
        %v4547 = vunpack.c.l.b16 %v4451
        %v4548 = vunpack.c.l.b16 %v4452
        %v4549 = vunpack.c.l.b16 %v4453
        %v4550 = vunpack.c.l.b16 %v4454
        %v4551 = vpack.c.b16 %v4520, %v4519
        %v4552 = vpack.c.b16 %v4522, %v4521
        %v4553 = vpack.c.b16 %v4524, %v4523
        %v4554 = vpack.c.b16 %v4526, %v4525
        %v4555 = vpack.c.b16 %v4528, %v4527
        %v4556 = vpack.c.b16 %v4530, %v4529
        %v4557 = vpack.c.b16 %v4532, %v4531
        %v4558 = vpack.c.b16 %v4534, %v4533
        %v4559 = vpack.c.b16 %v4536, %v4535
        %v4560 = vpack.c.b16 %v4538, %v4537
        %v4561 = vpack.c.b16 %v4540, %v4539
        %v4562 = vpack.c.b16 %v4542, %v4541
        %v4563 = vpack.c.b16 %v4544, %v4543
        %v4564 = vpack.c.b16 %v4546, %v4545
        %v4565 = vpack.c.b16 %v4548, %v4547
        %v4566 = vpack.c.b16 %v4550, %v4549
        %4583 = vmatpush.bf16.xpose.msra.mxu0 %v2042
        %4584 = vmatpush.bf16.xpose.msra.mxu0 %v2041
        %4585 = vmatpush.bf16.xpose.msra.mxu0 %v2040
        %4586 = vmatpush.bf16.xpose.msra.mxu0 %v2039
        %4587 = vmatpush.bf16.xpose.msra.mxu0 %v2038
        %4588 = vmatpush.bf16.xpose.msra.mxu0 %v2037
        %4589 = vmatpush.bf16.xpose.msra.mxu0 %v2036
        %4590 = vmatpush.bf16.xpose.msra.mxu0 %v2035
        %4591 = vmatmul.bf16.gmra.mxu0 %v4551
        %v4592 = vpop.f32.mrf.mxu0
        %v4593 = vadd.f32 0.0, %v4592
        %v4594 = vpop.f32.mrf.mxu0
        %v4595 = vadd.f32 0.0, %v4594
        %4596 = vmatmul.bf16.gmra.mxu0 %v4552
        %v4597 = vpop.f32.mrf.mxu0
        %v4598 = vadd.f32 0.0, %v4597
        %v4599 = vpop.f32.mrf.mxu0
        %v4600 = vadd.f32 0.0, %v4599
        %4601 = vmatmul.bf16.gmra.mxu0 %v4553
        %v4602 = vpop.f32.mrf.mxu0
        %v4603 = vadd.f32 0.0, %v4602
        %v4604 = vpop.f32.mrf.mxu0
        %v4605 = vadd.f32 0.0, %v4604
        %4606 = vmatmul.bf16.gmra.mxu0 %v4554
        %v4607 = vpop.f32.mrf.mxu0
        %v4608 = vadd.f32 0.0, %v4607
        %v4609 = vpop.f32.mrf.mxu0
        %v4610 = vadd.f32 0.0, %v4609
        %4611 = vmatmul.bf16.gmra.mxu0 %v4555
        %v4612 = vpop.f32.mrf.mxu0
        %v4613 = vadd.f32 0.0, %v4612
        %v4614 = vpop.f32.mrf.mxu0
        %v4615 = vadd.f32 0.0, %v4614
        %4616 = vmatmul.bf16.gmra.mxu0 %v4556
        %v4617 = vpop.f32.mrf.mxu0
        %v4618 = vadd.f32 0.0, %v4617
        %v4619 = vpop.f32.mrf.mxu0
        %v4620 = vadd.f32 0.0, %v4619
        %4621 = vmatmul.bf16.gmra.mxu0 %v4557
        %v4622 = vpop.f32.mrf.mxu0
        %v4623 = vadd.f32 0.0, %v4622
        %v4624 = vpop.f32.mrf.mxu0
        %v4625 = vadd.f32 0.0, %v4624
        %4626 = vmatmul.bf16.gmra.mxu0 %v4558
        %v4627 = vpop.f32.mrf.mxu0
        %v4628 = vadd.f32 0.0, %v4627
        %v4629 = vpop.f32.mrf.mxu0
        %v4630 = vadd.f32 0.0, %v4629
        %4631 = vmatmul.bf16.gmra.mxu0 %v4559
        %v4632 = vpop.f32.mrf.mxu0
        %v4633 = vadd.f32 0.0, %v4632
        %v4634 = vpop.f32.mrf.mxu0
        %v4635 = vadd.f32 0.0, %v4634
        %4636 = vmatmul.bf16.gmra.mxu0 %v4560
        %v4637 = vpop.f32.mrf.mxu0
        %v4638 = vadd.f32 0.0, %v4637
        %v4639 = vpop.f32.mrf.mxu0
        %v4640 = vadd.f32 0.0, %v4639
        %4641 = vmatmul.bf16.gmra.mxu0 %v4561
        %v4642 = vpop.f32.mrf.mxu0
        %v4643 = vadd.f32 0.0, %v4642
        %v4644 = vpop.f32.mrf.mxu0
        %v4645 = vadd.f32 0.0, %v4644
        %4646 = vmatmul.bf16.gmra.mxu0 %v4562
        %v4647 = vpop.f32.mrf.mxu0
        %v4648 = vadd.f32 0.0, %v4647
        %v4649 = vpop.f32.mrf.mxu0
        %v4650 = vadd.f32 0.0, %v4649
        %4651 = vmatmul.bf16.gmra.mxu0 %v4563
        %v4652 = vpop.f32.mrf.mxu0
        %v4653 = vadd.f32 0.0, %v4652
        %v4654 = vpop.f32.mrf.mxu0
        %v4655 = vadd.f32 0.0, %v4654
        %4656 = vmatmul.bf16.gmra.mxu0 %v4564
        %v4657 = vpop.f32.mrf.mxu0
        %v4658 = vadd.f32 0.0, %v4657
        %v4659 = vpop.f32.mrf.mxu0
        %v4660 = vadd.f32 0.0, %v4659
        %4661 = vmatmul.bf16.gmra.mxu0 %v4565
        %v4662 = vpop.f32.mrf.mxu0
        %v4663 = vadd.f32 0.0, %v4662
        %v4664 = vpop.f32.mrf.mxu0
        %v4665 = vadd.f32 0.0, %v4664
        %4666 = vmatmul.bf16.gmra.mxu0 %v4566
        %v4667 = vpop.f32.mrf.mxu0
        %v4668 = vadd.f32 0.0, %v4667
        %v4669 = vpop.f32.mrf.mxu0
        %v4670 = vadd.f32 0.0, %v4669
        %4671 = vdwg.mxu0
        %4672 = vmatpush.bf16.xpose.msra.mxu0 %v2050
        %4673 = vmatpush.bf16.xpose.msra.mxu0 %v2049
        %4674 = vmatpush.bf16.xpose.msra.mxu0 %v2048
        %4675 = vmatpush.bf16.xpose.msra.mxu0 %v2047
        %4676 = vmatpush.bf16.xpose.msra.mxu0 %v2046
        %4677 = vmatpush.bf16.xpose.msra.mxu0 %v2045
        %4678 = vmatpush.bf16.xpose.msra.mxu0 %v2044
        %4679 = vmatpush.bf16.xpose.msra.mxu0 %v2043
        %4680 = vmatmul.bf16.gmra.mxu0 %v4551
        %v4681 = vpop.f32.mrf.mxu0
        %v4682 = vadd.f32 0.0, %v4681
        %v4683 = vpop.f32.mrf.mxu0
        %v4684 = vadd.f32 0.0, %v4683
        %4685 = vmatmul.bf16.gmra.mxu0 %v4552
        %v4686 = vpop.f32.mrf.mxu0
        %v4687 = vadd.f32 0.0, %v4686
        %v4688 = vpop.f32.mrf.mxu0
        %v4689 = vadd.f32 0.0, %v4688
        %4690 = vmatmul.bf16.gmra.mxu0 %v4553
        %v4691 = vpop.f32.mrf.mxu0
        %v4692 = vadd.f32 0.0, %v4691
        %v4693 = vpop.f32.mrf.mxu0
        %v4694 = vadd.f32 0.0, %v4693
        %4695 = vmatmul.bf16.gmra.mxu0 %v4554
        %v4696 = vpop.f32.mrf.mxu0
        %v4697 = vadd.f32 0.0, %v4696
        %v4698 = vpop.f32.mrf.mxu0
        %v4699 = vadd.f32 0.0, %v4698
        %4700 = vmatmul.bf16.gmra.mxu0 %v4555
        %v4701 = vpop.f32.mrf.mxu0
        %v4702 = vadd.f32 0.0, %v4701
        %v4703 = vpop.f32.mrf.mxu0
        %v4704 = vadd.f32 0.0, %v4703
        %4705 = vmatmul.bf16.gmra.mxu0 %v4556
        %v4706 = vpop.f32.mrf.mxu0
        %v4707 = vadd.f32 0.0, %v4706
        %v4708 = vpop.f32.mrf.mxu0
        %v4709 = vadd.f32 0.0, %v4708
        %4710 = vmatmul.bf16.gmra.mxu0 %v4557
        %v4711 = vpop.f32.mrf.mxu0
        %v4712 = vadd.f32 0.0, %v4711
        %v4713 = vpop.f32.mrf.mxu0
        %v4714 = vadd.f32 0.0, %v4713
        %4715 = vmatmul.bf16.gmra.mxu0 %v4558
        %v4716 = vpop.f32.mrf.mxu0
        %v4717 = vadd.f32 0.0, %v4716
        %v4718 = vpop.f32.mrf.mxu0
        %v4719 = vadd.f32 0.0, %v4718
        %4720 = vmatmul.bf16.gmra.mxu0 %v4559
        %v4721 = vpop.f32.mrf.mxu0
        %v4722 = vadd.f32 0.0, %v4721
        %v4723 = vpop.f32.mrf.mxu0
        %v4724 = vadd.f32 0.0, %v4723
        %4725 = vmatmul.bf16.gmra.mxu0 %v4560
        %v4726 = vpop.f32.mrf.mxu0
        %v4727 = vadd.f32 0.0, %v4726
        %v4728 = vpop.f32.mrf.mxu0
        %v4729 = vadd.f32 0.0, %v4728
        %4730 = vmatmul.bf16.gmra.mxu0 %v4561
        %v4731 = vpop.f32.mrf.mxu0
        %v4732 = vadd.f32 0.0, %v4731
        %v4733 = vpop.f32.mrf.mxu0
        %v4734 = vadd.f32 0.0, %v4733
        %4735 = vmatmul.bf16.gmra.mxu0 %v4562
        %v4736 = vpop.f32.mrf.mxu0
        %v4737 = vadd.f32 0.0, %v4736
        %v4738 = vpop.f32.mrf.mxu0
        %v4739 = vadd.f32 0.0, %v4738
        %4740 = vmatmul.bf16.gmra.mxu0 %v4563
        %v4741 = vpop.f32.mrf.mxu0
        %v4742 = vadd.f32 0.0, %v4741
        %v4743 = vpop.f32.mrf.mxu0
        %v4744 = vadd.f32 0.0, %v4743
        %4745 = vmatmul.bf16.gmra.mxu0 %v4564
        %v4746 = vpop.f32.mrf.mxu0
        %v4747 = vadd.f32 0.0, %v4746
        %v4748 = vpop.f32.mrf.mxu0
        %v4749 = vadd.f32 0.0, %v4748
        %4750 = vmatmul.bf16.gmra.mxu0 %v4565
        %v4751 = vpop.f32.mrf.mxu0
        %v4752 = vadd.f32 0.0, %v4751
        %v4753 = vpop.f32.mrf.mxu0
        %v4754 = vadd.f32 0.0, %v4753
        %4755 = vmatmul.bf16.gmra.mxu0 %v4566
        %v4756 = vpop.f32.mrf.mxu0
        %v4757 = vadd.f32 0.0, %v4756
        %v4758 = vpop.f32.mrf.mxu0
        %v4759 = vadd.f32 0.0, %v4758
        %4760 = vdwg.mxu0
        %v4761 = vmul.f32 %v4593, 0.17677669
        %v4762 = vmul.f32 %v4682, 0.17677669
        %v4763 = vmul.f32 %v4595, 0.17677669
        %v4764 = vmul.f32 %v4684, 0.17677669
        %v4765 = vmul.f32 %v4598, 0.17677669
        %v4766 = vmul.f32 %v4687, 0.17677669
        %v4767 = vmul.f32 %v4600, 0.17677669
        %v4768 = vmul.f32 %v4689, 0.17677669
        %v4769 = vmul.f32 %v4603, 0.17677669
        %v4770 = vmul.f32 %v4692, 0.17677669
        %v4771 = vmul.f32 %v4605, 0.17677669
        %v4772 = vmul.f32 %v4694, 0.17677669
        %v4773 = vmul.f32 %v4608, 0.17677669
        %v4774 = vmul.f32 %v4697, 0.17677669
        %v4775 = vmul.f32 %v4610, 0.17677669
        %v4776 = vmul.f32 %v4699, 0.17677669
        %v4777 = vmul.f32 %v4613, 0.17677669
        %v4778 = vmul.f32 %v4702, 0.17677669
        %v4779 = vmul.f32 %v4615, 0.17677669
        %v4780 = vmul.f32 %v4704, 0.17677669
        %v4781 = vmul.f32 %v4618, 0.17677669
        %v4782 = vmul.f32 %v4707, 0.17677669
        %v4783 = vmul.f32 %v4620, 0.17677669
        %v4784 = vmul.f32 %v4709, 0.17677669
        %v4785 = vmul.f32 %v4623, 0.17677669
        %v4786 = vmul.f32 %v4712, 0.17677669
        %v4787 = vmul.f32 %v4625, 0.17677669
        %v4788 = vmul.f32 %v4714, 0.17677669
        %v4789 = vmul.f32 %v4628, 0.17677669
        %v4790 = vmul.f32 %v4717, 0.17677669
        %v4791 = vmul.f32 %v4630, 0.17677669
        %v4792 = vmul.f32 %v4719, 0.17677669
        %v4793 = vmul.f32 %v4633, 0.17677669
        %v4794 = vmul.f32 %v4722, 0.17677669
        %v4795 = vmul.f32 %v4635, 0.17677669
        %v4796 = vmul.f32 %v4724, 0.17677669
        %v4797 = vmul.f32 %v4638, 0.17677669
        %v4798 = vmul.f32 %v4727, 0.17677669
        %v4799 = vmul.f32 %v4640, 0.17677669
        %v4800 = vmul.f32 %v4729, 0.17677669
        %v4801 = vmul.f32 %v4643, 0.17677669
        %v4802 = vmul.f32 %v4732, 0.17677669
        %v4803 = vmul.f32 %v4645, 0.17677669
        %v4804 = vmul.f32 %v4734, 0.17677669
        %v4805 = vmul.f32 %v4648, 0.17677669
        %v4806 = vmul.f32 %v4737, 0.17677669
        %v4807 = vmul.f32 %v4650, 0.17677669
        %v4808 = vmul.f32 %v4739, 0.17677669
        %v4809 = vmul.f32 %v4653, 0.17677669
        %v4810 = vmul.f32 %v4742, 0.17677669
        %v4811 = vmul.f32 %v4655, 0.17677669
        %v4812 = vmul.f32 %v4744, 0.17677669
        %v4813 = vmul.f32 %v4658, 0.17677669
        %v4814 = vmul.f32 %v4747, 0.17677669
        %v4815 = vmul.f32 %v4660, 0.17677669
        %v4816 = vmul.f32 %v4749, 0.17677669
        %v4817 = vmul.f32 %v4663, 0.17677669
        %v4818 = vmul.f32 %v4752, 0.17677669
        %v4819 = vmul.f32 %v4665, 0.17677669
        %v4820 = vmul.f32 %v4754, 0.17677669
        %v4821 = vmul.f32 %v4668, 0.17677669
        %v4822 = vmul.f32 %v4757, 0.17677669
        %v4823 = vmul.f32 %v4670, 0.17677669
        %v4824 = vmul.f32 %v4759, 0.17677669
        %v4825 = vadd.f32 %v4761, %v1739
        %v4826 = vadd.f32 %v4762, %v1740
        %v4827 = vadd.f32 %v4763, %v1741
        %v4828 = vadd.f32 %v4764, %v1742
        %v4829 = vadd.f32 %v4765, %v1743
        %v4830 = vadd.f32 %v4766, %v1744
        %v4831 = vadd.f32 %v4767, %v1745
        %v4832 = vadd.f32 %v4768, %v1746
        %v4833 = vadd.f32 %v4769, %v1747
        %v4834 = vadd.f32 %v4770, %v1748
        %v4835 = vadd.f32 %v4771, %v1749
        %v4836 = vadd.f32 %v4772, %v1750
        %v4837 = vadd.f32 %v4773, %v1751
        %v4838 = vadd.f32 %v4774, %v1752
        %v4839 = vadd.f32 %v4775, %v1753
        %v4840 = vadd.f32 %v4776, %v1754
        %v4841 = vadd.f32 %v4777, %v1755
        %v4842 = vadd.f32 %v4778, %v1756
        %v4843 = vadd.f32 %v4779, %v1757
        %v4844 = vadd.f32 %v4780, %v1758
        %v4845 = vadd.f32 %v4781, %v1759
        %v4846 = vadd.f32 %v4782, %v1760
        %v4847 = vadd.f32 %v4783, %v1761
        %v4848 = vadd.f32 %v4784, %v1762
        %v4849 = vadd.f32 %v4785, %v1763
        %v4850 = vadd.f32 %v4786, %v1764
        %v4851 = vadd.f32 %v4787, %v1765
        %v4852 = vadd.f32 %v4788, %v1766
        %v4853 = vadd.f32 %v4789, %v1767
        %v4854 = vadd.f32 %v4790, %v1768
        %v4855 = vadd.f32 %v4791, %v1769
        %v4856 = vadd.f32 %v4792, %v1770
        %v4857 = vadd.f32 %v4793, %v1771
        %v4858 = vadd.f32 %v4794, %v1772
        %v4859 = vadd.f32 %v4795, %v1773
        %v4860 = vadd.f32 %v4796, %v1774
        %v4861 = vadd.f32 %v4797, %v1775
        %v4862 = vadd.f32 %v4798, %v1776
        %v4863 = vadd.f32 %v4799, %v1777
        %v4864 = vadd.f32 %v4800, %v1778
        %v4865 = vadd.f32 %v4801, %v1779
        %v4866 = vadd.f32 %v4802, %v1780
        %v4867 = vadd.f32 %v4803, %v1781
        %v4868 = vadd.f32 %v4804, %v1782
        %v4869 = vadd.f32 %v4805, %v1783
        %v4870 = vadd.f32 %v4806, %v1784
        %v4871 = vadd.f32 %v4807, %v1785
        %v4872 = vadd.f32 %v4808, %v1786
        %v4873 = vadd.f32 %v4809, %v1787
        %v4874 = vadd.f32 %v4810, %v1788
        %v4875 = vadd.f32 %v4811, %v1789
        %v4876 = vadd.f32 %v4812, %v1790
        %v4877 = vadd.f32 %v4813, %v1791
        %v4878 = vadd.f32 %v4814, %v1792
        %v4879 = vadd.f32 %v4815, %v1793
        %v4880 = vadd.f32 %v4816, %v1794
        %v4881 = vadd.f32 %v4817, %v1795
        %v4882 = vadd.f32 %v4818, %v1796
        %v4883 = vadd.f32 %v4819, %v1797
        %v4884 = vadd.f32 %v4820, %v1798
        %v4885 = vadd.f32 %v4821, %v1799
        %v4886 = vadd.f32 %v4822, %v1800
        %v4887 = vadd.f32 %v4823, %v1801
        %v4888 = vadd.f32 %v4824, %v1802
        %v4889 = vmax.f32 %v4825, %v4826
        %4890 = vmax.xlane.f32.xlu0 %v4889
        %v4891 = vpop.xlane.xlu0 %4890
        %v4892 = vmax.f32 %v4827, %v4828
        %4893 = vmax.xlane.f32.xlu0 %v4892
        %v4894 = vpop.xlane.xlu0 %4893
        %v4895 = vmax.f32 %v4829, %v4830
        %4896 = vmax.xlane.f32.xlu0 %v4895
        %v4897 = vpop.xlane.xlu0 %4896
        %v4898 = vmax.f32 %v4831, %v4832
        %4899 = vmax.xlane.f32.xlu0 %v4898
        %v4900 = vpop.xlane.xlu0 %4899
        %v4901 = vmax.f32 %v4833, %v4834
        %4902 = vmax.xlane.f32.xlu0 %v4901
        %v4903 = vpop.xlane.xlu0 %4902
        %v4904 = vmax.f32 %v4835, %v4836
        %4905 = vmax.xlane.f32.xlu0 %v4904
        %v4906 = vpop.xlane.xlu0 %4905
        %v4907 = vmax.f32 %v4837, %v4838
        %4908 = vmax.xlane.f32.xlu0 %v4907
        %v4909 = vpop.xlane.xlu0 %4908
        %v4910 = vmax.f32 %v4839, %v4840
        %4911 = vmax.xlane.f32.xlu0 %v4910
        %v4912 = vpop.xlane.xlu0 %4911
        %v4913 = vmax.f32 %v4841, %v4842
        %4914 = vmax.xlane.f32.xlu0 %v4913
        %v4915 = vpop.xlane.xlu0 %4914
        %v4916 = vmax.f32 %v4843, %v4844
        %4917 = vmax.xlane.f32.xlu0 %v4916
        %v4918 = vpop.xlane.xlu0 %4917
        %v4919 = vmax.f32 %v4845, %v4846
        %4920 = vmax.xlane.f32.xlu0 %v4919
        %v4921 = vpop.xlane.xlu0 %4920
        %v4922 = vmax.f32 %v4847, %v4848
        %4923 = vmax.xlane.f32.xlu0 %v4922
        %v4924 = vpop.xlane.xlu0 %4923
        %v4925 = vmax.f32 %v4849, %v4850
        %4926 = vmax.xlane.f32.xlu0 %v4925
        %v4927 = vpop.xlane.xlu0 %4926
        %v4928 = vmax.f32 %v4851, %v4852
        %4929 = vmax.xlane.f32.xlu0 %v4928
        %v4930 = vpop.xlane.xlu0 %4929
        %v4931 = vmax.f32 %v4853, %v4854
        %4932 = vmax.xlane.f32.xlu0 %v4931
        %v4933 = vpop.xlane.xlu0 %4932
        %v4934 = vmax.f32 %v4855, %v4856
        %4935 = vmax.xlane.f32.xlu0 %v4934
        %v4936 = vpop.xlane.xlu0 %4935
        %v4937 = vmax.f32 %v4857, %v4858
        %4938 = vmax.xlane.f32.xlu0 %v4937
        %v4939 = vpop.xlane.xlu0 %4938
        %v4940 = vmax.f32 %v4859, %v4860
        %4941 = vmax.xlane.f32.xlu0 %v4940
        %v4942 = vpop.xlane.xlu0 %4941
        %v4943 = vmax.f32 %v4861, %v4862
        %4944 = vmax.xlane.f32.xlu0 %v4943
        %v4945 = vpop.xlane.xlu0 %4944
        %v4946 = vmax.f32 %v4863, %v4864
        %4947 = vmax.xlane.f32.xlu0 %v4946
        %v4948 = vpop.xlane.xlu0 %4947
        %v4949 = vmax.f32 %v4865, %v4866
        %4950 = vmax.xlane.f32.xlu0 %v4949
        %v4951 = vpop.xlane.xlu0 %4950
        %v4952 = vmax.f32 %v4867, %v4868
        %4953 = vmax.xlane.f32.xlu0 %v4952
        %v4954 = vpop.xlane.xlu0 %4953
        %v4955 = vmax.f32 %v4869, %v4870
        %4956 = vmax.xlane.f32.xlu0 %v4955
        %v4957 = vpop.xlane.xlu0 %4956
        %v4958 = vmax.f32 %v4871, %v4872
        %4959 = vmax.xlane.f32.xlu0 %v4958
        %v4960 = vpop.xlane.xlu0 %4959
        %v4961 = vmax.f32 %v4873, %v4874
        %4962 = vmax.xlane.f32.xlu0 %v4961
        %v4963 = vpop.xlane.xlu0 %4962
        %v4964 = vmax.f32 %v4875, %v4876
        %4965 = vmax.xlane.f32.xlu0 %v4964
        %v4966 = vpop.xlane.xlu0 %4965
        %v4967 = vmax.f32 %v4877, %v4878
        %4968 = vmax.xlane.f32.xlu0 %v4967
        %v4969 = vpop.xlane.xlu0 %4968
        %v4970 = vmax.f32 %v4879, %v4880
        %4971 = vmax.xlane.f32.xlu0 %v4970
        %v4972 = vpop.xlane.xlu0 %4971
        %v4973 = vmax.f32 %v4881, %v4882
        %4974 = vmax.xlane.f32.xlu0 %v4973
        %v4975 = vpop.xlane.xlu0 %4974
        %v4976 = vmax.f32 %v4883, %v4884
        %4977 = vmax.xlane.f32.xlu0 %v4976
        %v4978 = vpop.xlane.xlu0 %4977
        %v4979 = vmax.f32 %v4885, %v4886
        %4980 = vmax.xlane.f32.xlu0 %v4979
        %v4981 = vpop.xlane.xlu0 %4980
        %v4982 = vmax.f32 %v4887, %v4888
        %4983 = vmax.xlane.f32.xlu0 %v4982
        %v4984 = vpop.xlane.xlu0 %4983
        %v4985 = vsub.f32 %v4825, %v4891
        %v4986 = vsub.f32 %v4826, %v4891
        %v4987 = vsub.f32 %v4827, %v4894
        %v4988 = vsub.f32 %v4828, %v4894
        %v4989 = vsub.f32 %v4829, %v4897
        %v4990 = vsub.f32 %v4830, %v4897
        %v4991 = vsub.f32 %v4831, %v4900
        %v4992 = vsub.f32 %v4832, %v4900
        %v4993 = vsub.f32 %v4833, %v4903
        %v4994 = vsub.f32 %v4834, %v4903
        %v4995 = vsub.f32 %v4835, %v4906
        %v4996 = vsub.f32 %v4836, %v4906
        %v4997 = vsub.f32 %v4837, %v4909
        %v4998 = vsub.f32 %v4838, %v4909
        %v4999 = vsub.f32 %v4839, %v4912
        %v5000 = vsub.f32 %v4840, %v4912
        %v5001 = vsub.f32 %v4841, %v4915
        %v5002 = vsub.f32 %v4842, %v4915
        %v5003 = vsub.f32 %v4843, %v4918
        %v5004 = vsub.f32 %v4844, %v4918
        %v5005 = vsub.f32 %v4845, %v4921
        %v5006 = vsub.f32 %v4846, %v4921
        %v5007 = vsub.f32 %v4847, %v4924
        %v5008 = vsub.f32 %v4848, %v4924
        %v5009 = vsub.f32 %v4849, %v4927
        %v5010 = vsub.f32 %v4850, %v4927
        %v5011 = vsub.f32 %v4851, %v4930
        %v5012 = vsub.f32 %v4852, %v4930
        %v5013 = vsub.f32 %v4853, %v4933
        %v5014 = vsub.f32 %v4854, %v4933
        %v5015 = vsub.f32 %v4855, %v4936
        %v5016 = vsub.f32 %v4856, %v4936
        %v5017 = vsub.f32 %v4857, %v4939
        %v5018 = vsub.f32 %v4858, %v4939
        %v5019 = vsub.f32 %v4859, %v4942
        %v5020 = vsub.f32 %v4860, %v4942
        %v5021 = vsub.f32 %v4861, %v4945
        %v5022 = vsub.f32 %v4862, %v4945
        %v5023 = vsub.f32 %v4863, %v4948
        %v5024 = vsub.f32 %v4864, %v4948
        %v5025 = vsub.f32 %v4865, %v4951
        %v5026 = vsub.f32 %v4866, %v4951
        %v5027 = vsub.f32 %v4867, %v4954
        %v5028 = vsub.f32 %v4868, %v4954
        %v5029 = vsub.f32 %v4869, %v4957
        %v5030 = vsub.f32 %v4870, %v4957
        %v5031 = vsub.f32 %v4871, %v4960
        %v5032 = vsub.f32 %v4872, %v4960
        %v5033 = vsub.f32 %v4873, %v4963
        %v5034 = vsub.f32 %v4874, %v4963
        %v5035 = vsub.f32 %v4875, %v4966
        %v5036 = vsub.f32 %v4876, %v4966
        %v5037 = vsub.f32 %v4877, %v4969
        %v5038 = vsub.f32 %v4878, %v4969
        %v5039 = vsub.f32 %v4879, %v4972
        %v5040 = vsub.f32 %v4880, %v4972
        %v5041 = vsub.f32 %v4881, %v4975
        %v5042 = vsub.f32 %v4882, %v4975
        %v5043 = vsub.f32 %v4883, %v4978
        %v5044 = vsub.f32 %v4884, %v4978
        %v5045 = vsub.f32 %v4885, %v4981
        %v5046 = vsub.f32 %v4886, %v4981
        %v5047 = vsub.f32 %v4887, %v4984
        %v5048 = vsub.f32 %v4888, %v4984
        %v5049 = vmul.f32 %v4985, 1.442695
        %v5050 = vpow.pop %v5049
        %v5051 = vmul.f32 %v4986, 1.442695
        %v5052 = vpow.pop %v5051
        %v5053 = vmul.f32 %v4987, 1.442695
        %v5054 = vpow.pop %v5053
        %v5055 = vmul.f32 %v4988, 1.442695
        %v5056 = vpow.pop %v5055
        %v5057 = vmul.f32 %v4989, 1.442695
        %v5058 = vpow.pop %v5057
        %v5059 = vmul.f32 %v4990, 1.442695
        %v5060 = vpow.pop %v5059
        %v5061 = vmul.f32 %v4991, 1.442695
        %v5062 = vpow.pop %v5061
        %v5063 = vmul.f32 %v4992, 1.442695
        %v5064 = vpow.pop %v5063
        %v5065 = vmul.f32 %v4993, 1.442695
        %v5066 = vpow.pop %v5065
        %v5067 = vmul.f32 %v4994, 1.442695
        %v5068 = vpow.pop %v5067
        %v5069 = vmul.f32 %v4995, 1.442695
        %v5070 = vpow.pop %v5069
        %v5071 = vmul.f32 %v4996, 1.442695
        %v5072 = vpow.pop %v5071
        %v5073 = vmul.f32 %v4997, 1.442695
        %v5074 = vpow.pop %v5073
        %v5075 = vmul.f32 %v4998, 1.442695
        %v5076 = vpow.pop %v5075
        %v5077 = vmul.f32 %v4999, 1.442695
        %v5078 = vpow.pop %v5077
        %v5079 = vmul.f32 %v5000, 1.442695
        %v5080 = vpow.pop %v5079
        %v5081 = vmul.f32 %v5001, 1.442695
        %v5082 = vpow.pop %v5081
        %v5083 = vmul.f32 %v5002, 1.442695
        %v5084 = vpow.pop %v5083
        %v5085 = vmul.f32 %v5003, 1.442695
        %v5086 = vpow.pop %v5085
        %v5087 = vmul.f32 %v5004, 1.442695
        %v5088 = vpow.pop %v5087
        %v5089 = vmul.f32 %v5005, 1.442695
        %v5090 = vpow.pop %v5089
        %v5091 = vmul.f32 %v5006, 1.442695
        %v5092 = vpow.pop %v5091
        %v5093 = vmul.f32 %v5007, 1.442695
        %v5094 = vpow.pop %v5093
        %v5095 = vmul.f32 %v5008, 1.442695
        %v5096 = vpow.pop %v5095
        %v5097 = vmul.f32 %v5009, 1.442695
        %v5098 = vpow.pop %v5097
        %v5099 = vmul.f32 %v5010, 1.442695
        %v5100 = vpow.pop %v5099
        %v5101 = vmul.f32 %v5011, 1.442695
        %v5102 = vpow.pop %v5101
        %v5103 = vmul.f32 %v5012, 1.442695
        %v5104 = vpow.pop %v5103
        %v5105 = vmul.f32 %v5013, 1.442695
        %v5106 = vpow.pop %v5105
        %v5107 = vmul.f32 %v5014, 1.442695
        %v5108 = vpow.pop %v5107
        %v5109 = vmul.f32 %v5015, 1.442695
        %v5110 = vpow.pop %v5109
        %v5111 = vmul.f32 %v5016, 1.442695
        %v5112 = vpow.pop %v5111
        %v5113 = vmul.f32 %v5017, 1.442695
        %v5114 = vpow.pop %v5113
        %v5115 = vmul.f32 %v5018, 1.442695
        %v5116 = vpow.pop %v5115
        %v5117 = vmul.f32 %v5019, 1.442695
        %v5118 = vpow.pop %v5117
        %v5119 = vmul.f32 %v5020, 1.442695
        %v5120 = vpow.pop %v5119
        %v5121 = vmul.f32 %v5021, 1.442695
        %v5122 = vpow.pop %v5121
        %v5123 = vmul.f32 %v5022, 1.442695
        %v5124 = vpow.pop %v5123
        %v5125 = vmul.f32 %v5023, 1.442695
        %v5126 = vpow.pop %v5125
        %v5127 = vmul.f32 %v5024, 1.442695
        %v5128 = vpow.pop %v5127
        %v5129 = vmul.f32 %v5025, 1.442695
        %v5130 = vpow.pop %v5129
        %v5131 = vmul.f32 %v5026, 1.442695
        %v5132 = vpow.pop %v5131
        %v5133 = vmul.f32 %v5027, 1.442695
        %v5134 = vpow.pop %v5133
        %v5135 = vmul.f32 %v5028, 1.442695
        %v5136 = vpow.pop %v5135
        %v5137 = vmul.f32 %v5029, 1.442695
        %v5138 = vpow.pop %v5137
        %v5139 = vmul.f32 %v5030, 1.442695
        %v5140 = vpow.pop %v5139
        %v5141 = vmul.f32 %v5031, 1.442695
        %v5142 = vpow.pop %v5141
        %v5143 = vmul.f32 %v5032, 1.442695
        %v5144 = vpow.pop %v5143
        %v5145 = vmul.f32 %v5033, 1.442695
        %v5146 = vpow.pop %v5145
        %v5147 = vmul.f32 %v5034, 1.442695
        %v5148 = vpow.pop %v5147
        %v5149 = vmul.f32 %v5035, 1.442695
        %v5150 = vpow.pop %v5149
        %v5151 = vmul.f32 %v5036, 1.442695
        %v5152 = vpow.pop %v5151
        %v5153 = vmul.f32 %v5037, 1.442695
        %v5154 = vpow.pop %v5153
        %v5155 = vmul.f32 %v5038, 1.442695
        %v5156 = vpow.pop %v5155
        %v5157 = vmul.f32 %v5039, 1.442695
        %v5158 = vpow.pop %v5157
        %v5159 = vmul.f32 %v5040, 1.442695
        %v5160 = vpow.pop %v5159
        %v5161 = vmul.f32 %v5041, 1.442695
        %v5162 = vpow.pop %v5161
        %v5163 = vmul.f32 %v5042, 1.442695
        %v5164 = vpow.pop %v5163
        %v5165 = vmul.f32 %v5043, 1.442695
        %v5166 = vpow.pop %v5165
        %v5167 = vmul.f32 %v5044, 1.442695
        %v5168 = vpow.pop %v5167
        %v5169 = vmul.f32 %v5045, 1.442695
        %v5170 = vpow.pop %v5169
        %v5171 = vmul.f32 %v5046, 1.442695
        %v5172 = vpow.pop %v5171
        %v5173 = vmul.f32 %v5047, 1.442695
        %v5174 = vpow.pop %v5173
        %v5175 = vmul.f32 %v5048, 1.442695
        %v5176 = vpow.pop %v5175
        %v5177 = vadd.f32 %v5050, %v5052
        %5178 = vadd.xlane.f32.xlu0 %v5177
        %v5179 = vpop.xlane.xlu0 %5178
        %v5180 = vadd.f32 %v5054, %v5056
        %5181 = vadd.xlane.f32.xlu0 %v5180
        %v5182 = vpop.xlane.xlu0 %5181
        %v5183 = vadd.f32 %v5058, %v5060
        %5184 = vadd.xlane.f32.xlu0 %v5183
        %v5185 = vpop.xlane.xlu0 %5184
        %v5186 = vadd.f32 %v5062, %v5064
        %5187 = vadd.xlane.f32.xlu0 %v5186
        %v5188 = vpop.xlane.xlu0 %5187
        %v5189 = vadd.f32 %v5066, %v5068
        %5190 = vadd.xlane.f32.xlu0 %v5189
        %v5191 = vpop.xlane.xlu0 %5190
        %v5192 = vadd.f32 %v5070, %v5072
        %5193 = vadd.xlane.f32.xlu0 %v5192
        %v5194 = vpop.xlane.xlu0 %5193
        %v5195 = vadd.f32 %v5074, %v5076
        %5196 = vadd.xlane.f32.xlu0 %v5195
        %v5197 = vpop.xlane.xlu0 %5196
        %v5198 = vadd.f32 %v5078, %v5080
        %5199 = vadd.xlane.f32.xlu0 %v5198
        %v5200 = vpop.xlane.xlu0 %5199
        %v5201 = vadd.f32 %v5082, %v5084
        %5202 = vadd.xlane.f32.xlu0 %v5201
        %v5203 = vpop.xlane.xlu0 %5202
        %v5204 = vadd.f32 %v5086, %v5088
        %5205 = vadd.xlane.f32.xlu0 %v5204
        %v5206 = vpop.xlane.xlu0 %5205
        %v5207 = vadd.f32 %v5090, %v5092
        %5208 = vadd.xlane.f32.xlu0 %v5207
        %v5209 = vpop.xlane.xlu0 %5208
        %v5210 = vadd.f32 %v5094, %v5096
        %5211 = vadd.xlane.f32.xlu0 %v5210
        %v5212 = vpop.xlane.xlu0 %5211
        %v5213 = vadd.f32 %v5098, %v5100
        %5214 = vadd.xlane.f32.xlu0 %v5213
        %v5215 = vpop.xlane.xlu0 %5214
        %v5216 = vadd.f32 %v5102, %v5104
        %5217 = vadd.xlane.f32.xlu0 %v5216
        %v5218 = vpop.xlane.xlu0 %5217
        %v5219 = vadd.f32 %v5106, %v5108
        %5220 = vadd.xlane.f32.xlu0 %v5219
        %v5221 = vpop.xlane.xlu0 %5220
        %v5222 = vadd.f32 %v5110, %v5112
        %5223 = vadd.xlane.f32.xlu0 %v5222
        %v5224 = vpop.xlane.xlu0 %5223
        %v5225 = vadd.f32 %v5114, %v5116
        %5226 = vadd.xlane.f32.xlu0 %v5225
        %v5227 = vpop.xlane.xlu0 %5226
        %v5228 = vadd.f32 %v5118, %v5120
        %5229 = vadd.xlane.f32.xlu0 %v5228
        %v5230 = vpop.xlane.xlu0 %5229
        %v5231 = vadd.f32 %v5122, %v5124
        %5232 = vadd.xlane.f32.xlu0 %v5231
        %v5233 = vpop.xlane.xlu0 %5232
        %v5234 = vadd.f32 %v5126, %v5128
        %5235 = vadd.xlane.f32.xlu0 %v5234
        %v5236 = vpop.xlane.xlu0 %5235
        %v5237 = vadd.f32 %v5130, %v5132
        %5238 = vadd.xlane.f32.xlu0 %v5237
        %v5239 = vpop.xlane.xlu0 %5238
        %v5240 = vadd.f32 %v5134, %v5136
        %5241 = vadd.xlane.f32.xlu0 %v5240
        %v5242 = vpop.xlane.xlu0 %5241
        %v5243 = vadd.f32 %v5138, %v5140
        %5244 = vadd.xlane.f32.xlu0 %v5243
        %v5245 = vpop.xlane.xlu0 %5244
        %v5246 = vadd.f32 %v5142, %v5144
        %5247 = vadd.xlane.f32.xlu0 %v5246
        %v5248 = vpop.xlane.xlu0 %5247
        %v5249 = vadd.f32 %v5146, %v5148
        %5250 = vadd.xlane.f32.xlu0 %v5249
        %v5251 = vpop.xlane.xlu0 %5250
        %v5252 = vadd.f32 %v5150, %v5152
        %5253 = vadd.xlane.f32.xlu0 %v5252
        %v5254 = vpop.xlane.xlu0 %5253
        %v5255 = vadd.f32 %v5154, %v5156
        %5256 = vadd.xlane.f32.xlu0 %v5255
        %v5257 = vpop.xlane.xlu0 %5256
        %v5258 = vadd.f32 %v5158, %v5160
        %5259 = vadd.xlane.f32.xlu0 %v5258
        %v5260 = vpop.xlane.xlu0 %5259
        %v5261 = vadd.f32 %v5162, %v5164
        %5262 = vadd.xlane.f32.xlu0 %v5261
        %v5263 = vpop.xlane.xlu0 %5262
        %v5264 = vadd.f32 %v5166, %v5168
        %5265 = vadd.xlane.f32.xlu0 %v5264
        %v5266 = vpop.xlane.xlu0 %5265
        %v5267 = vadd.f32 %v5170, %v5172
        %5268 = vadd.xlane.f32.xlu0 %v5267
        %v5269 = vpop.xlane.xlu0 %5268
        %v5270 = vadd.f32 %v5174, %v5176
        %5271 = vadd.xlane.f32.xlu0 %v5270
        %v5272 = vpop.xlane.xlu0 %5271
        %v5273 = vrcp.pop %v5179
        %v5274 = vrcp.pop %v5182
        %v5275 = vrcp.pop %v5185
        %v5276 = vrcp.pop %v5188
        %v5277 = vrcp.pop %v5191
        %v5278 = vrcp.pop %v5194
        %v5279 = vrcp.pop %v5197
        %v5280 = vrcp.pop %v5200
        %v5281 = vrcp.pop %v5203
        %v5282 = vrcp.pop %v5206
        %v5283 = vrcp.pop %v5209
        %v5284 = vrcp.pop %v5212
        %v5285 = vrcp.pop %v5215
        %v5286 = vrcp.pop %v5218
        %v5287 = vrcp.pop %v5221
        %v5288 = vrcp.pop %v5224
        %v5289 = vrcp.pop %v5227
        %v5290 = vrcp.pop %v5230
        %v5291 = vrcp.pop %v5233
        %v5292 = vrcp.pop %v5236
        %v5293 = vrcp.pop %v5239
        %v5294 = vrcp.pop %v5242
        %v5295 = vrcp.pop %v5245
        %v5296 = vrcp.pop %v5248
        %v5297 = vrcp.pop %v5251
        %v5298 = vrcp.pop %v5254
        %v5299 = vrcp.pop %v5257
        %v5300 = vrcp.pop %v5260
        %v5301 = vrcp.pop %v5263
        %v5302 = vrcp.pop %v5266
        %v5303 = vrcp.pop %v5269
        %v5304 = vrcp.pop %v5272
        %v5305 = vmul.f32 %v5050, %v5273
        %v5306 = vmul.f32 %v5052, %v5273
        %v5307 = vmul.f32 %v5054, %v5274
        %v5308 = vmul.f32 %v5056, %v5274
        %v5309 = vmul.f32 %v5058, %v5275
        %v5310 = vmul.f32 %v5060, %v5275
        %v5311 = vmul.f32 %v5062, %v5276
        %v5312 = vmul.f32 %v5064, %v5276
        %v5313 = vmul.f32 %v5066, %v5277
        %v5314 = vmul.f32 %v5068, %v5277
        %v5315 = vmul.f32 %v5070, %v5278
        %v5316 = vmul.f32 %v5072, %v5278
        %v5317 = vmul.f32 %v5074, %v5279
        %v5318 = vmul.f32 %v5076, %v5279
        %v5319 = vmul.f32 %v5078, %v5280
        %v5320 = vmul.f32 %v5080, %v5280
        %v5321 = vmul.f32 %v5082, %v5281
        %v5322 = vmul.f32 %v5084, %v5281
        %v5323 = vmul.f32 %v5086, %v5282
        %v5324 = vmul.f32 %v5088, %v5282
        %v5325 = vmul.f32 %v5090, %v5283
        %v5326 = vmul.f32 %v5092, %v5283
        %v5327 = vmul.f32 %v5094, %v5284
        %v5328 = vmul.f32 %v5096, %v5284
        %v5329 = vmul.f32 %v5098, %v5285
        %v5330 = vmul.f32 %v5100, %v5285
        %v5331 = vmul.f32 %v5102, %v5286
        %v5332 = vmul.f32 %v5104, %v5286
        %v5333 = vmul.f32 %v5106, %v5287
        %v5334 = vmul.f32 %v5108, %v5287
        %v5335 = vmul.f32 %v5110, %v5288
        %v5336 = vmul.f32 %v5112, %v5288
        %v5337 = vmul.f32 %v5114, %v5289
        %v5338 = vmul.f32 %v5116, %v5289
        %v5339 = vmul.f32 %v5118, %v5290
        %v5340 = vmul.f32 %v5120, %v5290
        %v5341 = vmul.f32 %v5122, %v5291
        %v5342 = vmul.f32 %v5124, %v5291
        %v5343 = vmul.f32 %v5126, %v5292
        %v5344 = vmul.f32 %v5128, %v5292
        %v5345 = vmul.f32 %v5130, %v5293
        %v5346 = vmul.f32 %v5132, %v5293
        %v5347 = vmul.f32 %v5134, %v5294
        %v5348 = vmul.f32 %v5136, %v5294
        %v5349 = vmul.f32 %v5138, %v5295
        %v5350 = vmul.f32 %v5140, %v5295
        %v5351 = vmul.f32 %v5142, %v5296
        %v5352 = vmul.f32 %v5144, %v5296
        %v5353 = vmul.f32 %v5146, %v5297
        %v5354 = vmul.f32 %v5148, %v5297
        %v5355 = vmul.f32 %v5150, %v5298
        %v5356 = vmul.f32 %v5152, %v5298
        %v5357 = vmul.f32 %v5154, %v5299
        %v5358 = vmul.f32 %v5156, %v5299
        %v5359 = vmul.f32 %v5158, %v5300
        %v5360 = vmul.f32 %v5160, %v5300
        %v5361 = vmul.f32 %v5162, %v5301
        %v5362 = vmul.f32 %v5164, %v5301
        %v5363 = vmul.f32 %v5166, %v5302
        %v5364 = vmul.f32 %v5168, %v5302
        %v5365 = vmul.f32 %v5170, %v5303
        %v5366 = vmul.f32 %v5172, %v5303
        %v5367 = vmul.f32 %v5174, %v5304
        %v5368 = vmul.f32 %v5176, %v5304
        %v5369 = vpack.c.bf16 %v5307, %v5305
        %v5370 = vpack.c.bf16 %v5308, %v5306
        %v5371 = vpack.c.bf16 %v5311, %v5309
        %v5372 = vpack.c.bf16 %v5312, %v5310
        %v5373 = vpack.c.bf16 %v5315, %v5313
        %v5374 = vpack.c.bf16 %v5316, %v5314
        %v5375 = vpack.c.bf16 %v5319, %v5317
        %v5376 = vpack.c.bf16 %v5320, %v5318
        %v5377 = vpack.c.bf16 %v5323, %v5321
        %v5378 = vpack.c.bf16 %v5324, %v5322
        %v5379 = vpack.c.bf16 %v5327, %v5325
        %v5380 = vpack.c.bf16 %v5328, %v5326
        %v5381 = vpack.c.bf16 %v5331, %v5329
        %v5382 = vpack.c.bf16 %v5332, %v5330
        %v5383 = vpack.c.bf16 %v5335, %v5333
        %v5384 = vpack.c.bf16 %v5336, %v5334
        %v5385 = vpack.c.bf16 %v5339, %v5337
        %v5386 = vpack.c.bf16 %v5340, %v5338
        %v5387 = vpack.c.bf16 %v5343, %v5341
        %v5388 = vpack.c.bf16 %v5344, %v5342
        %v5389 = vpack.c.bf16 %v5347, %v5345
        %v5390 = vpack.c.bf16 %v5348, %v5346
        %v5391 = vpack.c.bf16 %v5351, %v5349
        %v5392 = vpack.c.bf16 %v5352, %v5350
        %v5393 = vpack.c.bf16 %v5355, %v5353
        %v5394 = vpack.c.bf16 %v5356, %v5354
        %v5395 = vpack.c.bf16 %v5359, %v5357
        %v5396 = vpack.c.bf16 %v5360, %v5358
        %v5397 = vpack.c.bf16 %v5363, %v5361
        %v5398 = vpack.c.bf16 %v5364, %v5362
        %v5399 = vpack.c.bf16 %v5367, %v5365
        %v5400 = vpack.c.bf16 %v5368, %v5366
        %v5433 = vunpack.c.l.b16 %v4455
        %v5434 = vunpack.c.l.b16 %v4456
        %v5435 = vunpack.c.l.b16 %v4457
        %v5436 = vunpack.c.l.b16 %v4458
        %v5437 = vunpack.c.l.b16 %v4459
        %v5438 = vunpack.c.l.b16 %v4460
        %v5439 = vunpack.c.l.b16 %v4461
        %v5440 = vunpack.c.l.b16 %v4462
        %v5441 = vunpack.c.l.b16 %v4463
        %v5442 = vunpack.c.l.b16 %v4464
        %v5443 = vunpack.c.l.b16 %v4465
        %v5444 = vunpack.c.l.b16 %v4466
        %v5445 = vunpack.c.l.b16 %v4467
        %v5446 = vunpack.c.l.b16 %v4468
        %v5447 = vunpack.c.l.b16 %v4469
        %v5448 = vunpack.c.l.b16 %v4470
        %v5449 = vunpack.c.l.b16 %v4471
        %v5450 = vunpack.c.l.b16 %v4472
        %v5451 = vunpack.c.l.b16 %v4473
        %v5452 = vunpack.c.l.b16 %v4474
        %v5453 = vunpack.c.l.b16 %v4475
        %v5454 = vunpack.c.l.b16 %v4476
        %v5455 = vunpack.c.l.b16 %v4477
        %v5456 = vunpack.c.l.b16 %v4478
        %v5457 = vunpack.c.l.b16 %v4479
        %v5458 = vunpack.c.l.b16 %v4480
        %v5459 = vunpack.c.l.b16 %v4481
        %v5460 = vunpack.c.l.b16 %v4482
        %v5461 = vunpack.c.l.b16 %v4483
        %v5462 = vunpack.c.l.b16 %v4484
        %v5463 = vunpack.c.l.b16 %v4485
        %v5464 = vunpack.c.l.b16 %v4486
        %v5465 = vpack.c.b16 %v5434, %v5433
        %v5466 = vpack.c.b16 %v5436, %v5435
        %v5467 = vpack.c.b16 %v5438, %v5437
        %v5468 = vpack.c.b16 %v5440, %v5439
        %v5469 = vpack.c.b16 %v5442, %v5441
        %v5470 = vpack.c.b16 %v5444, %v5443
        %v5471 = vpack.c.b16 %v5446, %v5445
        %v5472 = vpack.c.b16 %v5448, %v5447
        %v5473 = vpack.c.b16 %v5450, %v5449
        %v5474 = vpack.c.b16 %v5452, %v5451
        %v5475 = vpack.c.b16 %v5454, %v5453
        %v5476 = vpack.c.b16 %v5456, %v5455
        %v5477 = vpack.c.b16 %v5458, %v5457
        %v5478 = vpack.c.b16 %v5460, %v5459
        %v5479 = vpack.c.b16 %v5462, %v5461
        %v5480 = vpack.c.b16 %v5464, %v5463
        %5497 = vmatpush.bf16.msra.mxu0 %v5472
        %5498 = vmatpush.bf16.msra.mxu0 %v5471
        %5499 = vmatpush.bf16.msra.mxu0 %v5470
        %5500 = vmatpush.bf16.msra.mxu0 %v5469
        %5501 = vmatpush.bf16.msra.mxu0 %v5468
        %5502 = vmatpush.bf16.msra.mxu0 %v5467
        %5503 = vmatpush.bf16.msra.mxu0 %v5466
        %5504 = vmatpush.bf16.msra.mxu0 %v5465
        %5505 = vmatmul.bf16.gmra.mxu0 %v5369
        %v5506 = vpop.f32.mrf.mxu0
        %v5507 = vadd.f32 0.0, %v5506
        %v5508 = vpop.f32.mrf.mxu0
        %v5509 = vadd.f32 0.0, %v5508
        %5510 = vmatmul.bf16.gmra.mxu0 %v5371
        %v5511 = vpop.f32.mrf.mxu0
        %v5512 = vadd.f32 0.0, %v5511
        %v5513 = vpop.f32.mrf.mxu0
        %v5514 = vadd.f32 0.0, %v5513
        %5515 = vmatmul.bf16.gmra.mxu0 %v5373
        %v5516 = vpop.f32.mrf.mxu0
        %v5517 = vadd.f32 0.0, %v5516
        %v5518 = vpop.f32.mrf.mxu0
        %v5519 = vadd.f32 0.0, %v5518
        %5520 = vmatmul.bf16.gmra.mxu0 %v5375
        %v5521 = vpop.f32.mrf.mxu0
        %v5522 = vadd.f32 0.0, %v5521
        %v5523 = vpop.f32.mrf.mxu0
        %v5524 = vadd.f32 0.0, %v5523
        %5525 = vmatmul.bf16.gmra.mxu0 %v5377
        %v5526 = vpop.f32.mrf.mxu0
        %v5527 = vadd.f32 0.0, %v5526
        %v5528 = vpop.f32.mrf.mxu0
        %v5529 = vadd.f32 0.0, %v5528
        %5530 = vmatmul.bf16.gmra.mxu0 %v5379
        %v5531 = vpop.f32.mrf.mxu0
        %v5532 = vadd.f32 0.0, %v5531
        %v5533 = vpop.f32.mrf.mxu0
        %v5534 = vadd.f32 0.0, %v5533
        %5535 = vmatmul.bf16.gmra.mxu0 %v5381
        %v5536 = vpop.f32.mrf.mxu0
        %v5537 = vadd.f32 0.0, %v5536
        %v5538 = vpop.f32.mrf.mxu0
        %v5539 = vadd.f32 0.0, %v5538
        %5540 = vmatmul.bf16.gmra.mxu0 %v5383
        %v5541 = vpop.f32.mrf.mxu0
        %v5542 = vadd.f32 0.0, %v5541
        %v5543 = vpop.f32.mrf.mxu0
        %v5544 = vadd.f32 0.0, %v5543
        %5545 = vmatmul.bf16.gmra.mxu0 %v5385
        %v5546 = vpop.f32.mrf.mxu0
        %v5547 = vadd.f32 0.0, %v5546
        %v5548 = vpop.f32.mrf.mxu0
        %v5549 = vadd.f32 0.0, %v5548
        %5550 = vmatmul.bf16.gmra.mxu0 %v5387
        %v5551 = vpop.f32.mrf.mxu0
        %v5552 = vadd.f32 0.0, %v5551
        %v5553 = vpop.f32.mrf.mxu0
        %v5554 = vadd.f32 0.0, %v5553
        %5555 = vmatmul.bf16.gmra.mxu0 %v5389
        %v5556 = vpop.f32.mrf.mxu0
        %v5557 = vadd.f32 0.0, %v5556
        %v5558 = vpop.f32.mrf.mxu0
        %v5559 = vadd.f32 0.0, %v5558
        %5560 = vmatmul.bf16.gmra.mxu0 %v5391
        %v5561 = vpop.f32.mrf.mxu0
        %v5562 = vadd.f32 0.0, %v5561
        %v5563 = vpop.f32.mrf.mxu0
        %v5564 = vadd.f32 0.0, %v5563
        %5565 = vmatmul.bf16.gmra.mxu0 %v5393
        %v5566 = vpop.f32.mrf.mxu0
        %v5567 = vadd.f32 0.0, %v5566
        %v5568 = vpop.f32.mrf.mxu0
        %v5569 = vadd.f32 0.0, %v5568
        %5570 = vmatmul.bf16.gmra.mxu0 %v5395
        %v5571 = vpop.f32.mrf.mxu0
        %v5572 = vadd.f32 0.0, %v5571
        %v5573 = vpop.f32.mrf.mxu0
        %v5574 = vadd.f32 0.0, %v5573
        %5575 = vmatmul.bf16.gmra.mxu0 %v5397
        %v5576 = vpop.f32.mrf.mxu0
        %v5577 = vadd.f32 0.0, %v5576
        %v5578 = vpop.f32.mrf.mxu0
        %v5579 = vadd.f32 0.0, %v5578
        %5580 = vmatmul.bf16.gmra.mxu0 %v5399
        %v5581 = vpop.f32.mrf.mxu0
        %v5582 = vadd.f32 0.0, %v5581
        %v5583 = vpop.f32.mrf.mxu0
        %v5584 = vadd.f32 0.0, %v5583
        %5585 = vdwg.mxu0
        %5586 = vmatpush.bf16.msra.mxu0 %v5480
        %5587 = vmatpush.bf16.msra.mxu0 %v5479
        %5588 = vmatpush.bf16.msra.mxu0 %v5478
        %5589 = vmatpush.bf16.msra.mxu0 %v5477
        %5590 = vmatpush.bf16.msra.mxu0 %v5476
        %5591 = vmatpush.bf16.msra.mxu0 %v5475
        %5592 = vmatpush.bf16.msra.mxu0 %v5474
        %5593 = vmatpush.bf16.msra.mxu0 %v5473
        %5594 = vmatmul.bf16.gmra.mxu0 %v5370
        %v5595 = vpop.f32.mrf.mxu0
        %v5596 = vadd.f32 %v5507, %v5595
        %v5597 = vpop.f32.mrf.mxu0
        %v5598 = vadd.f32 %v5509, %v5597
        %5599 = vmatmul.bf16.gmra.mxu0 %v5372
        %v5600 = vpop.f32.mrf.mxu0
        %v5601 = vadd.f32 %v5512, %v5600
        %v5602 = vpop.f32.mrf.mxu0
        %v5603 = vadd.f32 %v5514, %v5602
        %5604 = vmatmul.bf16.gmra.mxu0 %v5374
        %v5605 = vpop.f32.mrf.mxu0
        %v5606 = vadd.f32 %v5517, %v5605
        %v5607 = vpop.f32.mrf.mxu0
        %v5608 = vadd.f32 %v5519, %v5607
        %5609 = vmatmul.bf16.gmra.mxu0 %v5376
        %v5610 = vpop.f32.mrf.mxu0
        %v5611 = vadd.f32 %v5522, %v5610
        %v5612 = vpop.f32.mrf.mxu0
        %v5613 = vadd.f32 %v5524, %v5612
        %5614 = vmatmul.bf16.gmra.mxu0 %v5378
        %v5615 = vpop.f32.mrf.mxu0
        %v5616 = vadd.f32 %v5527, %v5615
        %v5617 = vpop.f32.mrf.mxu0
        %v5618 = vadd.f32 %v5529, %v5617
        %5619 = vmatmul.bf16.gmra.mxu0 %v5380
        %v5620 = vpop.f32.mrf.mxu0
        %v5621 = vadd.f32 %v5532, %v5620
        %v5622 = vpop.f32.mrf.mxu0
        %v5623 = vadd.f32 %v5534, %v5622
        %5624 = vmatmul.bf16.gmra.mxu0 %v5382
        %v5625 = vpop.f32.mrf.mxu0
        %v5626 = vadd.f32 %v5537, %v5625
        %v5627 = vpop.f32.mrf.mxu0
        %v5628 = vadd.f32 %v5539, %v5627
        %5629 = vmatmul.bf16.gmra.mxu0 %v5384
        %v5630 = vpop.f32.mrf.mxu0
        %v5631 = vadd.f32 %v5542, %v5630
        %v5632 = vpop.f32.mrf.mxu0
        %v5633 = vadd.f32 %v5544, %v5632
        %5634 = vmatmul.bf16.gmra.mxu0 %v5386
        %v5635 = vpop.f32.mrf.mxu0
        %v5636 = vadd.f32 %v5547, %v5635
        %v5637 = vpop.f32.mrf.mxu0
        %v5638 = vadd.f32 %v5549, %v5637
        %5639 = vmatmul.bf16.gmra.mxu0 %v5388
        %v5640 = vpop.f32.mrf.mxu0
        %v5641 = vadd.f32 %v5552, %v5640
        %v5642 = vpop.f32.mrf.mxu0
        %v5643 = vadd.f32 %v5554, %v5642
        %5644 = vmatmul.bf16.gmra.mxu0 %v5390
        %v5645 = vpop.f32.mrf.mxu0
        %v5646 = vadd.f32 %v5557, %v5645
        %v5647 = vpop.f32.mrf.mxu0
        %v5648 = vadd.f32 %v5559, %v5647
        %5649 = vmatmul.bf16.gmra.mxu0 %v5392
        %v5650 = vpop.f32.mrf.mxu0
        %v5651 = vadd.f32 %v5562, %v5650
        %v5652 = vpop.f32.mrf.mxu0
        %v5653 = vadd.f32 %v5564, %v5652
        %5654 = vmatmul.bf16.gmra.mxu0 %v5394
        %v5655 = vpop.f32.mrf.mxu0
        %v5656 = vadd.f32 %v5567, %v5655
        %v5657 = vpop.f32.mrf.mxu0
        %v5658 = vadd.f32 %v5569, %v5657
        %5659 = vmatmul.bf16.gmra.mxu0 %v5396
        %v5660 = vpop.f32.mrf.mxu0
        %v5661 = vadd.f32 %v5572, %v5660
        %v5662 = vpop.f32.mrf.mxu0
        %v5663 = vadd.f32 %v5574, %v5662
        %5664 = vmatmul.bf16.gmra.mxu0 %v5398
        %v5665 = vpop.f32.mrf.mxu0
        %v5666 = vadd.f32 %v5577, %v5665
        %v5667 = vpop.f32.mrf.mxu0
        %v5668 = vadd.f32 %v5579, %v5667
        %5669 = vmatmul.bf16.gmra.mxu0 %v5400
        %v5670 = vpop.f32.mrf.mxu0
        %v5671 = vadd.f32 %v5582, %v5670
        %v5672 = vpop.f32.mrf.mxu0
        %v5673 = vadd.f32 %v5584, %v5672
        %5674 = vdwg.mxu0
        %v5675 = vadd.f32 %v4338, %v5596
        %v5676 = vadd.f32 %v4340, %v5598
        %v5677 = vadd.f32 %v4343, %v5601
        %v5678 = vadd.f32 %v4345, %v5603
        %v5679 = vadd.f32 %v4348, %v5606
        %v5680 = vadd.f32 %v4350, %v5608
        %v5681 = vadd.f32 %v4353, %v5611
        %v5682 = vadd.f32 %v4355, %v5613
        %v5683 = vadd.f32 %v4358, %v5616
        %v5684 = vadd.f32 %v4360, %v5618
        %v5685 = vadd.f32 %v4363, %v5621
        %v5686 = vadd.f32 %v4365, %v5623
        %v5687 = vadd.f32 %v4368, %v5626
        %v5688 = vadd.f32 %v4370, %v5628
        %v5689 = vadd.f32 %v4373, %v5631
        %v5690 = vadd.f32 %v4375, %v5633
        %v5691 = vadd.f32 %v4378, %v5636
        %v5692 = vadd.f32 %v4380, %v5638
        %v5693 = vadd.f32 %v4383, %v5641
        %v5694 = vadd.f32 %v4385, %v5643
        %v5695 = vadd.f32 %v4388, %v5646
        %v5696 = vadd.f32 %v4390, %v5648
        %v5697 = vadd.f32 %v4393, %v5651
        %v5698 = vadd.f32 %v4395, %v5653
        %v5699 = vadd.f32 %v4398, %v5656
        %v5700 = vadd.f32 %v4400, %v5658
        %v5701 = vadd.f32 %v4403, %v5661
        %v5702 = vadd.f32 %v4405, %v5663
        %v5703 = vadd.f32 %v4408, %v5666
        %v5704 = vadd.f32 %v4410, %v5668
        %v5705 = vadd.f32 %v4413, %v5671
        %v5706 = vadd.f32 %v4415, %v5673
        %vm5707 = vcmp.ge.s32.totalorder %v1804, 96
        %vm5708 = vcmp.lt.s32.totalorder %v1804, 128
        %vm5709 = vmand %vm5707, %vm5708
        %v5710 = vsel %vm5709, 1, 0
        %vm5711 = vcmp.eq.s32.totalorder %v5710, 1
        %vm5712 = vmpackc.low %vm5711, %vm5711
        %v5713 = vsel %vm5712, %v1675, 0
        %v5714 = vsel %vm5712, %v1677, 0
        %v5715 = vsel %vm5712, %v1679, 0
        %v5716 = vsel %vm5712, %v1681, 0
        %v5717 = vsel %vm5712, %v1683, 0
        %v5718 = vsel %vm5712, %v1685, 0
        %v5719 = vsel %vm5712, %v1687, 0
        %v5720 = vsel %vm5712, %v1689, 0
        %v5721 = vsel %vm5712, %v1691, 0
        %v5722 = vsel %vm5712, %v1693, 0
        %v5723 = vsel %vm5712, %v1695, 0
        %v5724 = vsel %vm5712, %v1697, 0
        %v5725 = vsel %vm5712, %v1699, 0
        %v5726 = vsel %vm5712, %v1701, 0
        %v5727 = vsel %vm5712, %v1703, 0
        %v5728 = vsel %vm5712, %v1705, 0
        %v5729 = vsel %vm5712, %v1707, 0
        %v5730 = vsel %vm5712, %v1709, 0
        %v5731 = vsel %vm5712, %v1711, 0
        %v5732 = vsel %vm5712, %v1713, 0
        %v5733 = vsel %vm5712, %v1715, 0
        %v5734 = vsel %vm5712, %v1717, 0
        %v5735 = vsel %vm5712, %v1719, 0
        %v5736 = vsel %vm5712, %v1721, 0
        %v5737 = vsel %vm5712, %v1723, 0
        %v5738 = vsel %vm5712, %v1725, 0
        %v5739 = vsel %vm5712, %v1727, 0
        %v5740 = vsel %vm5712, %v1729, 0
        %v5741 = vsel %vm5712, %v1731, 0
        %v5742 = vsel %vm5712, %v1733, 0
        %v5743 = vsel %vm5712, %v1735, 0
        %v5744 = vsel %vm5712, %v1737, 0
        %v5745 = vsel %vm5712, %v1676, 0
        %v5746 = vsel %vm5712, %v1678, 0
        %v5747 = vsel %vm5712, %v1680, 0
        %v5748 = vsel %vm5712, %v1682, 0
        %v5749 = vsel %vm5712, %v1684, 0
        %v5750 = vsel %vm5712, %v1686, 0
        %v5751 = vsel %vm5712, %v1688, 0
        %v5752 = vsel %vm5712, %v1690, 0
        %v5753 = vsel %vm5712, %v1692, 0
        %v5754 = vsel %vm5712, %v1694, 0
        %v5755 = vsel %vm5712, %v1696, 0
        %v5756 = vsel %vm5712, %v1698, 0
        %v5757 = vsel %vm5712, %v1700, 0
        %v5758 = vsel %vm5712, %v1702, 0
        %v5759 = vsel %vm5712, %v1704, 0
        %v5760 = vsel %vm5712, %v1706, 0
        %v5761 = vsel %vm5712, %v1708, 0
        %v5762 = vsel %vm5712, %v1710, 0
        %v5763 = vsel %vm5712, %v1712, 0
        %v5764 = vsel %vm5712, %v1714, 0
        %v5765 = vsel %vm5712, %v1716, 0
        %v5766 = vsel %vm5712, %v1718, 0
        %v5767 = vsel %vm5712, %v1720, 0
        %v5768 = vsel %vm5712, %v1722, 0
        %v5769 = vsel %vm5712, %v1724, 0
        %v5770 = vsel %vm5712, %v1726, 0
        %v5771 = vsel %vm5712, %v1728, 0
        %v5772 = vsel %vm5712, %v1730, 0
        %v5773 = vsel %vm5712, %v1732, 0
        %v5774 = vsel %vm5712, %v1734, 0
        %v5775 = vsel %vm5712, %v1736, 0
        %v5776 = vsel %vm5712, %v1738, 0
        %v5809 = vunpack.c.l.b16 %v5713
        %v5810 = vunpack.c.l.b16 %v5714
        %v5811 = vunpack.c.l.b16 %v5715
        %v5812 = vunpack.c.l.b16 %v5716
        %v5813 = vunpack.c.l.b16 %v5717
        %v5814 = vunpack.c.l.b16 %v5718
        %v5815 = vunpack.c.l.b16 %v5719
        %v5816 = vunpack.c.l.b16 %v5720
        %v5817 = vunpack.c.l.b16 %v5721
        %v5818 = vunpack.c.l.b16 %v5722
        %v5819 = vunpack.c.l.b16 %v5723
        %v5820 = vunpack.c.l.b16 %v5724
        %v5821 = vunpack.c.l.b16 %v5725
        %v5822 = vunpack.c.l.b16 %v5726
        %v5823 = vunpack.c.l.b16 %v5727
        %v5824 = vunpack.c.l.b16 %v5728
        %v5825 = vunpack.c.l.b16 %v5729
        %v5826 = vunpack.c.l.b16 %v5730
        %v5827 = vunpack.c.l.b16 %v5731
        %v5828 = vunpack.c.l.b16 %v5732
        %v5829 = vunpack.c.l.b16 %v5733
        %v5830 = vunpack.c.l.b16 %v5734
        %v5831 = vunpack.c.l.b16 %v5735
        %v5832 = vunpack.c.l.b16 %v5736
        %v5833 = vunpack.c.l.b16 %v5737
        %v5834 = vunpack.c.l.b16 %v5738
        %v5835 = vunpack.c.l.b16 %v5739
        %v5836 = vunpack.c.l.b16 %v5740
        %v5837 = vunpack.c.l.b16 %v5741
        %v5838 = vunpack.c.l.b16 %v5742
        %v5839 = vunpack.c.l.b16 %v5743
        %v5840 = vunpack.c.l.b16 %v5744
        %v5841 = vpack.c.b16 %v5810, %v5809
        %v5842 = vpack.c.b16 %v5812, %v5811
        %v5843 = vpack.c.b16 %v5814, %v5813
        %v5844 = vpack.c.b16 %v5816, %v5815
        %v5845 = vpack.c.b16 %v5818, %v5817
        %v5846 = vpack.c.b16 %v5820, %v5819
        %v5847 = vpack.c.b16 %v5822, %v5821
        %v5848 = vpack.c.b16 %v5824, %v5823
        %v5849 = vpack.c.b16 %v5826, %v5825
        %v5850 = vpack.c.b16 %v5828, %v5827
        %v5851 = vpack.c.b16 %v5830, %v5829
        %v5852 = vpack.c.b16 %v5832, %v5831
        %v5853 = vpack.c.b16 %v5834, %v5833
        %v5854 = vpack.c.b16 %v5836, %v5835
        %v5855 = vpack.c.b16 %v5838, %v5837
        %v5856 = vpack.c.b16 %v5840, %v5839
        %5873 = vmatpush.bf16.xpose.msra.mxu0 %v2042
        %5874 = vmatpush.bf16.xpose.msra.mxu0 %v2041
        %5875 = vmatpush.bf16.xpose.msra.mxu0 %v2040
        %5876 = vmatpush.bf16.xpose.msra.mxu0 %v2039
        %5877 = vmatpush.bf16.xpose.msra.mxu0 %v2038
        %5878 = vmatpush.bf16.xpose.msra.mxu0 %v2037
        %5879 = vmatpush.bf16.xpose.msra.mxu0 %v2036
        %5880 = vmatpush.bf16.xpose.msra.mxu0 %v2035
        %5881 = vmatmul.bf16.gmra.mxu0 %v5841
        %v5882 = vpop.f32.mrf.mxu0
        %v5883 = vadd.f32 0.0, %v5882
        %v5884 = vpop.f32.mrf.mxu0
        %v5885 = vadd.f32 0.0, %v5884
        %5886 = vmatmul.bf16.gmra.mxu0 %v5842
        %v5887 = vpop.f32.mrf.mxu0
        %v5888 = vadd.f32 0.0, %v5887
        %v5889 = vpop.f32.mrf.mxu0
        %v5890 = vadd.f32 0.0, %v5889
        %5891 = vmatmul.bf16.gmra.mxu0 %v5843
        %v5892 = vpop.f32.mrf.mxu0
        %v5893 = vadd.f32 0.0, %v5892
        %v5894 = vpop.f32.mrf.mxu0
        %v5895 = vadd.f32 0.0, %v5894
        %5896 = vmatmul.bf16.gmra.mxu0 %v5844
        %v5897 = vpop.f32.mrf.mxu0
        %v5898 = vadd.f32 0.0, %v5897
        %v5899 = vpop.f32.mrf.mxu0
        %v5900 = vadd.f32 0.0, %v5899
        %5901 = vmatmul.bf16.gmra.mxu0 %v5845
        %v5902 = vpop.f32.mrf.mxu0
        %v5903 = vadd.f32 0.0, %v5902
        %v5904 = vpop.f32.mrf.mxu0
        %v5905 = vadd.f32 0.0, %v5904
        %5906 = vmatmul.bf16.gmra.mxu0 %v5846
        %v5907 = vpop.f32.mrf.mxu0
        %v5908 = vadd.f32 0.0, %v5907
        %v5909 = vpop.f32.mrf.mxu0
        %v5910 = vadd.f32 0.0, %v5909
        %5911 = vmatmul.bf16.gmra.mxu0 %v5847
        %v5912 = vpop.f32.mrf.mxu0
        %v5913 = vadd.f32 0.0, %v5912
        %v5914 = vpop.f32.mrf.mxu0
        %v5915 = vadd.f32 0.0, %v5914
        %5916 = vmatmul.bf16.gmra.mxu0 %v5848
        %v5917 = vpop.f32.mrf.mxu0
        %v5918 = vadd.f32 0.0, %v5917
        %v5919 = vpop.f32.mrf.mxu0
        %v5920 = vadd.f32 0.0, %v5919
        %5921 = vmatmul.bf16.gmra.mxu0 %v5849
        %v5922 = vpop.f32.mrf.mxu0
        %v5923 = vadd.f32 0.0, %v5922
        %v5924 = vpop.f32.mrf.mxu0
        %v5925 = vadd.f32 0.0, %v5924
        %5926 = vmatmul.bf16.gmra.mxu0 %v5850
        %v5927 = vpop.f32.mrf.mxu0
        %v5928 = vadd.f32 0.0, %v5927
        %v5929 = vpop.f32.mrf.mxu0
        %v5930 = vadd.f32 0.0, %v5929
        %5931 = vmatmul.bf16.gmra.mxu0 %v5851
        %v5932 = vpop.f32.mrf.mxu0
        %v5933 = vadd.f32 0.0, %v5932
        %v5934 = vpop.f32.mrf.mxu0
        %v5935 = vadd.f32 0.0, %v5934
        %5936 = vmatmul.bf16.gmra.mxu0 %v5852
        %v5937 = vpop.f32.mrf.mxu0
        %v5938 = vadd.f32 0.0, %v5937
        %v5939 = vpop.f32.mrf.mxu0
        %v5940 = vadd.f32 0.0, %v5939
        %5941 = vmatmul.bf16.gmra.mxu0 %v5853
        %v5942 = vpop.f32.mrf.mxu0
        %v5943 = vadd.f32 0.0, %v5942
        %v5944 = vpop.f32.mrf.mxu0
        %v5945 = vadd.f32 0.0, %v5944
        %5946 = vmatmul.bf16.gmra.mxu0 %v5854
        %v5947 = vpop.f32.mrf.mxu0
        %v5948 = vadd.f32 0.0, %v5947
        %v5949 = vpop.f32.mrf.mxu0
        %v5950 = vadd.f32 0.0, %v5949
        %5951 = vmatmul.bf16.gmra.mxu0 %v5855
        %v5952 = vpop.f32.mrf.mxu0
        %v5953 = vadd.f32 0.0, %v5952
        %v5954 = vpop.f32.mrf.mxu0
        %v5955 = vadd.f32 0.0, %v5954
        %5956 = vmatmul.bf16.gmra.mxu0 %v5856
        %v5957 = vpop.f32.mrf.mxu0
        %v5958 = vadd.f32 0.0, %v5957
        %v5959 = vpop.f32.mrf.mxu0
        %v5960 = vadd.f32 0.0, %v5959
        %5961 = vdwg.mxu0
        %5962 = vmatpush.bf16.xpose.msra.mxu0 %v2050
        %5963 = vmatpush.bf16.xpose.msra.mxu0 %v2049
        %5964 = vmatpush.bf16.xpose.msra.mxu0 %v2048
        %5965 = vmatpush.bf16.xpose.msra.mxu0 %v2047
        %5966 = vmatpush.bf16.xpose.msra.mxu0 %v2046
        %5967 = vmatpush.bf16.xpose.msra.mxu0 %v2045
        %5968 = vmatpush.bf16.xpose.msra.mxu0 %v2044
        %5969 = vmatpush.bf16.xpose.msra.mxu0 %v2043
        %5970 = vmatmul.bf16.gmra.mxu0 %v5841
        %v5971 = vpop.f32.mrf.mxu0
        %v5972 = vadd.f32 0.0, %v5971
        %v5973 = vpop.f32.mrf.mxu0
        %v5974 = vadd.f32 0.0, %v5973
        %5975 = vmatmul.bf16.gmra.mxu0 %v5842
        %v5976 = vpop.f32.mrf.mxu0
        %v5977 = vadd.f32 0.0, %v5976
        %v5978 = vpop.f32.mrf.mxu0
        %v5979 = vadd.f32 0.0, %v5978
        %5980 = vmatmul.bf16.gmra.mxu0 %v5843
        %v5981 = vpop.f32.mrf.mxu0
        %v5982 = vadd.f32 0.0, %v5981
        %v5983 = vpop.f32.mrf.mxu0
        %v5984 = vadd.f32 0.0, %v5983
        %5985 = vmatmul.bf16.gmra.mxu0 %v5844
        %v5986 = vpop.f32.mrf.mxu0
        %v5987 = vadd.f32 0.0, %v5986
        %v5988 = vpop.f32.mrf.mxu0
        %v5989 = vadd.f32 0.0, %v5988
        %5990 = vmatmul.bf16.gmra.mxu0 %v5845
        %v5991 = vpop.f32.mrf.mxu0
        %v5992 = vadd.f32 0.0, %v5991
        %v5993 = vpop.f32.mrf.mxu0
        %v5994 = vadd.f32 0.0, %v5993
        %5995 = vmatmul.bf16.gmra.mxu0 %v5846
        %v5996 = vpop.f32.mrf.mxu0
        %v5997 = vadd.f32 0.0, %v5996
        %v5998 = vpop.f32.mrf.mxu0
        %v5999 = vadd.f32 0.0, %v5998
        %6000 = vmatmul.bf16.gmra.mxu0 %v5847
        %v6001 = vpop.f32.mrf.mxu0
        %v6002 = vadd.f32 0.0, %v6001
        %v6003 = vpop.f32.mrf.mxu0
        %v6004 = vadd.f32 0.0, %v6003
        %6005 = vmatmul.bf16.gmra.mxu0 %v5848
        %v6006 = vpop.f32.mrf.mxu0
        %v6007 = vadd.f32 0.0, %v6006
        %v6008 = vpop.f32.mrf.mxu0
        %v6009 = vadd.f32 0.0, %v6008
        %6010 = vmatmul.bf16.gmra.mxu0 %v5849
        %v6011 = vpop.f32.mrf.mxu0
        %v6012 = vadd.f32 0.0, %v6011
        %v6013 = vpop.f32.mrf.mxu0
        %v6014 = vadd.f32 0.0, %v6013
        %6015 = vmatmul.bf16.gmra.mxu0 %v5850
        %v6016 = vpop.f32.mrf.mxu0
        %v6017 = vadd.f32 0.0, %v6016
        %v6018 = vpop.f32.mrf.mxu0
        %v6019 = vadd.f32 0.0, %v6018
        %6020 = vmatmul.bf16.gmra.mxu0 %v5851
        %v6021 = vpop.f32.mrf.mxu0
        %v6022 = vadd.f32 0.0, %v6021
        %v6023 = vpop.f32.mrf.mxu0
        %v6024 = vadd.f32 0.0, %v6023
        %6025 = vmatmul.bf16.gmra.mxu0 %v5852
        %v6026 = vpop.f32.mrf.mxu0
        %v6027 = vadd.f32 0.0, %v6026
        %v6028 = vpop.f32.mrf.mxu0
        %v6029 = vadd.f32 0.0, %v6028
        %6030 = vmatmul.bf16.gmra.mxu0 %v5853
        %v6031 = vpop.f32.mrf.mxu0
        %v6032 = vadd.f32 0.0, %v6031
        %v6033 = vpop.f32.mrf.mxu0
        %v6034 = vadd.f32 0.0, %v6033
        %6035 = vmatmul.bf16.gmra.mxu0 %v5854
        %v6036 = vpop.f32.mrf.mxu0
        %v6037 = vadd.f32 0.0, %v6036
        %v6038 = vpop.f32.mrf.mxu0
        %v6039 = vadd.f32 0.0, %v6038
        %6040 = vmatmul.bf16.gmra.mxu0 %v5855
        %v6041 = vpop.f32.mrf.mxu0
        %v6042 = vadd.f32 0.0, %v6041
        %v6043 = vpop.f32.mrf.mxu0
        %v6044 = vadd.f32 0.0, %v6043
        %6045 = vmatmul.bf16.gmra.mxu0 %v5856
        %v6046 = vpop.f32.mrf.mxu0
        %v6047 = vadd.f32 0.0, %v6046
        %v6048 = vpop.f32.mrf.mxu0
        %v6049 = vadd.f32 0.0, %v6048
        %6050 = vdwg.mxu0
        %v6051 = vmul.f32 %v5883, 0.17677669
        %v6052 = vmul.f32 %v5972, 0.17677669
        %v6053 = vmul.f32 %v5885, 0.17677669
        %v6054 = vmul.f32 %v5974, 0.17677669
        %v6055 = vmul.f32 %v5888, 0.17677669
        %v6056 = vmul.f32 %v5977, 0.17677669
        %v6057 = vmul.f32 %v5890, 0.17677669
        %v6058 = vmul.f32 %v5979, 0.17677669
        %v6059 = vmul.f32 %v5893, 0.17677669
        %v6060 = vmul.f32 %v5982, 0.17677669
        %v6061 = vmul.f32 %v5895, 0.17677669
        %v6062 = vmul.f32 %v5984, 0.17677669
        %v6063 = vmul.f32 %v5898, 0.17677669
        %v6064 = vmul.f32 %v5987, 0.17677669
        %v6065 = vmul.f32 %v5900, 0.17677669
        %v6066 = vmul.f32 %v5989, 0.17677669
        %v6067 = vmul.f32 %v5903, 0.17677669
        %v6068 = vmul.f32 %v5992, 0.17677669
        %v6069 = vmul.f32 %v5905, 0.17677669
        %v6070 = vmul.f32 %v5994, 0.17677669
        %v6071 = vmul.f32 %v5908, 0.17677669
        %v6072 = vmul.f32 %v5997, 0.17677669
        %v6073 = vmul.f32 %v5910, 0.17677669
        %v6074 = vmul.f32 %v5999, 0.17677669
        %v6075 = vmul.f32 %v5913, 0.17677669
        %v6076 = vmul.f32 %v6002, 0.17677669
        %v6077 = vmul.f32 %v5915, 0.17677669
        %v6078 = vmul.f32 %v6004, 0.17677669
        %v6079 = vmul.f32 %v5918, 0.17677669
        %v6080 = vmul.f32 %v6007, 0.17677669
        %v6081 = vmul.f32 %v5920, 0.17677669
        %v6082 = vmul.f32 %v6009, 0.17677669
        %v6083 = vmul.f32 %v5923, 0.17677669
        %v6084 = vmul.f32 %v6012, 0.17677669
        %v6085 = vmul.f32 %v5925, 0.17677669
        %v6086 = vmul.f32 %v6014, 0.17677669
        %v6087 = vmul.f32 %v5928, 0.17677669
        %v6088 = vmul.f32 %v6017, 0.17677669
        %v6089 = vmul.f32 %v5930, 0.17677669
        %v6090 = vmul.f32 %v6019, 0.17677669
        %v6091 = vmul.f32 %v5933, 0.17677669
        %v6092 = vmul.f32 %v6022, 0.17677669
        %v6093 = vmul.f32 %v5935, 0.17677669
        %v6094 = vmul.f32 %v6024, 0.17677669
        %v6095 = vmul.f32 %v5938, 0.17677669
        %v6096 = vmul.f32 %v6027, 0.17677669
        %v6097 = vmul.f32 %v5940, 0.17677669
        %v6098 = vmul.f32 %v6029, 0.17677669
        %v6099 = vmul.f32 %v5943, 0.17677669
        %v6100 = vmul.f32 %v6032, 0.17677669
        %v6101 = vmul.f32 %v5945, 0.17677669
        %v6102 = vmul.f32 %v6034, 0.17677669
        %v6103 = vmul.f32 %v5948, 0.17677669
        %v6104 = vmul.f32 %v6037, 0.17677669
        %v6105 = vmul.f32 %v5950, 0.17677669
        %v6106 = vmul.f32 %v6039, 0.17677669
        %v6107 = vmul.f32 %v5953, 0.17677669
        %v6108 = vmul.f32 %v6042, 0.17677669
        %v6109 = vmul.f32 %v5955, 0.17677669
        %v6110 = vmul.f32 %v6044, 0.17677669
        %v6111 = vmul.f32 %v5958, 0.17677669
        %v6112 = vmul.f32 %v6047, 0.17677669
        %v6113 = vmul.f32 %v5960, 0.17677669
        %v6114 = vmul.f32 %v6049, 0.17677669
        %v6115 = vadd.f32 %v6051, %v1739
        %v6116 = vadd.f32 %v6052, %v1740
        %v6117 = vadd.f32 %v6053, %v1741
        %v6118 = vadd.f32 %v6054, %v1742
        %v6119 = vadd.f32 %v6055, %v1743
        %v6120 = vadd.f32 %v6056, %v1744
        %v6121 = vadd.f32 %v6057, %v1745
        %v6122 = vadd.f32 %v6058, %v1746
        %v6123 = vadd.f32 %v6059, %v1747
        %v6124 = vadd.f32 %v6060, %v1748
        %v6125 = vadd.f32 %v6061, %v1749
        %v6126 = vadd.f32 %v6062, %v1750
        %v6127 = vadd.f32 %v6063, %v1751
        %v6128 = vadd.f32 %v6064, %v1752
        %v6129 = vadd.f32 %v6065, %v1753
        %v6130 = vadd.f32 %v6066, %v1754
        %v6131 = vadd.f32 %v6067, %v1755
        %v6132 = vadd.f32 %v6068, %v1756
        %v6133 = vadd.f32 %v6069, %v1757
        %v6134 = vadd.f32 %v6070, %v1758
        %v6135 = vadd.f32 %v6071, %v1759
        %v6136 = vadd.f32 %v6072, %v1760
        %v6137 = vadd.f32 %v6073, %v1761
        %v6138 = vadd.f32 %v6074, %v1762
        %v6139 = vadd.f32 %v6075, %v1763
        %v6140 = vadd.f32 %v6076, %v1764
        %v6141 = vadd.f32 %v6077, %v1765
        %v6142 = vadd.f32 %v6078, %v1766
        %v6143 = vadd.f32 %v6079, %v1767
        %v6144 = vadd.f32 %v6080, %v1768
        %v6145 = vadd.f32 %v6081, %v1769
        %v6146 = vadd.f32 %v6082, %v1770
        %v6147 = vadd.f32 %v6083, %v1771
        %v6148 = vadd.f32 %v6084, %v1772
        %v6149 = vadd.f32 %v6085, %v1773
        %v6150 = vadd.f32 %v6086, %v1774
        %v6151 = vadd.f32 %v6087, %v1775
        %v6152 = vadd.f32 %v6088, %v1776
        %v6153 = vadd.f32 %v6089, %v1777
        %v6154 = vadd.f32 %v6090, %v1778
        %v6155 = vadd.f32 %v6091, %v1779
        %v6156 = vadd.f32 %v6092, %v1780
        %v6157 = vadd.f32 %v6093, %v1781
        %v6158 = vadd.f32 %v6094, %v1782
        %v6159 = vadd.f32 %v6095, %v1783
        %v6160 = vadd.f32 %v6096, %v1784
        %v6161 = vadd.f32 %v6097, %v1785
        %v6162 = vadd.f32 %v6098, %v1786
        %v6163 = vadd.f32 %v6099, %v1787
        %v6164 = vadd.f32 %v6100, %v1788
        %v6165 = vadd.f32 %v6101, %v1789
        %v6166 = vadd.f32 %v6102, %v1790
        %v6167 = vadd.f32 %v6103, %v1791
        %v6168 = vadd.f32 %v6104, %v1792
        %v6169 = vadd.f32 %v6105, %v1793
        %v6170 = vadd.f32 %v6106, %v1794
        %v6171 = vadd.f32 %v6107, %v1795
        %v6172 = vadd.f32 %v6108, %v1796
        %v6173 = vadd.f32 %v6109, %v1797
        %v6174 = vadd.f32 %v6110, %v1798
        %v6175 = vadd.f32 %v6111, %v1799
        %v6176 = vadd.f32 %v6112, %v1800
        %v6177 = vadd.f32 %v6113, %v1801
        %v6178 = vadd.f32 %v6114, %v1802
        %v6179 = vmax.f32 %v6115, %v6116
        %6180 = vmax.xlane.f32.xlu0 %v6179
        %v6181 = vpop.xlane.xlu0 %6180
        %v6182 = vmax.f32 %v6117, %v6118
        %6183 = vmax.xlane.f32.xlu0 %v6182
        %v6184 = vpop.xlane.xlu0 %6183
        %v6185 = vmax.f32 %v6119, %v6120
        %6186 = vmax.xlane.f32.xlu0 %v6185
        %v6187 = vpop.xlane.xlu0 %6186
        %v6188 = vmax.f32 %v6121, %v6122
        %6189 = vmax.xlane.f32.xlu0 %v6188
        %v6190 = vpop.xlane.xlu0 %6189
        %v6191 = vmax.f32 %v6123, %v6124
        %6192 = vmax.xlane.f32.xlu0 %v6191
        %v6193 = vpop.xlane.xlu0 %6192
        %v6194 = vmax.f32 %v6125, %v6126
        %6195 = vmax.xlane.f32.xlu0 %v6194
        %v6196 = vpop.xlane.xlu0 %6195
        %v6197 = vmax.f32 %v6127, %v6128
        %6198 = vmax.xlane.f32.xlu0 %v6197
        %v6199 = vpop.xlane.xlu0 %6198
        %v6200 = vmax.f32 %v6129, %v6130
        %6201 = vmax.xlane.f32.xlu0 %v6200
        %v6202 = vpop.xlane.xlu0 %6201
        %v6203 = vmax.f32 %v6131, %v6132
        %6204 = vmax.xlane.f32.xlu0 %v6203
        %v6205 = vpop.xlane.xlu0 %6204
        %v6206 = vmax.f32 %v6133, %v6134
        %6207 = vmax.xlane.f32.xlu0 %v6206
        %v6208 = vpop.xlane.xlu0 %6207
        %v6209 = vmax.f32 %v6135, %v6136
        %6210 = vmax.xlane.f32.xlu0 %v6209
        %v6211 = vpop.xlane.xlu0 %6210
        %v6212 = vmax.f32 %v6137, %v6138
        %6213 = vmax.xlane.f32.xlu0 %v6212
        %v6214 = vpop.xlane.xlu0 %6213
        %v6215 = vmax.f32 %v6139, %v6140
        %6216 = vmax.xlane.f32.xlu0 %v6215
        %v6217 = vpop.xlane.xlu0 %6216
        %v6218 = vmax.f32 %v6141, %v6142
        %6219 = vmax.xlane.f32.xlu0 %v6218
        %v6220 = vpop.xlane.xlu0 %6219
        %v6221 = vmax.f32 %v6143, %v6144
        %6222 = vmax.xlane.f32.xlu0 %v6221
        %v6223 = vpop.xlane.xlu0 %6222
        %v6224 = vmax.f32 %v6145, %v6146
        %6225 = vmax.xlane.f32.xlu0 %v6224
        %v6226 = vpop.xlane.xlu0 %6225
        %v6227 = vmax.f32 %v6147, %v6148
        %6228 = vmax.xlane.f32.xlu0 %v6227
        %v6229 = vpop.xlane.xlu0 %6228
        %v6230 = vmax.f32 %v6149, %v6150
        %6231 = vmax.xlane.f32.xlu0 %v6230
        %v6232 = vpop.xlane.xlu0 %6231
        %v6233 = vmax.f32 %v6151, %v6152
        %6234 = vmax.xlane.f32.xlu0 %v6233
        %v6235 = vpop.xlane.xlu0 %6234
        %v6236 = vmax.f32 %v6153, %v6154
        %6237 = vmax.xlane.f32.xlu0 %v6236
        %v6238 = vpop.xlane.xlu0 %6237
        %v6239 = vmax.f32 %v6155, %v6156
        %6240 = vmax.xlane.f32.xlu0 %v6239
        %v6241 = vpop.xlane.xlu0 %6240
        %v6242 = vmax.f32 %v6157, %v6158
        %6243 = vmax.xlane.f32.xlu0 %v6242
        %v6244 = vpop.xlane.xlu0 %6243
        %v6245 = vmax.f32 %v6159, %v6160
        %6246 = vmax.xlane.f32.xlu0 %v6245
        %v6247 = vpop.xlane.xlu0 %6246
        %v6248 = vmax.f32 %v6161, %v6162
        %6249 = vmax.xlane.f32.xlu0 %v6248
        %v6250 = vpop.xlane.xlu0 %6249
        %v6251 = vmax.f32 %v6163, %v6164
        %6252 = vmax.xlane.f32.xlu0 %v6251
        %v6253 = vpop.xlane.xlu0 %6252
        %v6254 = vmax.f32 %v6165, %v6166
        %6255 = vmax.xlane.f32.xlu0 %v6254
        %v6256 = vpop.xlane.xlu0 %6255
        %v6257 = vmax.f32 %v6167, %v6168
        %6258 = vmax.xlane.f32.xlu0 %v6257
        %v6259 = vpop.xlane.xlu0 %6258
        %v6260 = vmax.f32 %v6169, %v6170
        %6261 = vmax.xlane.f32.xlu0 %v6260
        %v6262 = vpop.xlane.xlu0 %6261
        %v6263 = vmax.f32 %v6171, %v6172
        %6264 = vmax.xlane.f32.xlu0 %v6263
        %v6265 = vpop.xlane.xlu0 %6264
        %v6266 = vmax.f32 %v6173, %v6174
        %6267 = vmax.xlane.f32.xlu0 %v6266
        %v6268 = vpop.xlane.xlu0 %6267
        %v6269 = vmax.f32 %v6175, %v6176
        %6270 = vmax.xlane.f32.xlu0 %v6269
        %v6271 = vpop.xlane.xlu0 %6270
        %v6272 = vmax.f32 %v6177, %v6178
        %6273 = vmax.xlane.f32.xlu0 %v6272
        %v6274 = vpop.xlane.xlu0 %6273
        %v6275 = vsub.f32 %v6115, %v6181
        %v6276 = vsub.f32 %v6116, %v6181
        %v6277 = vsub.f32 %v6117, %v6184
        %v6278 = vsub.f32 %v6118, %v6184
        %v6279 = vsub.f32 %v6119, %v6187
        %v6280 = vsub.f32 %v6120, %v6187
        %v6281 = vsub.f32 %v6121, %v6190
        %v6282 = vsub.f32 %v6122, %v6190
        %v6283 = vsub.f32 %v6123, %v6193
        %v6284 = vsub.f32 %v6124, %v6193
        %v6285 = vsub.f32 %v6125, %v6196
        %v6286 = vsub.f32 %v6126, %v6196
        %v6287 = vsub.f32 %v6127, %v6199
        %v6288 = vsub.f32 %v6128, %v6199
        %v6289 = vsub.f32 %v6129, %v6202
        %v6290 = vsub.f32 %v6130, %v6202
        %v6291 = vsub.f32 %v6131, %v6205
        %v6292 = vsub.f32 %v6132, %v6205
        %v6293 = vsub.f32 %v6133, %v6208
        %v6294 = vsub.f32 %v6134, %v6208
        %v6295 = vsub.f32 %v6135, %v6211
        %v6296 = vsub.f32 %v6136, %v6211
        %v6297 = vsub.f32 %v6137, %v6214
        %v6298 = vsub.f32 %v6138, %v6214
        %v6299 = vsub.f32 %v6139, %v6217
        %v6300 = vsub.f32 %v6140, %v6217
        %v6301 = vsub.f32 %v6141, %v6220
        %v6302 = vsub.f32 %v6142, %v6220
        %v6303 = vsub.f32 %v6143, %v6223
        %v6304 = vsub.f32 %v6144, %v6223
        %v6305 = vsub.f32 %v6145, %v6226
        %v6306 = vsub.f32 %v6146, %v6226
        %v6307 = vsub.f32 %v6147, %v6229
        %v6308 = vsub.f32 %v6148, %v6229
        %v6309 = vsub.f32 %v6149, %v6232
        %v6310 = vsub.f32 %v6150, %v6232
        %v6311 = vsub.f32 %v6151, %v6235
        %v6312 = vsub.f32 %v6152, %v6235
        %v6313 = vsub.f32 %v6153, %v6238
        %v6314 = vsub.f32 %v6154, %v6238
        %v6315 = vsub.f32 %v6155, %v6241
        %v6316 = vsub.f32 %v6156, %v6241
        %v6317 = vsub.f32 %v6157, %v6244
        %v6318 = vsub.f32 %v6158, %v6244
        %v6319 = vsub.f32 %v6159, %v6247
        %v6320 = vsub.f32 %v6160, %v6247
        %v6321 = vsub.f32 %v6161, %v6250
        %v6322 = vsub.f32 %v6162, %v6250
        %v6323 = vsub.f32 %v6163, %v6253
        %v6324 = vsub.f32 %v6164, %v6253
        %v6325 = vsub.f32 %v6165, %v6256
        %v6326 = vsub.f32 %v6166, %v6256
        %v6327 = vsub.f32 %v6167, %v6259
        %v6328 = vsub.f32 %v6168, %v6259
        %v6329 = vsub.f32 %v6169, %v6262
        %v6330 = vsub.f32 %v6170, %v6262
        %v6331 = vsub.f32 %v6171, %v6265
        %v6332 = vsub.f32 %v6172, %v6265
        %v6333 = vsub.f32 %v6173, %v6268
        %v6334 = vsub.f32 %v6174, %v6268
        %v6335 = vsub.f32 %v6175, %v6271
        %v6336 = vsub.f32 %v6176, %v6271
        %v6337 = vsub.f32 %v6177, %v6274
        %v6338 = vsub.f32 %v6178, %v6274
        %v6339 = vmul.f32 %v6275, 1.442695
        %v6340 = vpow.pop %v6339
        %v6341 = vmul.f32 %v6276, 1.442695
        %v6342 = vpow.pop %v6341
        %v6343 = vmul.f32 %v6277, 1.442695
        %v6344 = vpow.pop %v6343
        %v6345 = vmul.f32 %v6278, 1.442695
        %v6346 = vpow.pop %v6345
        %v6347 = vmul.f32 %v6279, 1.442695
        %v6348 = vpow.pop %v6347
        %v6349 = vmul.f32 %v6280, 1.442695
        %v6350 = vpow.pop %v6349
        %v6351 = vmul.f32 %v6281, 1.442695
        %v6352 = vpow.pop %v6351
        %v6353 = vmul.f32 %v6282, 1.442695
        %v6354 = vpow.pop %v6353
        %v6355 = vmul.f32 %v6283, 1.442695
        %v6356 = vpow.pop %v6355
        %v6357 = vmul.f32 %v6284, 1.442695
        %v6358 = vpow.pop %v6357
        %v6359 = vmul.f32 %v6285, 1.442695
        %v6360 = vpow.pop %v6359
        %v6361 = vmul.f32 %v6286, 1.442695
        %v6362 = vpow.pop %v6361
        %v6363 = vmul.f32 %v6287, 1.442695
        %v6364 = vpow.pop %v6363
        %v6365 = vmul.f32 %v6288, 1.442695
        %v6366 = vpow.pop %v6365
        %v6367 = vmul.f32 %v6289, 1.442695
        %v6368 = vpow.pop %v6367
        %v6369 = vmul.f32 %v6290, 1.442695
        %v6370 = vpow.pop %v6369
        %v6371 = vmul.f32 %v6291, 1.442695
        %v6372 = vpow.pop %v6371
        %v6373 = vmul.f32 %v6292, 1.442695
        %v6374 = vpow.pop %v6373
        %v6375 = vmul.f32 %v6293, 1.442695
        %v6376 = vpow.pop %v6375
        %v6377 = vmul.f32 %v6294, 1.442695
        %v6378 = vpow.pop %v6377
        %v6379 = vmul.f32 %v6295, 1.442695
        %v6380 = vpow.pop %v6379
        %v6381 = vmul.f32 %v6296, 1.442695
        %v6382 = vpow.pop %v6381
        %v6383 = vmul.f32 %v6297, 1.442695
        %v6384 = vpow.pop %v6383
        %v6385 = vmul.f32 %v6298, 1.442695
        %v6386 = vpow.pop %v6385
        %v6387 = vmul.f32 %v6299, 1.442695
        %v6388 = vpow.pop %v6387
        %v6389 = vmul.f32 %v6300, 1.442695
        %v6390 = vpow.pop %v6389
        %v6391 = vmul.f32 %v6301, 1.442695
        %v6392 = vpow.pop %v6391
        %v6393 = vmul.f32 %v6302, 1.442695
        %v6394 = vpow.pop %v6393
        %v6395 = vmul.f32 %v6303, 1.442695
        %v6396 = vpow.pop %v6395
        %v6397 = vmul.f32 %v6304, 1.442695
        %v6398 = vpow.pop %v6397
        %v6399 = vmul.f32 %v6305, 1.442695
        %v6400 = vpow.pop %v6399
        %v6401 = vmul.f32 %v6306, 1.442695
        %v6402 = vpow.pop %v6401
        %v6403 = vmul.f32 %v6307, 1.442695
        %v6404 = vpow.pop %v6403
        %v6405 = vmul.f32 %v6308, 1.442695
        %v6406 = vpow.pop %v6405
        %v6407 = vmul.f32 %v6309, 1.442695
        %v6408 = vpow.pop %v6407
        %v6409 = vmul.f32 %v6310, 1.442695
        %v6410 = vpow.pop %v6409
        %v6411 = vmul.f32 %v6311, 1.442695
        %v6412 = vpow.pop %v6411
        %v6413 = vmul.f32 %v6312, 1.442695
        %v6414 = vpow.pop %v6413
        %v6415 = vmul.f32 %v6313, 1.442695
        %v6416 = vpow.pop %v6415
        %v6417 = vmul.f32 %v6314, 1.442695
        %v6418 = vpow.pop %v6417
        %v6419 = vmul.f32 %v6315, 1.442695
        %v6420 = vpow.pop %v6419
        %v6421 = vmul.f32 %v6316, 1.442695
        %v6422 = vpow.pop %v6421
        %v6423 = vmul.f32 %v6317, 1.442695
        %v6424 = vpow.pop %v6423
        %v6425 = vmul.f32 %v6318, 1.442695
        %v6426 = vpow.pop %v6425
        %v6427 = vmul.f32 %v6319, 1.442695
        %v6428 = vpow.pop %v6427
        %v6429 = vmul.f32 %v6320, 1.442695
        %v6430 = vpow.pop %v6429
        %v6431 = vmul.f32 %v6321, 1.442695
        %v6432 = vpow.pop %v6431
        %v6433 = vmul.f32 %v6322, 1.442695
        %v6434 = vpow.pop %v6433
        %v6435 = vmul.f32 %v6323, 1.442695
        %v6436 = vpow.pop %v6435
        %v6437 = vmul.f32 %v6324, 1.442695
        %v6438 = vpow.pop %v6437
        %v6439 = vmul.f32 %v6325, 1.442695
        %v6440 = vpow.pop %v6439
        %v6441 = vmul.f32 %v6326, 1.442695
        %v6442 = vpow.pop %v6441
        %v6443 = vmul.f32 %v6327, 1.442695
        %v6444 = vpow.pop %v6443
        %v6445 = vmul.f32 %v6328, 1.442695
        %v6446 = vpow.pop %v6445
        %v6447 = vmul.f32 %v6329, 1.442695
        %v6448 = vpow.pop %v6447
        %v6449 = vmul.f32 %v6330, 1.442695
        %v6450 = vpow.pop %v6449
        %v6451 = vmul.f32 %v6331, 1.442695
        %v6452 = vpow.pop %v6451
        %v6453 = vmul.f32 %v6332, 1.442695
        %v6454 = vpow.pop %v6453
        %v6455 = vmul.f32 %v6333, 1.442695
        %v6456 = vpow.pop %v6455
        %v6457 = vmul.f32 %v6334, 1.442695
        %v6458 = vpow.pop %v6457
        %v6459 = vmul.f32 %v6335, 1.442695
        %v6460 = vpow.pop %v6459
        %v6461 = vmul.f32 %v6336, 1.442695
        %v6462 = vpow.pop %v6461
        %v6463 = vmul.f32 %v6337, 1.442695
        %v6464 = vpow.pop %v6463
        %v6465 = vmul.f32 %v6338, 1.442695
        %v6466 = vpow.pop %v6465
        %v6467 = vadd.f32 %v6340, %v6342
        %6468 = vadd.xlane.f32.xlu0 %v6467
        %v6469 = vpop.xlane.xlu0 %6468
        %v6470 = vadd.f32 %v6344, %v6346
        %6471 = vadd.xlane.f32.xlu0 %v6470
        %v6472 = vpop.xlane.xlu0 %6471
        %v6473 = vadd.f32 %v6348, %v6350
        %6474 = vadd.xlane.f32.xlu0 %v6473
        %v6475 = vpop.xlane.xlu0 %6474
        %v6476 = vadd.f32 %v6352, %v6354
        %6477 = vadd.xlane.f32.xlu0 %v6476
        %v6478 = vpop.xlane.xlu0 %6477
        %v6479 = vadd.f32 %v6356, %v6358
        %6480 = vadd.xlane.f32.xlu0 %v6479
        %v6481 = vpop.xlane.xlu0 %6480
        %v6482 = vadd.f32 %v6360, %v6362
        %6483 = vadd.xlane.f32.xlu0 %v6482
        %v6484 = vpop.xlane.xlu0 %6483
        %v6485 = vadd.f32 %v6364, %v6366
        %6486 = vadd.xlane.f32.xlu0 %v6485
        %v6487 = vpop.xlane.xlu0 %6486
        %v6488 = vadd.f32 %v6368, %v6370
        %6489 = vadd.xlane.f32.xlu0 %v6488
        %v6490 = vpop.xlane.xlu0 %6489
        %v6491 = vadd.f32 %v6372, %v6374
        %6492 = vadd.xlane.f32.xlu0 %v6491
        %v6493 = vpop.xlane.xlu0 %6492
        %v6494 = vadd.f32 %v6376, %v6378
        %6495 = vadd.xlane.f32.xlu0 %v6494
        %v6496 = vpop.xlane.xlu0 %6495
        %v6497 = vadd.f32 %v6380, %v6382
        %6498 = vadd.xlane.f32.xlu0 %v6497
        %v6499 = vpop.xlane.xlu0 %6498
        %v6500 = vadd.f32 %v6384, %v6386
        %6501 = vadd.xlane.f32.xlu0 %v6500
        %v6502 = vpop.xlane.xlu0 %6501
        %v6503 = vadd.f32 %v6388, %v6390
        %6504 = vadd.xlane.f32.xlu0 %v6503
        %v6505 = vpop.xlane.xlu0 %6504
        %v6506 = vadd.f32 %v6392, %v6394
        %6507 = vadd.xlane.f32.xlu0 %v6506
        %v6508 = vpop.xlane.xlu0 %6507
        %v6509 = vadd.f32 %v6396, %v6398
        %6510 = vadd.xlane.f32.xlu0 %v6509
        %v6511 = vpop.xlane.xlu0 %6510
        %v6512 = vadd.f32 %v6400, %v6402
        %6513 = vadd.xlane.f32.xlu0 %v6512
        %v6514 = vpop.xlane.xlu0 %6513
        %v6515 = vadd.f32 %v6404, %v6406
        %6516 = vadd.xlane.f32.xlu0 %v6515
        %v6517 = vpop.xlane.xlu0 %6516
        %v6518 = vadd.f32 %v6408, %v6410
        %6519 = vadd.xlane.f32.xlu0 %v6518
        %v6520 = vpop.xlane.xlu0 %6519
        %v6521 = vadd.f32 %v6412, %v6414
        %6522 = vadd.xlane.f32.xlu0 %v6521
        %v6523 = vpop.xlane.xlu0 %6522
        %v6524 = vadd.f32 %v6416, %v6418
        %6525 = vadd.xlane.f32.xlu0 %v6524
        %v6526 = vpop.xlane.xlu0 %6525
        %v6527 = vadd.f32 %v6420, %v6422
        %6528 = vadd.xlane.f32.xlu0 %v6527
        %v6529 = vpop.xlane.xlu0 %6528
        %v6530 = vadd.f32 %v6424, %v6426
        %6531 = vadd.xlane.f32.xlu0 %v6530
        %v6532 = vpop.xlane.xlu0 %6531
        %v6533 = vadd.f32 %v6428, %v6430
        %6534 = vadd.xlane.f32.xlu0 %v6533
        %v6535 = vpop.xlane.xlu0 %6534
        %v6536 = vadd.f32 %v6432, %v6434
        %6537 = vadd.xlane.f32.xlu0 %v6536
        %v6538 = vpop.xlane.xlu0 %6537
        %v6539 = vadd.f32 %v6436, %v6438
        %6540 = vadd.xlane.f32.xlu0 %v6539
        %v6541 = vpop.xlane.xlu0 %6540
        %v6542 = vadd.f32 %v6440, %v6442
        %6543 = vadd.xlane.f32.xlu0 %v6542
        %v6544 = vpop.xlane.xlu0 %6543
        %v6545 = vadd.f32 %v6444, %v6446
        %6546 = vadd.xlane.f32.xlu0 %v6545
        %v6547 = vpop.xlane.xlu0 %6546
        %v6548 = vadd.f32 %v6448, %v6450
        %6549 = vadd.xlane.f32.xlu0 %v6548
        %v6550 = vpop.xlane.xlu0 %6549
        %v6551 = vadd.f32 %v6452, %v6454
        %6552 = vadd.xlane.f32.xlu0 %v6551
        %v6553 = vpop.xlane.xlu0 %6552
        %v6554 = vadd.f32 %v6456, %v6458
        %6555 = vadd.xlane.f32.xlu0 %v6554
        %v6556 = vpop.xlane.xlu0 %6555
        %v6557 = vadd.f32 %v6460, %v6462
        %6558 = vadd.xlane.f32.xlu0 %v6557
        %v6559 = vpop.xlane.xlu0 %6558
        %v6560 = vadd.f32 %v6464, %v6466
        %6561 = vadd.xlane.f32.xlu0 %v6560
        %v6562 = vpop.xlane.xlu0 %6561
        %v6563 = vrcp.pop %v6469
        %v6564 = vrcp.pop %v6472
        %v6565 = vrcp.pop %v6475
        %v6566 = vrcp.pop %v6478
        %v6567 = vrcp.pop %v6481
        %v6568 = vrcp.pop %v6484
        %v6569 = vrcp.pop %v6487
        %v6570 = vrcp.pop %v6490
        %v6571 = vrcp.pop %v6493
        %v6572 = vrcp.pop %v6496
        %v6573 = vrcp.pop %v6499
        %v6574 = vrcp.pop %v6502
        %v6575 = vrcp.pop %v6505
        %v6576 = vrcp.pop %v6508
        %v6577 = vrcp.pop %v6511
        %v6578 = vrcp.pop %v6514
        %v6579 = vrcp.pop %v6517
        %v6580 = vrcp.pop %v6520
        %v6581 = vrcp.pop %v6523
        %v6582 = vrcp.pop %v6526
        %v6583 = vrcp.pop %v6529
        %v6584 = vrcp.pop %v6532
        %v6585 = vrcp.pop %v6535
        %v6586 = vrcp.pop %v6538
        %v6587 = vrcp.pop %v6541
        %v6588 = vrcp.pop %v6544
        %v6589 = vrcp.pop %v6547
        %v6590 = vrcp.pop %v6550
        %v6591 = vrcp.pop %v6553
        %v6592 = vrcp.pop %v6556
        %v6593 = vrcp.pop %v6559
        %v6594 = vrcp.pop %v6562
        %v6595 = vmul.f32 %v6340, %v6563
        %v6596 = vmul.f32 %v6342, %v6563
        %v6597 = vmul.f32 %v6344, %v6564
        %v6598 = vmul.f32 %v6346, %v6564
        %v6599 = vmul.f32 %v6348, %v6565
        %v6600 = vmul.f32 %v6350, %v6565
        %v6601 = vmul.f32 %v6352, %v6566
        %v6602 = vmul.f32 %v6354, %v6566
        %v6603 = vmul.f32 %v6356, %v6567
        %v6604 = vmul.f32 %v6358, %v6567
        %v6605 = vmul.f32 %v6360, %v6568
        %v6606 = vmul.f32 %v6362, %v6568
        %v6607 = vmul.f32 %v6364, %v6569
        %v6608 = vmul.f32 %v6366, %v6569
        %v6609 = vmul.f32 %v6368, %v6570
        %v6610 = vmul.f32 %v6370, %v6570
        %v6611 = vmul.f32 %v6372, %v6571
        %v6612 = vmul.f32 %v6374, %v6571
        %v6613 = vmul.f32 %v6376, %v6572
        %v6614 = vmul.f32 %v6378, %v6572
        %v6615 = vmul.f32 %v6380, %v6573
        %v6616 = vmul.f32 %v6382, %v6573
        %v6617 = vmul.f32 %v6384, %v6574
        %v6618 = vmul.f32 %v6386, %v6574
        %v6619 = vmul.f32 %v6388, %v6575
        %v6620 = vmul.f32 %v6390, %v6575
        %v6621 = vmul.f32 %v6392, %v6576
        %v6622 = vmul.f32 %v6394, %v6576
        %v6623 = vmul.f32 %v6396, %v6577
        %v6624 = vmul.f32 %v6398, %v6577
        %v6625 = vmul.f32 %v6400, %v6578
        %v6626 = vmul.f32 %v6402, %v6578
        %v6627 = vmul.f32 %v6404, %v6579
        %v6628 = vmul.f32 %v6406, %v6579
        %v6629 = vmul.f32 %v6408, %v6580
        %v6630 = vmul.f32 %v6410, %v6580
        %v6631 = vmul.f32 %v6412, %v6581
        %v6632 = vmul.f32 %v6414, %v6581
        %v6633 = vmul.f32 %v6416, %v6582
        %v6634 = vmul.f32 %v6418, %v6582
        %v6635 = vmul.f32 %v6420, %v6583
        %v6636 = vmul.f32 %v6422, %v6583
        %v6637 = vmul.f32 %v6424, %v6584
        %v6638 = vmul.f32 %v6426, %v6584
        %v6639 = vmul.f32 %v6428, %v6585
        %v6640 = vmul.f32 %v6430, %v6585
        %v6641 = vmul.f32 %v6432, %v6586
        %v6642 = vmul.f32 %v6434, %v6586
        %v6643 = vmul.f32 %v6436, %v6587
        %v6644 = vmul.f32 %v6438, %v6587
        %v6645 = vmul.f32 %v6440, %v6588
        %v6646 = vmul.f32 %v6442, %v6588
        %v6647 = vmul.f32 %v6444, %v6589
        %v6648 = vmul.f32 %v6446, %v6589
        %v6649 = vmul.f32 %v6448, %v6590
        %v6650 = vmul.f32 %v6450, %v6590
        %v6651 = vmul.f32 %v6452, %v6591
        %v6652 = vmul.f32 %v6454, %v6591
        %v6653 = vmul.f32 %v6456, %v6592
        %v6654 = vmul.f32 %v6458, %v6592
        %v6655 = vmul.f32 %v6460, %v6593
        %v6656 = vmul.f32 %v6462, %v6593
        %v6657 = vmul.f32 %v6464, %v6594
        %v6658 = vmul.f32 %v6466, %v6594
        %v6659 = vpack.c.bf16 %v6597, %v6595
        %v6660 = vpack.c.bf16 %v6598, %v6596
        %v6661 = vpack.c.bf16 %v6601, %v6599
        %v6662 = vpack.c.bf16 %v6602, %v6600
        %v6663 = vpack.c.bf16 %v6605, %v6603
        %v6664 = vpack.c.bf16 %v6606, %v6604
        %v6665 = vpack.c.bf16 %v6609, %v6607
        %v6666 = vpack.c.bf16 %v6610, %v6608
        %v6667 = vpack.c.bf16 %v6613, %v6611
        %v6668 = vpack.c.bf16 %v6614, %v6612
        %v6669 = vpack.c.bf16 %v6617, %v6615
        %v6670 = vpack.c.bf16 %v6618, %v6616
        %v6671 = vpack.c.bf16 %v6621, %v6619
        %v6672 = vpack.c.bf16 %v6622, %v6620
        %v6673 = vpack.c.bf16 %v6625, %v6623
        %v6674 = vpack.c.bf16 %v6626, %v6624
        %v6675 = vpack.c.bf16 %v6629, %v6627
        %v6676 = vpack.c.bf16 %v6630, %v6628
        %v6677 = vpack.c.bf16 %v6633, %v6631
        %v6678 = vpack.c.bf16 %v6634, %v6632
        %v6679 = vpack.c.bf16 %v6637, %v6635
        %v6680 = vpack.c.bf16 %v6638, %v6636
        %v6681 = vpack.c.bf16 %v6641, %v6639
        %v6682 = vpack.c.bf16 %v6642, %v6640
        %v6683 = vpack.c.bf16 %v6645, %v6643
        %v6684 = vpack.c.bf16 %v6646, %v6644
        %v6685 = vpack.c.bf16 %v6649, %v6647
        %v6686 = vpack.c.bf16 %v6650, %v6648
        %v6687 = vpack.c.bf16 %v6653, %v6651
        %v6688 = vpack.c.bf16 %v6654, %v6652
        %v6689 = vpack.c.bf16 %v6657, %v6655
        %v6690 = vpack.c.bf16 %v6658, %v6656
        %v6723 = vunpack.c.l.b16 %v5745
        %v6724 = vunpack.c.l.b16 %v5746
        %v6725 = vunpack.c.l.b16 %v5747
        %v6726 = vunpack.c.l.b16 %v5748
        %v6727 = vunpack.c.l.b16 %v5749
        %v6728 = vunpack.c.l.b16 %v5750
        %v6729 = vunpack.c.l.b16 %v5751
        %v6730 = vunpack.c.l.b16 %v5752
        %v6731 = vunpack.c.l.b16 %v5753
        %v6732 = vunpack.c.l.b16 %v5754
        %v6733 = vunpack.c.l.b16 %v5755
        %v6734 = vunpack.c.l.b16 %v5756
        %v6735 = vunpack.c.l.b16 %v5757
        %v6736 = vunpack.c.l.b16 %v5758
        %v6737 = vunpack.c.l.b16 %v5759
        %v6738 = vunpack.c.l.b16 %v5760
        %v6739 = vunpack.c.l.b16 %v5761
        %v6740 = vunpack.c.l.b16 %v5762
        %v6741 = vunpack.c.l.b16 %v5763
        %v6742 = vunpack.c.l.b16 %v5764
        %v6743 = vunpack.c.l.b16 %v5765
        %v6744 = vunpack.c.l.b16 %v5766
        %v6745 = vunpack.c.l.b16 %v5767
        %v6746 = vunpack.c.l.b16 %v5768
        %v6747 = vunpack.c.l.b16 %v5769
        %v6748 = vunpack.c.l.b16 %v5770
        %v6749 = vunpack.c.l.b16 %v5771
        %v6750 = vunpack.c.l.b16 %v5772
        %v6751 = vunpack.c.l.b16 %v5773
        %v6752 = vunpack.c.l.b16 %v5774
        %v6753 = vunpack.c.l.b16 %v5775
        %v6754 = vunpack.c.l.b16 %v5776
        %v6755 = vpack.c.b16 %v6724, %v6723
        %v6756 = vpack.c.b16 %v6726, %v6725
        %v6757 = vpack.c.b16 %v6728, %v6727
        %v6758 = vpack.c.b16 %v6730, %v6729
        %v6759 = vpack.c.b16 %v6732, %v6731
        %v6760 = vpack.c.b16 %v6734, %v6733
        %v6761 = vpack.c.b16 %v6736, %v6735
        %v6762 = vpack.c.b16 %v6738, %v6737
        %v6763 = vpack.c.b16 %v6740, %v6739
        %v6764 = vpack.c.b16 %v6742, %v6741
        %v6765 = vpack.c.b16 %v6744, %v6743
        %v6766 = vpack.c.b16 %v6746, %v6745
        %v6767 = vpack.c.b16 %v6748, %v6747
        %v6768 = vpack.c.b16 %v6750, %v6749
        %v6769 = vpack.c.b16 %v6752, %v6751
        %v6770 = vpack.c.b16 %v6754, %v6753
        %6787 = vmatpush.bf16.msra.mxu0 %v6762
        %6788 = vmatpush.bf16.msra.mxu0 %v6761
        %6789 = vmatpush.bf16.msra.mxu0 %v6760
        %6790 = vmatpush.bf16.msra.mxu0 %v6759
        %6791 = vmatpush.bf16.msra.mxu0 %v6758
        %6792 = vmatpush.bf16.msra.mxu0 %v6757
        %6793 = vmatpush.bf16.msra.mxu0 %v6756
        %6794 = vmatpush.bf16.msra.mxu0 %v6755
        %6795 = vmatmul.bf16.gmra.mxu0 %v6659
        %v6796 = vpop.f32.mrf.mxu0
        %v6797 = vadd.f32 0.0, %v6796
        %v6798 = vpop.f32.mrf.mxu0
        %v6799 = vadd.f32 0.0, %v6798
        %6800 = vmatmul.bf16.gmra.mxu0 %v6661
        %v6801 = vpop.f32.mrf.mxu0
        %v6802 = vadd.f32 0.0, %v6801
        %v6803 = vpop.f32.mrf.mxu0
        %v6804 = vadd.f32 0.0, %v6803
        %6805 = vmatmul.bf16.gmra.mxu0 %v6663
        %v6806 = vpop.f32.mrf.mxu0
        %v6807 = vadd.f32 0.0, %v6806
        %v6808 = vpop.f32.mrf.mxu0
        %v6809 = vadd.f32 0.0, %v6808
        %6810 = vmatmul.bf16.gmra.mxu0 %v6665
        %v6811 = vpop.f32.mrf.mxu0
        %v6812 = vadd.f32 0.0, %v6811
        %v6813 = vpop.f32.mrf.mxu0
        %v6814 = vadd.f32 0.0, %v6813
        %6815 = vmatmul.bf16.gmra.mxu0 %v6667
        %v6816 = vpop.f32.mrf.mxu0
        %v6817 = vadd.f32 0.0, %v6816
        %v6818 = vpop.f32.mrf.mxu0
        %v6819 = vadd.f32 0.0, %v6818
        %6820 = vmatmul.bf16.gmra.mxu0 %v6669
        %v6821 = vpop.f32.mrf.mxu0
        %v6822 = vadd.f32 0.0, %v6821
        %v6823 = vpop.f32.mrf.mxu0
        %v6824 = vadd.f32 0.0, %v6823
        %6825 = vmatmul.bf16.gmra.mxu0 %v6671
        %v6826 = vpop.f32.mrf.mxu0
        %v6827 = vadd.f32 0.0, %v6826
        %v6828 = vpop.f32.mrf.mxu0
        %v6829 = vadd.f32 0.0, %v6828
        %6830 = vmatmul.bf16.gmra.mxu0 %v6673
        %v6831 = vpop.f32.mrf.mxu0
        %v6832 = vadd.f32 0.0, %v6831
        %v6833 = vpop.f32.mrf.mxu0
        %v6834 = vadd.f32 0.0, %v6833
        %6835 = vmatmul.bf16.gmra.mxu0 %v6675
        %v6836 = vpop.f32.mrf.mxu0
        %v6837 = vadd.f32 0.0, %v6836
        %v6838 = vpop.f32.mrf.mxu0
        %v6839 = vadd.f32 0.0, %v6838
        %6840 = vmatmul.bf16.gmra.mxu0 %v6677
        %v6841 = vpop.f32.mrf.mxu0
        %v6842 = vadd.f32 0.0, %v6841
        %v6843 = vpop.f32.mrf.mxu0
        %v6844 = vadd.f32 0.0, %v6843
        %6845 = vmatmul.bf16.gmra.mxu0 %v6679
        %v6846 = vpop.f32.mrf.mxu0
        %v6847 = vadd.f32 0.0, %v6846
        %v6848 = vpop.f32.mrf.mxu0
        %v6849 = vadd.f32 0.0, %v6848
        %6850 = vmatmul.bf16.gmra.mxu0 %v6681
        %v6851 = vpop.f32.mrf.mxu0
        %v6852 = vadd.f32 0.0, %v6851
        %v6853 = vpop.f32.mrf.mxu0
        %v6854 = vadd.f32 0.0, %v6853
        %6855 = vmatmul.bf16.gmra.mxu0 %v6683
        %v6856 = vpop.f32.mrf.mxu0
        %v6857 = vadd.f32 0.0, %v6856
        %v6858 = vpop.f32.mrf.mxu0
        %v6859 = vadd.f32 0.0, %v6858
        %6860 = vmatmul.bf16.gmra.mxu0 %v6685
        %v6861 = vpop.f32.mrf.mxu0
        %v6862 = vadd.f32 0.0, %v6861
        %v6863 = vpop.f32.mrf.mxu0
        %v6864 = vadd.f32 0.0, %v6863
        %6865 = vmatmul.bf16.gmra.mxu0 %v6687
        %v6866 = vpop.f32.mrf.mxu0
        %v6867 = vadd.f32 0.0, %v6866
        %v6868 = vpop.f32.mrf.mxu0
        %v6869 = vadd.f32 0.0, %v6868
        %6870 = vmatmul.bf16.gmra.mxu0 %v6689
        %v6871 = vpop.f32.mrf.mxu0
        %v6872 = vadd.f32 0.0, %v6871
        %v6873 = vpop.f32.mrf.mxu0
        %v6874 = vadd.f32 0.0, %v6873
        %6875 = vdwg.mxu0
        %6876 = vmatpush.bf16.msra.mxu0 %v6770
        %6877 = vmatpush.bf16.msra.mxu0 %v6769
        %6878 = vmatpush.bf16.msra.mxu0 %v6768
        %6879 = vmatpush.bf16.msra.mxu0 %v6767
        %6880 = vmatpush.bf16.msra.mxu0 %v6766
        %6881 = vmatpush.bf16.msra.mxu0 %v6765
        %6882 = vmatpush.bf16.msra.mxu0 %v6764
        %6883 = vmatpush.bf16.msra.mxu0 %v6763
        %6884 = vmatmul.bf16.gmra.mxu0 %v6660
        %v6885 = vpop.f32.mrf.mxu0
        %v6886 = vadd.f32 %v6797, %v6885
        %v6887 = vpop.f32.mrf.mxu0
        %v6888 = vadd.f32 %v6799, %v6887
        %6889 = vmatmul.bf16.gmra.mxu0 %v6662
        %v6890 = vpop.f32.mrf.mxu0
        %v6891 = vadd.f32 %v6802, %v6890
        %v6892 = vpop.f32.mrf.mxu0
        %v6893 = vadd.f32 %v6804, %v6892
        %6894 = vmatmul.bf16.gmra.mxu0 %v6664
        %v6895 = vpop.f32.mrf.mxu0
        %v6896 = vadd.f32 %v6807, %v6895
        %v6897 = vpop.f32.mrf.mxu0
        %v6898 = vadd.f32 %v6809, %v6897
        %6899 = vmatmul.bf16.gmra.mxu0 %v6666
        %v6900 = vpop.f32.mrf.mxu0
        %v6901 = vadd.f32 %v6812, %v6900
        %v6902 = vpop.f32.mrf.mxu0
        %v6903 = vadd.f32 %v6814, %v6902
        %6904 = vmatmul.bf16.gmra.mxu0 %v6668
        %v6905 = vpop.f32.mrf.mxu0
        %v6906 = vadd.f32 %v6817, %v6905
        %v6907 = vpop.f32.mrf.mxu0
        %v6908 = vadd.f32 %v6819, %v6907
        %6909 = vmatmul.bf16.gmra.mxu0 %v6670
        %v6910 = vpop.f32.mrf.mxu0
        %v6911 = vadd.f32 %v6822, %v6910
        %v6912 = vpop.f32.mrf.mxu0
        %v6913 = vadd.f32 %v6824, %v6912
        %6914 = vmatmul.bf16.gmra.mxu0 %v6672
        %v6915 = vpop.f32.mrf.mxu0
        %v6916 = vadd.f32 %v6827, %v6915
        %v6917 = vpop.f32.mrf.mxu0
        %v6918 = vadd.f32 %v6829, %v6917
        %6919 = vmatmul.bf16.gmra.mxu0 %v6674
        %v6920 = vpop.f32.mrf.mxu0
        %v6921 = vadd.f32 %v6832, %v6920
        %v6922 = vpop.f32.mrf.mxu0
        %v6923 = vadd.f32 %v6834, %v6922
        %6924 = vmatmul.bf16.gmra.mxu0 %v6676
        %v6925 = vpop.f32.mrf.mxu0
        %v6926 = vadd.f32 %v6837, %v6925
        %v6927 = vpop.f32.mrf.mxu0
        %v6928 = vadd.f32 %v6839, %v6927
        %6929 = vmatmul.bf16.gmra.mxu0 %v6678
        %v6930 = vpop.f32.mrf.mxu0
        %v6931 = vadd.f32 %v6842, %v6930
        %v6932 = vpop.f32.mrf.mxu0
        %v6933 = vadd.f32 %v6844, %v6932
        %6934 = vmatmul.bf16.gmra.mxu0 %v6680
        %v6935 = vpop.f32.mrf.mxu0
        %v6936 = vadd.f32 %v6847, %v6935
        %v6937 = vpop.f32.mrf.mxu0
        %v6938 = vadd.f32 %v6849, %v6937
        %6939 = vmatmul.bf16.gmra.mxu0 %v6682
        %v6940 = vpop.f32.mrf.mxu0
        %v6941 = vadd.f32 %v6852, %v6940
        %v6942 = vpop.f32.mrf.mxu0
        %v6943 = vadd.f32 %v6854, %v6942
        %6944 = vmatmul.bf16.gmra.mxu0 %v6684
        %v6945 = vpop.f32.mrf.mxu0
        %v6946 = vadd.f32 %v6857, %v6945
        %v6947 = vpop.f32.mrf.mxu0
        %v6948 = vadd.f32 %v6859, %v6947
        %6949 = vmatmul.bf16.gmra.mxu0 %v6686
        %v6950 = vpop.f32.mrf.mxu0
        %v6951 = vadd.f32 %v6862, %v6950
        %v6952 = vpop.f32.mrf.mxu0
        %v6953 = vadd.f32 %v6864, %v6952
        %6954 = vmatmul.bf16.gmra.mxu0 %v6688
        %v6955 = vpop.f32.mrf.mxu0
        %v6956 = vadd.f32 %v6867, %v6955
        %v6957 = vpop.f32.mrf.mxu0
        %v6958 = vadd.f32 %v6869, %v6957
        %6959 = vmatmul.bf16.gmra.mxu0 %v6690
        %v6960 = vpop.f32.mrf.mxu0
        %v6961 = vadd.f32 %v6872, %v6960
        %v6962 = vpop.f32.mrf.mxu0
        %v6963 = vadd.f32 %v6874, %v6962
        %6964 = vdwg.mxu0
        %v6965 = vadd.f32 %v5675, %v6886
        %v6966 = vadd.f32 %v5676, %v6888
        %v6967 = vadd.f32 %v5677, %v6891
        %v6968 = vadd.f32 %v5678, %v6893
        %v6969 = vadd.f32 %v5679, %v6896
        %v6970 = vadd.f32 %v5680, %v6898
        %v6971 = vadd.f32 %v5681, %v6901
        %v6972 = vadd.f32 %v5682, %v6903
        %v6973 = vadd.f32 %v5683, %v6906
        %v6974 = vadd.f32 %v5684, %v6908
        %v6975 = vadd.f32 %v5685, %v6911
        %v6976 = vadd.f32 %v5686, %v6913
        %v6977 = vadd.f32 %v5687, %v6916
        %v6978 = vadd.f32 %v5688, %v6918
        %v6979 = vadd.f32 %v5689, %v6921
        %v6980 = vadd.f32 %v5690, %v6923
        %v6981 = vadd.f32 %v5691, %v6926
        %v6982 = vadd.f32 %v5692, %v6928
        %v6983 = vadd.f32 %v5693, %v6931
        %v6984 = vadd.f32 %v5694, %v6933
        %v6985 = vadd.f32 %v5695, %v6936
        %v6986 = vadd.f32 %v5696, %v6938
        %v6987 = vadd.f32 %v5697, %v6941
        %v6988 = vadd.f32 %v5698, %v6943
        %v6989 = vadd.f32 %v5699, %v6946
        %v6990 = vadd.f32 %v5700, %v6948
        %v6991 = vadd.f32 %v5701, %v6951
        %v6992 = vadd.f32 %v5702, %v6953
        %v6993 = vadd.f32 %v5703, %v6956
        %v6994 = vadd.f32 %v5704, %v6958
        %v6995 = vadd.f32 %v5705, %v6961
        %v6996 = vadd.f32 %v5706, %v6963
        %v6997 = vpack.c.bf16 %v6966, %v6965
        %v6998 = vpack.c.bf16 %v6968, %v6967
        %v6999 = vpack.c.bf16 %v6970, %v6969
        %v7000 = vpack.c.bf16 %v6972, %v6971
        %v7001 = vpack.c.bf16 %v6974, %v6973
        %v7002 = vpack.c.bf16 %v6976, %v6975
        %v7003 = vpack.c.bf16 %v6978, %v6977
        %v7004 = vpack.c.bf16 %v6980, %v6979
        %v7005 = vpack.c.bf16 %v6982, %v6981
        %v7006 = vpack.c.bf16 %v6984, %v6983
        %v7007 = vpack.c.bf16 %v6986, %v6985
        %v7008 = vpack.c.bf16 %v6988, %v6987
        %v7009 = vpack.c.bf16 %v6990, %v6989
        %v7010 = vpack.c.bf16 %v6992, %v6991
        %v7011 = vpack.c.bf16 %v6994, %v6993
        %v7012 = vpack.c.bf16 %v6996, %v6995
        %v7013 = vld [vmem:[%s6] sm:$0xf]
        %v7014 = vld [vmem:[%s6 + $0x4] sm:$0xf]
        %v7015 = vld [vmem:[%s6 + $0x8] sm:$0xf]
        %v7016 = vld [vmem:[%s6 + $0xc] sm:$0xf]
        %v7017 = vld [vmem:[%s6 + $0x10] sm:$0xf]
        %v7018 = vld [vmem:[%s6 + $0x14] sm:$0xf]
        %v7019 = vld [vmem:[%s6 + $0x18] sm:$0xf]
        %v7020 = vld [vmem:[%s6 + $0x1c] sm:$0xf]
        %v7021 = vld [vmem:[%s6 + $0x20] sm:$0xf]
        %v7022 = vld [vmem:[%s6 + $0x24] sm:$0xf]
        %v7023 = vld [vmem:[%s6 + $0x28] sm:$0xf]
        %v7024 = vld [vmem:[%s6 + $0x2c] sm:$0xf]
        %v7025 = vld [vmem:[%s6 + $0x30] sm:$0xf]
        %v7026 = vld [vmem:[%s6 + $0x34] sm:$0xf]
        %v7027 = vld [vmem:[%s6 + $0x38] sm:$0xf]
        %v7028 = vld [vmem:[%s6 + $0x3c] sm:$0xf]
        %v7029 = vld [vmem:[%s7] sm:$0x1]
        %v7031 = vperm.slane %v7029, 0
        %v7049 = vunpack.c.l.b16 %v7013
        %v7050 = vunpack.c.l.b16 %v7014
        %v7051 = vunpack.c.l.b16 %v7015
        %v7052 = vunpack.c.l.b16 %v7016
        %v7053 = vunpack.c.l.b16 %v7017
        %v7054 = vunpack.c.l.b16 %v7018
        %v7055 = vunpack.c.l.b16 %v7019
        %v7056 = vunpack.c.l.b16 %v7020
        %v7057 = vunpack.c.l.b16 %v7021
        %v7058 = vunpack.c.l.b16 %v7022
        %v7059 = vunpack.c.l.b16 %v7023
        %v7060 = vunpack.c.l.b16 %v7024
        %v7061 = vunpack.c.l.b16 %v7025
        %v7062 = vunpack.c.l.b16 %v7026
        %v7063 = vunpack.c.l.b16 %v7027
        %v7064 = vunpack.c.l.b16 %v7028
        %v7065 = vpack.c.b16 %v7050, %v7049
        %v7066 = vpack.c.b16 %v7052, %v7051
        %v7067 = vpack.c.b16 %v7054, %v7053
        %v7068 = vpack.c.b16 %v7056, %v7055
        %v7069 = vpack.c.b16 %v7058, %v7057
        %v7070 = vpack.c.b16 %v7060, %v7059
        %v7071 = vpack.c.b16 %v7062, %v7061
        %v7072 = vpack.c.b16 %v7064, %v7063
        %7081 = vmatpush.bf16.msra.mxu0 %v7072
        %7082 = vmatpush.bf16.msra.mxu0 %v7071
        %7083 = vmatpush.bf16.msra.mxu0 %v7070
        %7084 = vmatpush.bf16.msra.mxu0 %v7069
        %7085 = vmatpush.bf16.msra.mxu0 %v7068
        %7086 = vmatpush.bf16.msra.mxu0 %v7067
        %7087 = vmatpush.bf16.msra.mxu0 %v7066
        %7088 = vmatpush.bf16.msra.mxu0 %v7065
        %7089 = vmatmul.bf16.gmra.mxu0 %v6997
        %v7090 = vpop.f32.mrf.mxu0
        %v7091 = vadd.f32 %v7031, %v7090
        %v7092 = vpop.f32.mrf.mxu0
        %v7093 = vadd.f32 %v7031, %v7092
        %7094 = vmatmul.bf16.gmra.mxu0 %v6998
        %v7095 = vpop.f32.mrf.mxu0
        %v7096 = vadd.f32 %v7031, %v7095
        %v7097 = vpop.f32.mrf.mxu0
        %v7098 = vadd.f32 %v7031, %v7097
        %7099 = vmatmul.bf16.gmra.mxu0 %v6999
        %v7100 = vpop.f32.mrf.mxu0
        %v7101 = vadd.f32 %v7031, %v7100
        %v7102 = vpop.f32.mrf.mxu0
        %v7103 = vadd.f32 %v7031, %v7102
        %7104 = vmatmul.bf16.gmra.mxu0 %v7000
        %v7105 = vpop.f32.mrf.mxu0
        %v7106 = vadd.f32 %v7031, %v7105
        %v7107 = vpop.f32.mrf.mxu0
        %v7108 = vadd.f32 %v7031, %v7107
        %7109 = vmatmul.bf16.gmra.mxu0 %v7001
        %v7110 = vpop.f32.mrf.mxu0
        %v7111 = vadd.f32 %v7031, %v7110
        %v7112 = vpop.f32.mrf.mxu0
        %v7113 = vadd.f32 %v7031, %v7112
        %7114 = vmatmul.bf16.gmra.mxu0 %v7002
        %v7115 = vpop.f32.mrf.mxu0
        %v7116 = vadd.f32 %v7031, %v7115
        %v7117 = vpop.f32.mrf.mxu0
        %v7118 = vadd.f32 %v7031, %v7117
        %7119 = vmatmul.bf16.gmra.mxu0 %v7003
        %v7120 = vpop.f32.mrf.mxu0
        %v7121 = vadd.f32 %v7031, %v7120
        %v7122 = vpop.f32.mrf.mxu0
        %v7123 = vadd.f32 %v7031, %v7122
        %7124 = vmatmul.bf16.gmra.mxu0 %v7004
        %v7125 = vpop.f32.mrf.mxu0
        %v7126 = vadd.f32 %v7031, %v7125
        %v7127 = vpop.f32.mrf.mxu0
        %v7128 = vadd.f32 %v7031, %v7127
        %7129 = vmatmul.bf16.gmra.mxu0 %v7005
        %v7130 = vpop.f32.mrf.mxu0
        %v7131 = vadd.f32 %v7031, %v7130
        %v7132 = vpop.f32.mrf.mxu0
        %v7133 = vadd.f32 %v7031, %v7132
        %7134 = vmatmul.bf16.gmra.mxu0 %v7006
        %v7135 = vpop.f32.mrf.mxu0
        %v7136 = vadd.f32 %v7031, %v7135
        %v7137 = vpop.f32.mrf.mxu0
        %v7138 = vadd.f32 %v7031, %v7137
        %7139 = vmatmul.bf16.gmra.mxu0 %v7007
        %v7140 = vpop.f32.mrf.mxu0
        %v7141 = vadd.f32 %v7031, %v7140
        %v7142 = vpop.f32.mrf.mxu0
        %v7143 = vadd.f32 %v7031, %v7142
        %7144 = vmatmul.bf16.gmra.mxu0 %v7008
        %v7145 = vpop.f32.mrf.mxu0
        %v7146 = vadd.f32 %v7031, %v7145
        %v7147 = vpop.f32.mrf.mxu0
        %v7148 = vadd.f32 %v7031, %v7147
        %7149 = vmatmul.bf16.gmra.mxu0 %v7009
        %v7150 = vpop.f32.mrf.mxu0
        %v7151 = vadd.f32 %v7031, %v7150
        %v7152 = vpop.f32.mrf.mxu0
        %v7153 = vadd.f32 %v7031, %v7152
        %7154 = vmatmul.bf16.gmra.mxu0 %v7010
        %v7155 = vpop.f32.mrf.mxu0
        %v7156 = vadd.f32 %v7031, %v7155
        %v7157 = vpop.f32.mrf.mxu0
        %v7158 = vadd.f32 %v7031, %v7157
        %7159 = vmatmul.bf16.gmra.mxu0 %v7011
        %v7160 = vpop.f32.mrf.mxu0
        %v7161 = vadd.f32 %v7031, %v7160
        %v7162 = vpop.f32.mrf.mxu0
        %v7163 = vadd.f32 %v7031, %v7162
        %7164 = vmatmul.bf16.gmra.mxu0 %v7012
        %v7165 = vpop.f32.mrf.mxu0
        %v7166 = vadd.f32 %v7031, %v7165
        %v7167 = vpop.f32.mrf.mxu0
        %v7168 = vadd.f32 %v7031, %v7167
        %7169 = vdwg.mxu0
        %v7170 = vadd.f32 %v473, %v7091
        %v7171 = vadd.f32 %v474, %v7093
        %v7172 = vadd.f32 %v475, %v7096
        %v7173 = vadd.f32 %v476, %v7098
        %v7174 = vadd.f32 %v477, %v7101
        %v7175 = vadd.f32 %v478, %v7103
        %v7176 = vadd.f32 %v479, %v7106
        %v7177 = vadd.f32 %v480, %v7108
        %v7178 = vadd.f32 %v481, %v7111
        %v7179 = vadd.f32 %v482, %v7113
        %v7180 = vadd.f32 %v483, %v7116
        %v7181 = vadd.f32 %v484, %v7118
        %v7182 = vadd.f32 %v485, %v7121
        %v7183 = vadd.f32 %v486, %v7123
        %v7184 = vadd.f32 %v487, %v7126
        %v7185 = vadd.f32 %v488, %v7128
        %v7186 = vadd.f32 %v489, %v7131
        %v7187 = vadd.f32 %v490, %v7133
        %v7188 = vadd.f32 %v491, %v7136
        %v7189 = vadd.f32 %v492, %v7138
        %v7190 = vadd.f32 %v493, %v7141
        %v7191 = vadd.f32 %v494, %v7143
        %v7192 = vadd.f32 %v495, %v7146
        %v7193 = vadd.f32 %v496, %v7148
        %v7194 = vadd.f32 %v497, %v7151
        %v7195 = vadd.f32 %v498, %v7153
        %v7196 = vadd.f32 %v499, %v7156
        %v7197 = vadd.f32 %v500, %v7158
        %v7198 = vadd.f32 %v501, %v7161
        %v7199 = vadd.f32 %v502, %v7163
        %v7200 = vadd.f32 %v503, %v7166
        %v7201 = vadd.f32 %v504, %v7168
        %v7202 = vld [vmem:[%s8] sm:$0x1]
        %v7203 = vld [vmem:[%s9] sm:$0x1]
        %7204 = vadd.xlane.f32.xlu0 %v7170
        %v7205 = vpop.xlane.xlu0 %7204
        %7206 = vadd.xlane.f32.xlu0 %v7171
        %v7207 = vpop.xlane.xlu0 %7206
        %7208 = vadd.xlane.f32.xlu0 %v7172
        %v7209 = vpop.xlane.xlu0 %7208
        %7210 = vadd.xlane.f32.xlu0 %v7173
        %v7211 = vpop.xlane.xlu0 %7210
        %7212 = vadd.xlane.f32.xlu0 %v7174
        %v7213 = vpop.xlane.xlu0 %7212
        %7214 = vadd.xlane.f32.xlu0 %v7175
        %v7215 = vpop.xlane.xlu0 %7214
        %7216 = vadd.xlane.f32.xlu0 %v7176
        %v7217 = vpop.xlane.xlu0 %7216
        %7218 = vadd.xlane.f32.xlu0 %v7177
        %v7219 = vpop.xlane.xlu0 %7218
        %7220 = vadd.xlane.f32.xlu0 %v7178
        %v7221 = vpop.xlane.xlu0 %7220
        %7222 = vadd.xlane.f32.xlu0 %v7179
        %v7223 = vpop.xlane.xlu0 %7222
        %7224 = vadd.xlane.f32.xlu0 %v7180
        %v7225 = vpop.xlane.xlu0 %7224
        %7226 = vadd.xlane.f32.xlu0 %v7181
        %v7227 = vpop.xlane.xlu0 %7226
        %7228 = vadd.xlane.f32.xlu0 %v7182
        %v7229 = vpop.xlane.xlu0 %7228
        %7230 = vadd.xlane.f32.xlu0 %v7183
        %v7231 = vpop.xlane.xlu0 %7230
        %7232 = vadd.xlane.f32.xlu0 %v7184
        %v7233 = vpop.xlane.xlu0 %7232
        %7234 = vadd.xlane.f32.xlu0 %v7185
        %v7235 = vpop.xlane.xlu0 %7234
        %7236 = vadd.xlane.f32.xlu0 %v7186
        %v7237 = vpop.xlane.xlu0 %7236
        %7238 = vadd.xlane.f32.xlu0 %v7187
        %v7239 = vpop.xlane.xlu0 %7238
        %7240 = vadd.xlane.f32.xlu0 %v7188
        %v7241 = vpop.xlane.xlu0 %7240
        %7242 = vadd.xlane.f32.xlu0 %v7189
        %v7243 = vpop.xlane.xlu0 %7242
        %7244 = vadd.xlane.f32.xlu0 %v7190
        %v7245 = vpop.xlane.xlu0 %7244
        %7246 = vadd.xlane.f32.xlu0 %v7191
        %v7247 = vpop.xlane.xlu0 %7246
        %7248 = vadd.xlane.f32.xlu0 %v7192
        %v7249 = vpop.xlane.xlu0 %7248
        %7250 = vadd.xlane.f32.xlu0 %v7193
        %v7251 = vpop.xlane.xlu0 %7250
        %7252 = vadd.xlane.f32.xlu0 %v7194
        %v7253 = vpop.xlane.xlu0 %7252
        %7254 = vadd.xlane.f32.xlu0 %v7195
        %v7255 = vpop.xlane.xlu0 %7254
        %7256 = vadd.xlane.f32.xlu0 %v7196
        %v7257 = vpop.xlane.xlu0 %7256
        %7258 = vadd.xlane.f32.xlu0 %v7197
        %v7259 = vpop.xlane.xlu0 %7258
        %7260 = vadd.xlane.f32.xlu0 %v7198
        %v7261 = vpop.xlane.xlu0 %7260
        %7262 = vadd.xlane.f32.xlu0 %v7199
        %v7263 = vpop.xlane.xlu0 %7262
        %7264 = vadd.xlane.f32.xlu0 %v7200
        %v7265 = vpop.xlane.xlu0 %7264
        %7266 = vadd.xlane.f32.xlu0 %v7201
        %v7267 = vpop.xlane.xlu0 %7266
        %v7268 = vmul.f32 %v7205, %v577
        %v7269 = vmul.f32 %v7207, %v577
        %v7270 = vmul.f32 %v7209, %v577
        %v7271 = vmul.f32 %v7211, %v577
        %v7272 = vmul.f32 %v7213, %v577
        %v7273 = vmul.f32 %v7215, %v577
        %v7274 = vmul.f32 %v7217, %v577
        %v7275 = vmul.f32 %v7219, %v577
        %v7276 = vmul.f32 %v7221, %v577
        %v7277 = vmul.f32 %v7223, %v577
        %v7278 = vmul.f32 %v7225, %v577
        %v7279 = vmul.f32 %v7227, %v577
        %v7280 = vmul.f32 %v7229, %v577
        %v7281 = vmul.f32 %v7231, %v577
        %v7282 = vmul.f32 %v7233, %v577
        %v7283 = vmul.f32 %v7235, %v577
        %v7284 = vmul.f32 %v7237, %v577
        %v7285 = vmul.f32 %v7239, %v577
        %v7286 = vmul.f32 %v7241, %v577
        %v7287 = vmul.f32 %v7243, %v577
        %v7288 = vmul.f32 %v7245, %v577
        %v7289 = vmul.f32 %v7247, %v577
        %v7290 = vmul.f32 %v7249, %v577
        %v7291 = vmul.f32 %v7251, %v577
        %v7292 = vmul.f32 %v7253, %v577
        %v7293 = vmul.f32 %v7255, %v577
        %v7294 = vmul.f32 %v7257, %v577
        %v7295 = vmul.f32 %v7259, %v577
        %v7296 = vmul.f32 %v7261, %v577
        %v7297 = vmul.f32 %v7263, %v577
        %v7298 = vmul.f32 %v7265, %v577
        %v7299 = vmul.f32 %v7267, %v577
        %v7300 = vsub.f32 %v7170, %v7268
        %v7301 = vsub.f32 %v7171, %v7269
        %v7302 = vsub.f32 %v7172, %v7270
        %v7303 = vsub.f32 %v7173, %v7271
        %v7304 = vsub.f32 %v7174, %v7272
        %v7305 = vsub.f32 %v7175, %v7273
        %v7306 = vsub.f32 %v7176, %v7274
        %v7307 = vsub.f32 %v7177, %v7275
        %v7308 = vsub.f32 %v7178, %v7276
        %v7309 = vsub.f32 %v7179, %v7277
        %v7310 = vsub.f32 %v7180, %v7278
        %v7311 = vsub.f32 %v7181, %v7279
        %v7312 = vsub.f32 %v7182, %v7280
        %v7313 = vsub.f32 %v7183, %v7281
        %v7314 = vsub.f32 %v7184, %v7282
        %v7315 = vsub.f32 %v7185, %v7283
        %v7316 = vsub.f32 %v7186, %v7284
        %v7317 = vsub.f32 %v7187, %v7285
        %v7318 = vsub.f32 %v7188, %v7286
        %v7319 = vsub.f32 %v7189, %v7287
        %v7320 = vsub.f32 %v7190, %v7288
        %v7321 = vsub.f32 %v7191, %v7289
        %v7322 = vsub.f32 %v7192, %v7290
        %v7323 = vsub.f32 %v7193, %v7291
        %v7324 = vsub.f32 %v7194, %v7292
        %v7325 = vsub.f32 %v7195, %v7293
        %v7326 = vsub.f32 %v7196, %v7294
        %v7327 = vsub.f32 %v7197, %v7295
        %v7328 = vsub.f32 %v7198, %v7296
        %v7329 = vsub.f32 %v7199, %v7297
        %v7330 = vsub.f32 %v7200, %v7298
        %v7331 = vsub.f32 %v7201, %v7299
        %v7332 = vmul.f32 %v7300, %v7300
        %v7333 = vmul.f32 %v7301, %v7301
        %v7334 = vmul.f32 %v7302, %v7302
        %v7335 = vmul.f32 %v7303, %v7303
        %v7336 = vmul.f32 %v7304, %v7304
        %v7337 = vmul.f32 %v7305, %v7305
        %v7338 = vmul.f32 %v7306, %v7306
        %v7339 = vmul.f32 %v7307, %v7307
        %v7340 = vmul.f32 %v7308, %v7308
        %v7341 = vmul.f32 %v7309, %v7309
        %v7342 = vmul.f32 %v7310, %v7310
        %v7343 = vmul.f32 %v7311, %v7311
        %v7344 = vmul.f32 %v7312, %v7312
        %v7345 = vmul.f32 %v7313, %v7313
        %v7346 = vmul.f32 %v7314, %v7314
        %v7347 = vmul.f32 %v7315, %v7315
        %v7348 = vmul.f32 %v7316, %v7316
        %v7349 = vmul.f32 %v7317, %v7317
        %v7350 = vmul.f32 %v7318, %v7318
        %v7351 = vmul.f32 %v7319, %v7319
        %v7352 = vmul.f32 %v7320, %v7320
        %v7353 = vmul.f32 %v7321, %v7321
        %v7354 = vmul.f32 %v7322, %v7322
        %v7355 = vmul.f32 %v7323, %v7323
        %v7356 = vmul.f32 %v7324, %v7324
        %v7357 = vmul.f32 %v7325, %v7325
        %v7358 = vmul.f32 %v7326, %v7326
        %v7359 = vmul.f32 %v7327, %v7327
        %v7360 = vmul.f32 %v7328, %v7328
        %v7361 = vmul.f32 %v7329, %v7329
        %v7362 = vmul.f32 %v7330, %v7330
        %v7363 = vmul.f32 %v7331, %v7331
        %7364 = vadd.xlane.f32.xlu0 %v7332
        %v7365 = vpop.xlane.xlu0 %7364
        %7366 = vadd.xlane.f32.xlu0 %v7333
        %v7367 = vpop.xlane.xlu0 %7366
        %7368 = vadd.xlane.f32.xlu0 %v7334
        %v7369 = vpop.xlane.xlu0 %7368
        %7370 = vadd.xlane.f32.xlu0 %v7335
        %v7371 = vpop.xlane.xlu0 %7370
        %7372 = vadd.xlane.f32.xlu0 %v7336
        %v7373 = vpop.xlane.xlu0 %7372
        %7374 = vadd.xlane.f32.xlu0 %v7337
        %v7375 = vpop.xlane.xlu0 %7374
        %7376 = vadd.xlane.f32.xlu0 %v7338
        %v7377 = vpop.xlane.xlu0 %7376
        %7378 = vadd.xlane.f32.xlu0 %v7339
        %v7379 = vpop.xlane.xlu0 %7378
        %7380 = vadd.xlane.f32.xlu0 %v7340
        %v7381 = vpop.xlane.xlu0 %7380
        %7382 = vadd.xlane.f32.xlu0 %v7341
        %v7383 = vpop.xlane.xlu0 %7382
        %7384 = vadd.xlane.f32.xlu0 %v7342
        %v7385 = vpop.xlane.xlu0 %7384
        %7386 = vadd.xlane.f32.xlu0 %v7343
        %v7387 = vpop.xlane.xlu0 %7386
        %7388 = vadd.xlane.f32.xlu0 %v7344
        %v7389 = vpop.xlane.xlu0 %7388
        %7390 = vadd.xlane.f32.xlu0 %v7345
        %v7391 = vpop.xlane.xlu0 %7390
        %7392 = vadd.xlane.f32.xlu0 %v7346
        %v7393 = vpop.xlane.xlu0 %7392
        %7394 = vadd.xlane.f32.xlu0 %v7347
        %v7395 = vpop.xlane.xlu0 %7394
        %7396 = vadd.xlane.f32.xlu0 %v7348
        %v7397 = vpop.xlane.xlu0 %7396
        %7398 = vadd.xlane.f32.xlu0 %v7349
        %v7399 = vpop.xlane.xlu0 %7398
        %7400 = vadd.xlane.f32.xlu0 %v7350
        %v7401 = vpop.xlane.xlu0 %7400
        %7402 = vadd.xlane.f32.xlu0 %v7351
        %v7403 = vpop.xlane.xlu0 %7402
        %7404 = vadd.xlane.f32.xlu0 %v7352
        %v7405 = vpop.xlane.xlu0 %7404
        %7406 = vadd.xlane.f32.xlu0 %v7353
        %v7407 = vpop.xlane.xlu0 %7406
        %7408 = vadd.xlane.f32.xlu0 %v7354
        %v7409 = vpop.xlane.xlu0 %7408
        %7410 = vadd.xlane.f32.xlu0 %v7355
        %v7411 = vpop.xlane.xlu0 %7410
        %7412 = vadd.xlane.f32.xlu0 %v7356
        %v7413 = vpop.xlane.xlu0 %7412
        %7414 = vadd.xlane.f32.xlu0 %v7357
        %v7415 = vpop.xlane.xlu0 %7414
        %7416 = vadd.xlane.f32.xlu0 %v7358
        %v7417 = vpop.xlane.xlu0 %7416
        %7418 = vadd.xlane.f32.xlu0 %v7359
        %v7419 = vpop.xlane.xlu0 %7418
        %7420 = vadd.xlane.f32.xlu0 %v7360
        %v7421 = vpop.xlane.xlu0 %7420
        %7422 = vadd.xlane.f32.xlu0 %v7361
        %v7423 = vpop.xlane.xlu0 %7422
        %7424 = vadd.xlane.f32.xlu0 %v7362
        %v7425 = vpop.xlane.xlu0 %7424
        %7426 = vadd.xlane.f32.xlu0 %v7363
        %v7427 = vpop.xlane.xlu0 %7426
        %v7428 = vmul.f32 %v7365, %v577
        %v7429 = vmul.f32 %v7367, %v577
        %v7430 = vmul.f32 %v7369, %v577
        %v7431 = vmul.f32 %v7371, %v577
        %v7432 = vmul.f32 %v7373, %v577
        %v7433 = vmul.f32 %v7375, %v577
        %v7434 = vmul.f32 %v7377, %v577
        %v7435 = vmul.f32 %v7379, %v577
        %v7436 = vmul.f32 %v7381, %v577
        %v7437 = vmul.f32 %v7383, %v577
        %v7438 = vmul.f32 %v7385, %v577
        %v7439 = vmul.f32 %v7387, %v577
        %v7440 = vmul.f32 %v7389, %v577
        %v7441 = vmul.f32 %v7391, %v577
        %v7442 = vmul.f32 %v7393, %v577
        %v7443 = vmul.f32 %v7395, %v577
        %v7444 = vmul.f32 %v7397, %v577
        %v7445 = vmul.f32 %v7399, %v577
        %v7446 = vmul.f32 %v7401, %v577
        %v7447 = vmul.f32 %v7403, %v577
        %v7448 = vmul.f32 %v7405, %v577
        %v7449 = vmul.f32 %v7407, %v577
        %v7450 = vmul.f32 %v7409, %v577
        %v7451 = vmul.f32 %v7411, %v577
        %v7452 = vmul.f32 %v7413, %v577
        %v7453 = vmul.f32 %v7415, %v577
        %v7454 = vmul.f32 %v7417, %v577
        %v7455 = vmul.f32 %v7419, %v577
        %v7456 = vmul.f32 %v7421, %v577
        %v7457 = vmul.f32 %v7423, %v577
        %v7458 = vmul.f32 %v7425, %v577
        %v7459 = vmul.f32 %v7427, %v577
        %v7460 = vadd.f32 %v7428, 1e-06
        %v7461 = vadd.f32 %v7429, 1e-06
        %v7462 = vadd.f32 %v7430, 1e-06
        %v7463 = vadd.f32 %v7431, 1e-06
        %v7464 = vadd.f32 %v7432, 1e-06
        %v7465 = vadd.f32 %v7433, 1e-06
        %v7466 = vadd.f32 %v7434, 1e-06
        %v7467 = vadd.f32 %v7435, 1e-06
        %v7468 = vadd.f32 %v7436, 1e-06
        %v7469 = vadd.f32 %v7437, 1e-06
        %v7470 = vadd.f32 %v7438, 1e-06
        %v7471 = vadd.f32 %v7439, 1e-06
        %v7472 = vadd.f32 %v7440, 1e-06
        %v7473 = vadd.f32 %v7441, 1e-06
        %v7474 = vadd.f32 %v7442, 1e-06
        %v7475 = vadd.f32 %v7443, 1e-06
        %v7476 = vadd.f32 %v7444, 1e-06
        %v7477 = vadd.f32 %v7445, 1e-06
        %v7478 = vadd.f32 %v7446, 1e-06
        %v7479 = vadd.f32 %v7447, 1e-06
        %v7480 = vadd.f32 %v7448, 1e-06
        %v7481 = vadd.f32 %v7449, 1e-06
        %v7482 = vadd.f32 %v7450, 1e-06
        %v7483 = vadd.f32 %v7451, 1e-06
        %v7484 = vadd.f32 %v7452, 1e-06
        %v7485 = vadd.f32 %v7453, 1e-06
        %v7486 = vadd.f32 %v7454, 1e-06
        %v7487 = vadd.f32 %v7455, 1e-06
        %v7488 = vadd.f32 %v7456, 1e-06
        %v7489 = vadd.f32 %v7457, 1e-06
        %v7490 = vadd.f32 %v7458, 1e-06
        %v7491 = vadd.f32 %v7459, 1e-06
        %v7492 = vrsqrt.pop %v7460
        %v7493 = vmul.f32 %v7492, %v7460
        %v7494 = vmul.f32 %v7493, %v7492
        %v7495 = vmul.f32 0.5, %v7494
        %v7496 = vsub.f32 1.5, %v7495
        %v7497 = vmul.f32 %v7492, %v7496
        %vm7498 = vweird.f32 %v7460
        %vm7499 = vweird.f32 %v7492
        %vm7500 = vmor %vm7498, %vm7499
        %v7501 = vsel %vm7500, %v7492, %v7497
        %v7502 = vrsqrt.pop %v7461
        %v7503 = vmul.f32 %v7502, %v7461
        %v7504 = vmul.f32 %v7503, %v7502
        %v7505 = vmul.f32 0.5, %v7504
        %v7506 = vsub.f32 1.5, %v7505
        %v7507 = vmul.f32 %v7502, %v7506
        %vm7508 = vweird.f32 %v7461
        %vm7509 = vweird.f32 %v7502
        %vm7510 = vmor %vm7508, %vm7509
        %v7511 = vsel %vm7510, %v7502, %v7507
        %v7512 = vrsqrt.pop %v7462
        %v7513 = vmul.f32 %v7512, %v7462
        %v7514 = vmul.f32 %v7513, %v7512
        %v7515 = vmul.f32 0.5, %v7514
        %v7516 = vsub.f32 1.5, %v7515
        %v7517 = vmul.f32 %v7512, %v7516
        %vm7518 = vweird.f32 %v7462
        %vm7519 = vweird.f32 %v7512
        %vm7520 = vmor %vm7518, %vm7519
        %v7521 = vsel %vm7520, %v7512, %v7517
        %v7522 = vrsqrt.pop %v7463
        %v7523 = vmul.f32 %v7522, %v7463
        %v7524 = vmul.f32 %v7523, %v7522
        %v7525 = vmul.f32 0.5, %v7524
        %v7526 = vsub.f32 1.5, %v7525
        %v7527 = vmul.f32 %v7522, %v7526
        %vm7528 = vweird.f32 %v7463
        %vm7529 = vweird.f32 %v7522
        %vm7530 = vmor %vm7528, %vm7529
        %v7531 = vsel %vm7530, %v7522, %v7527
        %v7532 = vrsqrt.pop %v7464
        %v7533 = vmul.f32 %v7532, %v7464
        %v7534 = vmul.f32 %v7533, %v7532
        %v7535 = vmul.f32 0.5, %v7534
        %v7536 = vsub.f32 1.5, %v7535
        %v7537 = vmul.f32 %v7532, %v7536
        %vm7538 = vweird.f32 %v7464
        %vm7539 = vweird.f32 %v7532
        %vm7540 = vmor %vm7538, %vm7539
        %v7541 = vsel %vm7540, %v7532, %v7537
        %v7542 = vrsqrt.pop %v7465
        %v7543 = vmul.f32 %v7542, %v7465
        %v7544 = vmul.f32 %v7543, %v7542
        %v7545 = vmul.f32 0.5, %v7544
        %v7546 = vsub.f32 1.5, %v7545
        %v7547 = vmul.f32 %v7542, %v7546
        %vm7548 = vweird.f32 %v7465
        %vm7549 = vweird.f32 %v7542
        %vm7550 = vmor %vm7548, %vm7549
        %v7551 = vsel %vm7550, %v7542, %v7547
        %v7552 = vrsqrt.pop %v7466
        %v7553 = vmul.f32 %v7552, %v7466
        %v7554 = vmul.f32 %v7553, %v7552
        %v7555 = vmul.f32 0.5, %v7554
        %v7556 = vsub.f32 1.5, %v7555
        %v7557 = vmul.f32 %v7552, %v7556
        %vm7558 = vweird.f32 %v7466
        %vm7559 = vweird.f32 %v7552
        %vm7560 = vmor %vm7558, %vm7559
        %v7561 = vsel %vm7560, %v7552, %v7557
        %v7562 = vrsqrt.pop %v7467
        %v7563 = vmul.f32 %v7562, %v7467
        %v7564 = vmul.f32 %v7563, %v7562
        %v7565 = vmul.f32 0.5, %v7564
        %v7566 = vsub.f32 1.5, %v7565
        %v7567 = vmul.f32 %v7562, %v7566
        %vm7568 = vweird.f32 %v7467
        %vm7569 = vweird.f32 %v7562
        %vm7570 = vmor %vm7568, %vm7569
        %v7571 = vsel %vm7570, %v7562, %v7567
        %v7572 = vrsqrt.pop %v7468
        %v7573 = vmul.f32 %v7572, %v7468
        %v7574 = vmul.f32 %v7573, %v7572
        %v7575 = vmul.f32 0.5, %v7574
        %v7576 = vsub.f32 1.5, %v7575
        %v7577 = vmul.f32 %v7572, %v7576
        %vm7578 = vweird.f32 %v7468
        %vm7579 = vweird.f32 %v7572
        %vm7580 = vmor %vm7578, %vm7579
        %v7581 = vsel %vm7580, %v7572, %v7577
        %v7582 = vrsqrt.pop %v7469
        %v7583 = vmul.f32 %v7582, %v7469
        %v7584 = vmul.f32 %v7583, %v7582
        %v7585 = vmul.f32 0.5, %v7584
        %v7586 = vsub.f32 1.5, %v7585
        %v7587 = vmul.f32 %v7582, %v7586
        %vm7588 = vweird.f32 %v7469
        %vm7589 = vweird.f32 %v7582
        %vm7590 = vmor %vm7588, %vm7589
        %v7591 = vsel %vm7590, %v7582, %v7587
        %v7592 = vrsqrt.pop %v7470
        %v7593 = vmul.f32 %v7592, %v7470
        %v7594 = vmul.f32 %v7593, %v7592
        %v7595 = vmul.f32 0.5, %v7594
        %v7596 = vsub.f32 1.5, %v7595
        %v7597 = vmul.f32 %v7592, %v7596
        %vm7598 = vweird.f32 %v7470
        %vm7599 = vweird.f32 %v7592
        %vm7600 = vmor %vm7598, %vm7599
        %v7601 = vsel %vm7600, %v7592, %v7597
        %v7602 = vrsqrt.pop %v7471
        %v7603 = vmul.f32 %v7602, %v7471
        %v7604 = vmul.f32 %v7603, %v7602
        %v7605 = vmul.f32 0.5, %v7604
        %v7606 = vsub.f32 1.5, %v7605
        %v7607 = vmul.f32 %v7602, %v7606
        %vm7608 = vweird.f32 %v7471
        %vm7609 = vweird.f32 %v7602
        %vm7610 = vmor %vm7608, %vm7609
        %v7611 = vsel %vm7610, %v7602, %v7607
        %v7612 = vrsqrt.pop %v7472
        %v7613 = vmul.f32 %v7612, %v7472
        %v7614 = vmul.f32 %v7613, %v7612
        %v7615 = vmul.f32 0.5, %v7614
        %v7616 = vsub.f32 1.5, %v7615
        %v7617 = vmul.f32 %v7612, %v7616
        %vm7618 = vweird.f32 %v7472
        %vm7619 = vweird.f32 %v7612
        %vm7620 = vmor %vm7618, %vm7619
        %v7621 = vsel %vm7620, %v7612, %v7617
        %v7622 = vrsqrt.pop %v7473
        %v7623 = vmul.f32 %v7622, %v7473
        %v7624 = vmul.f32 %v7623, %v7622
        %v7625 = vmul.f32 0.5, %v7624
        %v7626 = vsub.f32 1.5, %v7625
        %v7627 = vmul.f32 %v7622, %v7626
        %vm7628 = vweird.f32 %v7473
        %vm7629 = vweird.f32 %v7622
        %vm7630 = vmor %vm7628, %vm7629
        %v7631 = vsel %vm7630, %v7622, %v7627
        %v7632 = vrsqrt.pop %v7474
        %v7633 = vmul.f32 %v7632, %v7474
        %v7634 = vmul.f32 %v7633, %v7632
        %v7635 = vmul.f32 0.5, %v7634
        %v7636 = vsub.f32 1.5, %v7635
        %v7637 = vmul.f32 %v7632, %v7636
        %vm7638 = vweird.f32 %v7474
        %vm7639 = vweird.f32 %v7632
        %vm7640 = vmor %vm7638, %vm7639
        %v7641 = vsel %vm7640, %v7632, %v7637
        %v7642 = vrsqrt.pop %v7475
        %v7643 = vmul.f32 %v7642, %v7475
        %v7644 = vmul.f32 %v7643, %v7642
        %v7645 = vmul.f32 0.5, %v7644
        %v7646 = vsub.f32 1.5, %v7645
        %v7647 = vmul.f32 %v7642, %v7646
        %vm7648 = vweird.f32 %v7475
        %vm7649 = vweird.f32 %v7642
        %vm7650 = vmor %vm7648, %vm7649
        %v7651 = vsel %vm7650, %v7642, %v7647
        %v7652 = vrsqrt.pop %v7476
        %v7653 = vmul.f32 %v7652, %v7476
        %v7654 = vmul.f32 %v7653, %v7652
        %v7655 = vmul.f32 0.5, %v7654
        %v7656 = vsub.f32 1.5, %v7655
        %v7657 = vmul.f32 %v7652, %v7656
        %vm7658 = vweird.f32 %v7476
        %vm7659 = vweird.f32 %v7652
        %vm7660 = vmor %vm7658, %vm7659
        %v7661 = vsel %vm7660, %v7652, %v7657
        %v7662 = vrsqrt.pop %v7477
        %v7663 = vmul.f32 %v7662, %v7477
        %v7664 = vmul.f32 %v7663, %v7662
        %v7665 = vmul.f32 0.5, %v7664
        %v7666 = vsub.f32 1.5, %v7665
        %v7667 = vmul.f32 %v7662, %v7666
        %vm7668 = vweird.f32 %v7477
        %vm7669 = vweird.f32 %v7662
        %vm7670 = vmor %vm7668, %vm7669
        %v7671 = vsel %vm7670, %v7662, %v7667
        %v7672 = vrsqrt.pop %v7478
        %v7673 = vmul.f32 %v7672, %v7478
        %v7674 = vmul.f32 %v7673, %v7672
        %v7675 = vmul.f32 0.5, %v7674
        %v7676 = vsub.f32 1.5, %v7675
        %v7677 = vmul.f32 %v7672, %v7676
        %vm7678 = vweird.f32 %v7478
        %vm7679 = vweird.f32 %v7672
        %vm7680 = vmor %vm7678, %vm7679
        %v7681 = vsel %vm7680, %v7672, %v7677
        %v7682 = vrsqrt.pop %v7479
        %v7683 = vmul.f32 %v7682, %v7479
        %v7684 = vmul.f32 %v7683, %v7682
        %v7685 = vmul.f32 0.5, %v7684
        %v7686 = vsub.f32 1.5, %v7685
        %v7687 = vmul.f32 %v7682, %v7686
        %vm7688 = vweird.f32 %v7479
        %vm7689 = vweird.f32 %v7682
        %vm7690 = vmor %vm7688, %vm7689
        %v7691 = vsel %vm7690, %v7682, %v7687
        %v7692 = vrsqrt.pop %v7480
        %v7693 = vmul.f32 %v7692, %v7480
        %v7694 = vmul.f32 %v7693, %v7692
        %v7695 = vmul.f32 0.5, %v7694
        %v7696 = vsub.f32 1.5, %v7695
        %v7697 = vmul.f32 %v7692, %v7696
        %vm7698 = vweird.f32 %v7480
        %vm7699 = vweird.f32 %v7692
        %vm7700 = vmor %vm7698, %vm7699
        %v7701 = vsel %vm7700, %v7692, %v7697
        %v7702 = vrsqrt.pop %v7481
        %v7703 = vmul.f32 %v7702, %v7481
        %v7704 = vmul.f32 %v7703, %v7702
        %v7705 = vmul.f32 0.5, %v7704
        %v7706 = vsub.f32 1.5, %v7705
        %v7707 = vmul.f32 %v7702, %v7706
        %vm7708 = vweird.f32 %v7481
        %vm7709 = vweird.f32 %v7702
        %vm7710 = vmor %vm7708, %vm7709
        %v7711 = vsel %vm7710, %v7702, %v7707
        %v7712 = vrsqrt.pop %v7482
        %v7713 = vmul.f32 %v7712, %v7482
        %v7714 = vmul.f32 %v7713, %v7712
        %v7715 = vmul.f32 0.5, %v7714
        %v7716 = vsub.f32 1.5, %v7715
        %v7717 = vmul.f32 %v7712, %v7716
        %vm7718 = vweird.f32 %v7482
        %vm7719 = vweird.f32 %v7712
        %vm7720 = vmor %vm7718, %vm7719
        %v7721 = vsel %vm7720, %v7712, %v7717
        %v7722 = vrsqrt.pop %v7483
        %v7723 = vmul.f32 %v7722, %v7483
        %v7724 = vmul.f32 %v7723, %v7722
        %v7725 = vmul.f32 0.5, %v7724
        %v7726 = vsub.f32 1.5, %v7725
        %v7727 = vmul.f32 %v7722, %v7726
        %vm7728 = vweird.f32 %v7483
        %vm7729 = vweird.f32 %v7722
        %vm7730 = vmor %vm7728, %vm7729
        %v7731 = vsel %vm7730, %v7722, %v7727
        %v7732 = vrsqrt.pop %v7484
        %v7733 = vmul.f32 %v7732, %v7484
        %v7734 = vmul.f32 %v7733, %v7732
        %v7735 = vmul.f32 0.5, %v7734
        %v7736 = vsub.f32 1.5, %v7735
        %v7737 = vmul.f32 %v7732, %v7736
        %vm7738 = vweird.f32 %v7484
        %vm7739 = vweird.f32 %v7732
        %vm7740 = vmor %vm7738, %vm7739
        %v7741 = vsel %vm7740, %v7732, %v7737
        %v7742 = vrsqrt.pop %v7485
        %v7743 = vmul.f32 %v7742, %v7485
        %v7744 = vmul.f32 %v7743, %v7742
        %v7745 = vmul.f32 0.5, %v7744
        %v7746 = vsub.f32 1.5, %v7745
        %v7747 = vmul.f32 %v7742, %v7746
        %vm7748 = vweird.f32 %v7485
        %vm7749 = vweird.f32 %v7742
        %vm7750 = vmor %vm7748, %vm7749
        %v7751 = vsel %vm7750, %v7742, %v7747
        %v7752 = vrsqrt.pop %v7486
        %v7753 = vmul.f32 %v7752, %v7486
        %v7754 = vmul.f32 %v7753, %v7752
        %v7755 = vmul.f32 0.5, %v7754
        %v7756 = vsub.f32 1.5, %v7755
        %v7757 = vmul.f32 %v7752, %v7756
        %vm7758 = vweird.f32 %v7486
        %vm7759 = vweird.f32 %v7752
        %vm7760 = vmor %vm7758, %vm7759
        %v7761 = vsel %vm7760, %v7752, %v7757
        %v7762 = vrsqrt.pop %v7487
        %v7763 = vmul.f32 %v7762, %v7487
        %v7764 = vmul.f32 %v7763, %v7762
        %v7765 = vmul.f32 0.5, %v7764
        %v7766 = vsub.f32 1.5, %v7765
        %v7767 = vmul.f32 %v7762, %v7766
        %vm7768 = vweird.f32 %v7487
        %vm7769 = vweird.f32 %v7762
        %vm7770 = vmor %vm7768, %vm7769
        %v7771 = vsel %vm7770, %v7762, %v7767
        %v7772 = vrsqrt.pop %v7488
        %v7773 = vmul.f32 %v7772, %v7488
        %v7774 = vmul.f32 %v7773, %v7772
        %v7775 = vmul.f32 0.5, %v7774
        %v7776 = vsub.f32 1.5, %v7775
        %v7777 = vmul.f32 %v7772, %v7776
        %vm7778 = vweird.f32 %v7488
        %vm7779 = vweird.f32 %v7772
        %vm7780 = vmor %vm7778, %vm7779
        %v7781 = vsel %vm7780, %v7772, %v7777
        %v7782 = vrsqrt.pop %v7489
        %v7783 = vmul.f32 %v7782, %v7489
        %v7784 = vmul.f32 %v7783, %v7782
        %v7785 = vmul.f32 0.5, %v7784
        %v7786 = vsub.f32 1.5, %v7785
        %v7787 = vmul.f32 %v7782, %v7786
        %vm7788 = vweird.f32 %v7489
        %vm7789 = vweird.f32 %v7782
        %vm7790 = vmor %vm7788, %vm7789
        %v7791 = vsel %vm7790, %v7782, %v7787
        %v7792 = vrsqrt.pop %v7490
        %v7793 = vmul.f32 %v7792, %v7490
        %v7794 = vmul.f32 %v7793, %v7792
        %v7795 = vmul.f32 0.5, %v7794
        %v7796 = vsub.f32 1.5, %v7795
        %v7797 = vmul.f32 %v7792, %v7796
        %vm7798 = vweird.f32 %v7490
        %vm7799 = vweird.f32 %v7792
        %vm7800 = vmor %vm7798, %vm7799
        %v7801 = vsel %vm7800, %v7792, %v7797
        %v7802 = vrsqrt.pop %v7491
        %v7803 = vmul.f32 %v7802, %v7491
        %v7804 = vmul.f32 %v7803, %v7802
        %v7805 = vmul.f32 0.5, %v7804
        %v7806 = vsub.f32 1.5, %v7805
        %v7807 = vmul.f32 %v7802, %v7806
        %vm7808 = vweird.f32 %v7491
        %vm7809 = vweird.f32 %v7802
        %vm7810 = vmor %vm7808, %vm7809
        %v7811 = vsel %vm7810, %v7802, %v7807
        %v7812 = vmul.f32 %v7300, %v7501
        %v7813 = vmul.f32 %v7301, %v7511
        %v7814 = vmul.f32 %v7302, %v7521
        %v7815 = vmul.f32 %v7303, %v7531
        %v7816 = vmul.f32 %v7304, %v7541
        %v7817 = vmul.f32 %v7305, %v7551
        %v7818 = vmul.f32 %v7306, %v7561
        %v7819 = vmul.f32 %v7307, %v7571
        %v7820 = vmul.f32 %v7308, %v7581
        %v7821 = vmul.f32 %v7309, %v7591
        %v7822 = vmul.f32 %v7310, %v7601
        %v7823 = vmul.f32 %v7311, %v7611
        %v7824 = vmul.f32 %v7312, %v7621
        %v7825 = vmul.f32 %v7313, %v7631
        %v7826 = vmul.f32 %v7314, %v7641
        %v7827 = vmul.f32 %v7315, %v7651
        %v7828 = vmul.f32 %v7316, %v7661
        %v7829 = vmul.f32 %v7317, %v7671
        %v7830 = vmul.f32 %v7318, %v7681
        %v7831 = vmul.f32 %v7319, %v7691
        %v7832 = vmul.f32 %v7320, %v7701
        %v7833 = vmul.f32 %v7321, %v7711
        %v7834 = vmul.f32 %v7322, %v7721
        %v7835 = vmul.f32 %v7323, %v7731
        %v7836 = vmul.f32 %v7324, %v7741
        %v7837 = vmul.f32 %v7325, %v7751
        %v7838 = vmul.f32 %v7326, %v7761
        %v7839 = vmul.f32 %v7327, %v7771
        %v7840 = vmul.f32 %v7328, %v7781
        %v7841 = vmul.f32 %v7329, %v7791
        %v7842 = vmul.f32 %v7330, %v7801
        %v7843 = vmul.f32 %v7331, %v7811
        %v7845 = vperm.slane %v7202, 0
        %v7847 = vmul.f32 %v7812, %v7845
        %v7848 = vmul.f32 %v7813, %v7845
        %v7849 = vmul.f32 %v7814, %v7845
        %v7850 = vmul.f32 %v7815, %v7845
        %v7851 = vmul.f32 %v7816, %v7845
        %v7852 = vmul.f32 %v7817, %v7845
        %v7853 = vmul.f32 %v7818, %v7845
        %v7854 = vmul.f32 %v7819, %v7845
        %v7855 = vmul.f32 %v7820, %v7845
        %v7856 = vmul.f32 %v7821, %v7845
        %v7857 = vmul.f32 %v7822, %v7845
        %v7858 = vmul.f32 %v7823, %v7845
        %v7859 = vmul.f32 %v7824, %v7845
        %v7860 = vmul.f32 %v7825, %v7845
        %v7861 = vmul.f32 %v7826, %v7845
        %v7862 = vmul.f32 %v7827, %v7845
        %v7863 = vmul.f32 %v7828, %v7845
        %v7864 = vmul.f32 %v7829, %v7845
        %v7865 = vmul.f32 %v7830, %v7845
        %v7866 = vmul.f32 %v7831, %v7845
        %v7867 = vmul.f32 %v7832, %v7845
        %v7868 = vmul.f32 %v7833, %v7845
        %v7869 = vmul.f32 %v7834, %v7845
        %v7870 = vmul.f32 %v7835, %v7845
        %v7871 = vmul.f32 %v7836, %v7845
        %v7872 = vmul.f32 %v7837, %v7845
        %v7873 = vmul.f32 %v7838, %v7845
        %v7874 = vmul.f32 %v7839, %v7845
        %v7875 = vmul.f32 %v7840, %v7845
        %v7876 = vmul.f32 %v7841, %v7845
        %v7877 = vmul.f32 %v7842, %v7845
        %v7878 = vmul.f32 %v7843, %v7845
        %v7880 = vperm.slane %v7203, 0
        %v7882 = vadd.f32 %v7847, %v7880
        %v7883 = vadd.f32 %v7848, %v7880
        %v7884 = vadd.f32 %v7849, %v7880
        %v7885 = vadd.f32 %v7850, %v7880
        %v7886 = vadd.f32 %v7851, %v7880
        %v7887 = vadd.f32 %v7852, %v7880
        %v7888 = vadd.f32 %v7853, %v7880
        %v7889 = vadd.f32 %v7854, %v7880
        %v7890 = vadd.f32 %v7855, %v7880
        %v7891 = vadd.f32 %v7856, %v7880
        %v7892 = vadd.f32 %v7857, %v7880
        %v7893 = vadd.f32 %v7858, %v7880
        %v7894 = vadd.f32 %v7859, %v7880
        %v7895 = vadd.f32 %v7860, %v7880
        %v7896 = vadd.f32 %v7861, %v7880
        %v7897 = vadd.f32 %v7862, %v7880
        %v7898 = vadd.f32 %v7863, %v7880
        %v7899 = vadd.f32 %v7864, %v7880
        %v7900 = vadd.f32 %v7865, %v7880
        %v7901 = vadd.f32 %v7866, %v7880
        %v7902 = vadd.f32 %v7867, %v7880
        %v7903 = vadd.f32 %v7868, %v7880
        %v7904 = vadd.f32 %v7869, %v7880
        %v7905 = vadd.f32 %v7870, %v7880
        %v7906 = vadd.f32 %v7871, %v7880
        %v7907 = vadd.f32 %v7872, %v7880
        %v7908 = vadd.f32 %v7873, %v7880
        %v7909 = vadd.f32 %v7874, %v7880
        %v7910 = vadd.f32 %v7875, %v7880
        %v7911 = vadd.f32 %v7876, %v7880
        %v7912 = vadd.f32 %v7877, %v7880
        %v7913 = vadd.f32 %v7878, %v7880
        %v7914 = vpack.c.bf16 %v7883, %v7882
        %v7915 = vpack.c.bf16 %v7885, %v7884
        %v7916 = vpack.c.bf16 %v7887, %v7886
        %v7917 = vpack.c.bf16 %v7889, %v7888
        %v7918 = vpack.c.bf16 %v7891, %v7890
        %v7919 = vpack.c.bf16 %v7893, %v7892
        %v7920 = vpack.c.bf16 %v7895, %v7894
        %v7921 = vpack.c.bf16 %v7897, %v7896
        %v7922 = vpack.c.bf16 %v7899, %v7898
        %v7923 = vpack.c.bf16 %v7901, %v7900
        %v7924 = vpack.c.bf16 %v7903, %v7902
        %v7925 = vpack.c.bf16 %v7905, %v7904
        %v7926 = vpack.c.bf16 %v7907, %v7906
        %v7927 = vpack.c.bf16 %v7909, %v7908
        %v7928 = vpack.c.bf16 %v7911, %v7910
        %v7929 = vpack.c.bf16 %v7913, %v7912
        %v7930 = vld [vmem:[%s10] sm:$0xff]
        %v7931 = vld [vmem:[%s10 + $0x8] sm:$0xff]
        %v7932 = vld [vmem:[%s10 + $0x10] sm:$0xff]
        %v7933 = vld [vmem:[%s10 + $0x18] sm:$0xff]
        %v7934 = vld [vmem:[%s10 + $0x20] sm:$0xff]
        %v7935 = vld [vmem:[%s10 + $0x28] sm:$0xff]
        %v7936 = vld [vmem:[%s10 + $0x30] sm:$0xff]
        %v7937 = vld [vmem:[%s10 + $0x38] sm:$0xff]
        %v7938 = vld [vmem:[%s10 + $0x40] sm:$0xff]
        %v7939 = vld [vmem:[%s10 + $0x48] sm:$0xff]
        %v7940 = vld [vmem:[%s10 + $0x50] sm:$0xff]
        %v7941 = vld [vmem:[%s10 + $0x58] sm:$0xff]
        %v7942 = vld [vmem:[%s10 + $0x60] sm:$0xff]
        %v7943 = vld [vmem:[%s10 + $0x68] sm:$0xff]
        %v7944 = vld [vmem:[%s10 + $0x70] sm:$0xff]
        %v7945 = vld [vmem:[%s10 + $0x78] sm:$0xff]
        %v7946 = vld [vmem:[%s10 + $0x80] sm:$0xff]
        %v7947 = vld [vmem:[%s10 + $0x88] sm:$0xff]
        %v7948 = vld [vmem:[%s10 + $0x90] sm:$0xff]
        %v7949 = vld [vmem:[%s10 + $0x98] sm:$0xff]
        %v7950 = vld [vmem:[%s10 + $0xa0] sm:$0xff]
        %v7951 = vld [vmem:[%s10 + $0xa8] sm:$0xff]
        %v7952 = vld [vmem:[%s10 + $0xb0] sm:$0xff]
        %v7953 = vld [vmem:[%s10 + $0xb8] sm:$0xff]
        %v7954 = vld [vmem:[%s10 + $0xc0] sm:$0xff]
        %v7955 = vld [vmem:[%s10 + $0xc8] sm:$0xff]
        %v7956 = vld [vmem:[%s10 + $0xd0] sm:$0xff]
        %v7957 = vld [vmem:[%s10 + $0xd8] sm:$0xff]
        %v7958 = vld [vmem:[%s10 + $0xe0] sm:$0xff]
        %v7959 = vld [vmem:[%s10 + $0xe8] sm:$0xff]
        %v7960 = vld [vmem:[%s10 + $0xf0] sm:$0xff]
        %v7961 = vld [vmem:[%s10 + $0xf8] sm:$0xff]
        %v7962 = vld [vmem:[%s11] sm:$0xf]
        %v7964 = vperm.slane %v7962, 0
        %v7965 = vperm.slane %v7962, 1
        %v7966 = vperm.slane %v7962, 2
        %v7967 = vperm.slane %v7962, 3
        %v8004 = vunpack.c.l.b16 %v7930
        %v8005 = vunpack.c.h.b16 %v7930
        %v8006 = vunpack.c.l.b16 %v7931
        %v8007 = vunpack.c.h.b16 %v7931
        %v8008 = vunpack.c.l.b16 %v7932
        %v8009 = vunpack.c.h.b16 %v7932
        %v8010 = vunpack.c.l.b16 %v7933
        %v8011 = vunpack.c.h.b16 %v7933
        %v8012 = vunpack.c.l.b16 %v7934
        %v8013 = vunpack.c.h.b16 %v7934
        %v8014 = vunpack.c.l.b16 %v7935
        %v8015 = vunpack.c.h.b16 %v7935
        %v8016 = vunpack.c.l.b16 %v7936
        %v8017 = vunpack.c.h.b16 %v7936
        %v8018 = vunpack.c.l.b16 %v7937
        %v8019 = vunpack.c.h.b16 %v7937
        %v8020 = vunpack.c.l.b16 %v7938
        %v8021 = vunpack.c.h.b16 %v7938
        %v8022 = vunpack.c.l.b16 %v7939
        %v8023 = vunpack.c.h.b16 %v7939
        %v8024 = vunpack.c.l.b16 %v7940
        %v8025 = vunpack.c.h.b16 %v7940
        %v8026 = vunpack.c.l.b16 %v7941
        %v8027 = vunpack.c.h.b16 %v7941
        %v8028 = vunpack.c.l.b16 %v7942
        %v8029 = vunpack.c.h.b16 %v7942
        %v8030 = vunpack.c.l.b16 %v7943
        %v8031 = vunpack.c.h.b16 %v7943
        %v8032 = vunpack.c.l.b16 %v7944
        %v8033 = vunpack.c.h.b16 %v7944
        %v8034 = vunpack.c.l.b16 %v7945
        %v8035 = vunpack.c.h.b16 %v7945
        %v8036 = vunpack.c.l.b16 %v7946
        %v8037 = vunpack.c.h.b16 %v7946
        %v8038 = vunpack.c.l.b16 %v7947
        %v8039 = vunpack.c.h.b16 %v7947
        %v8040 = vunpack.c.l.b16 %v7948
        %v8041 = vunpack.c.h.b16 %v7948
        %v8042 = vunpack.c.l.b16 %v7949
        %v8043 = vunpack.c.h.b16 %v7949
        %v8044 = vunpack.c.l.b16 %v7950
        %v8045 = vunpack.c.h.b16 %v7950
        %v8046 = vunpack.c.l.b16 %v7951
        %v8047 = vunpack.c.h.b16 %v7951
        %v8048 = vunpack.c.l.b16 %v7952
        %v8049 = vunpack.c.h.b16 %v7952
        %v8050 = vunpack.c.l.b16 %v7953
        %v8051 = vunpack.c.h.b16 %v7953
        %v8052 = vunpack.c.l.b16 %v7954
        %v8053 = vunpack.c.h.b16 %v7954
        %v8054 = vunpack.c.l.b16 %v7955
        %v8055 = vunpack.c.h.b16 %v7955
        %v8056 = vunpack.c.l.b16 %v7956
        %v8057 = vunpack.c.h.b16 %v7956
        %v8058 = vunpack.c.l.b16 %v7957
        %v8059 = vunpack.c.h.b16 %v7957
        %v8060 = vunpack.c.l.b16 %v7958
        %v8061 = vunpack.c.h.b16 %v7958
        %v8062 = vunpack.c.l.b16 %v7959
        %v8063 = vunpack.c.h.b16 %v7959
        %v8064 = vunpack.c.l.b16 %v7960
        %v8065 = vunpack.c.h.b16 %v7960
        %v8066 = vunpack.c.l.b16 %v7961
        %v8067 = vunpack.c.h.b16 %v7961
        %v8068 = vpack.c.b16 %v8008, %v8004
        %v8069 = vpack.c.b16 %v8009, %v8005
        %v8070 = vpack.c.b16 %v8010, %v8006
        %v8071 = vpack.c.b16 %v8011, %v8007
        %v8072 = vpack.c.b16 %v8016, %v8012
        %v8073 = vpack.c.b16 %v8017, %v8013
        %v8074 = vpack.c.b16 %v8018, %v8014
        %v8075 = vpack.c.b16 %v8019, %v8015
        %v8076 = vpack.c.b16 %v8024, %v8020
        %v8077 = vpack.c.b16 %v8025, %v8021
        %v8078 = vpack.c.b16 %v8026, %v8022
        %v8079 = vpack.c.b16 %v8027, %v8023
        %v8080 = vpack.c.b16 %v8032, %v8028
        %v8081 = vpack.c.b16 %v8033, %v8029
        %v8082 = vpack.c.b16 %v8034, %v8030
        %v8083 = vpack.c.b16 %v8035, %v8031
        %v8084 = vpack.c.b16 %v8040, %v8036
        %v8085 = vpack.c.b16 %v8041, %v8037
        %v8086 = vpack.c.b16 %v8042, %v8038
        %v8087 = vpack.c.b16 %v8043, %v8039
        %v8088 = vpack.c.b16 %v8048, %v8044
        %v8089 = vpack.c.b16 %v8049, %v8045
        %v8090 = vpack.c.b16 %v8050, %v8046
        %v8091 = vpack.c.b16 %v8051, %v8047
        %v8092 = vpack.c.b16 %v8056, %v8052
        %v8093 = vpack.c.b16 %v8057, %v8053
        %v8094 = vpack.c.b16 %v8058, %v8054
        %v8095 = vpack.c.b16 %v8059, %v8055
        %v8096 = vpack.c.b16 %v8064, %v8060
        %v8097 = vpack.c.b16 %v8065, %v8061
        %v8098 = vpack.c.b16 %v8066, %v8062
        %v8099 = vpack.c.b16 %v8067, %v8063
        %8132 = vmatpush.bf16.msra.mxu0 %v8096
        %8133 = vmatpush.bf16.msra.mxu0 %v8092
        %8134 = vmatpush.bf16.msra.mxu0 %v8088
        %8135 = vmatpush.bf16.msra.mxu0 %v8084
        %8136 = vmatpush.bf16.msra.mxu0 %v8080
        %8137 = vmatpush.bf16.msra.mxu0 %v8076
        %8138 = vmatpush.bf16.msra.mxu0 %v8072
        %8139 = vmatpush.bf16.msra.mxu0 %v8068
        %8140 = vmatmul.bf16.gmra.mxu0 %v7914
        %v8141 = vpop.f32.mrf.mxu0
        %v8142 = vadd.f32 %v7964, %v8141
        %v8143 = vpop.f32.mrf.mxu0
        %v8144 = vadd.f32 %v7964, %v8143
        %8145 = vmatmul.bf16.gmra.mxu0 %v7915
        %v8146 = vpop.f32.mrf.mxu0
        %v8147 = vadd.f32 %v7964, %v8146
        %v8148 = vpop.f32.mrf.mxu0
        %v8149 = vadd.f32 %v7964, %v8148
        %8150 = vmatmul.bf16.gmra.mxu0 %v7916
        %v8151 = vpop.f32.mrf.mxu0
        %v8152 = vadd.f32 %v7964, %v8151
        %v8153 = vpop.f32.mrf.mxu0
        %v8154 = vadd.f32 %v7964, %v8153
        %8155 = vmatmul.bf16.gmra.mxu0 %v7917
        %v8156 = vpop.f32.mrf.mxu0
        %v8157 = vadd.f32 %v7964, %v8156
        %v8158 = vpop.f32.mrf.mxu0
        %v8159 = vadd.f32 %v7964, %v8158
        %8160 = vmatmul.bf16.gmra.mxu0 %v7918
        %v8161 = vpop.f32.mrf.mxu0
        %v8162 = vadd.f32 %v7964, %v8161
        %v8163 = vpop.f32.mrf.mxu0
        %v8164 = vadd.f32 %v7964, %v8163
        %8165 = vmatmul.bf16.gmra.mxu0 %v7919
        %v8166 = vpop.f32.mrf.mxu0
        %v8167 = vadd.f32 %v7964, %v8166
        %v8168 = vpop.f32.mrf.mxu0
        %v8169 = vadd.f32 %v7964, %v8168
        %8170 = vmatmul.bf16.gmra.mxu0 %v7920
        %v8171 = vpop.f32.mrf.mxu0
        %v8172 = vadd.f32 %v7964, %v8171
        %v8173 = vpop.f32.mrf.mxu0
        %v8174 = vadd.f32 %v7964, %v8173
        %8175 = vmatmul.bf16.gmra.mxu0 %v7921
        %v8176 = vpop.f32.mrf.mxu0
        %v8177 = vadd.f32 %v7964, %v8176
        %v8178 = vpop.f32.mrf.mxu0
        %v8179 = vadd.f32 %v7964, %v8178
        %8180 = vmatmul.bf16.gmra.mxu0 %v7922
        %v8181 = vpop.f32.mrf.mxu0
        %v8182 = vadd.f32 %v7964, %v8181
        %v8183 = vpop.f32.mrf.mxu0
        %v8184 = vadd.f32 %v7964, %v8183
        %8185 = vmatmul.bf16.gmra.mxu0 %v7923
        %v8186 = vpop.f32.mrf.mxu0
        %v8187 = vadd.f32 %v7964, %v8186
        %v8188 = vpop.f32.mrf.mxu0
        %v8189 = vadd.f32 %v7964, %v8188
        %8190 = vmatmul.bf16.gmra.mxu0 %v7924
        %v8191 = vpop.f32.mrf.mxu0
        %v8192 = vadd.f32 %v7964, %v8191
        %v8193 = vpop.f32.mrf.mxu0
        %v8194 = vadd.f32 %v7964, %v8193
        %8195 = vmatmul.bf16.gmra.mxu0 %v7925
        %v8196 = vpop.f32.mrf.mxu0
        %v8197 = vadd.f32 %v7964, %v8196
        %v8198 = vpop.f32.mrf.mxu0
        %v8199 = vadd.f32 %v7964, %v8198
        %8200 = vmatmul.bf16.gmra.mxu0 %v7926
        %v8201 = vpop.f32.mrf.mxu0
        %v8202 = vadd.f32 %v7964, %v8201
        %v8203 = vpop.f32.mrf.mxu0
        %v8204 = vadd.f32 %v7964, %v8203
        %8205 = vmatmul.bf16.gmra.mxu0 %v7927
        %v8206 = vpop.f32.mrf.mxu0
        %v8207 = vadd.f32 %v7964, %v8206
        %v8208 = vpop.f32.mrf.mxu0
        %v8209 = vadd.f32 %v7964, %v8208
        %8210 = vmatmul.bf16.gmra.mxu0 %v7928
        %v8211 = vpop.f32.mrf.mxu0
        %v8212 = vadd.f32 %v7964, %v8211
        %v8213 = vpop.f32.mrf.mxu0
        %v8214 = vadd.f32 %v7964, %v8213
        %8215 = vmatmul.bf16.gmra.mxu0 %v7929
        %v8216 = vpop.f32.mrf.mxu0
        %v8217 = vadd.f32 %v7964, %v8216
        %v8218 = vpop.f32.mrf.mxu0
        %v8219 = vadd.f32 %v7964, %v8218
        %8220 = vdwg.mxu0
        %8221 = vmatpush.bf16.msra.mxu0 %v8097
        %8222 = vmatpush.bf16.msra.mxu0 %v8093
        %8223 = vmatpush.bf16.msra.mxu0 %v8089
        %8224 = vmatpush.bf16.msra.mxu0 %v8085
        %8225 = vmatpush.bf16.msra.mxu0 %v8081
        %8226 = vmatpush.bf16.msra.mxu0 %v8077
        %8227 = vmatpush.bf16.msra.mxu0 %v8073
        %8228 = vmatpush.bf16.msra.mxu0 %v8069
        %8229 = vmatmul.bf16.gmra.mxu0 %v7914
        %v8230 = vpop.f32.mrf.mxu0
        %v8231 = vadd.f32 %v7965, %v8230
        %v8232 = vpop.f32.mrf.mxu0
        %v8233 = vadd.f32 %v7965, %v8232
        %8234 = vmatmul.bf16.gmra.mxu0 %v7915
        %v8235 = vpop.f32.mrf.mxu0
        %v8236 = vadd.f32 %v7965, %v8235
        %v8237 = vpop.f32.mrf.mxu0
        %v8238 = vadd.f32 %v7965, %v8237
        %8239 = vmatmul.bf16.gmra.mxu0 %v7916
        %v8240 = vpop.f32.mrf.mxu0
        %v8241 = vadd.f32 %v7965, %v8240
        %v8242 = vpop.f32.mrf.mxu0
        %v8243 = vadd.f32 %v7965, %v8242
        %8244 = vmatmul.bf16.gmra.mxu0 %v7917
        %v8245 = vpop.f32.mrf.mxu0
        %v8246 = vadd.f32 %v7965, %v8245
        %v8247 = vpop.f32.mrf.mxu0
        %v8248 = vadd.f32 %v7965, %v8247
        %8249 = vmatmul.bf16.gmra.mxu0 %v7918
        %v8250 = vpop.f32.mrf.mxu0
        %v8251 = vadd.f32 %v7965, %v8250
        %v8252 = vpop.f32.mrf.mxu0
        %v8253 = vadd.f32 %v7965, %v8252
        %8254 = vmatmul.bf16.gmra.mxu0 %v7919
        %v8255 = vpop.f32.mrf.mxu0
        %v8256 = vadd.f32 %v7965, %v8255
        %v8257 = vpop.f32.mrf.mxu0
        %v8258 = vadd.f32 %v7965, %v8257
        %8259 = vmatmul.bf16.gmra.mxu0 %v7920
        %v8260 = vpop.f32.mrf.mxu0
        %v8261 = vadd.f32 %v7965, %v8260
        %v8262 = vpop.f32.mrf.mxu0
        %v8263 = vadd.f32 %v7965, %v8262
        %8264 = vmatmul.bf16.gmra.mxu0 %v7921
        %v8265 = vpop.f32.mrf.mxu0
        %v8266 = vadd.f32 %v7965, %v8265
        %v8267 = vpop.f32.mrf.mxu0
        %v8268 = vadd.f32 %v7965, %v8267
        %8269 = vmatmul.bf16.gmra.mxu0 %v7922
        %v8270 = vpop.f32.mrf.mxu0
        %v8271 = vadd.f32 %v7965, %v8270
        %v8272 = vpop.f32.mrf.mxu0
        %v8273 = vadd.f32 %v7965, %v8272
        %8274 = vmatmul.bf16.gmra.mxu0 %v7923
        %v8275 = vpop.f32.mrf.mxu0
        %v8276 = vadd.f32 %v7965, %v8275
        %v8277 = vpop.f32.mrf.mxu0
        %v8278 = vadd.f32 %v7965, %v8277
        %8279 = vmatmul.bf16.gmra.mxu0 %v7924
        %v8280 = vpop.f32.mrf.mxu0
        %v8281 = vadd.f32 %v7965, %v8280
        %v8282 = vpop.f32.mrf.mxu0
        %v8283 = vadd.f32 %v7965, %v8282
        %8284 = vmatmul.bf16.gmra.mxu0 %v7925
        %v8285 = vpop.f32.mrf.mxu0
        %v8286 = vadd.f32 %v7965, %v8285
        %v8287 = vpop.f32.mrf.mxu0
        %v8288 = vadd.f32 %v7965, %v8287
        %8289 = vmatmul.bf16.gmra.mxu0 %v7926
        %v8290 = vpop.f32.mrf.mxu0
        %v8291 = vadd.f32 %v7965, %v8290
        %v8292 = vpop.f32.mrf.mxu0
        %v8293 = vadd.f32 %v7965, %v8292
        %8294 = vmatmul.bf16.gmra.mxu0 %v7927
        %v8295 = vpop.f32.mrf.mxu0
        %v8296 = vadd.f32 %v7965, %v8295
        %v8297 = vpop.f32.mrf.mxu0
        %v8298 = vadd.f32 %v7965, %v8297
        %8299 = vmatmul.bf16.gmra.mxu0 %v7928
        %v8300 = vpop.f32.mrf.mxu0
        %v8301 = vadd.f32 %v7965, %v8300
        %v8302 = vpop.f32.mrf.mxu0
        %v8303 = vadd.f32 %v7965, %v8302
        %8304 = vmatmul.bf16.gmra.mxu0 %v7929
        %v8305 = vpop.f32.mrf.mxu0
        %v8306 = vadd.f32 %v7965, %v8305
        %v8307 = vpop.f32.mrf.mxu0
        %v8308 = vadd.f32 %v7965, %v8307
        %8309 = vdwg.mxu0
        %8310 = vmatpush.bf16.msra.mxu0 %v8098
        %8311 = vmatpush.bf16.msra.mxu0 %v8094
        %8312 = vmatpush.bf16.msra.mxu0 %v8090
        %8313 = vmatpush.bf16.msra.mxu0 %v8086
        %8314 = vmatpush.bf16.msra.mxu0 %v8082
        %8315 = vmatpush.bf16.msra.mxu0 %v8078
        %8316 = vmatpush.bf16.msra.mxu0 %v8074
        %8317 = vmatpush.bf16.msra.mxu0 %v8070
        %8318 = vmatmul.bf16.gmra.mxu0 %v7914
        %v8319 = vpop.f32.mrf.mxu0
        %v8320 = vadd.f32 %v7966, %v8319
        %v8321 = vpop.f32.mrf.mxu0
        %v8322 = vadd.f32 %v7966, %v8321
        %8323 = vmatmul.bf16.gmra.mxu0 %v7915
        %v8324 = vpop.f32.mrf.mxu0
        %v8325 = vadd.f32 %v7966, %v8324
        %v8326 = vpop.f32.mrf.mxu0
        %v8327 = vadd.f32 %v7966, %v8326
        %8328 = vmatmul.bf16.gmra.mxu0 %v7916
        %v8329 = vpop.f32.mrf.mxu0
        %v8330 = vadd.f32 %v7966, %v8329
        %v8331 = vpop.f32.mrf.mxu0
        %v8332 = vadd.f32 %v7966, %v8331
        %8333 = vmatmul.bf16.gmra.mxu0 %v7917
        %v8334 = vpop.f32.mrf.mxu0
        %v8335 = vadd.f32 %v7966, %v8334
        %v8336 = vpop.f32.mrf.mxu0
        %v8337 = vadd.f32 %v7966, %v8336
        %8338 = vmatmul.bf16.gmra.mxu0 %v7918
        %v8339 = vpop.f32.mrf.mxu0
        %v8340 = vadd.f32 %v7966, %v8339
        %v8341 = vpop.f32.mrf.mxu0
        %v8342 = vadd.f32 %v7966, %v8341
        %8343 = vmatmul.bf16.gmra.mxu0 %v7919
        %v8344 = vpop.f32.mrf.mxu0
        %v8345 = vadd.f32 %v7966, %v8344
        %v8346 = vpop.f32.mrf.mxu0
        %v8347 = vadd.f32 %v7966, %v8346
        %8348 = vmatmul.bf16.gmra.mxu0 %v7920
        %v8349 = vpop.f32.mrf.mxu0
        %v8350 = vadd.f32 %v7966, %v8349
        %v8351 = vpop.f32.mrf.mxu0
        %v8352 = vadd.f32 %v7966, %v8351
        %8353 = vmatmul.bf16.gmra.mxu0 %v7921
        %v8354 = vpop.f32.mrf.mxu0
        %v8355 = vadd.f32 %v7966, %v8354
        %v8356 = vpop.f32.mrf.mxu0
        %v8357 = vadd.f32 %v7966, %v8356
        %8358 = vmatmul.bf16.gmra.mxu0 %v7922
        %v8359 = vpop.f32.mrf.mxu0
        %v8360 = vadd.f32 %v7966, %v8359
        %v8361 = vpop.f32.mrf.mxu0
        %v8362 = vadd.f32 %v7966, %v8361
        %8363 = vmatmul.bf16.gmra.mxu0 %v7923
        %v8364 = vpop.f32.mrf.mxu0
        %v8365 = vadd.f32 %v7966, %v8364
        %v8366 = vpop.f32.mrf.mxu0
        %v8367 = vadd.f32 %v7966, %v8366
        %8368 = vmatmul.bf16.gmra.mxu0 %v7924
        %v8369 = vpop.f32.mrf.mxu0
        %v8370 = vadd.f32 %v7966, %v8369
        %v8371 = vpop.f32.mrf.mxu0
        %v8372 = vadd.f32 %v7966, %v8371
        %8373 = vmatmul.bf16.gmra.mxu0 %v7925
        %v8374 = vpop.f32.mrf.mxu0
        %v8375 = vadd.f32 %v7966, %v8374
        %v8376 = vpop.f32.mrf.mxu0
        %v8377 = vadd.f32 %v7966, %v8376
        %8378 = vmatmul.bf16.gmra.mxu0 %v7926
        %v8379 = vpop.f32.mrf.mxu0
        %v8380 = vadd.f32 %v7966, %v8379
        %v8381 = vpop.f32.mrf.mxu0
        %v8382 = vadd.f32 %v7966, %v8381
        %8383 = vmatmul.bf16.gmra.mxu0 %v7927
        %v8384 = vpop.f32.mrf.mxu0
        %v8385 = vadd.f32 %v7966, %v8384
        %v8386 = vpop.f32.mrf.mxu0
        %v8387 = vadd.f32 %v7966, %v8386
        %8388 = vmatmul.bf16.gmra.mxu0 %v7928
        %v8389 = vpop.f32.mrf.mxu0
        %v8390 = vadd.f32 %v7966, %v8389
        %v8391 = vpop.f32.mrf.mxu0
        %v8392 = vadd.f32 %v7966, %v8391
        %8393 = vmatmul.bf16.gmra.mxu0 %v7929
        %v8394 = vpop.f32.mrf.mxu0
        %v8395 = vadd.f32 %v7966, %v8394
        %v8396 = vpop.f32.mrf.mxu0
        %v8397 = vadd.f32 %v7966, %v8396
        %8398 = vdwg.mxu0
        %8399 = vmatpush.bf16.msra.mxu0 %v8099
        %8400 = vmatpush.bf16.msra.mxu0 %v8095
        %8401 = vmatpush.bf16.msra.mxu0 %v8091
        %8402 = vmatpush.bf16.msra.mxu0 %v8087
        %8403 = vmatpush.bf16.msra.mxu0 %v8083
        %8404 = vmatpush.bf16.msra.mxu0 %v8079
        %8405 = vmatpush.bf16.msra.mxu0 %v8075
        %8406 = vmatpush.bf16.msra.mxu0 %v8071
        %8407 = vmatmul.bf16.gmra.mxu0 %v7914
        %v8408 = vpop.f32.mrf.mxu0
        %v8409 = vadd.f32 %v7967, %v8408
        %v8410 = vpop.f32.mrf.mxu0
        %v8411 = vadd.f32 %v7967, %v8410
        %8412 = vmatmul.bf16.gmra.mxu0 %v7915
        %v8413 = vpop.f32.mrf.mxu0
        %v8414 = vadd.f32 %v7967, %v8413
        %v8415 = vpop.f32.mrf.mxu0
        %v8416 = vadd.f32 %v7967, %v8415
        %8417 = vmatmul.bf16.gmra.mxu0 %v7916
        %v8418 = vpop.f32.mrf.mxu0
        %v8419 = vadd.f32 %v7967, %v8418
        %v8420 = vpop.f32.mrf.mxu0
        %v8421 = vadd.f32 %v7967, %v8420
        %8422 = vmatmul.bf16.gmra.mxu0 %v7917
        %v8423 = vpop.f32.mrf.mxu0
        %v8424 = vadd.f32 %v7967, %v8423
        %v8425 = vpop.f32.mrf.mxu0
        %v8426 = vadd.f32 %v7967, %v8425
        %8427 = vmatmul.bf16.gmra.mxu0 %v7918
        %v8428 = vpop.f32.mrf.mxu0
        %v8429 = vadd.f32 %v7967, %v8428
        %v8430 = vpop.f32.mrf.mxu0
        %v8431 = vadd.f32 %v7967, %v8430
        %8432 = vmatmul.bf16.gmra.mxu0 %v7919
        %v8433 = vpop.f32.mrf.mxu0
        %v8434 = vadd.f32 %v7967, %v8433
        %v8435 = vpop.f32.mrf.mxu0
        %v8436 = vadd.f32 %v7967, %v8435
        %8437 = vmatmul.bf16.gmra.mxu0 %v7920
        %v8438 = vpop.f32.mrf.mxu0
        %v8439 = vadd.f32 %v7967, %v8438
        %v8440 = vpop.f32.mrf.mxu0
        %v8441 = vadd.f32 %v7967, %v8440
        %8442 = vmatmul.bf16.gmra.mxu0 %v7921
        %v8443 = vpop.f32.mrf.mxu0
        %v8444 = vadd.f32 %v7967, %v8443
        %v8445 = vpop.f32.mrf.mxu0
        %v8446 = vadd.f32 %v7967, %v8445
        %8447 = vmatmul.bf16.gmra.mxu0 %v7922
        %v8448 = vpop.f32.mrf.mxu0
        %v8449 = vadd.f32 %v7967, %v8448
        %v8450 = vpop.f32.mrf.mxu0
        %v8451 = vadd.f32 %v7967, %v8450
        %8452 = vmatmul.bf16.gmra.mxu0 %v7923
        %v8453 = vpop.f32.mrf.mxu0
        %v8454 = vadd.f32 %v7967, %v8453
        %v8455 = vpop.f32.mrf.mxu0
        %v8456 = vadd.f32 %v7967, %v8455
        %8457 = vmatmul.bf16.gmra.mxu0 %v7924
        %v8458 = vpop.f32.mrf.mxu0
        %v8459 = vadd.f32 %v7967, %v8458
        %v8460 = vpop.f32.mrf.mxu0
        %v8461 = vadd.f32 %v7967, %v8460
        %8462 = vmatmul.bf16.gmra.mxu0 %v7925
        %v8463 = vpop.f32.mrf.mxu0
        %v8464 = vadd.f32 %v7967, %v8463
        %v8465 = vpop.f32.mrf.mxu0
        %v8466 = vadd.f32 %v7967, %v8465
        %8467 = vmatmul.bf16.gmra.mxu0 %v7926
        %v8468 = vpop.f32.mrf.mxu0
        %v8469 = vadd.f32 %v7967, %v8468
        %v8470 = vpop.f32.mrf.mxu0
        %v8471 = vadd.f32 %v7967, %v8470
        %8472 = vmatmul.bf16.gmra.mxu0 %v7927
        %v8473 = vpop.f32.mrf.mxu0
        %v8474 = vadd.f32 %v7967, %v8473
        %v8475 = vpop.f32.mrf.mxu0
        %v8476 = vadd.f32 %v7967, %v8475
        %8477 = vmatmul.bf16.gmra.mxu0 %v7928
        %v8478 = vpop.f32.mrf.mxu0
        %v8479 = vadd.f32 %v7967, %v8478
        %v8480 = vpop.f32.mrf.mxu0
        %v8481 = vadd.f32 %v7967, %v8480
        %8482 = vmatmul.bf16.gmra.mxu0 %v7929
        %v8483 = vpop.f32.mrf.mxu0
        %v8484 = vadd.f32 %v7967, %v8483
        %v8485 = vpop.f32.mrf.mxu0
        %v8486 = vadd.f32 %v7967, %v8485
        %8487 = vdwg.mxu0
        %v8488 = vmul.f32 %v8142, %v8142
        %v8489 = vmul.f32 %v8231, %v8231
        %v8490 = vmul.f32 %v8320, %v8320
        %v8491 = vmul.f32 %v8409, %v8409
        %v8492 = vmul.f32 %v8144, %v8144
        %v8493 = vmul.f32 %v8233, %v8233
        %v8494 = vmul.f32 %v8322, %v8322
        %v8495 = vmul.f32 %v8411, %v8411
        %v8496 = vmul.f32 %v8147, %v8147
        %v8497 = vmul.f32 %v8236, %v8236
        %v8498 = vmul.f32 %v8325, %v8325
        %v8499 = vmul.f32 %v8414, %v8414
        %v8500 = vmul.f32 %v8149, %v8149
        %v8501 = vmul.f32 %v8238, %v8238
        %v8502 = vmul.f32 %v8327, %v8327
        %v8503 = vmul.f32 %v8416, %v8416
        %v8504 = vmul.f32 %v8152, %v8152
        %v8505 = vmul.f32 %v8241, %v8241
        %v8506 = vmul.f32 %v8330, %v8330
        %v8507 = vmul.f32 %v8419, %v8419
        %v8508 = vmul.f32 %v8154, %v8154
        %v8509 = vmul.f32 %v8243, %v8243
        %v8510 = vmul.f32 %v8332, %v8332
        %v8511 = vmul.f32 %v8421, %v8421
        %v8512 = vmul.f32 %v8157, %v8157
        %v8513 = vmul.f32 %v8246, %v8246
        %v8514 = vmul.f32 %v8335, %v8335
        %v8515 = vmul.f32 %v8424, %v8424
        %v8516 = vmul.f32 %v8159, %v8159
        %v8517 = vmul.f32 %v8248, %v8248
        %v8518 = vmul.f32 %v8337, %v8337
        %v8519 = vmul.f32 %v8426, %v8426
        %v8520 = vmul.f32 %v8162, %v8162
        %v8521 = vmul.f32 %v8251, %v8251
        %v8522 = vmul.f32 %v8340, %v8340
        %v8523 = vmul.f32 %v8429, %v8429
        %v8524 = vmul.f32 %v8164, %v8164
        %v8525 = vmul.f32 %v8253, %v8253
        %v8526 = vmul.f32 %v8342, %v8342
        %v8527 = vmul.f32 %v8431, %v8431
        %v8528 = vmul.f32 %v8167, %v8167
        %v8529 = vmul.f32 %v8256, %v8256
        %v8530 = vmul.f32 %v8345, %v8345
        %v8531 = vmul.f32 %v8434, %v8434
        %v8532 = vmul.f32 %v8169, %v8169
        %v8533 = vmul.f32 %v8258, %v8258
        %v8534 = vmul.f32 %v8347, %v8347
        %v8535 = vmul.f32 %v8436, %v8436
        %v8536 = vmul.f32 %v8172, %v8172
        %v8537 = vmul.f32 %v8261, %v8261
        %v8538 = vmul.f32 %v8350, %v8350
        %v8539 = vmul.f32 %v8439, %v8439
        %v8540 = vmul.f32 %v8174, %v8174
        %v8541 = vmul.f32 %v8263, %v8263
        %v8542 = vmul.f32 %v8352, %v8352
        %v8543 = vmul.f32 %v8441, %v8441
        %v8544 = vmul.f32 %v8177, %v8177
        %v8545 = vmul.f32 %v8266, %v8266
        %v8546 = vmul.f32 %v8355, %v8355
        %v8547 = vmul.f32 %v8444, %v8444
        %v8548 = vmul.f32 %v8179, %v8179
        %v8549 = vmul.f32 %v8268, %v8268
        %v8550 = vmul.f32 %v8357, %v8357
        %v8551 = vmul.f32 %v8446, %v8446
        %v8552 = vmul.f32 %v8182, %v8182
        %v8553 = vmul.f32 %v8271, %v8271
        %v8554 = vmul.f32 %v8360, %v8360
        %v8555 = vmul.f32 %v8449, %v8449
        %v8556 = vmul.f32 %v8184, %v8184
        %v8557 = vmul.f32 %v8273, %v8273
        %v8558 = vmul.f32 %v8362, %v8362
        %v8559 = vmul.f32 %v8451, %v8451
        %v8560 = vmul.f32 %v8187, %v8187
        %v8561 = vmul.f32 %v8276, %v8276
        %v8562 = vmul.f32 %v8365, %v8365
        %v8563 = vmul.f32 %v8454, %v8454
        %v8564 = vmul.f32 %v8189, %v8189
        %v8565 = vmul.f32 %v8278, %v8278
        %v8566 = vmul.f32 %v8367, %v8367
        %v8567 = vmul.f32 %v8456, %v8456
        %v8568 = vmul.f32 %v8192, %v8192
        %v8569 = vmul.f32 %v8281, %v8281
        %v8570 = vmul.f32 %v8370, %v8370
        %v8571 = vmul.f32 %v8459, %v8459
        %v8572 = vmul.f32 %v8194, %v8194
        %v8573 = vmul.f32 %v8283, %v8283
        %v8574 = vmul.f32 %v8372, %v8372
        %v8575 = vmul.f32 %v8461, %v8461
        %v8576 = vmul.f32 %v8197, %v8197
        %v8577 = vmul.f32 %v8286, %v8286
        %v8578 = vmul.f32 %v8375, %v8375
        %v8579 = vmul.f32 %v8464, %v8464
        %v8580 = vmul.f32 %v8199, %v8199
        %v8581 = vmul.f32 %v8288, %v8288
        %v8582 = vmul.f32 %v8377, %v8377
        %v8583 = vmul.f32 %v8466, %v8466
        %v8584 = vmul.f32 %v8202, %v8202
        %v8585 = vmul.f32 %v8291, %v8291
        %v8586 = vmul.f32 %v8380, %v8380
        %v8587 = vmul.f32 %v8469, %v8469
        %v8588 = vmul.f32 %v8204, %v8204
        %v8589 = vmul.f32 %v8293, %v8293
        %v8590 = vmul.f32 %v8382, %v8382
        %v8591 = vmul.f32 %v8471, %v8471
        %v8592 = vmul.f32 %v8207, %v8207
        %v8593 = vmul.f32 %v8296, %v8296
        %v8594 = vmul.f32 %v8385, %v8385
        %v8595 = vmul.f32 %v8474, %v8474
        %v8596 = vmul.f32 %v8209, %v8209
        %v8597 = vmul.f32 %v8298, %v8298
        %v8598 = vmul.f32 %v8387, %v8387
        %v8599 = vmul.f32 %v8476, %v8476
        %v8600 = vmul.f32 %v8212, %v8212
        %v8601 = vmul.f32 %v8301, %v8301
        %v8602 = vmul.f32 %v8390, %v8390
        %v8603 = vmul.f32 %v8479, %v8479
        %v8604 = vmul.f32 %v8214, %v8214
        %v8605 = vmul.f32 %v8303, %v8303
        %v8606 = vmul.f32 %v8392, %v8392
        %v8607 = vmul.f32 %v8481, %v8481
        %v8608 = vmul.f32 %v8217, %v8217
        %v8609 = vmul.f32 %v8306, %v8306
        %v8610 = vmul.f32 %v8395, %v8395
        %v8611 = vmul.f32 %v8484, %v8484
        %v8612 = vmul.f32 %v8219, %v8219
        %v8613 = vmul.f32 %v8308, %v8308
        %v8614 = vmul.f32 %v8397, %v8397
        %v8615 = vmul.f32 %v8486, %v8486
        %v8616 = vmul.f32 %v8142, %v8488
        %v8617 = vmul.f32 %v8231, %v8489
        %v8618 = vmul.f32 %v8320, %v8490
        %v8619 = vmul.f32 %v8409, %v8491
        %v8620 = vmul.f32 %v8144, %v8492
        %v8621 = vmul.f32 %v8233, %v8493
        %v8622 = vmul.f32 %v8322, %v8494
        %v8623 = vmul.f32 %v8411, %v8495
        %v8624 = vmul.f32 %v8147, %v8496
        %v8625 = vmul.f32 %v8236, %v8497
        %v8626 = vmul.f32 %v8325, %v8498
        %v8627 = vmul.f32 %v8414, %v8499
        %v8628 = vmul.f32 %v8149, %v8500
        %v8629 = vmul.f32 %v8238, %v8501
        %v8630 = vmul.f32 %v8327, %v8502
        %v8631 = vmul.f32 %v8416, %v8503
        %v8632 = vmul.f32 %v8152, %v8504
        %v8633 = vmul.f32 %v8241, %v8505
        %v8634 = vmul.f32 %v8330, %v8506
        %v8635 = vmul.f32 %v8419, %v8507
        %v8636 = vmul.f32 %v8154, %v8508
        %v8637 = vmul.f32 %v8243, %v8509
        %v8638 = vmul.f32 %v8332, %v8510
        %v8639 = vmul.f32 %v8421, %v8511
        %v8640 = vmul.f32 %v8157, %v8512
        %v8641 = vmul.f32 %v8246, %v8513
        %v8642 = vmul.f32 %v8335, %v8514
        %v8643 = vmul.f32 %v8424, %v8515
        %v8644 = vmul.f32 %v8159, %v8516
        %v8645 = vmul.f32 %v8248, %v8517
        %v8646 = vmul.f32 %v8337, %v8518
        %v8647 = vmul.f32 %v8426, %v8519
        %v8648 = vmul.f32 %v8162, %v8520
        %v8649 = vmul.f32 %v8251, %v8521
        %v8650 = vmul.f32 %v8340, %v8522
        %v8651 = vmul.f32 %v8429, %v8523
        %v8652 = vmul.f32 %v8164, %v8524
        %v8653 = vmul.f32 %v8253, %v8525
        %v8654 = vmul.f32 %v8342, %v8526
        %v8655 = vmul.f32 %v8431, %v8527
        %v8656 = vmul.f32 %v8167, %v8528
        %v8657 = vmul.f32 %v8256, %v8529
        %v8658 = vmul.f32 %v8345, %v8530
        %v8659 = vmul.f32 %v8434, %v8531
        %v8660 = vmul.f32 %v8169, %v8532
        %v8661 = vmul.f32 %v8258, %v8533
        %v8662 = vmul.f32 %v8347, %v8534
        %v8663 = vmul.f32 %v8436, %v8535
        %v8664 = vmul.f32 %v8172, %v8536
        %v8665 = vmul.f32 %v8261, %v8537
        %v8666 = vmul.f32 %v8350, %v8538
        %v8667 = vmul.f32 %v8439, %v8539
        %v8668 = vmul.f32 %v8174, %v8540
        %v8669 = vmul.f32 %v8263, %v8541
        %v8670 = vmul.f32 %v8352, %v8542
        %v8671 = vmul.f32 %v8441, %v8543
        %v8672 = vmul.f32 %v8177, %v8544
        %v8673 = vmul.f32 %v8266, %v8545
        %v8674 = vmul.f32 %v8355, %v8546
        %v8675 = vmul.f32 %v8444, %v8547
        %v8676 = vmul.f32 %v8179, %v8548
        %v8677 = vmul.f32 %v8268, %v8549
        %v8678 = vmul.f32 %v8357, %v8550
        %v8679 = vmul.f32 %v8446, %v8551
        %v8680 = vmul.f32 %v8182, %v8552
        %v8681 = vmul.f32 %v8271, %v8553
        %v8682 = vmul.f32 %v8360, %v8554
        %v8683 = vmul.f32 %v8449, %v8555
        %v8684 = vmul.f32 %v8184, %v8556
        %v8685 = vmul.f32 %v8273, %v8557
        %v8686 = vmul.f32 %v8362, %v8558
        %v8687 = vmul.f32 %v8451, %v8559
        %v8688 = vmul.f32 %v8187, %v8560
        %v8689 = vmul.f32 %v8276, %v8561
        %v8690 = vmul.f32 %v8365, %v8562
        %v8691 = vmul.f32 %v8454, %v8563
        %v8692 = vmul.f32 %v8189, %v8564
        %v8693 = vmul.f32 %v8278, %v8565
        %v8694 = vmul.f32 %v8367, %v8566
        %v8695 = vmul.f32 %v8456, %v8567
        %v8696 = vmul.f32 %v8192, %v8568
        %v8697 = vmul.f32 %v8281, %v8569
        %v8698 = vmul.f32 %v8370, %v8570
        %v8699 = vmul.f32 %v8459, %v8571
        %v8700 = vmul.f32 %v8194, %v8572
        %v8701 = vmul.f32 %v8283, %v8573
        %v8702 = vmul.f32 %v8372, %v8574
        %v8703 = vmul.f32 %v8461, %v8575
        %v8704 = vmul.f32 %v8197, %v8576
        %v8705 = vmul.f32 %v8286, %v8577
        %v8706 = vmul.f32 %v8375, %v8578
        %v8707 = vmul.f32 %v8464, %v8579
        %v8708 = vmul.f32 %v8199, %v8580
        %v8709 = vmul.f32 %v8288, %v8581
        %v8710 = vmul.f32 %v8377, %v8582
        %v8711 = vmul.f32 %v8466, %v8583
        %v8712 = vmul.f32 %v8202, %v8584
        %v8713 = vmul.f32 %v8291, %v8585
        %v8714 = vmul.f32 %v8380, %v8586
        %v8715 = vmul.f32 %v8469, %v8587
        %v8716 = vmul.f32 %v8204, %v8588
        %v8717 = vmul.f32 %v8293, %v8589
        %v8718 = vmul.f32 %v8382, %v8590
        %v8719 = vmul.f32 %v8471, %v8591
        %v8720 = vmul.f32 %v8207, %v8592
        %v8721 = vmul.f32 %v8296, %v8593
        %v8722 = vmul.f32 %v8385, %v8594
        %v8723 = vmul.f32 %v8474, %v8595
        %v8724 = vmul.f32 %v8209, %v8596
        %v8725 = vmul.f32 %v8298, %v8597
        %v8726 = vmul.f32 %v8387, %v8598
        %v8727 = vmul.f32 %v8476, %v8599
        %v8728 = vmul.f32 %v8212, %v8600
        %v8729 = vmul.f32 %v8301, %v8601
        %v8730 = vmul.f32 %v8390, %v8602
        %v8731 = vmul.f32 %v8479, %v8603
        %v8732 = vmul.f32 %v8214, %v8604
        %v8733 = vmul.f32 %v8303, %v8605
        %v8734 = vmul.f32 %v8392, %v8606
        %v8735 = vmul.f32 %v8481, %v8607
        %v8736 = vmul.f32 %v8217, %v8608
        %v8737 = vmul.f32 %v8306, %v8609
        %v8738 = vmul.f32 %v8395, %v8610
        %v8739 = vmul.f32 %v8484, %v8611
        %v8740 = vmul.f32 %v8219, %v8612
        %v8741 = vmul.f32 %v8308, %v8613
        %v8742 = vmul.f32 %v8397, %v8614
        %v8743 = vmul.f32 %v8486, %v8615
        %v8744 = vmul.f32 %v8616, 0.044715
        %v8745 = vmul.f32 %v8617, 0.044715
        %v8746 = vmul.f32 %v8618, 0.044715
        %v8747 = vmul.f32 %v8619, 0.044715
        %v8748 = vmul.f32 %v8620, 0.044715
        %v8749 = vmul.f32 %v8621, 0.044715
        %v8750 = vmul.f32 %v8622, 0.044715
        %v8751 = vmul.f32 %v8623, 0.044715
        %v8752 = vmul.f32 %v8624, 0.044715
        %v8753 = vmul.f32 %v8625, 0.044715
        %v8754 = vmul.f32 %v8626, 0.044715
        %v8755 = vmul.f32 %v8627, 0.044715
        %v8756 = vmul.f32 %v8628, 0.044715
        %v8757 = vmul.f32 %v8629, 0.044715
        %v8758 = vmul.f32 %v8630, 0.044715
        %v8759 = vmul.f32 %v8631, 0.044715
        %v8760 = vmul.f32 %v8632, 0.044715
        %v8761 = vmul.f32 %v8633, 0.044715
        %v8762 = vmul.f32 %v8634, 0.044715
        %v8763 = vmul.f32 %v8635, 0.044715
        %v8764 = vmul.f32 %v8636, 0.044715
        %v8765 = vmul.f32 %v8637, 0.044715
        %v8766 = vmul.f32 %v8638, 0.044715
        %v8767 = vmul.f32 %v8639, 0.044715
        %v8768 = vmul.f32 %v8640, 0.044715
        %v8769 = vmul.f32 %v8641, 0.044715
        %v8770 = vmul.f32 %v8642, 0.044715
        %v8771 = vmul.f32 %v8643, 0.044715
        %v8772 = vmul.f32 %v8644, 0.044715
        %v8773 = vmul.f32 %v8645, 0.044715
        %v8774 = vmul.f32 %v8646, 0.044715
        %v8775 = vmul.f32 %v8647, 0.044715
        %v8776 = vmul.f32 %v8648, 0.044715
        %v8777 = vmul.f32 %v8649, 0.044715
        %v8778 = vmul.f32 %v8650, 0.044715
        %v8779 = vmul.f32 %v8651, 0.044715
        %v8780 = vmul.f32 %v8652, 0.044715
        %v8781 = vmul.f32 %v8653, 0.044715
        %v8782 = vmul.f32 %v8654, 0.044715
        %v8783 = vmul.f32 %v8655, 0.044715
        %v8784 = vmul.f32 %v8656, 0.044715
        %v8785 = vmul.f32 %v8657, 0.044715
        %v8786 = vmul.f32 %v8658, 0.044715
        %v8787 = vmul.f32 %v8659, 0.044715
        %v8788 = vmul.f32 %v8660, 0.044715
        %v8789 = vmul.f32 %v8661, 0.044715
        %v8790 = vmul.f32 %v8662, 0.044715
        %v8791 = vmul.f32 %v8663, 0.044715
        %v8792 = vmul.f32 %v8664, 0.044715
        %v8793 = vmul.f32 %v8665, 0.044715
        %v8794 = vmul.f32 %v8666, 0.044715
        %v8795 = vmul.f32 %v8667, 0.044715
        %v8796 = vmul.f32 %v8668, 0.044715
        %v8797 = vmul.f32 %v8669, 0.044715
        %v8798 = vmul.f32 %v8670, 0.044715
        %v8799 = vmul.f32 %v8671, 0.044715
        %v8800 = vmul.f32 %v8672, 0.044715
        %v8801 = vmul.f32 %v8673, 0.044715
        %v8802 = vmul.f32 %v8674, 0.044715
        %v8803 = vmul.f32 %v8675, 0.044715
        %v8804 = vmul.f32 %v8676, 0.044715
        %v8805 = vmul.f32 %v8677, 0.044715
        %v8806 = vmul.f32 %v8678, 0.044715
        %v8807 = vmul.f32 %v8679, 0.044715
        %v8808 = vmul.f32 %v8680, 0.044715
        %v8809 = vmul.f32 %v8681, 0.044715
        %v8810 = vmul.f32 %v8682, 0.044715
        %v8811 = vmul.f32 %v8683, 0.044715
        %v8812 = vmul.f32 %v8684, 0.044715
        %v8813 = vmul.f32 %v8685, 0.044715
        %v8814 = vmul.f32 %v8686, 0.044715
        %v8815 = vmul.f32 %v8687, 0.044715
        %v8816 = vmul.f32 %v8688, 0.044715
        %v8817 = vmul.f32 %v8689, 0.044715
        %v8818 = vmul.f32 %v8690, 0.044715
        %v8819 = vmul.f32 %v8691, 0.044715
        %v8820 = vmul.f32 %v8692, 0.044715
        %v8821 = vmul.f32 %v8693, 0.044715
        %v8822 = vmul.f32 %v8694, 0.044715
        %v8823 = vmul.f32 %v8695, 0.044715
        %v8824 = vmul.f32 %v8696, 0.044715
        %v8825 = vmul.f32 %v8697, 0.044715
        %v8826 = vmul.f32 %v8698, 0.044715
        %v8827 = vmul.f32 %v8699, 0.044715
        %v8828 = vmul.f32 %v8700, 0.044715
        %v8829 = vmul.f32 %v8701, 0.044715
        %v8830 = vmul.f32 %v8702, 0.044715
        %v8831 = vmul.f32 %v8703, 0.044715
        %v8832 = vmul.f32 %v8704, 0.044715
        %v8833 = vmul.f32 %v8705, 0.044715
        %v8834 = vmul.f32 %v8706, 0.044715
        %v8835 = vmul.f32 %v8707, 0.044715
        %v8836 = vmul.f32 %v8708, 0.044715
        %v8837 = vmul.f32 %v8709, 0.044715
        %v8838 = vmul.f32 %v8710, 0.044715
        %v8839 = vmul.f32 %v8711, 0.044715
        %v8840 = vmul.f32 %v8712, 0.044715
        %v8841 = vmul.f32 %v8713, 0.044715
        %v8842 = vmul.f32 %v8714, 0.044715
        %v8843 = vmul.f32 %v8715, 0.044715
        %v8844 = vmul.f32 %v8716, 0.044715
        %v8845 = vmul.f32 %v8717, 0.044715
        %v8846 = vmul.f32 %v8718, 0.044715
        %v8847 = vmul.f32 %v8719, 0.044715
        %v8848 = vmul.f32 %v8720, 0.044715
        %v8849 = vmul.f32 %v8721, 0.044715
        %v8850 = vmul.f32 %v8722, 0.044715
        %v8851 = vmul.f32 %v8723, 0.044715
        %v8852 = vmul.f32 %v8724, 0.044715
        %v8853 = vmul.f32 %v8725, 0.044715
        %v8854 = vmul.f32 %v8726, 0.044715
        %v8855 = vmul.f32 %v8727, 0.044715
        %v8856 = vmul.f32 %v8728, 0.044715
        %v8857 = vmul.f32 %v8729, 0.044715
        %v8858 = vmul.f32 %v8730, 0.044715
        %v8859 = vmul.f32 %v8731, 0.044715
        %v8860 = vmul.f32 %v8732, 0.044715
        %v8861 = vmul.f32 %v8733, 0.044715
        %v8862 = vmul.f32 %v8734, 0.044715
        %v8863 = vmul.f32 %v8735, 0.044715
        %v8864 = vmul.f32 %v8736, 0.044715
        %v8865 = vmul.f32 %v8737, 0.044715
        %v8866 = vmul.f32 %v8738, 0.044715
        %v8867 = vmul.f32 %v8739, 0.044715
        %v8868 = vmul.f32 %v8740, 0.044715
        %v8869 = vmul.f32 %v8741, 0.044715
        %v8870 = vmul.f32 %v8742, 0.044715
        %v8871 = vmul.f32 %v8743, 0.044715
        %v8872 = vadd.f32 %v8142, %v8744
        %v8873 = vadd.f32 %v8231, %v8745
        %v8874 = vadd.f32 %v8320, %v8746
        %v8875 = vadd.f32 %v8409, %v8747
        %v8876 = vadd.f32 %v8144, %v8748
        %v8877 = vadd.f32 %v8233, %v8749
        %v8878 = vadd.f32 %v8322, %v8750
        %v8879 = vadd.f32 %v8411, %v8751
        %v8880 = vadd.f32 %v8147, %v8752
        %v8881 = vadd.f32 %v8236, %v8753
        %v8882 = vadd.f32 %v8325, %v8754
        %v8883 = vadd.f32 %v8414, %v8755
        %v8884 = vadd.f32 %v8149, %v8756
        %v8885 = vadd.f32 %v8238, %v8757
        %v8886 = vadd.f32 %v8327, %v8758
        %v8887 = vadd.f32 %v8416, %v8759
        %v8888 = vadd.f32 %v8152, %v8760
        %v8889 = vadd.f32 %v8241, %v8761
        %v8890 = vadd.f32 %v8330, %v8762
        %v8891 = vadd.f32 %v8419, %v8763
        %v8892 = vadd.f32 %v8154, %v8764
        %v8893 = vadd.f32 %v8243, %v8765
        %v8894 = vadd.f32 %v8332, %v8766
        %v8895 = vadd.f32 %v8421, %v8767
        %v8896 = vadd.f32 %v8157, %v8768
        %v8897 = vadd.f32 %v8246, %v8769
        %v8898 = vadd.f32 %v8335, %v8770
        %v8899 = vadd.f32 %v8424, %v8771
        %v8900 = vadd.f32 %v8159, %v8772
        %v8901 = vadd.f32 %v8248, %v8773
        %v8902 = vadd.f32 %v8337, %v8774
        %v8903 = vadd.f32 %v8426, %v8775
        %v8904 = vadd.f32 %v8162, %v8776
        %v8905 = vadd.f32 %v8251, %v8777
        %v8906 = vadd.f32 %v8340, %v8778
        %v8907 = vadd.f32 %v8429, %v8779
        %v8908 = vadd.f32 %v8164, %v8780
        %v8909 = vadd.f32 %v8253, %v8781
        %v8910 = vadd.f32 %v8342, %v8782
        %v8911 = vadd.f32 %v8431, %v8783
        %v8912 = vadd.f32 %v8167, %v8784
        %v8913 = vadd.f32 %v8256, %v8785
        %v8914 = vadd.f32 %v8345, %v8786
        %v8915 = vadd.f32 %v8434, %v8787
        %v8916 = vadd.f32 %v8169, %v8788
        %v8917 = vadd.f32 %v8258, %v8789
        %v8918 = vadd.f32 %v8347, %v8790
        %v8919 = vadd.f32 %v8436, %v8791
        %v8920 = vadd.f32 %v8172, %v8792
        %v8921 = vadd.f32 %v8261, %v8793
        %v8922 = vadd.f32 %v8350, %v8794
        %v8923 = vadd.f32 %v8439, %v8795
        %v8924 = vadd.f32 %v8174, %v8796
        %v8925 = vadd.f32 %v8263, %v8797
        %v8926 = vadd.f32 %v8352, %v8798
        %v8927 = vadd.f32 %v8441, %v8799
        %v8928 = vadd.f32 %v8177, %v8800
        %v8929 = vadd.f32 %v8266, %v8801
        %v8930 = vadd.f32 %v8355, %v8802
        %v8931 = vadd.f32 %v8444, %v8803
        %v8932 = vadd.f32 %v8179, %v8804
        %v8933 = vadd.f32 %v8268, %v8805
        %v8934 = vadd.f32 %v8357, %v8806
        %v8935 = vadd.f32 %v8446, %v8807
        %v8936 = vadd.f32 %v8182, %v8808
        %v8937 = vadd.f32 %v8271, %v8809
        %v8938 = vadd.f32 %v8360, %v8810
        %v8939 = vadd.f32 %v8449, %v8811
        %v8940 = vadd.f32 %v8184, %v8812
        %v8941 = vadd.f32 %v8273, %v8813
        %v8942 = vadd.f32 %v8362, %v8814
        %v8943 = vadd.f32 %v8451, %v8815
        %v8944 = vadd.f32 %v8187, %v8816
        %v8945 = vadd.f32 %v8276, %v8817
        %v8946 = vadd.f32 %v8365, %v8818
        %v8947 = vadd.f32 %v8454, %v8819
        %v8948 = vadd.f32 %v8189, %v8820
        %v8949 = vadd.f32 %v8278, %v8821
        %v8950 = vadd.f32 %v8367, %v8822
        %v8951 = vadd.f32 %v8456, %v8823
        %v8952 = vadd.f32 %v8192, %v8824
        %v8953 = vadd.f32 %v8281, %v8825
        %v8954 = vadd.f32 %v8370, %v8826
        %v8955 = vadd.f32 %v8459, %v8827
        %v8956 = vadd.f32 %v8194, %v8828
        %v8957 = vadd.f32 %v8283, %v8829
        %v8958 = vadd.f32 %v8372, %v8830
        %v8959 = vadd.f32 %v8461, %v8831
        %v8960 = vadd.f32 %v8197, %v8832
        %v8961 = vadd.f32 %v8286, %v8833
        %v8962 = vadd.f32 %v8375, %v8834
        %v8963 = vadd.f32 %v8464, %v8835
        %v8964 = vadd.f32 %v8199, %v8836
        %v8965 = vadd.f32 %v8288, %v8837
        %v8966 = vadd.f32 %v8377, %v8838
        %v8967 = vadd.f32 %v8466, %v8839
        %v8968 = vadd.f32 %v8202, %v8840
        %v8969 = vadd.f32 %v8291, %v8841
        %v8970 = vadd.f32 %v8380, %v8842
        %v8971 = vadd.f32 %v8469, %v8843
        %v8972 = vadd.f32 %v8204, %v8844
        %v8973 = vadd.f32 %v8293, %v8845
        %v8974 = vadd.f32 %v8382, %v8846
        %v8975 = vadd.f32 %v8471, %v8847
        %v8976 = vadd.f32 %v8207, %v8848
        %v8977 = vadd.f32 %v8296, %v8849
        %v8978 = vadd.f32 %v8385, %v8850
        %v8979 = vadd.f32 %v8474, %v8851
        %v8980 = vadd.f32 %v8209, %v8852
        %v8981 = vadd.f32 %v8298, %v8853
        %v8982 = vadd.f32 %v8387, %v8854
        %v8983 = vadd.f32 %v8476, %v8855
        %v8984 = vadd.f32 %v8212, %v8856
        %v8985 = vadd.f32 %v8301, %v8857
        %v8986 = vadd.f32 %v8390, %v8858
        %v8987 = vadd.f32 %v8479, %v8859
        %v8988 = vadd.f32 %v8214, %v8860
        %v8989 = vadd.f32 %v8303, %v8861
        %v8990 = vadd.f32 %v8392, %v8862
        %v8991 = vadd.f32 %v8481, %v8863
        %v8992 = vadd.f32 %v8217, %v8864
        %v8993 = vadd.f32 %v8306, %v8865
        %v8994 = vadd.f32 %v8395, %v8866
        %v8995 = vadd.f32 %v8484, %v8867
        %v8996 = vadd.f32 %v8219, %v8868
        %v8997 = vadd.f32 %v8308, %v8869
        %v8998 = vadd.f32 %v8397, %v8870
        %v8999 = vadd.f32 %v8486, %v8871
        %v9000 = vmul.f32 %v8872, 0.7978846
        %v9001 = vmul.f32 %v8873, 0.7978846
        %v9002 = vmul.f32 %v8874, 0.7978846
        %v9003 = vmul.f32 %v8875, 0.7978846
        %v9004 = vmul.f32 %v8876, 0.7978846
        %v9005 = vmul.f32 %v8877, 0.7978846
        %v9006 = vmul.f32 %v8878, 0.7978846
        %v9007 = vmul.f32 %v8879, 0.7978846
        %v9008 = vmul.f32 %v8880, 0.7978846
        %v9009 = vmul.f32 %v8881, 0.7978846
        %v9010 = vmul.f32 %v8882, 0.7978846
        %v9011 = vmul.f32 %v8883, 0.7978846
        %v9012 = vmul.f32 %v8884, 0.7978846
        %v9013 = vmul.f32 %v8885, 0.7978846
        %v9014 = vmul.f32 %v8886, 0.7978846
        %v9015 = vmul.f32 %v8887, 0.7978846
        %v9016 = vmul.f32 %v8888, 0.7978846
        %v9017 = vmul.f32 %v8889, 0.7978846
        %v9018 = vmul.f32 %v8890, 0.7978846
        %v9019 = vmul.f32 %v8891, 0.7978846
        %v9020 = vmul.f32 %v8892, 0.7978846
        %v9021 = vmul.f32 %v8893, 0.7978846
        %v9022 = vmul.f32 %v8894, 0.7978846
        %v9023 = vmul.f32 %v8895, 0.7978846
        %v9024 = vmul.f32 %v8896, 0.7978846
        %v9025 = vmul.f32 %v8897, 0.7978846
        %v9026 = vmul.f32 %v8898, 0.7978846
        %v9027 = vmul.f32 %v8899, 0.7978846
        %v9028 = vmul.f32 %v8900, 0.7978846
        %v9029 = vmul.f32 %v8901, 0.7978846
        %v9030 = vmul.f32 %v8902, 0.7978846
        %v9031 = vmul.f32 %v8903, 0.7978846
        %v9032 = vmul.f32 %v8904, 0.7978846
        %v9033 = vmul.f32 %v8905, 0.7978846
        %v9034 = vmul.f32 %v8906, 0.7978846
        %v9035 = vmul.f32 %v8907, 0.7978846
        %v9036 = vmul.f32 %v8908, 0.7978846
        %v9037 = vmul.f32 %v8909, 0.7978846
        %v9038 = vmul.f32 %v8910, 0.7978846
        %v9039 = vmul.f32 %v8911, 0.7978846
        %v9040 = vmul.f32 %v8912, 0.7978846
        %v9041 = vmul.f32 %v8913, 0.7978846
        %v9042 = vmul.f32 %v8914, 0.7978846
        %v9043 = vmul.f32 %v8915, 0.7978846
        %v9044 = vmul.f32 %v8916, 0.7978846
        %v9045 = vmul.f32 %v8917, 0.7978846
        %v9046 = vmul.f32 %v8918, 0.7978846
        %v9047 = vmul.f32 %v8919, 0.7978846
        %v9048 = vmul.f32 %v8920, 0.7978846
        %v9049 = vmul.f32 %v8921, 0.7978846
        %v9050 = vmul.f32 %v8922, 0.7978846
        %v9051 = vmul.f32 %v8923, 0.7978846
        %v9052 = vmul.f32 %v8924, 0.7978846
        %v9053 = vmul.f32 %v8925, 0.7978846
        %v9054 = vmul.f32 %v8926, 0.7978846
        %v9055 = vmul.f32 %v8927, 0.7978846
        %v9056 = vmul.f32 %v8928, 0.7978846
        %v9057 = vmul.f32 %v8929, 0.7978846
        %v9058 = vmul.f32 %v8930, 0.7978846
        %v9059 = vmul.f32 %v8931, 0.7978846
        %v9060 = vmul.f32 %v8932, 0.7978846
        %v9061 = vmul.f32 %v8933, 0.7978846
        %v9062 = vmul.f32 %v8934, 0.7978846
        %v9063 = vmul.f32 %v8935, 0.7978846
        %v9064 = vmul.f32 %v8936, 0.7978846
        %v9065 = vmul.f32 %v8937, 0.7978846
        %v9066 = vmul.f32 %v8938, 0.7978846
        %v9067 = vmul.f32 %v8939, 0.7978846
        %v9068 = vmul.f32 %v8940, 0.7978846
        %v9069 = vmul.f32 %v8941, 0.7978846
        %v9070 = vmul.f32 %v8942, 0.7978846
        %v9071 = vmul.f32 %v8943, 0.7978846
        %v9072 = vmul.f32 %v8944, 0.7978846
        %v9073 = vmul.f32 %v8945, 0.7978846
        %v9074 = vmul.f32 %v8946, 0.7978846
        %v9075 = vmul.f32 %v8947, 0.7978846
        %v9076 = vmul.f32 %v8948, 0.7978846
        %v9077 = vmul.f32 %v8949, 0.7978846
        %v9078 = vmul.f32 %v8950, 0.7978846
        %v9079 = vmul.f32 %v8951, 0.7978846
        %v9080 = vmul.f32 %v8952, 0.7978846
        %v9081 = vmul.f32 %v8953, 0.7978846
        %v9082 = vmul.f32 %v8954, 0.7978846
        %v9083 = vmul.f32 %v8955, 0.7978846
        %v9084 = vmul.f32 %v8956, 0.7978846
        %v9085 = vmul.f32 %v8957, 0.7978846
        %v9086 = vmul.f32 %v8958, 0.7978846
        %v9087 = vmul.f32 %v8959, 0.7978846
        %v9088 = vmul.f32 %v8960, 0.7978846
        %v9089 = vmul.f32 %v8961, 0.7978846
        %v9090 = vmul.f32 %v8962, 0.7978846
        %v9091 = vmul.f32 %v8963, 0.7978846
        %v9092 = vmul.f32 %v8964, 0.7978846
        %v9093 = vmul.f32 %v8965, 0.7978846
        %v9094 = vmul.f32 %v8966, 0.7978846
        %v9095 = vmul.f32 %v8967, 0.7978846
        %v9096 = vmul.f32 %v8968, 0.7978846
        %v9097 = vmul.f32 %v8969, 0.7978846
        %v9098 = vmul.f32 %v8970, 0.7978846
        %v9099 = vmul.f32 %v8971, 0.7978846
        %v9100 = vmul.f32 %v8972, 0.7978846
        %v9101 = vmul.f32 %v8973, 0.7978846
        %v9102 = vmul.f32 %v8974, 0.7978846
        %v9103 = vmul.f32 %v8975, 0.7978846
        %v9104 = vmul.f32 %v8976, 0.7978846
        %v9105 = vmul.f32 %v8977, 0.7978846
        %v9106 = vmul.f32 %v8978, 0.7978846
        %v9107 = vmul.f32 %v8979, 0.7978846
        %v9108 = vmul.f32 %v8980, 0.7978846
        %v9109 = vmul.f32 %v8981, 0.7978846
        %v9110 = vmul.f32 %v8982, 0.7978846
        %v9111 = vmul.f32 %v8983, 0.7978846
        %v9112 = vmul.f32 %v8984, 0.7978846
        %v9113 = vmul.f32 %v8985, 0.7978846
        %v9114 = vmul.f32 %v8986, 0.7978846
        %v9115 = vmul.f32 %v8987, 0.7978846
        %v9116 = vmul.f32 %v8988, 0.7978846
        %v9117 = vmul.f32 %v8989, 0.7978846
        %v9118 = vmul.f32 %v8990, 0.7978846
        %v9119 = vmul.f32 %v8991, 0.7978846
        %v9120 = vmul.f32 %v8992, 0.7978846
        %v9121 = vmul.f32 %v8993, 0.7978846
        %v9122 = vmul.f32 %v8994, 0.7978846
        %v9123 = vmul.f32 %v8995, 0.7978846
        %v9124 = vmul.f32 %v8996, 0.7978846
        %v9125 = vmul.f32 %v8997, 0.7978846
        %v9126 = vmul.f32 %v8998, 0.7978846
        %v9127 = vmul.f32 %v8999, 0.7978846
        %v9128 = vtanh.pop %v9000
        %v9129 = vtanh.pop %v9001
        %v9130 = vtanh.pop %v9002
        %v9131 = vtanh.pop %v9003
        %v9132 = vtanh.pop %v9004
        %v9133 = vtanh.pop %v9005
        %v9134 = vtanh.pop %v9006
        %v9135 = vtanh.pop %v9007
        %v9136 = vtanh.pop %v9008
        %v9137 = vtanh.pop %v9009
        %v9138 = vtanh.pop %v9010
        %v9139 = vtanh.pop %v9011
        %v9140 = vtanh.pop %v9012
        %v9141 = vtanh.pop %v9013
        %v9142 = vtanh.pop %v9014
        %v9143 = vtanh.pop %v9015
        %v9144 = vtanh.pop %v9016
        %v9145 = vtanh.pop %v9017
        %v9146 = vtanh.pop %v9018
        %v9147 = vtanh.pop %v9019
        %v9148 = vtanh.pop %v9020
        %v9149 = vtanh.pop %v9021
        %v9150 = vtanh.pop %v9022
        %v9151 = vtanh.pop %v9023
        %v9152 = vtanh.pop %v9024
        %v9153 = vtanh.pop %v9025
        %v9154 = vtanh.pop %v9026
        %v9155 = vtanh.pop %v9027
        %v9156 = vtanh.pop %v9028
        %v9157 = vtanh.pop %v9029
        %v9158 = vtanh.pop %v9030
        %v9159 = vtanh.pop %v9031
        %v9160 = vtanh.pop %v9032
        %v9161 = vtanh.pop %v9033
        %v9162 = vtanh.pop %v9034
        %v9163 = vtanh.pop %v9035
        %v9164 = vtanh.pop %v9036
        %v9165 = vtanh.pop %v9037
        %v9166 = vtanh.pop %v9038
        %v9167 = vtanh.pop %v9039
        %v9168 = vtanh.pop %v9040
        %v9169 = vtanh.pop %v9041
        %v9170 = vtanh.pop %v9042
        %v9171 = vtanh.pop %v9043
        %v9172 = vtanh.pop %v9044
        %v9173 = vtanh.pop %v9045
        %v9174 = vtanh.pop %v9046
        %v9175 = vtanh.pop %v9047
        %v9176 = vtanh.pop %v9048
        %v9177 = vtanh.pop %v9049
        %v9178 = vtanh.pop %v9050
        %v9179 = vtanh.pop %v9051
        %v9180 = vtanh.pop %v9052
        %v9181 = vtanh.pop %v9053
        %v9182 = vtanh.pop %v9054
        %v9183 = vtanh.pop %v9055
        %v9184 = vtanh.pop %v9056
        %v9185 = vtanh.pop %v9057
        %v9186 = vtanh.pop %v9058
        %v9187 = vtanh.pop %v9059
        %v9188 = vtanh.pop %v9060
        %v9189 = vtanh.pop %v9061
        %v9190 = vtanh.pop %v9062
        %v9191 = vtanh.pop %v9063
        %v9192 = vtanh.pop %v9064
        %v9193 = vtanh.pop %v9065
        %v9194 = vtanh.pop %v9066
        %v9195 = vtanh.pop %v9067
        %v9196 = vtanh.pop %v9068
        %v9197 = vtanh.pop %v9069
        %v9198 = vtanh.pop %v9070
        %v9199 = vtanh.pop %v9071
        %v9200 = vtanh.pop %v9072
        %v9201 = vtanh.pop %v9073
        %v9202 = vtanh.pop %v9074
        %v9203 = vtanh.pop %v9075
        %v9204 = vtanh.pop %v9076
        %v9205 = vtanh.pop %v9077
        %v9206 = vtanh.pop %v9078
        %v9207 = vtanh.pop %v9079
        %v9208 = vtanh.pop %v9080
        %v9209 = vtanh.pop %v9081
        %v9210 = vtanh.pop %v9082
        %v9211 = vtanh.pop %v9083
        %v9212 = vtanh.pop %v9084
        %v9213 = vtanh.pop %v9085
        %v9214 = vtanh.pop %v9086
        %v9215 = vtanh.pop %v9087
        %v9216 = vtanh.pop %v9088
        %v9217 = vtanh.pop %v9089
        %v9218 = vtanh.pop %v9090
        %v9219 = vtanh.pop %v9091
        %v9220 = vtanh.pop %v9092
        %v9221 = vtanh.pop %v9093
        %v9222 = vtanh.pop %v9094
        %v9223 = vtanh.pop %v9095
        %v9224 = vtanh.pop %v9096
        %v9225 = vtanh.pop %v9097
        %v9226 = vtanh.pop %v9098
        %v9227 = vtanh.pop %v9099
        %v9228 = vtanh.pop %v9100
        %v9229 = vtanh.pop %v9101
        %v9230 = vtanh.pop %v9102
        %v9231 = vtanh.pop %v9103
        %v9232 = vtanh.pop %v9104
        %v9233 = vtanh.pop %v9105
        %v9234 = vtanh.pop %v9106
        %v9235 = vtanh.pop %v9107
        %v9236 = vtanh.pop %v9108
        %v9237 = vtanh.pop %v9109
        %v9238 = vtanh.pop %v9110
        %v9239 = vtanh.pop %v9111
        %v9240 = vtanh.pop %v9112
        %v9241 = vtanh.pop %v9113
        %v9242 = vtanh.pop %v9114
        %v9243 = vtanh.pop %v9115
        %v9244 = vtanh.pop %v9116
        %v9245 = vtanh.pop %v9117
        %v9246 = vtanh.pop %v9118
        %v9247 = vtanh.pop %v9119
        %v9248 = vtanh.pop %v9120
        %v9249 = vtanh.pop %v9121
        %v9250 = vtanh.pop %v9122
        %v9251 = vtanh.pop %v9123
        %v9252 = vtanh.pop %v9124
        %v9253 = vtanh.pop %v9125
        %v9254 = vtanh.pop %v9126
        %v9255 = vtanh.pop %v9127
        %v9256 = vadd.f32 %v9128, 1.0
        %v9257 = vadd.f32 %v9129, 1.0
        %v9258 = vadd.f32 %v9130, 1.0
        %v9259 = vadd.f32 %v9131, 1.0
        %v9260 = vadd.f32 %v9132, 1.0
        %v9261 = vadd.f32 %v9133, 1.0
        %v9262 = vadd.f32 %v9134, 1.0
        %v9263 = vadd.f32 %v9135, 1.0
        %v9264 = vadd.f32 %v9136, 1.0
        %v9265 = vadd.f32 %v9137, 1.0
        %v9266 = vadd.f32 %v9138, 1.0
        %v9267 = vadd.f32 %v9139, 1.0
        %v9268 = vadd.f32 %v9140, 1.0
        %v9269 = vadd.f32 %v9141, 1.0
        %v9270 = vadd.f32 %v9142, 1.0
        %v9271 = vadd.f32 %v9143, 1.0
        %v9272 = vadd.f32 %v9144, 1.0
        %v9273 = vadd.f32 %v9145, 1.0
        %v9274 = vadd.f32 %v9146, 1.0
        %v9275 = vadd.f32 %v9147, 1.0
        %v9276 = vadd.f32 %v9148, 1.0
        %v9277 = vadd.f32 %v9149, 1.0
        %v9278 = vadd.f32 %v9150, 1.0
        %v9279 = vadd.f32 %v9151, 1.0
        %v9280 = vadd.f32 %v9152, 1.0
        %v9281 = vadd.f32 %v9153, 1.0
        %v9282 = vadd.f32 %v9154, 1.0
        %v9283 = vadd.f32 %v9155, 1.0
        %v9284 = vadd.f32 %v9156, 1.0
        %v9285 = vadd.f32 %v9157, 1.0
        %v9286 = vadd.f32 %v9158, 1.0
        %v9287 = vadd.f32 %v9159, 1.0
        %v9288 = vadd.f32 %v9160, 1.0
        %v9289 = vadd.f32 %v9161, 1.0
        %v9290 = vadd.f32 %v9162, 1.0
        %v9291 = vadd.f32 %v9163, 1.0
        %v9292 = vadd.f32 %v9164, 1.0
        %v9293 = vadd.f32 %v9165, 1.0
        %v9294 = vadd.f32 %v9166, 1.0
        %v9295 = vadd.f32 %v9167, 1.0
        %v9296 = vadd.f32 %v9168, 1.0
        %v9297 = vadd.f32 %v9169, 1.0
        %v9298 = vadd.f32 %v9170, 1.0
        %v9299 = vadd.f32 %v9171, 1.0
        %v9300 = vadd.f32 %v9172, 1.0
        %v9301 = vadd.f32 %v9173, 1.0
        %v9302 = vadd.f32 %v9174, 1.0
        %v9303 = vadd.f32 %v9175, 1.0
        %v9304 = vadd.f32 %v9176, 1.0
        %v9305 = vadd.f32 %v9177, 1.0
        %v9306 = vadd.f32 %v9178, 1.0
        %v9307 = vadd.f32 %v9179, 1.0
        %v9308 = vadd.f32 %v9180, 1.0
        %v9309 = vadd.f32 %v9181, 1.0
        %v9310 = vadd.f32 %v9182, 1.0
        %v9311 = vadd.f32 %v9183, 1.0
        %v9312 = vadd.f32 %v9184, 1.0
        %v9313 = vadd.f32 %v9185, 1.0
        %v9314 = vadd.f32 %v9186, 1.0
        %v9315 = vadd.f32 %v9187, 1.0
        %v9316 = vadd.f32 %v9188, 1.0
        %v9317 = vadd.f32 %v9189, 1.0
        %v9318 = vadd.f32 %v9190, 1.0
        %v9319 = vadd.f32 %v9191, 1.0
        %v9320 = vadd.f32 %v9192, 1.0
        %v9321 = vadd.f32 %v9193, 1.0
        %v9322 = vadd.f32 %v9194, 1.0
        %v9323 = vadd.f32 %v9195, 1.0
        %v9324 = vadd.f32 %v9196, 1.0
        %v9325 = vadd.f32 %v9197, 1.0
        %v9326 = vadd.f32 %v9198, 1.0
        %v9327 = vadd.f32 %v9199, 1.0
        %v9328 = vadd.f32 %v9200, 1.0
        %v9329 = vadd.f32 %v9201, 1.0
        %v9330 = vadd.f32 %v9202, 1.0
        %v9331 = vadd.f32 %v9203, 1.0
        %v9332 = vadd.f32 %v9204, 1.0
        %v9333 = vadd.f32 %v9205, 1.0
        %v9334 = vadd.f32 %v9206, 1.0
        %v9335 = vadd.f32 %v9207, 1.0
        %v9336 = vadd.f32 %v9208, 1.0
        %v9337 = vadd.f32 %v9209, 1.0
        %v9338 = vadd.f32 %v9210, 1.0
        %v9339 = vadd.f32 %v9211, 1.0
        %v9340 = vadd.f32 %v9212, 1.0
        %v9341 = vadd.f32 %v9213, 1.0
        %v9342 = vadd.f32 %v9214, 1.0
        %v9343 = vadd.f32 %v9215, 1.0
        %v9344 = vadd.f32 %v9216, 1.0
        %v9345 = vadd.f32 %v9217, 1.0
        %v9346 = vadd.f32 %v9218, 1.0
        %v9347 = vadd.f32 %v9219, 1.0
        %v9348 = vadd.f32 %v9220, 1.0
        %v9349 = vadd.f32 %v9221, 1.0
        %v9350 = vadd.f32 %v9222, 1.0
        %v9351 = vadd.f32 %v9223, 1.0
        %v9352 = vadd.f32 %v9224, 1.0
        %v9353 = vadd.f32 %v9225, 1.0
        %v9354 = vadd.f32 %v9226, 1.0
        %v9355 = vadd.f32 %v9227, 1.0
        %v9356 = vadd.f32 %v9228, 1.0
        %v9357 = vadd.f32 %v9229, 1.0
        %v9358 = vadd.f32 %v9230, 1.0
        %v9359 = vadd.f32 %v9231, 1.0
        %v9360 = vadd.f32 %v9232, 1.0
        %v9361 = vadd.f32 %v9233, 1.0
        %v9362 = vadd.f32 %v9234, 1.0
        %v9363 = vadd.f32 %v9235, 1.0
        %v9364 = vadd.f32 %v9236, 1.0
        %v9365 = vadd.f32 %v9237, 1.0
        %v9366 = vadd.f32 %v9238, 1.0
        %v9367 = vadd.f32 %v9239, 1.0
        %v9368 = vadd.f32 %v9240, 1.0
        %v9369 = vadd.f32 %v9241, 1.0
        %v9370 = vadd.f32 %v9242, 1.0
        %v9371 = vadd.f32 %v9243, 1.0
        %v9372 = vadd.f32 %v9244, 1.0
        %v9373 = vadd.f32 %v9245, 1.0
        %v9374 = vadd.f32 %v9246, 1.0
        %v9375 = vadd.f32 %v9247, 1.0
        %v9376 = vadd.f32 %v9248, 1.0
        %v9377 = vadd.f32 %v9249, 1.0
        %v9378 = vadd.f32 %v9250, 1.0
        %v9379 = vadd.f32 %v9251, 1.0
        %v9380 = vadd.f32 %v9252, 1.0
        %v9381 = vadd.f32 %v9253, 1.0
        %v9382 = vadd.f32 %v9254, 1.0
        %v9383 = vadd.f32 %v9255, 1.0
        %v9384 = vmul.f32 %v9256, 0.5
        %v9385 = vmul.f32 %v9257, 0.5
        %v9386 = vmul.f32 %v9258, 0.5
        %v9387 = vmul.f32 %v9259, 0.5
        %v9388 = vmul.f32 %v9260, 0.5
        %v9389 = vmul.f32 %v9261, 0.5
        %v9390 = vmul.f32 %v9262, 0.5
        %v9391 = vmul.f32 %v9263, 0.5
        %v9392 = vmul.f32 %v9264, 0.5
        %v9393 = vmul.f32 %v9265, 0.5
        %v9394 = vmul.f32 %v9266, 0.5
        %v9395 = vmul.f32 %v9267, 0.5
        %v9396 = vmul.f32 %v9268, 0.5
        %v9397 = vmul.f32 %v9269, 0.5
        %v9398 = vmul.f32 %v9270, 0.5
        %v9399 = vmul.f32 %v9271, 0.5
        %v9400 = vmul.f32 %v9272, 0.5
        %v9401 = vmul.f32 %v9273, 0.5
        %v9402 = vmul.f32 %v9274, 0.5
        %v9403 = vmul.f32 %v9275, 0.5
        %v9404 = vmul.f32 %v9276, 0.5
        %v9405 = vmul.f32 %v9277, 0.5
        %v9406 = vmul.f32 %v9278, 0.5
        %v9407 = vmul.f32 %v9279, 0.5
        %v9408 = vmul.f32 %v9280, 0.5
        %v9409 = vmul.f32 %v9281, 0.5
        %v9410 = vmul.f32 %v9282, 0.5
        %v9411 = vmul.f32 %v9283, 0.5
        %v9412 = vmul.f32 %v9284, 0.5
        %v9413 = vmul.f32 %v9285, 0.5
        %v9414 = vmul.f32 %v9286, 0.5
        %v9415 = vmul.f32 %v9287, 0.5
        %v9416 = vmul.f32 %v9288, 0.5
        %v9417 = vmul.f32 %v9289, 0.5
        %v9418 = vmul.f32 %v9290, 0.5
        %v9419 = vmul.f32 %v9291, 0.5
        %v9420 = vmul.f32 %v9292, 0.5
        %v9421 = vmul.f32 %v9293, 0.5
        %v9422 = vmul.f32 %v9294, 0.5
        %v9423 = vmul.f32 %v9295, 0.5
        %v9424 = vmul.f32 %v9296, 0.5
        %v9425 = vmul.f32 %v9297, 0.5
        %v9426 = vmul.f32 %v9298, 0.5
        %v9427 = vmul.f32 %v9299, 0.5
        %v9428 = vmul.f32 %v9300, 0.5
        %v9429 = vmul.f32 %v9301, 0.5
        %v9430 = vmul.f32 %v9302, 0.5
        %v9431 = vmul.f32 %v9303, 0.5
        %v9432 = vmul.f32 %v9304, 0.5
        %v9433 = vmul.f32 %v9305, 0.5
        %v9434 = vmul.f32 %v9306, 0.5
        %v9435 = vmul.f32 %v9307, 0.5
        %v9436 = vmul.f32 %v9308, 0.5
        %v9437 = vmul.f32 %v9309, 0.5
        %v9438 = vmul.f32 %v9310, 0.5
        %v9439 = vmul.f32 %v9311, 0.5
        %v9440 = vmul.f32 %v9312, 0.5
        %v9441 = vmul.f32 %v9313, 0.5
        %v9442 = vmul.f32 %v9314, 0.5
        %v9443 = vmul.f32 %v9315, 0.5
        %v9444 = vmul.f32 %v9316, 0.5
        %v9445 = vmul.f32 %v9317, 0.5
        %v9446 = vmul.f32 %v9318, 0.5
        %v9447 = vmul.f32 %v9319, 0.5
        %v9448 = vmul.f32 %v9320, 0.5
        %v9449 = vmul.f32 %v9321, 0.5
        %v9450 = vmul.f32 %v9322, 0.5
        %v9451 = vmul.f32 %v9323, 0.5
        %v9452 = vmul.f32 %v9324, 0.5
        %v9453 = vmul.f32 %v9325, 0.5
        %v9454 = vmul.f32 %v9326, 0.5
        %v9455 = vmul.f32 %v9327, 0.5
        %v9456 = vmul.f32 %v9328, 0.5
        %v9457 = vmul.f32 %v9329, 0.5
        %v9458 = vmul.f32 %v9330, 0.5
        %v9459 = vmul.f32 %v9331, 0.5
        %v9460 = vmul.f32 %v9332, 0.5
        %v9461 = vmul.f32 %v9333, 0.5
        %v9462 = vmul.f32 %v9334, 0.5
        %v9463 = vmul.f32 %v9335, 0.5
        %v9464 = vmul.f32 %v9336, 0.5
        %v9465 = vmul.f32 %v9337, 0.5
        %v9466 = vmul.f32 %v9338, 0.5
        %v9467 = vmul.f32 %v9339, 0.5
        %v9468 = vmul.f32 %v9340, 0.5
        %v9469 = vmul.f32 %v9341, 0.5
        %v9470 = vmul.f32 %v9342, 0.5
        %v9471 = vmul.f32 %v9343, 0.5
        %v9472 = vmul.f32 %v9344, 0.5
        %v9473 = vmul.f32 %v9345, 0.5
        %v9474 = vmul.f32 %v9346, 0.5
        %v9475 = vmul.f32 %v9347, 0.5
        %v9476 = vmul.f32 %v9348, 0.5
        %v9477 = vmul.f32 %v9349, 0.5
        %v9478 = vmul.f32 %v9350, 0.5
        %v9479 = vmul.f32 %v9351, 0.5
        %v9480 = vmul.f32 %v9352, 0.5
        %v9481 = vmul.f32 %v9353, 0.5
        %v9482 = vmul.f32 %v9354, 0.5
        %v9483 = vmul.f32 %v9355, 0.5
        %v9484 = vmul.f32 %v9356, 0.5
        %v9485 = vmul.f32 %v9357, 0.5
        %v9486 = vmul.f32 %v9358, 0.5
        %v9487 = vmul.f32 %v9359, 0.5
        %v9488 = vmul.f32 %v9360, 0.5
        %v9489 = vmul.f32 %v9361, 0.5
        %v9490 = vmul.f32 %v9362, 0.5
        %v9491 = vmul.f32 %v9363, 0.5
        %v9492 = vmul.f32 %v9364, 0.5
        %v9493 = vmul.f32 %v9365, 0.5
        %v9494 = vmul.f32 %v9366, 0.5
        %v9495 = vmul.f32 %v9367, 0.5
        %v9496 = vmul.f32 %v9368, 0.5
        %v9497 = vmul.f32 %v9369, 0.5
        %v9498 = vmul.f32 %v9370, 0.5
        %v9499 = vmul.f32 %v9371, 0.5
        %v9500 = vmul.f32 %v9372, 0.5
        %v9501 = vmul.f32 %v9373, 0.5
        %v9502 = vmul.f32 %v9374, 0.5
        %v9503 = vmul.f32 %v9375, 0.5
        %v9504 = vmul.f32 %v9376, 0.5
        %v9505 = vmul.f32 %v9377, 0.5
        %v9506 = vmul.f32 %v9378, 0.5
        %v9507 = vmul.f32 %v9379, 0.5
        %v9508 = vmul.f32 %v9380, 0.5
        %v9509 = vmul.f32 %v9381, 0.5
        %v9510 = vmul.f32 %v9382, 0.5
        %v9511 = vmul.f32 %v9383, 0.5
        %v9512 = vmul.f32 %v8142, %v9384
        %v9513 = vmul.f32 %v8231, %v9385
        %v9514 = vmul.f32 %v8320, %v9386
        %v9515 = vmul.f32 %v8409, %v9387
        %v9516 = vmul.f32 %v8144, %v9388
        %v9517 = vmul.f32 %v8233, %v9389
        %v9518 = vmul.f32 %v8322, %v9390
        %v9519 = vmul.f32 %v8411, %v9391
        %v9520 = vmul.f32 %v8147, %v9392
        %v9521 = vmul.f32 %v8236, %v9393
        %v9522 = vmul.f32 %v8325, %v9394
        %v9523 = vmul.f32 %v8414, %v9395
        %v9524 = vmul.f32 %v8149, %v9396
        %v9525 = vmul.f32 %v8238, %v9397
        %v9526 = vmul.f32 %v8327, %v9398
        %v9527 = vmul.f32 %v8416, %v9399
        %v9528 = vmul.f32 %v8152, %v9400
        %v9529 = vmul.f32 %v8241, %v9401
        %v9530 = vmul.f32 %v8330, %v9402
        %v9531 = vmul.f32 %v8419, %v9403
        %v9532 = vmul.f32 %v8154, %v9404
        %v9533 = vmul.f32 %v8243, %v9405
        %v9534 = vmul.f32 %v8332, %v9406
        %v9535 = vmul.f32 %v8421, %v9407
        %v9536 = vmul.f32 %v8157, %v9408
        %v9537 = vmul.f32 %v8246, %v9409
        %v9538 = vmul.f32 %v8335, %v9410
        %v9539 = vmul.f32 %v8424, %v9411
        %v9540 = vmul.f32 %v8159, %v9412
        %v9541 = vmul.f32 %v8248, %v9413
        %v9542 = vmul.f32 %v8337, %v9414
        %v9543 = vmul.f32 %v8426, %v9415
        %v9544 = vmul.f32 %v8162, %v9416
        %v9545 = vmul.f32 %v8251, %v9417
        %v9546 = vmul.f32 %v8340, %v9418
        %v9547 = vmul.f32 %v8429, %v9419
        %v9548 = vmul.f32 %v8164, %v9420
        %v9549 = vmul.f32 %v8253, %v9421
        %v9550 = vmul.f32 %v8342, %v9422
        %v9551 = vmul.f32 %v8431, %v9423
        %v9552 = vmul.f32 %v8167, %v9424
        %v9553 = vmul.f32 %v8256, %v9425
        %v9554 = vmul.f32 %v8345, %v9426
        %v9555 = vmul.f32 %v8434, %v9427
        %v9556 = vmul.f32 %v8169, %v9428
        %v9557 = vmul.f32 %v8258, %v9429
        %v9558 = vmul.f32 %v8347, %v9430
        %v9559 = vmul.f32 %v8436, %v9431
        %v9560 = vmul.f32 %v8172, %v9432
        %v9561 = vmul.f32 %v8261, %v9433
        %v9562 = vmul.f32 %v8350, %v9434
        %v9563 = vmul.f32 %v8439, %v9435
        %v9564 = vmul.f32 %v8174, %v9436
        %v9565 = vmul.f32 %v8263, %v9437
        %v9566 = vmul.f32 %v8352, %v9438
        %v9567 = vmul.f32 %v8441, %v9439
        %v9568 = vmul.f32 %v8177, %v9440
        %v9569 = vmul.f32 %v8266, %v9441
        %v9570 = vmul.f32 %v8355, %v9442
        %v9571 = vmul.f32 %v8444, %v9443
        %v9572 = vmul.f32 %v8179, %v9444
        %v9573 = vmul.f32 %v8268, %v9445
        %v9574 = vmul.f32 %v8357, %v9446
        %v9575 = vmul.f32 %v8446, %v9447
        %v9576 = vmul.f32 %v8182, %v9448
        %v9577 = vmul.f32 %v8271, %v9449
        %v9578 = vmul.f32 %v8360, %v9450
        %v9579 = vmul.f32 %v8449, %v9451
        %v9580 = vmul.f32 %v8184, %v9452
        %v9581 = vmul.f32 %v8273, %v9453
        %v9582 = vmul.f32 %v8362, %v9454
        %v9583 = vmul.f32 %v8451, %v9455
        %v9584 = vmul.f32 %v8187, %v9456
        %v9585 = vmul.f32 %v8276, %v9457
        %v9586 = vmul.f32 %v8365, %v9458
        %v9587 = vmul.f32 %v8454, %v9459
        %v9588 = vmul.f32 %v8189, %v9460
        %v9589 = vmul.f32 %v8278, %v9461
        %v9590 = vmul.f32 %v8367, %v9462
        %v9591 = vmul.f32 %v8456, %v9463
        %v9592 = vmul.f32 %v8192, %v9464
        %v9593 = vmul.f32 %v8281, %v9465
        %v9594 = vmul.f32 %v8370, %v9466
        %v9595 = vmul.f32 %v8459, %v9467
        %v9596 = vmul.f32 %v8194, %v9468
        %v9597 = vmul.f32 %v8283, %v9469
        %v9598 = vmul.f32 %v8372, %v9470
        %v9599 = vmul.f32 %v8461, %v9471
        %v9600 = vmul.f32 %v8197, %v9472
        %v9601 = vmul.f32 %v8286, %v9473
        %v9602 = vmul.f32 %v8375, %v9474
        %v9603 = vmul.f32 %v8464, %v9475
        %v9604 = vmul.f32 %v8199, %v9476
        %v9605 = vmul.f32 %v8288, %v9477
        %v9606 = vmul.f32 %v8377, %v9478
        %v9607 = vmul.f32 %v8466, %v9479
        %v9608 = vmul.f32 %v8202, %v9480
        %v9609 = vmul.f32 %v8291, %v9481
        %v9610 = vmul.f32 %v8380, %v9482
        %v9611 = vmul.f32 %v8469, %v9483
        %v9612 = vmul.f32 %v8204, %v9484
        %v9613 = vmul.f32 %v8293, %v9485
        %v9614 = vmul.f32 %v8382, %v9486
        %v9615 = vmul.f32 %v8471, %v9487
        %v9616 = vmul.f32 %v8207, %v9488
        %v9617 = vmul.f32 %v8296, %v9489
        %v9618 = vmul.f32 %v8385, %v9490
        %v9619 = vmul.f32 %v8474, %v9491
        %v9620 = vmul.f32 %v8209, %v9492
        %v9621 = vmul.f32 %v8298, %v9493
        %v9622 = vmul.f32 %v8387, %v9494
        %v9623 = vmul.f32 %v8476, %v9495
        %v9624 = vmul.f32 %v8212, %v9496
        %v9625 = vmul.f32 %v8301, %v9497
        %v9626 = vmul.f32 %v8390, %v9498
        %v9627 = vmul.f32 %v8479, %v9499
        %v9628 = vmul.f32 %v8214, %v9500
        %v9629 = vmul.f32 %v8303, %v9501
        %v9630 = vmul.f32 %v8392, %v9502
        %v9631 = vmul.f32 %v8481, %v9503
        %v9632 = vmul.f32 %v8217, %v9504
        %v9633 = vmul.f32 %v8306, %v9505
        %v9634 = vmul.f32 %v8395, %v9506
        %v9635 = vmul.f32 %v8484, %v9507
        %v9636 = vmul.f32 %v8219, %v9508
        %v9637 = vmul.f32 %v8308, %v9509
        %v9638 = vmul.f32 %v8397, %v9510
        %v9639 = vmul.f32 %v8486, %v9511
        %v9640 = vpack.c.bf16 %v9516, %v9512
        %v9641 = vpack.c.bf16 %v9517, %v9513
        %v9642 = vpack.c.bf16 %v9518, %v9514
        %v9643 = vpack.c.bf16 %v9519, %v9515
        %v9644 = vpack.c.bf16 %v9524, %v9520
        %v9645 = vpack.c.bf16 %v9525, %v9521
        %v9646 = vpack.c.bf16 %v9526, %v9522
        %v9647 = vpack.c.bf16 %v9527, %v9523
        %v9648 = vpack.c.bf16 %v9532, %v9528
        %v9649 = vpack.c.bf16 %v9533, %v9529
        %v9650 = vpack.c.bf16 %v9534, %v9530
        %v9651 = vpack.c.bf16 %v9535, %v9531
        %v9652 = vpack.c.bf16 %v9540, %v9536
        %v9653 = vpack.c.bf16 %v9541, %v9537
        %v9654 = vpack.c.bf16 %v9542, %v9538
        %v9655 = vpack.c.bf16 %v9543, %v9539
        %v9656 = vpack.c.bf16 %v9548, %v9544
        %v9657 = vpack.c.bf16 %v9549, %v9545
        %v9658 = vpack.c.bf16 %v9550, %v9546
        %v9659 = vpack.c.bf16 %v9551, %v9547
        %v9660 = vpack.c.bf16 %v9556, %v9552
        %v9661 = vpack.c.bf16 %v9557, %v9553
        %v9662 = vpack.c.bf16 %v9558, %v9554
        %v9663 = vpack.c.bf16 %v9559, %v9555
        %v9664 = vpack.c.bf16 %v9564, %v9560
        %v9665 = vpack.c.bf16 %v9565, %v9561
        %v9666 = vpack.c.bf16 %v9566, %v9562
        %v9667 = vpack.c.bf16 %v9567, %v9563
        %v9668 = vpack.c.bf16 %v9572, %v9568
        %v9669 = vpack.c.bf16 %v9573, %v9569
        %v9670 = vpack.c.bf16 %v9574, %v9570
        %v9671 = vpack.c.bf16 %v9575, %v9571
        %v9672 = vpack.c.bf16 %v9580, %v9576
        %v9673 = vpack.c.bf16 %v9581, %v9577
        %v9674 = vpack.c.bf16 %v9582, %v9578
        %v9675 = vpack.c.bf16 %v9583, %v9579
        %v9676 = vpack.c.bf16 %v9588, %v9584
        %v9677 = vpack.c.bf16 %v9589, %v9585
        %v9678 = vpack.c.bf16 %v9590, %v9586
        %v9679 = vpack.c.bf16 %v9591, %v9587
        %v9680 = vpack.c.bf16 %v9596, %v9592
        %v9681 = vpack.c.bf16 %v9597, %v9593
        %v9682 = vpack.c.bf16 %v9598, %v9594
        %v9683 = vpack.c.bf16 %v9599, %v9595
        %v9684 = vpack.c.bf16 %v9604, %v9600
        %v9685 = vpack.c.bf16 %v9605, %v9601
        %v9686 = vpack.c.bf16 %v9606, %v9602
        %v9687 = vpack.c.bf16 %v9607, %v9603
        %v9688 = vpack.c.bf16 %v9612, %v9608
        %v9689 = vpack.c.bf16 %v9613, %v9609
        %v9690 = vpack.c.bf16 %v9614, %v9610
        %v9691 = vpack.c.bf16 %v9615, %v9611
        %v9692 = vpack.c.bf16 %v9620, %v9616
        %v9693 = vpack.c.bf16 %v9621, %v9617
        %v9694 = vpack.c.bf16 %v9622, %v9618
        %v9695 = vpack.c.bf16 %v9623, %v9619
        %v9696 = vpack.c.bf16 %v9628, %v9624
        %v9697 = vpack.c.bf16 %v9629, %v9625
        %v9698 = vpack.c.bf16 %v9630, %v9626
        %v9699 = vpack.c.bf16 %v9631, %v9627
        %v9700 = vpack.c.bf16 %v9636, %v9632
        %v9701 = vpack.c.bf16 %v9637, %v9633
        %v9702 = vpack.c.bf16 %v9638, %v9634
        %v9703 = vpack.c.bf16 %v9639, %v9635
        %v9704 = vld [vmem:[%s12] sm:$0xf]
        %v9705 = vld [vmem:[%s12 + $0x4] sm:$0xf]
        %v9706 = vld [vmem:[%s12 + $0x8] sm:$0xf]
        %v9707 = vld [vmem:[%s12 + $0xc] sm:$0xf]
        %v9708 = vld [vmem:[%s12 + $0x10] sm:$0xf]
        %v9709 = vld [vmem:[%s12 + $0x14] sm:$0xf]
        %v9710 = vld [vmem:[%s12 + $0x18] sm:$0xf]
        %v9711 = vld [vmem:[%s12 + $0x1c] sm:$0xf]
        %v9712 = vld [vmem:[%s12 + $0x20] sm:$0xf]
        %v9713 = vld [vmem:[%s12 + $0x24] sm:$0xf]
        %v9714 = vld [vmem:[%s12 + $0x28] sm:$0xf]
        %v9715 = vld [vmem:[%s12 + $0x2c] sm:$0xf]
        %v9716 = vld [vmem:[%s12 + $0x30] sm:$0xf]
        %v9717 = vld [vmem:[%s12 + $0x34] sm:$0xf]
        %v9718 = vld [vmem:[%s12 + $0x38] sm:$0xf]
        %v9719 = vld [vmem:[%s12 + $0x3c] sm:$0xf]
        %v9720 = vld [vmem:[%s12 + $0x40] sm:$0xf]
        %v9721 = vld [vmem:[%s12 + $0x44] sm:$0xf]
        %v9722 = vld [vmem:[%s12 + $0x48] sm:$0xf]
        %v9723 = vld [vmem:[%s12 + $0x4c] sm:$0xf]
        %v9724 = vld [vmem:[%s12 + $0x50] sm:$0xf]
        %v9725 = vld [vmem:[%s12 + $0x54] sm:$0xf]
        %v9726 = vld [vmem:[%s12 + $0x58] sm:$0xf]
        %v9727 = vld [vmem:[%s12 + $0x5c] sm:$0xf]
        %v9728 = vld [vmem:[%s12 + $0x60] sm:$0xf]
        %v9729 = vld [vmem:[%s12 + $0x64] sm:$0xf]
        %v9730 = vld [vmem:[%s12 + $0x68] sm:$0xf]
        %v9731 = vld [vmem:[%s12 + $0x6c] sm:$0xf]
        %v9732 = vld [vmem:[%s12 + $0x70] sm:$0xf]
        %v9733 = vld [vmem:[%s12 + $0x74] sm:$0xf]
        %v9734 = vld [vmem:[%s12 + $0x78] sm:$0xf]
        %v9735 = vld [vmem:[%s12 + $0x7c] sm:$0xf]
        %v9736 = vld [vmem:[%s12 + $0x80] sm:$0xf]
        %v9737 = vld [vmem:[%s12 + $0x84] sm:$0xf]
        %v9738 = vld [vmem:[%s12 + $0x88] sm:$0xf]
        %v9739 = vld [vmem:[%s12 + $0x8c] sm:$0xf]
        %v9740 = vld [vmem:[%s12 + $0x90] sm:$0xf]
        %v9741 = vld [vmem:[%s12 + $0x94] sm:$0xf]
        %v9742 = vld [vmem:[%s12 + $0x98] sm:$0xf]
        %v9743 = vld [vmem:[%s12 + $0x9c] sm:$0xf]
        %v9744 = vld [vmem:[%s12 + $0xa0] sm:$0xf]
        %v9745 = vld [vmem:[%s12 + $0xa4] sm:$0xf]
        %v9746 = vld [vmem:[%s12 + $0xa8] sm:$0xf]
        %v9747 = vld [vmem:[%s12 + $0xac] sm:$0xf]
        %v9748 = vld [vmem:[%s12 + $0xb0] sm:$0xf]
        %v9749 = vld [vmem:[%s12 + $0xb4] sm:$0xf]
        %v9750 = vld [vmem:[%s12 + $0xb8] sm:$0xf]
        %v9751 = vld [vmem:[%s12 + $0xbc] sm:$0xf]
        %v9752 = vld [vmem:[%s12 + $0xc0] sm:$0xf]
        %v9753 = vld [vmem:[%s12 + $0xc4] sm:$0xf]
        %v9754 = vld [vmem:[%s12 + $0xc8] sm:$0xf]
        %v9755 = vld [vmem:[%s12 + $0xcc] sm:$0xf]
        %v9756 = vld [vmem:[%s12 + $0xd0] sm:$0xf]
        %v9757 = vld [vmem:[%s12 + $0xd4] sm:$0xf]
        %v9758 = vld [vmem:[%s12 + $0xd8] sm:$0xf]
        %v9759 = vld [vmem:[%s12 + $0xdc] sm:$0xf]
        %v9760 = vld [vmem:[%s12 + $0xe0] sm:$0xf]
        %v9761 = vld [vmem:[%s12 + $0xe4] sm:$0xf]
        %v9762 = vld [vmem:[%s12 + $0xe8] sm:$0xf]
        %v9763 = vld [vmem:[%s12 + $0xec] sm:$0xf]
        %v9764 = vld [vmem:[%s12 + $0xf0] sm:$0xf]
        %v9765 = vld [vmem:[%s12 + $0xf4] sm:$0xf]
        %v9766 = vld [vmem:[%s12 + $0xf8] sm:$0xf]
        %v9767 = vld [vmem:[%s12 + $0xfc] sm:$0xf]
        %v9768 = vld [vmem:[%s13] sm:$0x1]
        %v9770 = vperm.slane %v9768, 0
        %v9836 = vunpack.c.l.b16 %v9704
        %v9837 = vunpack.c.l.b16 %v9705
        %v9838 = vunpack.c.l.b16 %v9706
        %v9839 = vunpack.c.l.b16 %v9707
        %v9840 = vunpack.c.l.b16 %v9708
        %v9841 = vunpack.c.l.b16 %v9709
        %v9842 = vunpack.c.l.b16 %v9710
        %v9843 = vunpack.c.l.b16 %v9711
        %v9844 = vunpack.c.l.b16 %v9712
        %v9845 = vunpack.c.l.b16 %v9713
        %v9846 = vunpack.c.l.b16 %v9714
        %v9847 = vunpack.c.l.b16 %v9715
        %v9848 = vunpack.c.l.b16 %v9716
        %v9849 = vunpack.c.l.b16 %v9717
        %v9850 = vunpack.c.l.b16 %v9718
        %v9851 = vunpack.c.l.b16 %v9719
        %v9852 = vunpack.c.l.b16 %v9720
        %v9853 = vunpack.c.l.b16 %v9721
        %v9854 = vunpack.c.l.b16 %v9722
        %v9855 = vunpack.c.l.b16 %v9723
        %v9856 = vunpack.c.l.b16 %v9724
        %v9857 = vunpack.c.l.b16 %v9725
        %v9858 = vunpack.c.l.b16 %v9726
        %v9859 = vunpack.c.l.b16 %v9727
        %v9860 = vunpack.c.l.b16 %v9728
        %v9861 = vunpack.c.l.b16 %v9729
        %v9862 = vunpack.c.l.b16 %v9730
        %v9863 = vunpack.c.l.b16 %v9731
        %v9864 = vunpack.c.l.b16 %v9732
        %v9865 = vunpack.c.l.b16 %v9733
        %v9866 = vunpack.c.l.b16 %v9734
        %v9867 = vunpack.c.l.b16 %v9735
        %v9868 = vunpack.c.l.b16 %v9736
        %v9869 = vunpack.c.l.b16 %v9737
        %v9870 = vunpack.c.l.b16 %v9738
        %v9871 = vunpack.c.l.b16 %v9739
        %v9872 = vunpack.c.l.b16 %v9740
        %v9873 = vunpack.c.l.b16 %v9741
        %v9874 = vunpack.c.l.b16 %v9742
        %v9875 = vunpack.c.l.b16 %v9743
        %v9876 = vunpack.c.l.b16 %v9744
        %v9877 = vunpack.c.l.b16 %v9745
        %v9878 = vunpack.c.l.b16 %v9746
        %v9879 = vunpack.c.l.b16 %v9747
        %v9880 = vunpack.c.l.b16 %v9748
        %v9881 = vunpack.c.l.b16 %v9749
        %v9882 = vunpack.c.l.b16 %v9750
        %v9883 = vunpack.c.l.b16 %v9751
        %v9884 = vunpack.c.l.b16 %v9752
        %v9885 = vunpack.c.l.b16 %v9753
        %v9886 = vunpack.c.l.b16 %v9754
        %v9887 = vunpack.c.l.b16 %v9755
        %v9888 = vunpack.c.l.b16 %v9756
        %v9889 = vunpack.c.l.b16 %v9757
        %v9890 = vunpack.c.l.b16 %v9758
        %v9891 = vunpack.c.l.b16 %v9759
        %v9892 = vunpack.c.l.b16 %v9760
        %v9893 = vunpack.c.l.b16 %v9761
        %v9894 = vunpack.c.l.b16 %v9762
        %v9895 = vunpack.c.l.b16 %v9763
        %v9896 = vunpack.c.l.b16 %v9764
        %v9897 = vunpack.c.l.b16 %v9765
        %v9898 = vunpack.c.l.b16 %v9766
        %v9899 = vunpack.c.l.b16 %v9767
        %v9900 = vpack.c.b16 %v9837, %v9836
        %v9901 = vpack.c.b16 %v9839, %v9838
        %v9902 = vpack.c.b16 %v9841, %v9840
        %v9903 = vpack.c.b16 %v9843, %v9842
        %v9904 = vpack.c.b16 %v9845, %v9844
        %v9905 = vpack.c.b16 %v9847, %v9846
        %v9906 = vpack.c.b16 %v9849, %v9848
        %v9907 = vpack.c.b16 %v9851, %v9850
        %v9908 = vpack.c.b16 %v9853, %v9852
        %v9909 = vpack.c.b16 %v9855, %v9854
        %v9910 = vpack.c.b16 %v9857, %v9856
        %v9911 = vpack.c.b16 %v9859, %v9858
        %v9912 = vpack.c.b16 %v9861, %v9860
        %v9913 = vpack.c.b16 %v9863, %v9862
        %v9914 = vpack.c.b16 %v9865, %v9864
        %v9915 = vpack.c.b16 %v9867, %v9866
        %v9916 = vpack.c.b16 %v9869, %v9868
        %v9917 = vpack.c.b16 %v9871, %v9870
        %v9918 = vpack.c.b16 %v9873, %v9872
        %v9919 = vpack.c.b16 %v9875, %v9874
        %v9920 = vpack.c.b16 %v9877, %v9876
        %v9921 = vpack.c.b16 %v9879, %v9878
        %v9922 = vpack.c.b16 %v9881, %v9880
        %v9923 = vpack.c.b16 %v9883, %v9882
        %v9924 = vpack.c.b16 %v9885, %v9884
        %v9925 = vpack.c.b16 %v9887, %v9886
        %v9926 = vpack.c.b16 %v9889, %v9888
        %v9927 = vpack.c.b16 %v9891, %v9890
        %v9928 = vpack.c.b16 %v9893, %v9892
        %v9929 = vpack.c.b16 %v9895, %v9894
        %v9930 = vpack.c.b16 %v9897, %v9896
        %v9931 = vpack.c.b16 %v9899, %v9898
        %9964 = vmatpush.bf16.msra.mxu0 %v9907
        %9965 = vmatpush.bf16.msra.mxu0 %v9906
        %9966 = vmatpush.bf16.msra.mxu0 %v9905
        %9967 = vmatpush.bf16.msra.mxu0 %v9904
        %9968 = vmatpush.bf16.msra.mxu0 %v9903
        %9969 = vmatpush.bf16.msra.mxu0 %v9902
        %9970 = vmatpush.bf16.msra.mxu0 %v9901
        %9971 = vmatpush.bf16.msra.mxu0 %v9900
        %9972 = vmatmul.bf16.gmra.mxu0 %v9640
        %v9973 = vpop.f32.mrf.mxu0
        %v9974 = vadd.f32 %v9770, %v9973
        %v9975 = vpop.f32.mrf.mxu0
        %v9976 = vadd.f32 %v9770, %v9975
        %9977 = vmatmul.bf16.gmra.mxu0 %v9644
        %v9978 = vpop.f32.mrf.mxu0
        %v9979 = vadd.f32 %v9770, %v9978
        %v9980 = vpop.f32.mrf.mxu0
        %v9981 = vadd.f32 %v9770, %v9980
        %9982 = vmatmul.bf16.gmra.mxu0 %v9648
        %v9983 = vpop.f32.mrf.mxu0
        %v9984 = vadd.f32 %v9770, %v9983
        %v9985 = vpop.f32.mrf.mxu0
        %v9986 = vadd.f32 %v9770, %v9985
        %9987 = vmatmul.bf16.gmra.mxu0 %v9652
        %v9988 = vpop.f32.mrf.mxu0
        %v9989 = vadd.f32 %v9770, %v9988
        %v9990 = vpop.f32.mrf.mxu0
        %v9991 = vadd.f32 %v9770, %v9990
        %9992 = vmatmul.bf16.gmra.mxu0 %v9656
        %v9993 = vpop.f32.mrf.mxu0
        %v9994 = vadd.f32 %v9770, %v9993
        %v9995 = vpop.f32.mrf.mxu0
        %v9996 = vadd.f32 %v9770, %v9995
        %9997 = vmatmul.bf16.gmra.mxu0 %v9660
        %v9998 = vpop.f32.mrf.mxu0
        %v9999 = vadd.f32 %v9770, %v9998
        %v10000 = vpop.f32.mrf.mxu0
        %v10001 = vadd.f32 %v9770, %v10000
        %10002 = vmatmul.bf16.gmra.mxu0 %v9664
        %v10003 = vpop.f32.mrf.mxu0
        %v10004 = vadd.f32 %v9770, %v10003
        %v10005 = vpop.f32.mrf.mxu0
        %v10006 = vadd.f32 %v9770, %v10005
        %10007 = vmatmul.bf16.gmra.mxu0 %v9668
        %v10008 = vpop.f32.mrf.mxu0
        %v10009 = vadd.f32 %v9770, %v10008
        %v10010 = vpop.f32.mrf.mxu0
        %v10011 = vadd.f32 %v9770, %v10010
        %10012 = vmatmul.bf16.gmra.mxu0 %v9672
        %v10013 = vpop.f32.mrf.mxu0
        %v10014 = vadd.f32 %v9770, %v10013
        %v10015 = vpop.f32.mrf.mxu0
        %v10016 = vadd.f32 %v9770, %v10015
        %10017 = vmatmul.bf16.gmra.mxu0 %v9676
        %v10018 = vpop.f32.mrf.mxu0
        %v10019 = vadd.f32 %v9770, %v10018
        %v10020 = vpop.f32.mrf.mxu0
        %v10021 = vadd.f32 %v9770, %v10020
        %10022 = vmatmul.bf16.gmra.mxu0 %v9680
        %v10023 = vpop.f32.mrf.mxu0
        %v10024 = vadd.f32 %v9770, %v10023
        %v10025 = vpop.f32.mrf.mxu0
        %v10026 = vadd.f32 %v9770, %v10025
        %10027 = vmatmul.bf16.gmra.mxu0 %v9684
        %v10028 = vpop.f32.mrf.mxu0
        %v10029 = vadd.f32 %v9770, %v10028
        %v10030 = vpop.f32.mrf.mxu0
        %v10031 = vadd.f32 %v9770, %v10030
        %10032 = vmatmul.bf16.gmra.mxu0 %v9688
        %v10033 = vpop.f32.mrf.mxu0
        %v10034 = vadd.f32 %v9770, %v10033
        %v10035 = vpop.f32.mrf.mxu0
        %v10036 = vadd.f32 %v9770, %v10035
        %10037 = vmatmul.bf16.gmra.mxu0 %v9692
        %v10038 = vpop.f32.mrf.mxu0
        %v10039 = vadd.f32 %v9770, %v10038
        %v10040 = vpop.f32.mrf.mxu0
        %v10041 = vadd.f32 %v9770, %v10040
        %10042 = vmatmul.bf16.gmra.mxu0 %v9696
        %v10043 = vpop.f32.mrf.mxu0
        %v10044 = vadd.f32 %v9770, %v10043
        %v10045 = vpop.f32.mrf.mxu0
        %v10046 = vadd.f32 %v9770, %v10045
        %10047 = vmatmul.bf16.gmra.mxu0 %v9700
        %v10048 = vpop.f32.mrf.mxu0
        %v10049 = vadd.f32 %v9770, %v10048
        %v10050 = vpop.f32.mrf.mxu0
        %v10051 = vadd.f32 %v9770, %v10050
        %10052 = vdwg.mxu0
        %10053 = vmatpush.bf16.msra.mxu0 %v9915
        %10054 = vmatpush.bf16.msra.mxu0 %v9914
        %10055 = vmatpush.bf16.msra.mxu0 %v9913
        %10056 = vmatpush.bf16.msra.mxu0 %v9912
        %10057 = vmatpush.bf16.msra.mxu0 %v9911
        %10058 = vmatpush.bf16.msra.mxu0 %v9910
        %10059 = vmatpush.bf16.msra.mxu0 %v9909
        %10060 = vmatpush.bf16.msra.mxu0 %v9908
        %10061 = vmatmul.bf16.gmra.mxu0 %v9641
        %v10062 = vpop.f32.mrf.mxu0
        %v10063 = vadd.f32 %v9974, %v10062
        %v10064 = vpop.f32.mrf.mxu0
        %v10065 = vadd.f32 %v9976, %v10064
        %10066 = vmatmul.bf16.gmra.mxu0 %v9645
        %v10067 = vpop.f32.mrf.mxu0
        %v10068 = vadd.f32 %v9979, %v10067
        %v10069 = vpop.f32.mrf.mxu0
        %v10070 = vadd.f32 %v9981, %v10069
        %10071 = vmatmul.bf16.gmra.mxu0 %v9649
        %v10072 = vpop.f32.mrf.mxu0
        %v10073 = vadd.f32 %v9984, %v10072
        %v10074 = vpop.f32.mrf.mxu0
        %v10075 = vadd.f32 %v9986, %v10074
        %10076 = vmatmul.bf16.gmra.mxu0 %v9653
        %v10077 = vpop.f32.mrf.mxu0
        %v10078 = vadd.f32 %v9989, %v10077
        %v10079 = vpop.f32.mrf.mxu0
        %v10080 = vadd.f32 %v9991, %v10079
        %10081 = vmatmul.bf16.gmra.mxu0 %v9657
        %v10082 = vpop.f32.mrf.mxu0
        %v10083 = vadd.f32 %v9994, %v10082
        %v10084 = vpop.f32.mrf.mxu0
        %v10085 = vadd.f32 %v9996, %v10084
        %10086 = vmatmul.bf16.gmra.mxu0 %v9661
        %v10087 = vpop.f32.mrf.mxu0
        %v10088 = vadd.f32 %v9999, %v10087
        %v10089 = vpop.f32.mrf.mxu0
        %v10090 = vadd.f32 %v10001, %v10089
        %10091 = vmatmul.bf16.gmra.mxu0 %v9665
        %v10092 = vpop.f32.mrf.mxu0
        %v10093 = vadd.f32 %v10004, %v10092
        %v10094 = vpop.f32.mrf.mxu0
        %v10095 = vadd.f32 %v10006, %v10094
        %10096 = vmatmul.bf16.gmra.mxu0 %v9669
        %v10097 = vpop.f32.mrf.mxu0
        %v10098 = vadd.f32 %v10009, %v10097
        %v10099 = vpop.f32.mrf.mxu0
        %v10100 = vadd.f32 %v10011, %v10099
        %10101 = vmatmul.bf16.gmra.mxu0 %v9673
        %v10102 = vpop.f32.mrf.mxu0
        %v10103 = vadd.f32 %v10014, %v10102
        %v10104 = vpop.f32.mrf.mxu0
        %v10105 = vadd.f32 %v10016, %v10104
        %10106 = vmatmul.bf16.gmra.mxu0 %v9677
        %v10107 = vpop.f32.mrf.mxu0
        %v10108 = vadd.f32 %v10019, %v10107
        %v10109 = vpop.f32.mrf.mxu0
        %v10110 = vadd.f32 %v10021, %v10109
        %10111 = vmatmul.bf16.gmra.mxu0 %v9681
        %v10112 = vpop.f32.mrf.mxu0
        %v10113 = vadd.f32 %v10024, %v10112
        %v10114 = vpop.f32.mrf.mxu0
        %v10115 = vadd.f32 %v10026, %v10114
        %10116 = vmatmul.bf16.gmra.mxu0 %v9685
        %v10117 = vpop.f32.mrf.mxu0
        %v10118 = vadd.f32 %v10029, %v10117
        %v10119 = vpop.f32.mrf.mxu0
        %v10120 = vadd.f32 %v10031, %v10119
        %10121 = vmatmul.bf16.gmra.mxu0 %v9689
        %v10122 = vpop.f32.mrf.mxu0
        %v10123 = vadd.f32 %v10034, %v10122
        %v10124 = vpop.f32.mrf.mxu0
        %v10125 = vadd.f32 %v10036, %v10124
        %10126 = vmatmul.bf16.gmra.mxu0 %v9693
        %v10127 = vpop.f32.mrf.mxu0
        %v10128 = vadd.f32 %v10039, %v10127
        %v10129 = vpop.f32.mrf.mxu0
        %v10130 = vadd.f32 %v10041, %v10129
        %10131 = vmatmul.bf16.gmra.mxu0 %v9697
        %v10132 = vpop.f32.mrf.mxu0
        %v10133 = vadd.f32 %v10044, %v10132
        %v10134 = vpop.f32.mrf.mxu0
        %v10135 = vadd.f32 %v10046, %v10134
        %10136 = vmatmul.bf16.gmra.mxu0 %v9701
        %v10137 = vpop.f32.mrf.mxu0
        %v10138 = vadd.f32 %v10049, %v10137
        %v10139 = vpop.f32.mrf.mxu0
        %v10140 = vadd.f32 %v10051, %v10139
        %10141 = vdwg.mxu0
        %10142 = vmatpush.bf16.msra.mxu0 %v9923
        %10143 = vmatpush.bf16.msra.mxu0 %v9922
        %10144 = vmatpush.bf16.msra.mxu0 %v9921
        %10145 = vmatpush.bf16.msra.mxu0 %v9920
        %10146 = vmatpush.bf16.msra.mxu0 %v9919
        %10147 = vmatpush.bf16.msra.mxu0 %v9918
        %10148 = vmatpush.bf16.msra.mxu0 %v9917
        %10149 = vmatpush.bf16.msra.mxu0 %v9916
        %10150 = vmatmul.bf16.gmra.mxu0 %v9642
        %v10151 = vpop.f32.mrf.mxu0
        %v10152 = vadd.f32 %v10063, %v10151
        %v10153 = vpop.f32.mrf.mxu0
        %v10154 = vadd.f32 %v10065, %v10153
        %10155 = vmatmul.bf16.gmra.mxu0 %v9646
        %v10156 = vpop.f32.mrf.mxu0
        %v10157 = vadd.f32 %v10068, %v10156
        %v10158 = vpop.f32.mrf.mxu0
        %v10159 = vadd.f32 %v10070, %v10158
        %10160 = vmatmul.bf16.gmra.mxu0 %v9650
        %v10161 = vpop.f32.mrf.mxu0
        %v10162 = vadd.f32 %v10073, %v10161
        %v10163 = vpop.f32.mrf.mxu0
        %v10164 = vadd.f32 %v10075, %v10163
        %10165 = vmatmul.bf16.gmra.mxu0 %v9654
        %v10166 = vpop.f32.mrf.mxu0
        %v10167 = vadd.f32 %v10078, %v10166
        %v10168 = vpop.f32.mrf.mxu0
        %v10169 = vadd.f32 %v10080, %v10168
        %10170 = vmatmul.bf16.gmra.mxu0 %v9658
        %v10171 = vpop.f32.mrf.mxu0
        %v10172 = vadd.f32 %v10083, %v10171
        %v10173 = vpop.f32.mrf.mxu0
        %v10174 = vadd.f32 %v10085, %v10173
        %10175 = vmatmul.bf16.gmra.mxu0 %v9662
        %v10176 = vpop.f32.mrf.mxu0
        %v10177 = vadd.f32 %v10088, %v10176
        %v10178 = vpop.f32.mrf.mxu0
        %v10179 = vadd.f32 %v10090, %v10178
        %10180 = vmatmul.bf16.gmra.mxu0 %v9666
        %v10181 = vpop.f32.mrf.mxu0
        %v10182 = vadd.f32 %v10093, %v10181
        %v10183 = vpop.f32.mrf.mxu0
        %v10184 = vadd.f32 %v10095, %v10183
        %10185 = vmatmul.bf16.gmra.mxu0 %v9670
        %v10186 = vpop.f32.mrf.mxu0
        %v10187 = vadd.f32 %v10098, %v10186
        %v10188 = vpop.f32.mrf.mxu0
        %v10189 = vadd.f32 %v10100, %v10188
        %10190 = vmatmul.bf16.gmra.mxu0 %v9674
        %v10191 = vpop.f32.mrf.mxu0
        %v10192 = vadd.f32 %v10103, %v10191
        %v10193 = vpop.f32.mrf.mxu0
        %v10194 = vadd.f32 %v10105, %v10193
        %10195 = vmatmul.bf16.gmra.mxu0 %v9678
        %v10196 = vpop.f32.mrf.mxu0
        %v10197 = vadd.f32 %v10108, %v10196
        %v10198 = vpop.f32.mrf.mxu0
        %v10199 = vadd.f32 %v10110, %v10198
        %10200 = vmatmul.bf16.gmra.mxu0 %v9682
        %v10201 = vpop.f32.mrf.mxu0
        %v10202 = vadd.f32 %v10113, %v10201
        %v10203 = vpop.f32.mrf.mxu0
        %v10204 = vadd.f32 %v10115, %v10203
        %10205 = vmatmul.bf16.gmra.mxu0 %v9686
        %v10206 = vpop.f32.mrf.mxu0
        %v10207 = vadd.f32 %v10118, %v10206
        %v10208 = vpop.f32.mrf.mxu0
        %v10209 = vadd.f32 %v10120, %v10208
        %10210 = vmatmul.bf16.gmra.mxu0 %v9690
        %v10211 = vpop.f32.mrf.mxu0
        %v10212 = vadd.f32 %v10123, %v10211
        %v10213 = vpop.f32.mrf.mxu0
        %v10214 = vadd.f32 %v10125, %v10213
        %10215 = vmatmul.bf16.gmra.mxu0 %v9694
        %v10216 = vpop.f32.mrf.mxu0
        %v10217 = vadd.f32 %v10128, %v10216
        %v10218 = vpop.f32.mrf.mxu0
        %v10219 = vadd.f32 %v10130, %v10218
        %10220 = vmatmul.bf16.gmra.mxu0 %v9698
        %v10221 = vpop.f32.mrf.mxu0
        %v10222 = vadd.f32 %v10133, %v10221
        %v10223 = vpop.f32.mrf.mxu0
        %v10224 = vadd.f32 %v10135, %v10223
        %10225 = vmatmul.bf16.gmra.mxu0 %v9702
        %v10226 = vpop.f32.mrf.mxu0
        %v10227 = vadd.f32 %v10138, %v10226
        %v10228 = vpop.f32.mrf.mxu0
        %v10229 = vadd.f32 %v10140, %v10228
        %10230 = vdwg.mxu0
        %10231 = vmatpush.bf16.msra.mxu0 %v9931
        %10232 = vmatpush.bf16.msra.mxu0 %v9930
        %10233 = vmatpush.bf16.msra.mxu0 %v9929
        %10234 = vmatpush.bf16.msra.mxu0 %v9928
        %10235 = vmatpush.bf16.msra.mxu0 %v9927
        %10236 = vmatpush.bf16.msra.mxu0 %v9926
        %10237 = vmatpush.bf16.msra.mxu0 %v9925
        %10238 = vmatpush.bf16.msra.mxu0 %v9924
        %10239 = vmatmul.bf16.gmra.mxu0 %v9643
        %v10240 = vpop.f32.mrf.mxu0
        %v10241 = vadd.f32 %v10152, %v10240
        %v10242 = vpop.f32.mrf.mxu0
        %v10243 = vadd.f32 %v10154, %v10242
        %10244 = vmatmul.bf16.gmra.mxu0 %v9647
        %v10245 = vpop.f32.mrf.mxu0
        %v10246 = vadd.f32 %v10157, %v10245
        %v10247 = vpop.f32.mrf.mxu0
        %v10248 = vadd.f32 %v10159, %v10247
        %10249 = vmatmul.bf16.gmra.mxu0 %v9651
        %v10250 = vpop.f32.mrf.mxu0
        %v10251 = vadd.f32 %v10162, %v10250
        %v10252 = vpop.f32.mrf.mxu0
        %v10253 = vadd.f32 %v10164, %v10252
        %10254 = vmatmul.bf16.gmra.mxu0 %v9655
        %v10255 = vpop.f32.mrf.mxu0
        %v10256 = vadd.f32 %v10167, %v10255
        %v10257 = vpop.f32.mrf.mxu0
        %v10258 = vadd.f32 %v10169, %v10257
        %10259 = vmatmul.bf16.gmra.mxu0 %v9659
        %v10260 = vpop.f32.mrf.mxu0
        %v10261 = vadd.f32 %v10172, %v10260
        %v10262 = vpop.f32.mrf.mxu0
        %v10263 = vadd.f32 %v10174, %v10262
        %10264 = vmatmul.bf16.gmra.mxu0 %v9663
        %v10265 = vpop.f32.mrf.mxu0
        %v10266 = vadd.f32 %v10177, %v10265
        %v10267 = vpop.f32.mrf.mxu0
        %v10268 = vadd.f32 %v10179, %v10267
        %10269 = vmatmul.bf16.gmra.mxu0 %v9667
        %v10270 = vpop.f32.mrf.mxu0
        %v10271 = vadd.f32 %v10182, %v10270
        %v10272 = vpop.f32.mrf.mxu0
        %v10273 = vadd.f32 %v10184, %v10272
        %10274 = vmatmul.bf16.gmra.mxu0 %v9671
        %v10275 = vpop.f32.mrf.mxu0
        %v10276 = vadd.f32 %v10187, %v10275
        %v10277 = vpop.f32.mrf.mxu0
        %v10278 = vadd.f32 %v10189, %v10277
        %10279 = vmatmul.bf16.gmra.mxu0 %v9675
        %v10280 = vpop.f32.mrf.mxu0
        %v10281 = vadd.f32 %v10192, %v10280
        %v10282 = vpop.f32.mrf.mxu0
        %v10283 = vadd.f32 %v10194, %v10282
        %10284 = vmatmul.bf16.gmra.mxu0 %v9679
        %v10285 = vpop.f32.mrf.mxu0
        %v10286 = vadd.f32 %v10197, %v10285
        %v10287 = vpop.f32.mrf.mxu0
        %v10288 = vadd.f32 %v10199, %v10287
        %10289 = vmatmul.bf16.gmra.mxu0 %v9683
        %v10290 = vpop.f32.mrf.mxu0
        %v10291 = vadd.f32 %v10202, %v10290
        %v10292 = vpop.f32.mrf.mxu0
        %v10293 = vadd.f32 %v10204, %v10292
        %10294 = vmatmul.bf16.gmra.mxu0 %v9687
        %v10295 = vpop.f32.mrf.mxu0
        %v10296 = vadd.f32 %v10207, %v10295
        %v10297 = vpop.f32.mrf.mxu0
        %v10298 = vadd.f32 %v10209, %v10297
        %10299 = vmatmul.bf16.gmra.mxu0 %v9691
        %v10300 = vpop.f32.mrf.mxu0
        %v10301 = vadd.f32 %v10212, %v10300
        %v10302 = vpop.f32.mrf.mxu0
        %v10303 = vadd.f32 %v10214, %v10302
        %10304 = vmatmul.bf16.gmra.mxu0 %v9695
        %v10305 = vpop.f32.mrf.mxu0
        %v10306 = vadd.f32 %v10217, %v10305
        %v10307 = vpop.f32.mrf.mxu0
        %v10308 = vadd.f32 %v10219, %v10307
        %10309 = vmatmul.bf16.gmra.mxu0 %v9699
        %v10310 = vpop.f32.mrf.mxu0
        %v10311 = vadd.f32 %v10222, %v10310
        %v10312 = vpop.f32.mrf.mxu0
        %v10313 = vadd.f32 %v10224, %v10312
        %10314 = vmatmul.bf16.gmra.mxu0 %v9703
        %v10315 = vpop.f32.mrf.mxu0
        %v10316 = vadd.f32 %v10227, %v10315
        %v10317 = vpop.f32.mrf.mxu0
        %v10318 = vadd.f32 %v10229, %v10317
        %10319 = vdwg.mxu0
        %v10320 = vadd.f32 %v7170, %v10241
        %v10321 = vadd.f32 %v7171, %v10243
        %v10322 = vadd.f32 %v7172, %v10246
        %v10323 = vadd.f32 %v7173, %v10248
        %v10324 = vadd.f32 %v7174, %v10251
        %v10325 = vadd.f32 %v7175, %v10253
        %v10326 = vadd.f32 %v7176, %v10256
        %v10327 = vadd.f32 %v7177, %v10258
        %v10328 = vadd.f32 %v7178, %v10261
        %v10329 = vadd.f32 %v7179, %v10263
        %v10330 = vadd.f32 %v7180, %v10266
        %v10331 = vadd.f32 %v7181, %v10268
        %v10332 = vadd.f32 %v7182, %v10271
        %v10333 = vadd.f32 %v7183, %v10273
        %v10334 = vadd.f32 %v7184, %v10276
        %v10335 = vadd.f32 %v7185, %v10278
        %v10336 = vadd.f32 %v7186, %v10281
        %v10337 = vadd.f32 %v7187, %v10283
        %v10338 = vadd.f32 %v7188, %v10286
        %v10339 = vadd.f32 %v7189, %v10288
        %v10340 = vadd.f32 %v7190, %v10291
        %v10341 = vadd.f32 %v7191, %v10293
        %v10342 = vadd.f32 %v7192, %v10296
        %v10343 = vadd.f32 %v7193, %v10298
        %v10344 = vadd.f32 %v7194, %v10301
        %v10345 = vadd.f32 %v7195, %v10303
        %v10346 = vadd.f32 %v7196, %v10306
        %v10347 = vadd.f32 %v7197, %v10308
        %v10348 = vadd.f32 %v7198, %v10311
        %v10349 = vadd.f32 %v7199, %v10313
        %v10350 = vadd.f32 %v7200, %v10316
        %v10351 = vadd.f32 %v7201, %v10318
        %10352 = vst [vmem:[%s463] sm:$0xff] %v10320
        %10353 = vst [vmem:[%s463 + $0x8] sm:$0xff] %v10321
        %10354 = vst [vmem:[%s463 + $0x10] sm:$0xff] %v10322
        %10355 = vst [vmem:[%s463 + $0x18] sm:$0xff] %v10323
        %10356 = vst [vmem:[%s463 + $0x20] sm:$0xff] %v10324
        %10357 = vst [vmem:[%s463 + $0x28] sm:$0xff] %v10325
        %10358 = vst [vmem:[%s463 + $0x30] sm:$0xff] %v10326
        %10359 = vst [vmem:[%s463 + $0x38] sm:$0xff] %v10327
        %10360 = vst [vmem:[%s463 + $0x40] sm:$0xff] %v10328
        %10361 = vst [vmem:[%s463 + $0x48] sm:$0xff] %v10329
        %10362 = vst [vmem:[%s463 + $0x50] sm:$0xff] %v10330
        %10363 = vst [vmem:[%s463 + $0x58] sm:$0xff] %v10331
        %10364 = vst [vmem:[%s463 + $0x60] sm:$0xff] %v10332
        %10365 = vst [vmem:[%s463 + $0x68] sm:$0xff] %v10333
        %10366 = vst [vmem:[%s463 + $0x70] sm:$0xff] %v10334
        %10367 = vst [vmem:[%s463 + $0x78] sm:$0xff] %v10335
        %10368 = vst [vmem:[%s463 + $0x80] sm:$0xff] %v10336
        %10369 = vst [vmem:[%s463 + $0x88] sm:$0xff] %v10337
        %10370 = vst [vmem:[%s463 + $0x90] sm:$0xff] %v10338
        %10371 = vst [vmem:[%s463 + $0x98] sm:$0xff] %v10339
        %10372 = vst [vmem:[%s463 + $0xa0] sm:$0xff] %v10340
        %10373 = vst [vmem:[%s463 + $0xa8] sm:$0xff] %v10341
        %10374 = vst [vmem:[%s463 + $0xb0] sm:$0xff] %v10342
        %10375 = vst [vmem:[%s463 + $0xb8] sm:$0xff] %v10343
        %10376 = vst [vmem:[%s463 + $0xc0] sm:$0xff] %v10344
        %10377 = vst [vmem:[%s463 + $0xc8] sm:$0xff] %v10345
        %10378 = vst [vmem:[%s463 + $0xd0] sm:$0xff] %v10346
        %10379 = vst [vmem:[%s463 + $0xd8] sm:$0xff] %v10347
        %10380 = vst [vmem:[%s463 + $0xe0] sm:$0xff] %v10348
        %10381 = vst [vmem:[%s463 + $0xe8] sm:$0xff] %v10349
        %10382 = vst [vmem:[%s463 + $0xf0] sm:$0xff] %v10350
        %10383 = vst [vmem:[%s463 + $0xf8] sm:$0xff] %v10351
        %s10384 = sand.u32 %s335, 1
        %s10385 = scalar_lea.sflag [#allocation3], %s10384
        %s10386 = sand.u32 %s335, 1
        %s10387 = smul.addr %s10386, 256
        %s10388 = scalar_lea.vmem [#allocation2], %s10387
        // Predicated region
        $region77: #{partition_attention_2d_forward.1} parent=75 // pred_check
          %p10389 = pneg %p345
        $region78: #{partition_attention_2d_forward.1} parent=75 // pred_check_branch
          %10391 = sbr.rel (%p10389) target = $region80
        $region79: #{partition_attention_2d_forward.1} parent=75 // pred_region
          %s10392 = smul.u32 16, %s28
          %10394 = vsyncadd %s10385, 0
          %s10395 = smul.addr %s10392, 2
          %s10396 = smul.addr %s10395, 8
          %s10397 = scalar_lea.hbm %s14, %s10396
          %s10398 = sshll.u32 %s10388, 4
          %s10399 = int_to_ptr.vmem [resolvable:$true] %s10398
          %s10400 = sshll.u32 %s10397, 4
          %s10401 = int_to_ptr.hbm [resolvable:$true] %s10400
          %10406 = dma.vmem_to_hbm [thread:$0]  %s10399, 4096, %s10401, %s10385, 128, 128, 8
        $region80: #{partition_attention_2d_forward.1} parent=75 // pred_fallthru
          _
      $region76: #{partition_attention_2d_forward.1} parent=5 // pred_fallthru
        _
      %p10407 = scmp.le.s32.totalorder 2, %s23
      // Predicated region
      $region81: #{partition_attention_2d_forward.1} parent=5 // pred_check
        %p10408 = pneg %p10407
      $region82: #{partition_attention_2d_forward.1} parent=5 // pred_check_branch
        %10410 = sbr.rel (%p10408) target = $region84
      $region83: #{partition_attention_2d_forward.1} parent=5 // pred_region
        %s10411 = ssub.s32 %s23, 2
        // Predicated region
        $region85: #{partition_attention_2d_forward.1} parent=83 // pred_check
          %p10412 = pneg %p351
        $region86: #{partition_attention_2d_forward.1} parent=83 // pred_check_branch
          %10414 = sbr.rel (%p10412) target = $region88
        $region87: #{partition_attention_2d_forward.1} parent=83 // pred_region
          %s10415 = sand.u32 %s336, 1
          %s10416 = scalar_lea.sflag [#allocation3], %s10415
          %s10417 = sand.u32 %s336, 1
          %s10418 = smul.addr %s10417, 256
          %s10419 = scalar_lea.vmem [#allocation2], %s10418
          %10421 = dma.done %s10416, 4096
        $region88: #{partition_attention_2d_forward.1} parent=83 // pred_fallthru
          _
      $region84: #{partition_attention_2d_forward.1} parent=5 // pred_fallthru
        _
    $region6: #{partition_attention_2d_forward.1} parent=1 // loop_footer
      %s27 = sadd.s32 1, %s23
    $region7: #{partition_attention_2d_forward.1} parent=1 // loop_footer_branch
      %22 = sbr.rel target = $region3
    $region8: #{partition_attention_2d_forward.1} parent=1 // loop_exit
      _
    %10422 = vsyncpa [#allocation3], 1
    %s10423 = scalar_lea.sflag [#allocation3], 1
    %10424 = vsyncpa %s10423, 1

</llo_original>
